<compile_context>
chip_gen: v7x
topology: tpu7x:2x2x1
jax: 0.10.0
libtpu: 0.0.40
codegen_flags: <defaults>
</compile_context>

<pallas_src>
import jax
import jax.numpy as jnp
from jax.experimental import pallas as pl
from jax.experimental.pallas import tpu as pltpu

LATENT_DIM = 32
BATCH = 8
BN_EPS = 0.8
LRELU_SLOPE = 0.2
OUT_DIM = 1204
PADDED = ((OUT_DIM + 127) // 128) * 128          # 1280
W5_K = 1024
W5_CHUNK = 256                                   # rows per w5 DMA chunk
W5_NCHUNK = W5_K // W5_CHUNK                     # 4


def _leaky_relu(x):
    return jnp.where(x > 0, x, LRELU_SLOPE * x)


def _bn_lrelu(x, gamma, beta, eps):
    """Training-mode BatchNorm1d (batch mean / biased variance) folded into a
    single scale/shift, followed by LeakyReLU(0.2).  `eps` may be a scalar or
    a per-channel [1,C] vector (used to fold int8 per-channel weight scales
    exactly into BN)."""
    mean = jnp.mean(x, axis=0, keepdims=True)
    d = x - mean
    var = jnp.mean(d * d, axis=0, keepdims=True)
    scale = gamma * jax.lax.rsqrt(var + eps)
    return _leaky_relu(d * scale + beta)


def generator_kernel(
    z_ref,
    w1_ref, b1_ref,
    w2_ref, g2_ref, be2_ref,
    w3_ref, g3_ref, be3_ref,
    w4_hbm, g4_ref, be4_ref, eps4_ref,
    w5_hbm, s5_ref, b5_ref,
    out_ref,
    w4_q, w4_bf, w5_q, w5_bf, sems,
):
    is_first = pl.program_id(0) == 0

    # DMA descriptors (no ops emitted until .start()/.wait()).
    cp4 = pltpu.make_async_copy(w4_hbm, w4_q, sems.at[0])
    cp5 = [
        pltpu.make_async_copy(
            w5_hbm.at[pl.ds(c * W5_CHUNK, W5_CHUNK), :],
            w5_q.at[pl.ds(c * W5_CHUNK, W5_CHUNK), :],
            sems.at[1 + c],
        )
        for c in range(W5_NCHUNK)
    ]

    # Stream the two big int8 weight matrices only once per call (grid step 0);
    # the VMEM scratch (and the dequantized bf16 copies) persist across the
    # remaining batch groups.  w4 is issued first so it arrives first.
    @pl.when(is_first)
    def _start_weight_streams():
        cp4.start()
        for cp in cp5:
            cp.start()

    # ---- block(L, 128, normalize=False) ----
    h = jnp.dot(z_ref[...].astype(jnp.bfloat16), w1_ref[...],
                preferred_element_type=jnp.float32) + b1_ref[...]
    h = _leaky_relu(h)

    # ---- block(128, 256)  (bias cancelled by training-mode BN) ----
    h = jnp.dot(h.astype(jnp.bfloat16), w2_ref[...],
                preferred_element_type=jnp.float32)
    h = _bn_lrelu(h, g2_ref[...], be2_ref[...], BN_EPS)

    # ---- block(256, 512) ----
    h = jnp.dot(h.astype(jnp.bfloat16), w3_ref[...],
                preferred_element_type=jnp.float32)
    h = _bn_lrelu(h, g3_ref[...], be3_ref[...], BN_EPS)

    # ---- block(512, 1024): int8 weights, per-channel scale folded into eps --
    @pl.when(is_first)
    def _materialize_w4():
        cp4.wait()
        w4_bf[...] = w4_q[...].astype(jnp.bfloat16)

    h = jnp.dot(h.astype(jnp.bfloat16), w4_bf[...],
                preferred_element_type=jnp.float32)
    h = _bn_lrelu(h, g4_ref[...], be4_ref[...], eps4_ref[...])

    # ---- Linear(1024, 1204->1280 padded) -> Tanh ----
    # w5 arrives in row chunks: dequant of chunk c overlaps the DMA of the
    # remaining chunks; the per-chunk partial dot accumulates in f32.
    h_bf = h.astype(jnp.bfloat16)
    o = jnp.zeros((h.shape[0], PADDED), jnp.float32)
    for c in range(W5_NCHUNK):
        r0 = c * W5_CHUNK

        @pl.when(is_first)
        def _materialize_w5_chunk(c=c, r0=r0):
            cp5[c].wait()
            w5_bf[pl.ds(r0, W5_CHUNK), :] = (
                w5_q[pl.ds(r0, W5_CHUNK), :].astype(jnp.bfloat16))

        o = o + jnp.dot(h_bf[:, r0:r0 + W5_CHUNK],
                        w5_bf[pl.ds(r0, W5_CHUNK), :],
                        preferred_element_type=jnp.float32)

    # Per-output-channel int8 dequant scale + bias, then tanh (EUP).
    out_ref[...] = jnp.tanh(o * s5_ref[...] + b5_ref[...])


@jax.jit
def _generator_pallas(z, w1, b1, w2, g2, be2, w3, g3, be3,
                      w4_q, g4, be4, eps4, w5_q, s5, b5):
    G, B, L = z.shape

    def const_spec(a):
        return pl.BlockSpec(a.shape, lambda g: (0,) * a.ndim)

    hbm = pl.BlockSpec(memory_space=pl.ANY)

    out = pl.pallas_call(
        generator_kernel,
        grid=(G,),
        out_shape=jax.ShapeDtypeStruct((G, B, PADDED), jnp.float32),
        in_specs=[
            pl.BlockSpec((None, B, L), lambda g: (g, 0, 0)),   # z (per group)
            const_spec(w1), const_spec(b1),
            const_spec(w2), const_spec(g2), const_spec(be2),
            const_spec(w3), const_spec(g3), const_spec(be3),
            hbm, const_spec(g4), const_spec(be4), const_spec(eps4),
            hbm, const_spec(s5), const_spec(b5),
        ],
        out_specs=pl.BlockSpec((None, B, PADDED), lambda g: (g, 0, 0)),
        scratch_shapes=[
            pltpu.VMEM((512, 1024), jnp.int8),       # w4 int8 staging
            pltpu.VMEM((512, 1024), jnp.bfloat16),   # w4 dequantized
            pltpu.VMEM((W5_K, PADDED), jnp.int8),    # w5 int8 staging
            pltpu.VMEM((W5_K, PADDED), jnp.bfloat16),# w5 dequantized
            pltpu.SemaphoreType.DMA((1 + W5_NCHUNK,)),
        ],
        compiler_params=pltpu.CompilerParams(
            # "arbitrary": the step-0-only weight DMA/dequant requires the
            # grid to be visited sequentially on one core.
            dimension_semantics=("arbitrary",),
            vmem_limit_bytes=16 << 20,
        ),
    )(z, w1, b1, w2, g2, be2, w3, g3, be3, w4_q, g4, be4, eps4, w5_q, s5, b5)

    return out[..., :OUT_DIM]


def generator_forward(z, kparams):
    """z: [B, latent] (exactly the nn.Module forward) or [G, B, latent]
    (G independent batches in one call; the weight stream is paid once and
    each group gets its own training-mode BN statistics)."""
    squeeze = z.ndim == 2
    if squeeze:
        z = z[None]
    out = _generator_pallas(z, *kparams)
    return out[0] if squeeze else out


def _quantize_int8(w):
    """Symmetric per-output-channel int8 quantization."""
    maxabs = jnp.max(jnp.abs(w), axis=0, keepdims=True)         # [1, out]
    scale = jnp.where(maxabs > 0, maxabs / 127.0, 1.0)
    q = jnp.clip(jnp.round(w / scale), -127.0, 127.0).astype(jnp.int8)
    return q, scale.astype(jnp.float32)


def init_params(key, latent_dim):
    """Deterministic synthetic init (PyTorch-style uniform for Linear), f32."""
    dims = [(latent_dim, 128), (128, 256), (256, 512), (512, 1024), (1024, OUT_DIM)]
    keys = jax.random.split(key, 2 * len(dims))
    params = []
    for i, (fin, fout) in enumerate(dims):
        bound = 1.0 / jnp.sqrt(float(fin))
        w = jax.random.uniform(keys[2 * i], (fin, fout), jnp.float32, -bound, bound)
        b = jax.random.uniform(keys[2 * i + 1], (1, fout), jnp.float32, -bound, bound)
        params.append((w, b))
    (w1, b1), (w2, b2), (w3, b3), (w4, b4), (w5, b5) = params
    # BatchNorm affine params at PyTorch defaults (gamma=1, beta=0).
    g2, be2 = jnp.ones((1, 256), jnp.float32), jnp.zeros((1, 256), jnp.float32)
    g3, be3 = jnp.ones((1, 512), jnp.float32), jnp.zeros((1, 512), jnp.float32)
    g4, be4 = jnp.ones((1, 1024), jnp.float32), jnp.zeros((1, 1024), jnp.float32)
    return (w1, b1, w2, b2, g2, be2, w3, b3, g3, be3, w4, b4, g4, be4, w5, b5)


def prepare_params(params):
    """One-time (outside jit) prep: bf16 small weights, int8 + per-channel
    scales for the two big weights, drop BN-cancelled biases, pad layer 5 to a
    lane multiple (1204 -> 1280)."""
    (w1, b1, w2, b2, g2, be2, w3, b3, g3, be3,
     w4, b4, g4, be4, w5, b5) = params
    del b2, b3, b4  # cancelled exactly by training-mode BatchNorm

    pad = PADDED - OUT_DIM
    w5p = jnp.pad(w5, ((0, 0), (0, pad)))
    b5p = jnp.pad(b5, ((0, 0), (0, pad)))

    w4_q, s4 = _quantize_int8(w4)          # layer-4 scale folds into BN eps
    w5_q, s5 = _quantize_int8(w5p)         # layer-5 scale applied in epilogue
    eps4 = BN_EPS / (s4 * s4)              # per-channel effective eps (exact)

    kparams = (
        w1.astype(jnp.bfloat16), b1,
        w2.astype(jnp.bfloat16), g2, be2,
        w3.astype(jnp.bfloat16), g3, be3,
        w4_q, g4, be4, eps4,
        w5_q, s5, b5p,
    )
    return jax.tree_util.tree_map(jax.device_put, kparams)


def reference_forward(z, params):
    """Pure-f32 reference with exact PyTorch-module math (biases included)."""
    (w1, b1, w2, b2, g2, be2, w3, b3, g3, be3,
     w4, b4, g4, be4, w5, b5) = params

    def bn(x, g, b):
        m = jnp.mean(x, axis=0, keepdims=True)
        v = jnp.mean((x - m) ** 2, axis=0, keepdims=True)
        return (x - m) / jnp.sqrt(v + BN_EPS) * g + b

    h = _leaky_relu(z @ w1 + b1)
    h = _leaky_relu(bn(h @ w2 + b2, g2, be2))
    h = _leaky_relu(bn(h @ w3 + b3, g3, be3))
    h = _leaky_relu(bn(h @ w4 + b4, g4, be4))
    return jnp.tanh(h @ w5 + b5)


if __name__ == "__main__":
    key = jax.random.PRNGKey(0)
    k_z, k_p, k_z3 = jax.random.split(key, 3)
    z = jax.random.normal(k_z, (BATCH, LATENT_DIM), jnp.float32)
    params = init_params(k_p, LATENT_DIM)
    kparams = prepare_params(params)

    # Single batch: exactly the nn.Module forward.
    out = generator_forward(z, kparams)
    out = jax.block_until_ready(out)
    ref = reference_forward(z, params)
    assert out.shape == (BATCH, OUT_DIM), out.shape
    max_err = float(jnp.max(jnp.abs(out - ref)))
    # int8 big weights + bf16 activations (f32 accumulation): loosened tolerance.
    assert max_err < 5e-2, f"mismatch vs reference: max_abs_err={max_err}"

    # Multi-group call: 3 independent batches in one kernel launch; the
    # 2.15 MB weight stream (and int8 dequant) is paid only on grid step 0.
    z3 = jax.random.normal(k_z3, (3, BATCH, LATENT_DIM), jnp.float32)
    out3 = jax.block_until_ready(generator_forward(z3, kparams))
    ref3 = jax.vmap(lambda zz: reference_forward(zz, params))(z3)
    assert out3.shape == (3, BATCH, OUT_DIM), out3.shape
    max_err3 = float(jnp.max(jnp.abs(out3 - ref3)))
    assert max_err3 < 5e-2, f"grouped mismatch vs reference: max_abs_err={max_err3}"

    print("KERNEL_OK")
</pallas_src>

<mosaic_0001>
module attributes {stable_mosaic.version = 11 : i64} {
  func.func @generator_kernel(%arg0: i32, %arg1: memref<1x8x32xf32, #tpu.memory_space<vmem>>, %arg2: memref<32x128xbf16, #tpu.memory_space<vmem>>, %arg3: memref<1x128xf32, #tpu.memory_space<vmem>>, %arg4: memref<128x256xbf16, #tpu.memory_space<vmem>>, %arg5: memref<1x256xf32, #tpu.memory_space<vmem>>, %arg6: memref<1x256xf32, #tpu.memory_space<vmem>>, %arg7: memref<256x512xbf16, #tpu.memory_space<vmem>>, %arg8: memref<1x512xf32, #tpu.memory_space<vmem>>, %arg9: memref<1x512xf32, #tpu.memory_space<vmem>>, %arg10: memref<512x1024xi8, #tpu.memory_space<any>>, %arg11: memref<1x1024xf32, #tpu.memory_space<vmem>>, %arg12: memref<1x1024xf32, #tpu.memory_space<vmem>>, %arg13: memref<1x1024xf32, #tpu.memory_space<vmem>>, %arg14: memref<1024x1280xi8, #tpu.memory_space<any>>, %arg15: memref<1x1280xf32, #tpu.memory_space<vmem>>, %arg16: memref<1x1280xf32, #tpu.memory_space<vmem>>, %arg17: memref<1x8x1280xf32, #tpu.memory_space<vmem>>, %arg18: memref<512x1024xi8, #tpu.memory_space<vmem>>, %arg19: memref<512x1024xbf16, #tpu.memory_space<vmem>>, %arg20: memref<1024x1280xi8, #tpu.memory_space<vmem>>, %arg21: memref<1024x1280xbf16, #tpu.memory_space<vmem>>, %arg22: memref<5x!tpu.dma_semaphore, #tpu.memory_space<semaphore_mem>>) attributes {dimension_semantics = [#tpu.dimension_semantics<arbitrary>], iteration_bounds = array<i64: 1>, scalar_prefetch = 0 : i64, scratch_operands = 5 : i64, tpu.core_type = #tpu.core_type<tc>, window_params = [{transform_indices = @transform_0, window_bounds = array<i64: 1, 8, 32>}, {pipeline_mode = #tpu.pipeline_mode<synchronous>, transform_indices = @transform_1, window_bounds = array<i64: 32, 128>}, {pipeline_mode = #tpu.pipeline_mode<synchronous>, transform_indices = @transform_2, window_bounds = array<i64: 1, 128>}, {pipeline_mode = #tpu.pipeline_mode<synchronous>, transform_indices = @transform_3, window_bounds = array<i64: 128, 256>}, {pipeline_mode = #tpu.pipeline_mode<synchronous>, transform_indices = @transform_4, window_bounds = array<i64: 1, 256>}, {pipeline_mode = #tpu.pipeline_mode<synchronous>, transform_indices = @transform_5, window_bounds = array<i64: 1, 256>}, {pipeline_mode = #tpu.pipeline_mode<synchronous>, transform_indices = @transform_6, window_bounds = array<i64: 256, 512>}, {pipeline_mode = #tpu.pipeline_mode<synchronous>, transform_indices = @transform_7, window_bounds = array<i64: 1, 512>}, {pipeline_mode = #tpu.pipeline_mode<synchronous>, transform_indices = @transform_8, window_bounds = array<i64: 1, 512>}, {}, {pipeline_mode = #tpu.pipeline_mode<synchronous>, transform_indices = @transform_10, window_bounds = array<i64: 1, 1024>}, {pipeline_mode = #tpu.pipeline_mode<synchronous>, transform_indices = @transform_11, window_bounds = array<i64: 1, 1024>}, {pipeline_mode = #tpu.pipeline_mode<synchronous>, transform_indices = @transform_12, window_bounds = array<i64: 1, 1024>}, {}, {pipeline_mode = #tpu.pipeline_mode<synchronous>, transform_indices = @transform_14, window_bounds = array<i64: 1, 1280>}, {pipeline_mode = #tpu.pipeline_mode<synchronous>, transform_indices = @transform_15, window_bounds = array<i64: 1, 1280>}, {transform_indices = @transform_16, window_bounds = array<i64: 1, 8, 1280>}]} {
    %c0_i32 = arith.constant 0 : i32
    %0 = arith.cmpi eq, %arg0, %c0_i32 : i32
    %1 = arith.extui %0 : i1 to i32
    %c0_i32_0 = arith.constant 0 : i32
    %c1_i32 = arith.constant 1 : i32
    %c2_i32 = arith.constant 2 : i32
    %c3_i32 = arith.constant 3 : i32
    %c4_i32 = arith.constant 4 : i32
    %c0_i32_1 = arith.constant 0 : i32
    %2 = arith.cmpi ne, %1, %c0_i32_1 : i32
    scf.if %2 {
      %141 = tpu.memref_slice %arg22[%c0_i32_0] : memref<5x!tpu.dma_semaphore, #tpu.memory_space<semaphore_mem>> -> memref<1x!tpu.dma_semaphore, #tpu.memory_space<semaphore_mem>>
      %142 = tpu.memref_squeeze %141 : memref<1x!tpu.dma_semaphore, #tpu.memory_space<semaphore_mem>> -> memref<!tpu.dma_semaphore, #tpu.memory_space<semaphore_mem>>
      tpu.enqueue_dma source(%arg10 : memref<512x1024xi8, #tpu.memory_space<any>>) target(%arg18 : memref<512x1024xi8, #tpu.memory_space<vmem>>) target_semaphore(%142 : memref<!tpu.dma_semaphore, #tpu.memory_space<semaphore_mem>>)
      %c0_i32_80 = arith.constant 0 : i32
      %c0_i32_81 = arith.constant 0 : i32
      %143 = tpu.memref_slice %arg14[%c0_i32_80, %c0_i32_81] : memref<1024x1280xi8, #tpu.memory_space<any>> -> memref<256x1280xi8, #tpu.memory_space<any>>
      %c0_i32_82 = arith.constant 0 : i32
      %c0_i32_83 = arith.constant 0 : i32
      %144 = tpu.memref_slice %arg20[%c0_i32_82, %c0_i32_83] : memref<1024x1280xi8, #tpu.memory_space<vmem>> -> memref<256x1280xi8, #tpu.memory_space<vmem>>
      %145 = tpu.memref_slice %arg22[%c1_i32] : memref<5x!tpu.dma_semaphore, #tpu.memory_space<semaphore_mem>> -> memref<1x!tpu.dma_semaphore, #tpu.memory_space<semaphore_mem>>
      %146 = tpu.memref_squeeze %145 : memref<1x!tpu.dma_semaphore, #tpu.memory_space<semaphore_mem>> -> memref<!tpu.dma_semaphore, #tpu.memory_space<semaphore_mem>>
      tpu.enqueue_dma source(%143 : memref<256x1280xi8, #tpu.memory_space<any>>) target(%144 : memref<256x1280xi8, #tpu.memory_space<vmem>>) target_semaphore(%146 : memref<!tpu.dma_semaphore, #tpu.memory_space<semaphore_mem>>)
      %c256_i32 = arith.constant 256 : i32
      %c0_i32_84 = arith.constant 0 : i32
      %147 = tpu.memref_slice %arg14[%c256_i32, %c0_i32_84] : memref<1024x1280xi8, #tpu.memory_space<any>> -> memref<256x1280xi8, #tpu.memory_space<any>>
      %c256_i32_85 = arith.constant 256 : i32
      %c0_i32_86 = arith.constant 0 : i32
      %148 = tpu.memref_slice %arg20[%c256_i32_85, %c0_i32_86] : memref<1024x1280xi8, #tpu.memory_space<vmem>> -> memref<256x1280xi8, #tpu.memory_space<vmem>>
      %149 = tpu.memref_slice %arg22[%c2_i32] : memref<5x!tpu.dma_semaphore, #tpu.memory_space<semaphore_mem>> -> memref<1x!tpu.dma_semaphore, #tpu.memory_space<semaphore_mem>>
      %150 = tpu.memref_squeeze %149 : memref<1x!tpu.dma_semaphore, #tpu.memory_space<semaphore_mem>> -> memref<!tpu.dma_semaphore, #tpu.memory_space<semaphore_mem>>
      tpu.enqueue_dma source(%147 : memref<256x1280xi8, #tpu.memory_space<any>>) target(%148 : memref<256x1280xi8, #tpu.memory_space<vmem>>) target_semaphore(%150 : memref<!tpu.dma_semaphore, #tpu.memory_space<semaphore_mem>>)
      %c512_i32 = arith.constant 512 : i32
      %c0_i32_87 = arith.constant 0 : i32
      %151 = tpu.memref_slice %arg14[%c512_i32, %c0_i32_87] : memref<1024x1280xi8, #tpu.memory_space<any>> -> memref<256x1280xi8, #tpu.memory_space<any>>
      %c512_i32_88 = arith.constant 512 : i32
      %c0_i32_89 = arith.constant 0 : i32
      %152 = tpu.memref_slice %arg20[%c512_i32_88, %c0_i32_89] : memref<1024x1280xi8, #tpu.memory_space<vmem>> -> memref<256x1280xi8, #tpu.memory_space<vmem>>
      %153 = tpu.memref_slice %arg22[%c3_i32] : memref<5x!tpu.dma_semaphore, #tpu.memory_space<semaphore_mem>> -> memref<1x!tpu.dma_semaphore, #tpu.memory_space<semaphore_mem>>
      %154 = tpu.memref_squeeze %153 : memref<1x!tpu.dma_semaphore, #tpu.memory_space<semaphore_mem>> -> memref<!tpu.dma_semaphore, #tpu.memory_space<semaphore_mem>>
      tpu.enqueue_dma source(%151 : memref<256x1280xi8, #tpu.memory_space<any>>) target(%152 : memref<256x1280xi8, #tpu.memory_space<vmem>>) target_semaphore(%154 : memref<!tpu.dma_semaphore, #tpu.memory_space<semaphore_mem>>)
      %c768_i32 = arith.constant 768 : i32
      %c0_i32_90 = arith.constant 0 : i32
      %155 = tpu.memref_slice %arg14[%c768_i32, %c0_i32_90] : memref<1024x1280xi8, #tpu.memory_space<any>> -> memref<256x1280xi8, #tpu.memory_space<any>>
      %c768_i32_91 = arith.constant 768 : i32
      %c0_i32_92 = arith.constant 0 : i32
      %156 = tpu.memref_slice %arg20[%c768_i32_91, %c0_i32_92] : memref<1024x1280xi8, #tpu.memory_space<vmem>> -> memref<256x1280xi8, #tpu.memory_space<vmem>>
      %157 = tpu.memref_slice %arg22[%c4_i32] : memref<5x!tpu.dma_semaphore, #tpu.memory_space<semaphore_mem>> -> memref<1x!tpu.dma_semaphore, #tpu.memory_space<semaphore_mem>>
      %158 = tpu.memref_squeeze %157 : memref<1x!tpu.dma_semaphore, #tpu.memory_space<semaphore_mem>> -> memref<!tpu.dma_semaphore, #tpu.memory_space<semaphore_mem>>
      tpu.enqueue_dma source(%155 : memref<256x1280xi8, #tpu.memory_space<any>>) target(%156 : memref<256x1280xi8, #tpu.memory_space<vmem>>) target_semaphore(%158 : memref<!tpu.dma_semaphore, #tpu.memory_space<semaphore_mem>>)
    } else {
    }
    %c0 = arith.constant 0 : index
    %c0_2 = arith.constant 0 : index
    %c0_3 = arith.constant 0 : index
    %3 = vector.load %arg1[%c0, %c0_2, %c0_3] : memref<1x8x32xf32, #tpu.memory_space<vmem>>, vector<1x8x32xf32>
    %4 = vector.shape_cast %3 : vector<1x8x32xf32> to vector<8x32xf32>
    %5 = arith.truncf %4 : vector<8x32xf32> to vector<8x32xbf16>
    %c0_4 = arith.constant 0 : index
    %c0_5 = arith.constant 0 : index
    %6 = vector.load %arg2[%c0_4, %c0_5] : memref<32x128xbf16, #tpu.memory_space<vmem>>, vector<32x128xbf16>
    %cst = arith.constant dense<0.000000e+00> : vector<8x128xf32>
    %7 = tpu.matmul %5, %6, %cst {dimension_numbers = #tpu.dot_dimension_numbers<[1], [0], [0], [1], [0, 0, 1, 1], [], []>} : vector<8x32xbf16>, vector<32x128xbf16>, vector<8x128xf32> -> vector<8x128xf32>
    %c0_6 = arith.constant 0 : index
    %c0_7 = arith.constant 0 : index
    %8 = vector.load %arg3[%c0_6, %c0_7] : memref<1x128xf32, #tpu.memory_space<vmem>>, vector<1x128xf32>
    %9 = vector.broadcast %8 : vector<1x128xf32> to vector<8x128xf32>
    %10 = arith.addf %7, %9 : vector<8x128xf32>
    %cst_8 = arith.constant 0.000000e+00 : f32
    %11 = vector.broadcast %cst_8 : f32 to vector<8x128xf32>
    %12 = arith.cmpf ogt, %10, %11 : vector<8x128xf32>
    %cst_9 = arith.constant 2.000000e-01 : f32
    %13 = vector.broadcast %cst_9 : f32 to vector<8x128xf32>
    %14 = arith.mulf %13, %10 : vector<8x128xf32>
    %15 = arith.select %12, %10, %14 : vector<8x128xi1>, vector<8x128xf32>
    %16 = arith.truncf %15 : vector<8x128xf32> to vector<8x128xbf16>
    %c0_10 = arith.constant 0 : index
    %c0_11 = arith.constant 0 : index
    %17 = vector.load %arg4[%c0_10, %c0_11] : memref<128x256xbf16, #tpu.memory_space<vmem>>, vector<128x256xbf16>
    %cst_12 = arith.constant dense<0.000000e+00> : vector<8x256xf32>
    %18 = tpu.matmul %16, %17, %cst_12 {dimension_numbers = #tpu.dot_dimension_numbers<[1], [0], [0], [1], [0, 0, 1, 1], [], []>} : vector<8x128xbf16>, vector<128x256xbf16>, vector<8x256xf32> -> vector<8x256xf32>
    %c0_13 = arith.constant 0 : index
    %c0_14 = arith.constant 0 : index
    %19 = vector.load %arg5[%c0_13, %c0_14] : memref<1x256xf32, #tpu.memory_space<vmem>>, vector<1x256xf32>
    %c0_15 = arith.constant 0 : index
    %c0_16 = arith.constant 0 : index
    %20 = vector.load %arg6[%c0_15, %c0_16] : memref<1x256xf32, #tpu.memory_space<vmem>>, vector<1x256xf32>
    %cst_17 = arith.constant dense<0.000000e+00> : vector<256xf32>
    %21 = vector.multi_reduction <add>, %18, %cst_17 [0] : vector<8x256xf32> to vector<256xf32>
    %22 = vector.shape_cast %21 : vector<256xf32> to vector<1x256xf32>
    %cst_18 = arith.constant 8.000000e+00 : f32
    %23 = vector.broadcast %cst_18 : f32 to vector<1x256xf32>
    %24 = arith.divf %22, %23 : vector<1x256xf32>
    %25 = vector.broadcast %24 : vector<1x256xf32> to vector<8x256xf32>
    %26 = arith.subf %18, %25 : vector<8x256xf32>
    %27 = arith.mulf %26, %26 : vector<8x256xf32>
    %cst_19 = arith.constant dense<0.000000e+00> : vector<256xf32>
    %28 = vector.multi_reduction <add>, %27, %cst_19 [0] : vector<8x256xf32> to vector<256xf32>
    %29 = vector.shape_cast %28 : vector<256xf32> to vector<1x256xf32>
    %cst_20 = arith.constant 8.000000e+00 : f32
    %30 = vector.broadcast %cst_20 : f32 to vector<1x256xf32>
    %31 = arith.divf %29, %30 : vector<1x256xf32>
    %cst_21 = arith.constant 8.000000e-01 : f32
    %32 = vector.broadcast %cst_21 : f32 to vector<1x256xf32>
    %33 = arith.addf %31, %32 : vector<1x256xf32>
    %34 = math.rsqrt %33 : vector<1x256xf32>
    %35 = arith.mulf %19, %34 : vector<1x256xf32>
    %36 = vector.broadcast %35 : vector<1x256xf32> to vector<8x256xf32>
    %37 = arith.mulf %26, %36 : vector<8x256xf32>
    %38 = vector.broadcast %20 : vector<1x256xf32> to vector<8x256xf32>
    %39 = arith.addf %37, %38 : vector<8x256xf32>
    %cst_22 = arith.constant 0.000000e+00 : f32
    %40 = vector.broadcast %cst_22 : f32 to vector<8x256xf32>
    %41 = arith.cmpf ogt, %39, %40 : vector<8x256xf32>
    %cst_23 = arith.constant 2.000000e-01 : f32
    %42 = vector.broadcast %cst_23 : f32 to vector<8x256xf32>
    %43 = arith.mulf %42, %39 : vector<8x256xf32>
    %44 = arith.select %41, %39, %43 : vector<8x256xi1>, vector<8x256xf32>
    %45 = arith.truncf %44 : vector<8x256xf32> to vector<8x256xbf16>
    %c0_24 = arith.constant 0 : index
    %c0_25 = arith.constant 0 : index
    %46 = vector.load %arg7[%c0_24, %c0_25] : memref<256x512xbf16, #tpu.memory_space<vmem>>, vector<256x512xbf16>
    %cst_26 = arith.constant dense<0.000000e+00> : vector<8x512xf32>
    %47 = tpu.matmul %45, %46, %cst_26 {dimension_numbers = #tpu.dot_dimension_numbers<[1], [0], [0], [1], [0, 0, 1, 1], [], []>} : vector<8x256xbf16>, vector<256x512xbf16>, vector<8x512xf32> -> vector<8x512xf32>
    %c0_27 = arith.constant 0 : index
    %c0_28 = arith.constant 0 : index
    %48 = vector.load %arg8[%c0_27, %c0_28] : memref<1x512xf32, #tpu.memory_space<vmem>>, vector<1x512xf32>
    %c0_29 = arith.constant 0 : index
    %c0_30 = arith.constant 0 : index
    %49 = vector.load %arg9[%c0_29, %c0_30] : memref<1x512xf32, #tpu.memory_space<vmem>>, vector<1x512xf32>
    %cst_31 = arith.constant dense<0.000000e+00> : vector<512xf32>
    %50 = vector.multi_reduction <add>, %47, %cst_31 [0] : vector<8x512xf32> to vector<512xf32>
    %51 = vector.shape_cast %50 : vector<512xf32> to vector<1x512xf32>
    %cst_32 = arith.constant 8.000000e+00 : f32
    %52 = vector.broadcast %cst_32 : f32 to vector<1x512xf32>
    %53 = arith.divf %51, %52 : vector<1x512xf32>
    %54 = vector.broadcast %53 : vector<1x512xf32> to vector<8x512xf32>
    %55 = arith.subf %47, %54 : vector<8x512xf32>
    %56 = arith.mulf %55, %55 : vector<8x512xf32>
    %cst_33 = arith.constant dense<0.000000e+00> : vector<512xf32>
    %57 = vector.multi_reduction <add>, %56, %cst_33 [0] : vector<8x512xf32> to vector<512xf32>
    %58 = vector.shape_cast %57 : vector<512xf32> to vector<1x512xf32>
    %cst_34 = arith.constant 8.000000e+00 : f32
    %59 = vector.broadcast %cst_34 : f32 to vector<1x512xf32>
    %60 = arith.divf %58, %59 : vector<1x512xf32>
    %cst_35 = arith.constant 8.000000e-01 : f32
    %61 = vector.broadcast %cst_35 : f32 to vector<1x512xf32>
    %62 = arith.addf %60, %61 : vector<1x512xf32>
    %63 = math.rsqrt %62 : vector<1x512xf32>
    %64 = arith.mulf %48, %63 : vector<1x512xf32>
    %65 = vector.broadcast %64 : vector<1x512xf32> to vector<8x512xf32>
    %66 = arith.mulf %55, %65 : vector<8x512xf32>
    %67 = vector.broadcast %49 : vector<1x512xf32> to vector<8x512xf32>
    %68 = arith.addf %66, %67 : vector<8x512xf32>
    %cst_36 = arith.constant 0.000000e+00 : f32
    %69 = vector.broadcast %cst_36 : f32 to vector<8x512xf32>
    %70 = arith.cmpf ogt, %68, %69 : vector<8x512xf32>
    %cst_37 = arith.constant 2.000000e-01 : f32
    %71 = vector.broadcast %cst_37 : f32 to vector<8x512xf32>
    %72 = arith.mulf %71, %68 : vector<8x512xf32>
    %73 = arith.select %70, %68, %72 : vector<8x512xi1>, vector<8x512xf32>
    %74 = arith.extui %0 : i1 to i32
    %c0_i32_38 = arith.constant 0 : i32
    %c0_i32_39 = arith.constant 0 : i32
    %75 = arith.cmpi ne, %74, %c0_i32_39 : i32
    scf.if %75 {
      %141 = tpu.memref_slice %arg22[%c0_i32_38] : memref<5x!tpu.dma_semaphore, #tpu.memory_space<semaphore_mem>> -> memref<1x!tpu.dma_semaphore, #tpu.memory_space<semaphore_mem>>
      %142 = tpu.memref_squeeze %141 : memref<1x!tpu.dma_semaphore, #tpu.memory_space<semaphore_mem>> -> memref<!tpu.dma_semaphore, #tpu.memory_space<semaphore_mem>>
      tpu.wait_dma2 semaphore(%142 : memref<!tpu.dma_semaphore, #tpu.memory_space<semaphore_mem>>) src(%arg10 : memref<512x1024xi8, #tpu.memory_space<any>>) dst(%arg18 : memref<512x1024xi8, #tpu.memory_space<vmem>>)
      %c0_80 = arith.constant 0 : index
      %c0_81 = arith.constant 0 : index
      %143 = vector.load %arg18[%c0_80, %c0_81] : memref<512x1024xi8, #tpu.memory_space<vmem>>, vector<512x1024xi8>
      %144 = arith.sitofp %143 : vector<512x1024xi8> to vector<512x1024xbf16>
      %c0_82 = arith.constant 0 : index
      %c0_83 = arith.constant 0 : index
      %145 = vector.load %arg19[%c0_82, %c0_83] : memref<512x1024xbf16, #tpu.memory_space<vmem>>, vector<512x1024xbf16>
      tpu.vector_store %arg19[%c0_82, %c0_83], %144 {strides = array<i32>} : memref<512x1024xbf16, #tpu.memory_space<vmem>>, vector<512x1024xbf16>,
    } else {
    }
    %76 = arith.truncf %73 : vector<8x512xf32> to vector<8x512xbf16>
    %c0_40 = arith.constant 0 : index
    %c0_41 = arith.constant 0 : index
    %77 = vector.load %arg19[%c0_40, %c0_41] : memref<512x1024xbf16, #tpu.memory_space<vmem>>, vector<512x1024xbf16>
    %cst_42 = arith.constant dense<0.000000e+00> : vector<8x1024xf32>
    %78 = tpu.matmul %76, %77, %cst_42 {dimension_numbers = #tpu.dot_dimension_numbers<[1], [0], [0], [1], [0, 0, 1, 1], [], []>} : vector<8x512xbf16>, vector<512x1024xbf16>, vector<8x1024xf32> -> vector<8x1024xf32>
    %c0_43 = arith.constant 0 : index
    %c0_44 = arith.constant 0 : index
    %79 = vector.load %arg11[%c0_43, %c0_44] : memref<1x1024xf32, #tpu.memory_space<vmem>>, vector<1x1024xf32>
    %c0_45 = arith.constant 0 : index
    %c0_46 = arith.constant 0 : index
    %80 = vector.load %arg12[%c0_45, %c0_46] : memref<1x1024xf32, #tpu.memory_space<vmem>>, vector<1x1024xf32>
    %c0_47 = arith.constant 0 : index
    %c0_48 = arith.constant 0 : index
    %81 = vector.load %arg13[%c0_47, %c0_48] : memref<1x1024xf32, #tpu.memory_space<vmem>>, vector<1x1024xf32>
    %cst_49 = arith.constant dense<0.000000e+00> : vector<1024xf32>
    %82 = vector.multi_reduction <add>, %78, %cst_49 [0] : vector<8x1024xf32> to vector<1024xf32>
    %83 = vector.shape_cast %82 : vector<1024xf32> to vector<1x1024xf32>
    %cst_50 = arith.constant 8.000000e+00 : f32
    %84 = vector.broadcast %cst_50 : f32 to vector<1x1024xf32>
    %85 = arith.divf %83, %84 : vector<1x1024xf32>
    %86 = vector.broadcast %85 : vector<1x1024xf32> to vector<8x1024xf32>
    %87 = arith.subf %78, %86 : vector<8x1024xf32>
    %88 = arith.mulf %87, %87 : vector<8x1024xf32>
    %cst_51 = arith.constant dense<0.000000e+00> : vector<1024xf32>
    %89 = vector.multi_reduction <add>, %88, %cst_51 [0] : vector<8x1024xf32> to vector<1024xf32>
    %90 = vector.shape_cast %89 : vector<1024xf32> to vector<1x1024xf32>
    %cst_52 = arith.constant 8.000000e+00 : f32
    %91 = vector.broadcast %cst_52 : f32 to vector<1x1024xf32>
    %92 = arith.divf %90, %91 : vector<1x1024xf32>
    %93 = arith.addf %92, %81 : vector<1x1024xf32>
    %94 = math.rsqrt %93 : vector<1x1024xf32>
    %95 = arith.mulf %79, %94 : vector<1x1024xf32>
    %96 = vector.broadcast %95 : vector<1x1024xf32> to vector<8x1024xf32>
    %97 = arith.mulf %87, %96 : vector<8x1024xf32>
    %98 = vector.broadcast %80 : vector<1x1024xf32> to vector<8x1024xf32>
    %99 = arith.addf %97, %98 : vector<8x1024xf32>
    %cst_53 = arith.constant 0.000000e+00 : f32
    %100 = vector.broadcast %cst_53 : f32 to vector<8x1024xf32>
    %101 = arith.cmpf ogt, %99, %100 : vector<8x1024xf32>
    %cst_54 = arith.constant 2.000000e-01 : f32
    %102 = vector.broadcast %cst_54 : f32 to vector<8x1024xf32>
    %103 = arith.mulf %102, %99 : vector<8x1024xf32>
    %104 = arith.select %101, %99, %103 : vector<8x1024xi1>, vector<8x1024xf32>
    %105 = arith.truncf %104 : vector<8x1024xf32> to vector<8x1024xbf16>
    %cst_55 = arith.constant 0.000000e+00 : f32
    %106 = vector.broadcast %cst_55 : f32 to vector<8x1280xf32>
    %107 = arith.extui %0 : i1 to i32
    %c1_i32_56 = arith.constant 1 : i32
    %c0_i32_57 = arith.constant 0 : i32
    %108 = arith.cmpi ne, %107, %c0_i32_57 : i32
    scf.if %108 {
      %c0_i32_80 = arith.constant 0 : i32
      %c0_i32_81 = arith.constant 0 : i32
      %141 = tpu.memref_slice %arg14[%c0_i32_80, %c0_i32_81] : memref<1024x1280xi8, #tpu.memory_space<any>> -> memref<256x1280xi8, #tpu.memory_space<any>>
      %c0_i32_82 = arith.constant 0 : i32
      %c0_i32_83 = arith.constant 0 : i32
      %142 = tpu.memref_slice %arg20[%c0_i32_82, %c0_i32_83] : memref<1024x1280xi8, #tpu.memory_space<vmem>> -> memref<256x1280xi8, #tpu.memory_space<vmem>>
      %143 = tpu.memref_slice %arg22[%c1_i32_56] : memref<5x!tpu.dma_semaphore, #tpu.memory_space<semaphore_mem>> -> memref<1x!tpu.dma_semaphore, #tpu.memory_space<semaphore_mem>>
      %144 = tpu.memref_squeeze %143 : memref<1x!tpu.dma_semaphore, #tpu.memory_space<semaphore_mem>> -> memref<!tpu.dma_semaphore, #tpu.memory_space<semaphore_mem>>
      tpu.wait_dma2 semaphore(%144 : memref<!tpu.dma_semaphore, #tpu.memory_space<semaphore_mem>>) src(%141 : memref<256x1280xi8, #tpu.memory_space<any>>) dst(%142 : memref<256x1280xi8, #tpu.memory_space<vmem>>)
      %c0_84 = arith.constant 0 : index
      %c0_85 = arith.constant 0 : index
      %145 = vector.load %arg20[%c0_84, %c0_85] : memref<1024x1280xi8, #tpu.memory_space<vmem>>, vector<256x1280xi8>
      %146 = arith.sitofp %145 : vector<256x1280xi8> to vector<256x1280xbf16>
      %c0_86 = arith.constant 0 : index
      %c0_87 = arith.constant 0 : index
      %147 = vector.load %arg21[%c0_86, %c0_87] : memref<1024x1280xbf16, #tpu.memory_space<vmem>>, vector<256x1280xbf16>
      tpu.vector_store %arg21[%c0_86, %c0_87], %146 {strides = array<i32>} : memref<1024x1280xbf16, #tpu.memory_space<vmem>>, vector<256x1280xbf16>,
    } else {
    }
    %109 = vector.extract_strided_slice %105 {offsets = [0, 0], sizes = [8, 256], strides = [1, 1]} : vector<8x1024xbf16> to vector<8x256xbf16>
    %c0_58 = arith.constant 0 : index
    %c0_59 = arith.constant 0 : index
    %110 = vector.load %arg21[%c0_58, %c0_59] : memref<1024x1280xbf16, #tpu.memory_space<vmem>>, vector<256x1280xbf16>
    %cst_60 = arith.constant dense<0.000000e+00> : vector<8x1280xf32>
    %111 = tpu.matmul %109, %110, %cst_60 {dimension_numbers = #tpu.dot_dimension_numbers<[1], [0], [0], [1], [0, 0, 1, 1], [], []>} : vector<8x256xbf16>, vector<256x1280xbf16>, vector<8x1280xf32> -> vector<8x1280xf32>
    %112 = arith.addf %106, %111 : vector<8x1280xf32>
    %113 = arith.extui %0 : i1 to i32
    %c2_i32_61 = arith.constant 2 : i32
    %c0_i32_62 = arith.constant 0 : i32
    %114 = arith.cmpi ne, %113, %c0_i32_62 : i32
    scf.if %114 {
      %c256_i32 = arith.constant 256 : i32
      %c0_i32_80 = arith.constant 0 : i32
      %141 = tpu.memref_slice %arg14[%c256_i32, %c0_i32_80] : memref<1024x1280xi8, #tpu.memory_space<any>> -> memref<256x1280xi8, #tpu.memory_space<any>>
      %c256_i32_81 = arith.constant 256 : i32
      %c0_i32_82 = arith.constant 0 : i32
      %142 = tpu.memref_slice %arg20[%c256_i32_81, %c0_i32_82] : memref<1024x1280xi8, #tpu.memory_space<vmem>> -> memref<256x1280xi8, #tpu.memory_space<vmem>>
      %143 = tpu.memref_slice %arg22[%c2_i32_61] : memref<5x!tpu.dma_semaphore, #tpu.memory_space<semaphore_mem>> -> memref<1x!tpu.dma_semaphore, #tpu.memory_space<semaphore_mem>>
      %144 = tpu.memref_squeeze %143 : memref<1x!tpu.dma_semaphore, #tpu.memory_space<semaphore_mem>> -> memref<!tpu.dma_semaphore, #tpu.memory_space<semaphore_mem>>
      tpu.wait_dma2 semaphore(%144 : memref<!tpu.dma_semaphore, #tpu.memory_space<semaphore_mem>>) src(%141 : memref<256x1280xi8, #tpu.memory_space<any>>) dst(%142 : memref<256x1280xi8, #tpu.memory_space<vmem>>)
      %c256_83 = arith.constant 256 : index
      %c0_84 = arith.constant 0 : index
      %145 = vector.load %arg20[%c256_83, %c0_84] : memref<1024x1280xi8, #tpu.memory_space<vmem>>, vector<256x1280xi8>
      %146 = arith.sitofp %145 : vector<256x1280xi8> to vector<256x1280xbf16>
      %c256_85 = arith.constant 256 : index
      %c0_86 = arith.constant 0 : index
      %147 = vector.load %arg21[%c256_85, %c0_86] : memref<1024x1280xbf16, #tpu.memory_space<vmem>>, vector<256x1280xbf16>
      tpu.vector_store %arg21[%c256_85, %c0_86], %146 {strides = array<i32>} : memref<1024x1280xbf16, #tpu.memory_space<vmem>>, vector<256x1280xbf16>,
    } else {
    }
    %115 = vector.extract_strided_slice %105 {offsets = [0, 256], sizes = [8, 256], strides = [1, 1]} : vector<8x1024xbf16> to vector<8x256xbf16>
    %c256 = arith.constant 256 : index
    %c0_63 = arith.constant 0 : index
    %116 = vector.load %arg21[%c256, %c0_63] : memref<1024x1280xbf16, #tpu.memory_space<vmem>>, vector<256x1280xbf16>
    %cst_64 = arith.constant dense<0.000000e+00> : vector<8x1280xf32>
    %117 = tpu.matmul %115, %116, %cst_64 {dimension_numbers = #tpu.dot_dimension_numbers<[1], [0], [0], [1], [0, 0, 1, 1], [], []>} : vector<8x256xbf16>, vector<256x1280xbf16>, vector<8x1280xf32> -> vector<8x1280xf32>
    %118 = arith.addf %112, %117 : vector<8x1280xf32>
    %119 = arith.extui %0 : i1 to i32
    %c3_i32_65 = arith.constant 3 : i32
    %c0_i32_66 = arith.constant 0 : i32
    %120 = arith.cmpi ne, %119, %c0_i32_66 : i32
    scf.if %120 {
      %c512_i32 = arith.constant 512 : i32
      %c0_i32_80 = arith.constant 0 : i32
      %141 = tpu.memref_slice %arg14[%c512_i32, %c0_i32_80] : memref<1024x1280xi8, #tpu.memory_space<any>> -> memref<256x1280xi8, #tpu.memory_space<any>>
      %c512_i32_81 = arith.constant 512 : i32
      %c0_i32_82 = arith.constant 0 : i32
      %142 = tpu.memref_slice %arg20[%c512_i32_81, %c0_i32_82] : memref<1024x1280xi8, #tpu.memory_space<vmem>> -> memref<256x1280xi8, #tpu.memory_space<vmem>>
      %143 = tpu.memref_slice %arg22[%c3_i32_65] : memref<5x!tpu.dma_semaphore, #tpu.memory_space<semaphore_mem>> -> memref<1x!tpu.dma_semaphore, #tpu.memory_space<semaphore_mem>>
      %144 = tpu.memref_squeeze %143 : memref<1x!tpu.dma_semaphore, #tpu.memory_space<semaphore_mem>> -> memref<!tpu.dma_semaphore, #tpu.memory_space<semaphore_mem>>
      tpu.wait_dma2 semaphore(%144 : memref<!tpu.dma_semaphore, #tpu.memory_space<semaphore_mem>>) src(%141 : memref<256x1280xi8, #tpu.memory_space<any>>) dst(%142 : memref<256x1280xi8, #tpu.memory_space<vmem>>)
      %c512_83 = arith.constant 512 : index
      %c0_84 = arith.constant 0 : index
      %145 = vector.load %arg20[%c512_83, %c0_84] : memref<1024x1280xi8, #tpu.memory_space<vmem>>, vector<256x1280xi8>
      %146 = arith.sitofp %145 : vector<256x1280xi8> to vector<256x1280xbf16>
      %c512_85 = arith.constant 512 : index
      %c0_86 = arith.constant 0 : index
      %147 = vector.load %arg21[%c512_85, %c0_86] : memref<1024x1280xbf16, #tpu.memory_space<vmem>>, vector<256x1280xbf16>
      tpu.vector_store %arg21[%c512_85, %c0_86], %146 {strides = array<i32>} : memref<1024x1280xbf16, #tpu.memory_space<vmem>>, vector<256x1280xbf16>,
    } else {
    }
    %121 = vector.extract_strided_slice %105 {offsets = [0, 512], sizes = [8, 256], strides = [1, 1]} : vector<8x1024xbf16> to vector<8x256xbf16>
    %c512 = arith.constant 512 : index
    %c0_67 = arith.constant 0 : index
    %122 = vector.load %arg21[%c512, %c0_67] : memref<1024x1280xbf16, #tpu.memory_space<vmem>>, vector<256x1280xbf16>
    %cst_68 = arith.constant dense<0.000000e+00> : vector<8x1280xf32>
    %123 = tpu.matmul %121, %122, %cst_68 {dimension_numbers = #tpu.dot_dimension_numbers<[1], [0], [0], [1], [0, 0, 1, 1], [], []>} : vector<8x256xbf16>, vector<256x1280xbf16>, vector<8x1280xf32> -> vector<8x1280xf32>
    %124 = arith.addf %118, %123 : vector<8x1280xf32>
    %125 = arith.extui %0 : i1 to i32
    %c4_i32_69 = arith.constant 4 : i32
    %c0_i32_70 = arith.constant 0 : i32
    %126 = arith.cmpi ne, %125, %c0_i32_70 : i32
    scf.if %126 {
      %c768_i32 = arith.constant 768 : i32
      %c0_i32_80 = arith.constant 0 : i32
      %141 = tpu.memref_slice %arg14[%c768_i32, %c0_i32_80] : memref<1024x1280xi8, #tpu.memory_space<any>> -> memref<256x1280xi8, #tpu.memory_space<any>>
      %c768_i32_81 = arith.constant 768 : i32
      %c0_i32_82 = arith.constant 0 : i32
      %142 = tpu.memref_slice %arg20[%c768_i32_81, %c0_i32_82] : memref<1024x1280xi8, #tpu.memory_space<vmem>> -> memref<256x1280xi8, #tpu.memory_space<vmem>>
      %143 = tpu.memref_slice %arg22[%c4_i32_69] : memref<5x!tpu.dma_semaphore, #tpu.memory_space<semaphore_mem>> -> memref<1x!tpu.dma_semaphore, #tpu.memory_space<semaphore_mem>>
      %144 = tpu.memref_squeeze %143 : memref<1x!tpu.dma_semaphore, #tpu.memory_space<semaphore_mem>> -> memref<!tpu.dma_semaphore, #tpu.memory_space<semaphore_mem>>
      tpu.wait_dma2 semaphore(%144 : memref<!tpu.dma_semaphore, #tpu.memory_space<semaphore_mem>>) src(%141 : memref<256x1280xi8, #tpu.memory_space<any>>) dst(%142 : memref<256x1280xi8, #tpu.memory_space<vmem>>)
      %c768_83 = arith.constant 768 : index
      %c0_84 = arith.constant 0 : index
      %145 = vector.load %arg20[%c768_83, %c0_84] : memref<1024x1280xi8, #tpu.memory_space<vmem>>, vector<256x1280xi8>
      %146 = arith.sitofp %145 : vector<256x1280xi8> to vector<256x1280xbf16>
      %c768_85 = arith.constant 768 : index
      %c0_86 = arith.constant 0 : index
      %147 = vector.load %arg21[%c768_85, %c0_86] : memref<1024x1280xbf16, #tpu.memory_space<vmem>>, vector<256x1280xbf16>
      tpu.vector_store %arg21[%c768_85, %c0_86], %146 {strides = array<i32>} : memref<1024x1280xbf16, #tpu.memory_space<vmem>>, vector<256x1280xbf16>,
    } else {
    }
    %127 = vector.extract_strided_slice %105 {offsets = [0, 768], sizes = [8, 256], strides = [1, 1]} : vector<8x1024xbf16> to vector<8x256xbf16>
    %c768 = arith.constant 768 : index
    %c0_71 = arith.constant 0 : index
    %128 = vector.load %arg21[%c768, %c0_71] : memref<1024x1280xbf16, #tpu.memory_space<vmem>>, vector<256x1280xbf16>
    %cst_72 = arith.constant dense<0.000000e+00> : vector<8x1280xf32>
    %129 = tpu.matmul %127, %128, %cst_72 {dimension_numbers = #tpu.dot_dimension_numbers<[1], [0], [0], [1], [0, 0, 1, 1], [], []>} : vector<8x256xbf16>, vector<256x1280xbf16>, vector<8x1280xf32> -> vector<8x1280xf32>
    %130 = arith.addf %124, %129 : vector<8x1280xf32>
    %c0_73 = arith.constant 0 : index
    %c0_74 = arith.constant 0 : index
    %131 = vector.load %arg15[%c0_73, %c0_74] : memref<1x1280xf32, #tpu.memory_space<vmem>>, vector<1x1280xf32>
    %132 = vector.broadcast %131 : vector<1x1280xf32> to vector<8x1280xf32>
    %133 = arith.mulf %130, %132 : vector<8x1280xf32>
    %c0_75 = arith.constant 0 : index
    %c0_76 = arith.constant 0 : index
    %134 = vector.load %arg16[%c0_75, %c0_76] : memref<1x1280xf32, #tpu.memory_space<vmem>>, vector<1x1280xf32>
    %135 = vector.broadcast %134 : vector<1x1280xf32> to vector<8x1280xf32>
    %136 = arith.addf %133, %135 : vector<8x1280xf32>
    %137 = math.tanh %136 : vector<8x1280xf32>
    %c0_77 = arith.constant 0 : index
    %c0_78 = arith.constant 0 : index
    %c0_79 = arith.constant 0 : index
    %138 = vector.load %arg17[%c0_77, %c0_78, %c0_79] : memref<1x8x1280xf32, #tpu.memory_space<vmem>>, vector<1x8x1280xf32>
    %139 = vector.shape_cast %138 : vector<1x8x1280xf32> to vector<8x1280xf32>
    %140 = vector.shape_cast %137 : vector<8x1280xf32> to vector<1x8x1280xf32>
    tpu.vector_store %arg17[%c0_77, %c0_78, %c0_79], %140 {strides = array<i32>} : memref<1x8x1280xf32, #tpu.memory_space<vmem>>, vector<1x8x1280xf32>,
    return
  }
  func.func @transform_0(%arg0: i32) -> (i32, i32, i32) {
    %c0_i32 = arith.constant 0 : i32
    %c0_i32_0 = arith.constant 0 : i32
    %c0_i32_1 = arith.constant 0 : i32
    return %arg0, %c0_i32, %c0_i32_0 : i32, i32, i32
  }
  func.func @transform_1(%arg0: i32) -> (i32, i32) {
    %c0_i32 = arith.constant 0 : i32
    %c0_i32_0 = arith.constant 0 : i32
    %c0_i32_1 = arith.constant 0 : i32
    return %c0_i32, %c0_i32_0 : i32, i32
  }
  func.func @transform_2(%arg0: i32) -> (i32, i32) {
    %c0_i32 = arith.constant 0 : i32
    %c0_i32_0 = arith.constant 0 : i32
    %c0_i32_1 = arith.constant 0 : i32
    return %c0_i32, %c0_i32_0 : i32, i32
  }
  func.func @transform_3(%arg0: i32) -> (i32, i32) {
    %c0_i32 = arith.constant 0 : i32
    %c0_i32_0 = arith.constant 0 : i32
    %c0_i32_1 = arith.constant 0 : i32
    return %c0_i32, %c0_i32_0 : i32, i32
  }
  func.func @transform_4(%arg0: i32) -> (i32, i32) {
    %c0_i32 = arith.constant 0 : i32
    %c0_i32_0 = arith.constant 0 : i32
    %c0_i32_1 = arith.constant 0 : i32
    return %c0_i32, %c0_i32_0 : i32, i32
  }
  func.func @transform_5(%arg0: i32) -> (i32, i32) {
    %c0_i32 = arith.constant 0 : i32
    %c0_i32_0 = arith.constant 0 : i32
    %c0_i32_1 = arith.constant 0 : i32
    return %c0_i32, %c0_i32_0 : i32, i32
  }
  func.func @transform_6(%arg0: i32) -> (i32, i32) {
    %c0_i32 = arith.constant 0 : i32
    %c0_i32_0 = arith.constant 0 : i32
    %c0_i32_1 = arith.constant 0 : i32
    return %c0_i32, %c0_i32_0 : i32, i32
  }
  func.func @transform_7(%arg0: i32) -> (i32, i32) {
    %c0_i32 = arith.constant 0 : i32
    %c0_i32_0 = arith.constant 0 : i32
    %c0_i32_1 = arith.constant 0 : i32
    return %c0_i32, %c0_i32_0 : i32, i32
  }
  func.func @transform_8(%arg0: i32) -> (i32, i32) {
    %c0_i32 = arith.constant 0 : i32
    %c0_i32_0 = arith.constant 0 : i32
    %c0_i32_1 = arith.constant 0 : i32
    return %c0_i32, %c0_i32_0 : i32, i32
  }
  func.func @transform_10(%arg0: i32) -> (i32, i32) {
    %c0_i32 = arith.constant 0 : i32
    %c0_i32_0 = arith.constant 0 : i32
    %c0_i32_1 = arith.constant 0 : i32
    return %c0_i32, %c0_i32_0 : i32, i32
  }
  func.func @transform_11(%arg0: i32) -> (i32, i32) {
    %c0_i32 = arith.constant 0 : i32
    %c0_i32_0 = arith.constant 0 : i32
    %c0_i32_1 = arith.constant 0 : i32
    return %c0_i32, %c0_i32_0 : i32, i32
  }
  func.func @transform_12(%arg0: i32) -> (i32, i32) {
    %c0_i32 = arith.constant 0 : i32
    %c0_i32_0 = arith.constant 0 : i32
    %c0_i32_1 = arith.constant 0 : i32
    return %c0_i32, %c0_i32_0 : i32, i32
  }
  func.func @transform_14(%arg0: i32) -> (i32, i32) {
    %c0_i32 = arith.constant 0 : i32
    %c0_i32_0 = arith.constant 0 : i32
    %c0_i32_1 = arith.constant 0 : i32
    return %c0_i32, %c0_i32_0 : i32, i32
  }
  func.func @transform_15(%arg0: i32) -> (i32, i32) {
    %c0_i32 = arith.constant 0 : i32
    %c0_i32_0 = arith.constant 0 : i32
    %c0_i32_1 = arith.constant 0 : i32
    return %c0_i32, %c0_i32_0 : i32, i32
  }
  func.func @transform_16(%arg0: i32) -> (i32, i32, i32) {
    %c0_i32 = arith.constant 0 : i32
    %c0_i32_0 = arith.constant 0 : i32
    %c0_i32_1 = arith.constant 0 : i32
    return %arg0, %c0_i32, %c0_i32_0 : i32, i32, i32
  }
}

</mosaic_0001>

<llo_original>
// kernel: _generator_pallas.1
$region0: #{_generator_pallas.1}
  #allocation0 [shape = 'u32[]', space=smem, size = 0x4, offset = 0x4, fixed_abs, tag = 'smem constant byte address 0x4 - core index']
  #allocation1 [shape = 'u32[144,128]{1,0:T(1,128)}', space=vmem, size = 0x12000, scoped, tag = 'internal scratch']
  #allocation2 [shape = 's8[512,1024]{1,0:T(32,128)(4,1)}', space=vmem, size = 0x80000, scoped, tag = 'scratch operand']
  #allocation3 [shape = 'bf16[512,1024]{1,0:T(16,128)(2,1)}', space=vmem, size = 0x100000, scoped, tag = 'scratch operand']
  #allocation4 [shape = 's8[1024,1280]{1,0:T(32,128)(4,1)}', space=vmem, size = 0x140000, scoped, tag = 'scratch operand']
  #allocation5 [shape = 'bf16[1024,1280]{1,0:T(16,128)(2,1)}', space=vmem, size = 0x280000, scoped, tag = 'scratch operand']
  #allocation6 [shape = 's32[5]{0}', space=sflag, size = 0x14, scoped, tag = 'scratch operand']
  #allocation31 [shape = 's32[]', space=sflag, size = 0x4, offset = 0, fixed_abs, tag = 'sflag constant byte address 0x0 - dummy sync flag']
  #allocation32 [shape = 's32[]', space=sflag, size = 0x4, offset = 0, fixed_abs, tag = 'sflag constant byte address 0x0 - dummy sync flag']
  #allocation33 [shape = 'u32[]', space=smem, size = 0x4, offset = 0x44, fixed_abs, tag = 'smem constant byte address 0x44 - assertion arg 0']
  #allocation34 [shape = 'u32[]', space=smem, size = 0x4, offset = 0x48, fixed_abs, tag = 'smem constant byte address 0x48 - assertion arg 1']
  #allocation35 [shape = 's32[]', space=sflag, size = 0x4, offset = 0, fixed_abs, tag = 'sflag constant byte address 0x0 - dummy sync flag']
  #allocation36 [shape = 's32[]', space=sflag, size = 0x4, offset = 0, fixed_abs, tag = 'sflag constant byte address 0x0 - dummy sync flag']
  #allocation37 [shape = 's32[]', space=sflag, size = 0x4, offset = 0, fixed_abs, tag = 'sflag constant byte address 0x0 - dummy sync flag']
  #allocation38 [shape = 's32[]', space=sflag, size = 0x4, offset = 0, fixed_abs, tag = 'sflag constant byte address 0x0 - dummy sync flag']
  #allocation39 [shape = 's32[]', space=sflag, size = 0x4, offset = 0, fixed_abs, tag = 'sflag constant byte address 0x0 - dummy sync flag']
  #allocation40 [shape = 's32[]', space=sflag, size = 0x4, offset = 0, fixed_abs, tag = 'sflag constant byte address 0x0 - dummy sync flag']
  #allocation41 [shape = 's32[]', space=sflag, size = 0x4, offset = 0, fixed_abs, tag = 'sflag constant byte address 0x0 - dummy sync flag']
  #allocation42 [shape = 's32[]', space=sflag, size = 0x4, offset = 0, fixed_abs, tag = 'sflag constant byte address 0x0 - dummy sync flag']
  %s0 = inlined_call_operand.hbm [shape: f32[1,8,32], index: 0, kind: input, shape index: {}]
  %s1 = inlined_call_operand.hbm [shape: bf16[32,128], index: 1, kind: input, shape index: {}]
  %s2 = inlined_call_operand.hbm [shape: f32[1,128], index: 2, kind: input, shape index: {}]
  %s3 = inlined_call_operand.hbm [shape: bf16[128,256], index: 3, kind: input, shape index: {}]
  %s4 = inlined_call_operand.hbm [shape: f32[1,256], index: 4, kind: input, shape index: {}]
  %s5 = inlined_call_operand.hbm [shape: f32[1,256], index: 5, kind: input, shape index: {}]
  %s6 = inlined_call_operand.hbm [shape: bf16[256,512], index: 6, kind: input, shape index: {}]
  %s7 = inlined_call_operand.hbm [shape: f32[1,512], index: 7, kind: input, shape index: {}]
  %s8 = inlined_call_operand.hbm [shape: f32[1,512], index: 8, kind: input, shape index: {}]
  %s9 = inlined_call_operand.hbm [shape: s8[512,1024], index: 9, kind: input, shape index: {}]
  %s10 = inlined_call_operand.hbm [shape: f32[1,1024], index: 10, kind: input, shape index: {}]
  %s11 = inlined_call_operand.hbm [shape: f32[1,1024], index: 11, kind: input, shape index: {}]
  %s12 = inlined_call_operand.hbm [shape: f32[1,1024], index: 12, kind: input, shape index: {}]
  %s13 = inlined_call_operand.hbm [shape: s8[1024,1280], index: 13, kind: input, shape index: {}]
  %s14 = inlined_call_operand.hbm [shape: f32[1,1280], index: 14, kind: input, shape index: {}]
  %s15 = inlined_call_operand.hbm [shape: f32[1,1280], index: 15, kind: input, shape index: {}]
  %s16 = inlined_call_operand.hbm [shape: f32[1,8,1280], index: 16, kind: output, shape index: {}]
  %s17 = sld [smem:[#allocation0]]
  $region166: #{_generator_pallas.1} parent=0
    _
  %s19 = ssub.s32 1, %s17
  %s20 = scalar_select 0, %s19, %s17
  $region1: #{_generator_pallas.1} parent=0
    #allocation7 [shape = 'u8[4096]{0}', space=vmem, size = 0x1000, scoped, tag = 'input window, operand 0, single buffered']
    #allocation8 [shape = 's32[1]{0}', space=sflag, size = 0x4, scoped, tag = 'scoped memory for _generator_pallas.1']
    #allocation9 [shape = 's32[1]{0}', space=sflag, size = 0x4, scoped, tag = 'scoped memory for _generator_pallas.1']
    #allocation10 [shape = 'u8[8192]{0}', space=vmem, size = 0x2000, scoped, tag = 'input window, operand 1, single buffered']
    #allocation11 [shape = 's32[1]{0}', space=sflag, size = 0x4, scoped, tag = 'scoped memory for _generator_pallas.1']
    #allocation12 [shape = 'u8[512]{0}', space=vmem, size = 0x400, scoped, tag = 'input window, operand 2, single buffered']
    #allocation13 [shape = 'u8[65536]{0}', space=vmem, size = 0x10000, scoped, tag = 'input window, operand 3, single buffered']
    #allocation14 [shape = 's32[1]{0}', space=sflag, size = 0x4, scoped, tag = 'scoped memory for _generator_pallas.1']
    #allocation15 [shape = 'u8[1024]{0}', space=vmem, size = 0x400, scoped, tag = 'input window, operand 4, single buffered']
    #allocation16 [shape = 'u8[1024]{0}', space=vmem, size = 0x400, scoped, tag = 'input window, operand 5, single buffered']
    #allocation17 [shape = 's32[1]{0}', space=sflag, size = 0x4, scoped, tag = 'scoped memory for _generator_pallas.1']
    #allocation18 [shape = 'u8[262144]{0}', space=vmem, size = 0x40000, scoped, tag = 'input window, operand 6, single buffered']
    #allocation19 [shape = 'u8[2048]{0}', space=vmem, size = 0x800, scoped, tag = 'input window, operand 7, single buffered']
    #allocation20 [shape = 's32[1]{0}', space=sflag, size = 0x4, scoped, tag = 'scoped memory for _generator_pallas.1']
    #allocation21 [shape = 'u8[2048]{0}', space=vmem, size = 0x800, scoped, tag = 'input window, operand 8, single buffered']
    #allocation22 [shape = 'u8[4096]{0}', space=vmem, size = 0x1000, scoped, tag = 'input window, operand 10, single buffered']
    #allocation23 [shape = 's32[1]{0}', space=sflag, size = 0x4, scoped, tag = 'scoped memory for _generator_pallas.1']
    #allocation24 [shape = 'u8[4096]{0}', space=vmem, size = 0x1000, scoped, tag = 'input window, operand 11, single buffered']
    #allocation25 [shape = 'u8[4096]{0}', space=vmem, size = 0x1000, scoped, tag = 'input window, operand 12, single buffered']
    #allocation26 [shape = 's32[1]{0}', space=sflag, size = 0x4, scoped, tag = 'scoped memory for _generator_pallas.1']
    #allocation27 [shape = 'u8[5120]{0}', space=vmem, size = 0x1400, scoped, tag = 'input window, operand 14, single buffered']
    #allocation28 [shape = 'u8[5120]{0}', space=vmem, size = 0x1400, scoped, tag = 'input window, operand 15, single buffered']
    #allocation29 [shape = 's32[1]{0}', space=sflag, size = 0x4, scoped, tag = 'scoped memory for _generator_pallas.1']
    #allocation30 [shape = 'u8[40960]{0}', space=vmem, size = 0xa000, scoped, tag = 'output window, operand 0, single buffered']
    %21 = vsyncpa [#allocation8], 0
    %22 = vsyncpa [#allocation11], 0
    %23 = vsyncpa [#allocation14], 0
    %24 = vsyncpa [#allocation17], 0
    %25 = vsyncpa [#allocation20], 0
    %26 = vsyncpa [#allocation23], 0
    %27 = vsyncpa [#allocation26], 0
    %28 = vsyncpa [#allocation29], 0
    %29 = vsyncpa [#allocation9], 0
    // Predicated region
    $region2: #{_generator_pallas.1} parent=1 // pred_check
      _
    $region3: #{_generator_pallas.1} parent=1 // pred_check_branch
      %31 = sbr.rel (0) target = $region5
    $region4: #{_generator_pallas.1} parent=1 // pred_region
      %s33 = ssub.s32 128, 128
      %34 = vsyncadd [#allocation8], %s33
      %s36 = sshll.u32 [#allocation7], 4
      %s37 = int_to_ptr.vmem [resolvable:$true] %s36
      %39 = dma.hbm_to_vmem [thread:$0]  %s0, 128, %s37, [#allocation8]
    $region5: #{_generator_pallas.1} parent=1 // pred_fallthru
      _
    // Predicated region
    $region6: #{_generator_pallas.1} parent=1 // pred_check
      _
    $region7: #{_generator_pallas.1} parent=1 // pred_check_branch
      %41 = sbr.rel (0) target = $region9
    $region8: #{_generator_pallas.1} parent=1 // pred_region
      %s43 = ssub.s32 256, 256
      %44 = vsyncadd [#allocation11], %s43
      %s45 = sshll.u32 [#allocation10], 4
      %s46 = int_to_ptr.vmem [resolvable:$true] %s45
      %51 = dma.hbm_to_vmem [thread:$0]  %s1, 256, %s46, [#allocation11], 64, 64, 4
    $region9: #{_generator_pallas.1} parent=1 // pred_fallthru
      _
    // Predicated region
    $region10: #{_generator_pallas.1} parent=1 // pred_check
      _
    $region11: #{_generator_pallas.1} parent=1 // pred_check_branch
      %53 = sbr.rel (0) target = $region13
    $region12: #{_generator_pallas.1} parent=1 // pred_region
      %s55 = ssub.s32 16, 16
      %56 = vsyncadd [#allocation11], %s55
      %s58 = sshll.u32 [#allocation12], 4
      %s59 = int_to_ptr.vmem [resolvable:$true] %s58
      %61 = dma.hbm_to_vmem [thread:$0]  %s2, 16, %s59, [#allocation11]
    $region13: #{_generator_pallas.1} parent=1 // pred_fallthru
      _
    // Predicated region
    $region14: #{_generator_pallas.1} parent=1 // pred_check
      _
    $region15: #{_generator_pallas.1} parent=1 // pred_check_branch
      %63 = sbr.rel (0) target = $region17
    $region16: #{_generator_pallas.1} parent=1 // pred_region
      %s65 = ssub.s32 2048, 2048
      %66 = vsyncadd [#allocation14], %s65
      %s67 = sshll.u32 [#allocation13], 4
      %s68 = int_to_ptr.vmem [resolvable:$true] %s67
      %73 = dma.hbm_to_vmem [thread:$0]  %s3, 2048, %s68, [#allocation14], 128, 128, 8
    $region17: #{_generator_pallas.1} parent=1 // pred_fallthru
      _
    // Predicated region
    $region18: #{_generator_pallas.1} parent=1 // pred_check
      _
    $region19: #{_generator_pallas.1} parent=1 // pred_check_branch
      %75 = sbr.rel (0) target = $region21
    $region20: #{_generator_pallas.1} parent=1 // pred_region
      %s77 = ssub.s32 32, 32
      %78 = vsyncadd [#allocation14], %s77
      %s80 = sshll.u32 [#allocation15], 4
      %s81 = int_to_ptr.vmem [resolvable:$true] %s80
      %83 = dma.hbm_to_vmem [thread:$0]  %s4, 32, %s81, [#allocation14]
    $region21: #{_generator_pallas.1} parent=1 // pred_fallthru
      _
    // Predicated region
    $region22: #{_generator_pallas.1} parent=1 // pred_check
      _
    $region23: #{_generator_pallas.1} parent=1 // pred_check_branch
      %85 = sbr.rel (0) target = $region25
    $region24: #{_generator_pallas.1} parent=1 // pred_region
      %s87 = ssub.s32 32, 32
      %88 = vsyncadd [#allocation17], %s87
      %s90 = sshll.u32 [#allocation16], 4
      %s91 = int_to_ptr.vmem [resolvable:$true] %s90
      %93 = dma.hbm_to_vmem [thread:$0]  %s5, 32, %s91, [#allocation17]
    $region25: #{_generator_pallas.1} parent=1 // pred_fallthru
      _
    // Predicated region
    $region26: #{_generator_pallas.1} parent=1 // pred_check
      _
    $region27: #{_generator_pallas.1} parent=1 // pred_check_branch
      %95 = sbr.rel (0) target = $region29
    $region28: #{_generator_pallas.1} parent=1 // pred_region
      %s97 = ssub.s32 8192, 8192
      %98 = vsyncadd [#allocation17], %s97
      %s99 = sshll.u32 [#allocation18], 4
      %s100 = int_to_ptr.vmem [resolvable:$true] %s99
      %105 = dma.hbm_to_vmem [thread:$0]  %s6, 8192, %s100, [#allocation17], 256, 256, 16
    $region29: #{_generator_pallas.1} parent=1 // pred_fallthru
      _
    // Predicated region
    $region30: #{_generator_pallas.1} parent=1 // pred_check
      _
    $region31: #{_generator_pallas.1} parent=1 // pred_check_branch
      %107 = sbr.rel (0) target = $region33
    $region32: #{_generator_pallas.1} parent=1 // pred_region
      %s109 = ssub.s32 64, 64
      %110 = vsyncadd [#allocation20], %s109
      %s112 = sshll.u32 [#allocation19], 4
      %s113 = int_to_ptr.vmem [resolvable:$true] %s112
      %115 = dma.hbm_to_vmem [thread:$0]  %s7, 64, %s113, [#allocation20]
    $region33: #{_generator_pallas.1} parent=1 // pred_fallthru
      _
    // Predicated region
    $region34: #{_generator_pallas.1} parent=1 // pred_check
      _
    $region35: #{_generator_pallas.1} parent=1 // pred_check_branch
      %117 = sbr.rel (0) target = $region37
    $region36: #{_generator_pallas.1} parent=1 // pred_region
      %s119 = ssub.s32 64, 64
      %120 = vsyncadd [#allocation20], %s119
      %s122 = sshll.u32 [#allocation21], 4
      %s123 = int_to_ptr.vmem [resolvable:$true] %s122
      %125 = dma.hbm_to_vmem [thread:$0]  %s8, 64, %s123, [#allocation20]
    $region37: #{_generator_pallas.1} parent=1 // pred_fallthru
      _
    // Predicated region
    $region38: #{_generator_pallas.1} parent=1 // pred_check
      _
    $region39: #{_generator_pallas.1} parent=1 // pred_check_branch
      %127 = sbr.rel (0) target = $region41
    $region40: #{_generator_pallas.1} parent=1 // pred_region
      %s129 = ssub.s32 128, 128
      %130 = vsyncadd [#allocation23], %s129
      %s132 = sshll.u32 [#allocation22], 4
      %s133 = int_to_ptr.vmem [resolvable:$true] %s132
      %135 = dma.hbm_to_vmem [thread:$0]  %s10, 128, %s133, [#allocation23]
    $region41: #{_generator_pallas.1} parent=1 // pred_fallthru
      _
    // Predicated region
    $region42: #{_generator_pallas.1} parent=1 // pred_check
      _
    $region43: #{_generator_pallas.1} parent=1 // pred_check_branch
      %137 = sbr.rel (0) target = $region45
    $region44: #{_generator_pallas.1} parent=1 // pred_region
      %s139 = ssub.s32 128, 128
      %140 = vsyncadd [#allocation23], %s139
      %s142 = sshll.u32 [#allocation24], 4
      %s143 = int_to_ptr.vmem [resolvable:$true] %s142
      %145 = dma.hbm_to_vmem [thread:$0]  %s11, 128, %s143, [#allocation23]
    $region45: #{_generator_pallas.1} parent=1 // pred_fallthru
      _
    // Predicated region
    $region46: #{_generator_pallas.1} parent=1 // pred_check
      _
    $region47: #{_generator_pallas.1} parent=1 // pred_check_branch
      %147 = sbr.rel (0) target = $region49
    $region48: #{_generator_pallas.1} parent=1 // pred_region
      %s149 = ssub.s32 128, 128
      %150 = vsyncadd [#allocation26], %s149
      %s152 = sshll.u32 [#allocation25], 4
      %s153 = int_to_ptr.vmem [resolvable:$true] %s152
      %155 = dma.hbm_to_vmem [thread:$0]  %s12, 128, %s153, [#allocation26]
    $region49: #{_generator_pallas.1} parent=1 // pred_fallthru
      _
    // Predicated region
    $region50: #{_generator_pallas.1} parent=1 // pred_check
      _
    $region51: #{_generator_pallas.1} parent=1 // pred_check_branch
      %157 = sbr.rel (0) target = $region53
    $region52: #{_generator_pallas.1} parent=1 // pred_region
      %s159 = ssub.s32 160, 160
      %160 = vsyncadd [#allocation26], %s159
      %s162 = sshll.u32 [#allocation27], 4
      %s163 = int_to_ptr.vmem [resolvable:$true] %s162
      %165 = dma.hbm_to_vmem [thread:$0]  %s14, 160, %s163, [#allocation26]
    $region53: #{_generator_pallas.1} parent=1 // pred_fallthru
      _
    // Predicated region
    $region54: #{_generator_pallas.1} parent=1 // pred_check
      _
    $region55: #{_generator_pallas.1} parent=1 // pred_check_branch
      %167 = sbr.rel (0) target = $region57
    $region56: #{_generator_pallas.1} parent=1 // pred_region
      %s169 = ssub.s32 160, 160
      %170 = vsyncadd [#allocation29], %s169
      %s172 = sshll.u32 [#allocation28], 4
      %s173 = int_to_ptr.vmem [resolvable:$true] %s172
      %175 = dma.hbm_to_vmem [thread:$0]  %s15, 160, %s173, [#allocation29]
    $region57: #{_generator_pallas.1} parent=1 // pred_fallthru
      _
    // Predicated region
    $region58: #{_generator_pallas.1} parent=1 // pred_check
      _
    $region59: #{_generator_pallas.1} parent=1 // pred_check_branch
      %177 = sbr.rel (0) target = $region61
    $region60: #{_generator_pallas.1} parent=1 // pred_region
      %178 = dma.done [#allocation8], 128
    $region61: #{_generator_pallas.1} parent=1 // pred_fallthru
      _
    // Predicated region
    $region62: #{_generator_pallas.1} parent=1 // pred_check
      _
    $region63: #{_generator_pallas.1} parent=1 // pred_check_branch
      %180 = sbr.rel (0) target = $region65
    $region64: #{_generator_pallas.1} parent=1 // pred_region
      %181 = dma.done [#allocation11], 256
    $region65: #{_generator_pallas.1} parent=1 // pred_fallthru
      _
    // Predicated region
    $region66: #{_generator_pallas.1} parent=1 // pred_check
      _
    $region67: #{_generator_pallas.1} parent=1 // pred_check_branch
      %183 = sbr.rel (0) target = $region69
    $region68: #{_generator_pallas.1} parent=1 // pred_region
      %184 = dma.done [#allocation11], 16
    $region69: #{_generator_pallas.1} parent=1 // pred_fallthru
      _
    // Predicated region
    $region70: #{_generator_pallas.1} parent=1 // pred_check
      _
    $region71: #{_generator_pallas.1} parent=1 // pred_check_branch
      %186 = sbr.rel (0) target = $region73
    $region72: #{_generator_pallas.1} parent=1 // pred_region
      %187 = dma.done [#allocation14], 2048
    $region73: #{_generator_pallas.1} parent=1 // pred_fallthru
      _
    // Predicated region
    $region74: #{_generator_pallas.1} parent=1 // pred_check
      _
    $region75: #{_generator_pallas.1} parent=1 // pred_check_branch
      %189 = sbr.rel (0) target = $region77
    $region76: #{_generator_pallas.1} parent=1 // pred_region
      %190 = dma.done [#allocation14], 32
    $region77: #{_generator_pallas.1} parent=1 // pred_fallthru
      _
    // Predicated region
    $region78: #{_generator_pallas.1} parent=1 // pred_check
      _
    $region79: #{_generator_pallas.1} parent=1 // pred_check_branch
      %192 = sbr.rel (0) target = $region81
    $region80: #{_generator_pallas.1} parent=1 // pred_region
      %193 = dma.done [#allocation17], 32
    $region81: #{_generator_pallas.1} parent=1 // pred_fallthru
      _
    // Predicated region
    $region82: #{_generator_pallas.1} parent=1 // pred_check
      _
    $region83: #{_generator_pallas.1} parent=1 // pred_check_branch
      %195 = sbr.rel (0) target = $region85
    $region84: #{_generator_pallas.1} parent=1 // pred_region
      %196 = dma.done [#allocation17], 8192
    $region85: #{_generator_pallas.1} parent=1 // pred_fallthru
      _
    // Predicated region
    $region86: #{_generator_pallas.1} parent=1 // pred_check
      _
    $region87: #{_generator_pallas.1} parent=1 // pred_check_branch
      %198 = sbr.rel (0) target = $region89
    $region88: #{_generator_pallas.1} parent=1 // pred_region
      %199 = dma.done [#allocation20], 64
    $region89: #{_generator_pallas.1} parent=1 // pred_fallthru
      _
    // Predicated region
    $region90: #{_generator_pallas.1} parent=1 // pred_check
      _
    $region91: #{_generator_pallas.1} parent=1 // pred_check_branch
      %201 = sbr.rel (0) target = $region93
    $region92: #{_generator_pallas.1} parent=1 // pred_region
      %202 = dma.done [#allocation20], 64
    $region93: #{_generator_pallas.1} parent=1 // pred_fallthru
      _
    // Predicated region
    $region94: #{_generator_pallas.1} parent=1 // pred_check
      _
    $region95: #{_generator_pallas.1} parent=1 // pred_check_branch
      %204 = sbr.rel (0) target = $region97
    $region96: #{_generator_pallas.1} parent=1 // pred_region
      %205 = dma.done [#allocation23], 128
    $region97: #{_generator_pallas.1} parent=1 // pred_fallthru
      _
    // Predicated region
    $region98: #{_generator_pallas.1} parent=1 // pred_check
      _
    $region99: #{_generator_pallas.1} parent=1 // pred_check_branch
      %207 = sbr.rel (0) target = $region101
    $region100: #{_generator_pallas.1} parent=1 // pred_region
      %208 = dma.done [#allocation23], 128
    $region101: #{_generator_pallas.1} parent=1 // pred_fallthru
      _
    // Predicated region
    $region102: #{_generator_pallas.1} parent=1 // pred_check
      _
    $region103: #{_generator_pallas.1} parent=1 // pred_check_branch
      %210 = sbr.rel (0) target = $region105
    $region104: #{_generator_pallas.1} parent=1 // pred_region
      %211 = dma.done [#allocation26], 128
    $region105: #{_generator_pallas.1} parent=1 // pred_fallthru
      _
    // Predicated region
    $region106: #{_generator_pallas.1} parent=1 // pred_check
      _
    $region107: #{_generator_pallas.1} parent=1 // pred_check_branch
      %213 = sbr.rel (0) target = $region109
    $region108: #{_generator_pallas.1} parent=1 // pred_region
      %214 = dma.done [#allocation26], 160
    $region109: #{_generator_pallas.1} parent=1 // pred_fallthru
      _
    // Predicated region
    $region110: #{_generator_pallas.1} parent=1 // pred_check
      _
    $region111: #{_generator_pallas.1} parent=1 // pred_check_branch
      %216 = sbr.rel (0) target = $region113
    $region112: #{_generator_pallas.1} parent=1 // pred_region
      %217 = dma.done [#allocation29], 160
    $region113: #{_generator_pallas.1} parent=1 // pred_fallthru
      _
    %p219 = scmp.eq.s32.totalorder 0, 0
    // Predicated region
    $region114: #{_generator_pallas.1} parent=1 // pred_check
      %p220 = pneg %p219
    $region115: #{_generator_pallas.1} parent=1 // pred_check_branch
      %222 = sbr.rel (%p220) target = $region117
    $region116: #{_generator_pallas.1} parent=1 // pred_region
      // Predicated region
      $region118: #{_generator_pallas.1} parent=116 // pred_check
        _
      $region119: #{_generator_pallas.1} parent=116 // pred_check_branch
        %224 = sbr.rel target = $region121
      $region120: #{_generator_pallas.1} parent=116 // pred_region
        %225 = sst [smem:[#allocation33]] [#allocation32]
        %226 = sst [smem:[#allocation34]] [#allocation31]
      $region121: #{_generator_pallas.1} parent=116 // pred_fallthru
        _
      %228 = shalt.err (0)
      %s230 = sshll.u32 [#allocation2], 4
      %s231 = int_to_ptr.vmem [resolvable:$true] %s230
      %233 = dma.hbm_to_vmem [thread:$0]  %s9, 16384, %s231, [#allocation6]
      %s234 = scalar_lea.sflag [#allocation6], 1
      // Predicated region
      $region122: #{_generator_pallas.1} parent=116 // pred_check
        _
      $region123: #{_generator_pallas.1} parent=116 // pred_check_branch
        %236 = sbr.rel target = $region125
      $region124: #{_generator_pallas.1} parent=116 // pred_region
        %237 = sst [smem:[#allocation33]] [#allocation36]
        %238 = sst [smem:[#allocation34]] [#allocation35]
      $region125: #{_generator_pallas.1} parent=116 // pred_fallthru
        _
      %240 = shalt.err (0)
      %s242 = sshll.u32 [#allocation4], 4
      %s243 = int_to_ptr.vmem [resolvable:$true] %s242
      %245 = dma.hbm_to_vmem [thread:$0]  %s13, 10240, %s243, %s234
      %s246 = scalar_lea.hbm %s13, 10240
      %s247 = scalar_lea.vmem [#allocation4], 640
      %s248 = scalar_lea.sflag [#allocation6], 2
      // Predicated region
      $region126: #{_generator_pallas.1} parent=116 // pred_check
        _
      $region127: #{_generator_pallas.1} parent=116 // pred_check_branch
        %250 = sbr.rel target = $region129
      $region128: #{_generator_pallas.1} parent=116 // pred_region
        %251 = sst [smem:[#allocation33]] [#allocation38]
        %252 = sst [smem:[#allocation34]] [#allocation37]
      $region129: #{_generator_pallas.1} parent=116 // pred_fallthru
        _
      %254 = shalt.err (0)
      %s256 = sshll.u32 %s247, 4
      %s257 = int_to_ptr.vmem [resolvable:$true] %s256
      %259 = dma.hbm_to_vmem [thread:$0]  %s246, 10240, %s257, %s248
      %s260 = scalar_lea.hbm %s13, 20480
      %s261 = scalar_lea.vmem [#allocation4], 1280
      %s262 = scalar_lea.sflag [#allocation6], 3
      // Predicated region
      $region130: #{_generator_pallas.1} parent=116 // pred_check
        _
      $region131: #{_generator_pallas.1} parent=116 // pred_check_branch
        %264 = sbr.rel target = $region133
      $region132: #{_generator_pallas.1} parent=116 // pred_region
        %265 = sst [smem:[#allocation33]] [#allocation40]
        %266 = sst [smem:[#allocation34]] [#allocation39]
      $region133: #{_generator_pallas.1} parent=116 // pred_fallthru
        _
      %268 = shalt.err (0)
      %s270 = sshll.u32 %s261, 4
      %s271 = int_to_ptr.vmem [resolvable:$true] %s270
      %273 = dma.hbm_to_vmem [thread:$0]  %s260, 10240, %s271, %s262
      %s274 = scalar_lea.hbm %s13, 30720
      %s275 = scalar_lea.vmem [#allocation4], 1920
      %s276 = scalar_lea.sflag [#allocation6], 4
      // Predicated region
      $region134: #{_generator_pallas.1} parent=116 // pred_check
        _
      $region135: #{_generator_pallas.1} parent=116 // pred_check_branch
        %278 = sbr.rel target = $region137
      $region136: #{_generator_pallas.1} parent=116 // pred_region
        %279 = sst [smem:[#allocation33]] [#allocation42]
        %280 = sst [smem:[#allocation34]] [#allocation41]
      $region137: #{_generator_pallas.1} parent=116 // pred_fallthru
        _
      %282 = shalt.err (0)
      %s284 = sshll.u32 %s275, 4
      %s285 = int_to_ptr.vmem [resolvable:$true] %s284
      %287 = dma.hbm_to_vmem [thread:$0]  %s274, 10240, %s285, %s276
    $region117: #{_generator_pallas.1} parent=1 // pred_fallthru
      _
    %v288 = vld [vmem:[#allocation7] sm:$0xff]
    %v289 = vpack.c.bf16 %v288, %v288
    %v290 = vld [vmem:[#allocation10] sm:$0xf]
    %v291 = vld [vmem:[#allocation10 + $0x4] sm:$0xf]
    %v292 = vld [vmem:[#allocation10 + $0x8] sm:$0xf]
    %v293 = vld [vmem:[#allocation10 + $0xc] sm:$0xf]
    %v294 = vld [vmem:[#allocation12] sm:$0x1]
    %v296 = vlaneseq
    %v297 = vshrl.u32 %v296, 7
    %v298 = vsub.s32 0, %v297
    %v299 = vrot.slane %v294, %v298
    %v305 = vunpack.c.l.b16 %v290
    %v306 = vunpack.c.l.b16 %v291
    %v307 = vunpack.c.l.b16 %v292
    %v308 = vunpack.c.l.b16 %v293
    %v309 = vpack.c.b16 %v306, %v305
    %v310 = vpack.c.b16 %v308, %v307
    %vm313 = vcmask 261120
    %v315 = vsel %vm313, %v289, 0
    %317 = vmatprep.subr.bf16.mxu0 0
    %318 = vmatpush1.bf16.msra.mxu0 %v309
    %319 = vmatprep.subr.bf16.mxu0 0
    %320 = vmatpush1.bf16.msra.mxu0 %v310
    %321 = vmatprep.subr.bf16.mxu0 0
    %322 = vmatpush1.bf16.msra.mxu0 0
    %323 = vmatprep.subr.bf16.mxu0 0
    %324 = vmatpush1.bf16.msra.mxu0 0
    %325 = vmatprep.subr.bf16.mxu0 0
    %326 = vmatpush1.bf16.msra.mxu0 0
    %327 = vmatprep.subr.bf16.mxu0 0
    %328 = vmatpush1.bf16.msra.mxu0 0
    %329 = vmatprep.subr.bf16.mxu0 0
    %330 = vmatpush1.bf16.msra.mxu0 0
    %331 = vmatprep.subr.bf16.mxu0 0
    %332 = vmatpush1.bf16.msra.mxu0 0
    %333 = vmatprep.subr.bf16.mxu0 0
    %334 = vmatpush1.bf16.msra.mxu0 0
    %335 = vmatprep.subr.bf16.mxu0 0
    %336 = vmatpush1.bf16.msra.mxu0 0
    %337 = vmatprep.subr.bf16.mxu0 0
    %338 = vmatpush1.bf16.msra.mxu0 0
    %339 = vmatprep.subr.bf16.mxu0 0
    %340 = vmatpush1.bf16.msra.mxu0 0
    %341 = vmatprep.subr.bf16.mxu0 0
    %342 = vmatpush1.bf16.msra.mxu0 0
    %343 = vmatprep.subr.bf16.mxu0 0
    %344 = vmatpush1.bf16.msra.mxu0 0
    %345 = vmatprep.subr.bf16.mxu0 0
    %346 = vmatpush1.bf16.msra.mxu0 0
    %347 = vmatprep.subr.bf16.mxu0 0
    %348 = vmatpush1.bf16.msra.mxu0 0
    %349 = vmatprep.mubr.bf16.mxu0 0
    %350 = vmatmul.mubr.bf16.gmra.mrb[0].mxu0 %v315
    %v351 = vpop.f32.mrb[0].mxu0
    %v352 = vadd.f32 %v299, %v351
    %v353 = vpop.f32.mrb[0].mxu0
    %v354 = vpop.f32.mrb[0].mxu0
    %v355 = vpop.f32.mrb[0].mxu0
    %356 = vdwg.mxu0
    %vm357 = vcmp.gt.f32.partialorder %v352, 0.0
    %v358 = vmul.f32 %v352, 0.2
    %v359 = vsel %vm357, %v352, %v358
    %v360 = vpack.c.bf16 %v359, %v359
    %v361 = vld [vmem:[#allocation13] sm:$0xff]
    %v362 = vld [vmem:[#allocation13 + $0x8] sm:$0xff]
    %v363 = vld [vmem:[#allocation13 + $0x10] sm:$0xff]
    %v364 = vld [vmem:[#allocation13 + $0x18] sm:$0xff]
    %v365 = vld [vmem:[#allocation13 + $0x20] sm:$0xff]
    %v366 = vld [vmem:[#allocation13 + $0x28] sm:$0xff]
    %v367 = vld [vmem:[#allocation13 + $0x30] sm:$0xff]
    %v368 = vld [vmem:[#allocation13 + $0x38] sm:$0xff]
    %v369 = vld [vmem:[#allocation13 + $0x40] sm:$0xff]
    %v370 = vld [vmem:[#allocation13 + $0x48] sm:$0xff]
    %v371 = vld [vmem:[#allocation13 + $0x50] sm:$0xff]
    %v372 = vld [vmem:[#allocation13 + $0x58] sm:$0xff]
    %v373 = vld [vmem:[#allocation13 + $0x60] sm:$0xff]
    %v374 = vld [vmem:[#allocation13 + $0x68] sm:$0xff]
    %v375 = vld [vmem:[#allocation13 + $0x70] sm:$0xff]
    %v376 = vld [vmem:[#allocation13 + $0x78] sm:$0xff]
    %v393 = vunpack.c.l.b16 %v361
    %v394 = vunpack.c.h.b16 %v361
    %v395 = vunpack.c.l.b16 %v362
    %v396 = vunpack.c.h.b16 %v362
    %v397 = vunpack.c.l.b16 %v363
    %v398 = vunpack.c.h.b16 %v363
    %v399 = vunpack.c.l.b16 %v364
    %v400 = vunpack.c.h.b16 %v364
    %v401 = vunpack.c.l.b16 %v365
    %v402 = vunpack.c.h.b16 %v365
    %v403 = vunpack.c.l.b16 %v366
    %v404 = vunpack.c.h.b16 %v366
    %v405 = vunpack.c.l.b16 %v367
    %v406 = vunpack.c.h.b16 %v367
    %v407 = vunpack.c.l.b16 %v368
    %v408 = vunpack.c.h.b16 %v368
    %v409 = vunpack.c.l.b16 %v369
    %v410 = vunpack.c.h.b16 %v369
    %v411 = vunpack.c.l.b16 %v370
    %v412 = vunpack.c.h.b16 %v370
    %v413 = vunpack.c.l.b16 %v371
    %v414 = vunpack.c.h.b16 %v371
    %v415 = vunpack.c.l.b16 %v372
    %v416 = vunpack.c.h.b16 %v372
    %v417 = vunpack.c.l.b16 %v373
    %v418 = vunpack.c.h.b16 %v373
    %v419 = vunpack.c.l.b16 %v374
    %v420 = vunpack.c.h.b16 %v374
    %v421 = vunpack.c.l.b16 %v375
    %v422 = vunpack.c.h.b16 %v375
    %v423 = vunpack.c.l.b16 %v376
    %v424 = vunpack.c.h.b16 %v376
    %v425 = vpack.c.b16 %v395, %v393
    %v426 = vpack.c.b16 %v396, %v394
    %v427 = vpack.c.b16 %v399, %v397
    %v428 = vpack.c.b16 %v400, %v398
    %v429 = vpack.c.b16 %v403, %v401
    %v430 = vpack.c.b16 %v404, %v402
    %v431 = vpack.c.b16 %v407, %v405
    %v432 = vpack.c.b16 %v408, %v406
    %v433 = vpack.c.b16 %v411, %v409
    %v434 = vpack.c.b16 %v412, %v410
    %v435 = vpack.c.b16 %v415, %v413
    %v436 = vpack.c.b16 %v416, %v414
    %v437 = vpack.c.b16 %v419, %v417
    %v438 = vpack.c.b16 %v420, %v418
    %v439 = vpack.c.b16 %v423, %v421
    %v440 = vpack.c.b16 %v424, %v422
    %457 = vmatprep.subr.bf16.mxu0 %v426
    %458 = vmatpush1.bf16.msra.mxu0 %v425
    %459 = vmatprep.subr.bf16.mxu0 %v428
    %460 = vmatpush1.bf16.msra.mxu0 %v427
    %461 = vmatprep.subr.bf16.mxu0 %v430
    %462 = vmatpush1.bf16.msra.mxu0 %v429
    %463 = vmatprep.subr.bf16.mxu0 %v432
    %464 = vmatpush1.bf16.msra.mxu0 %v431
    %465 = vmatprep.subr.bf16.mxu0 %v434
    %466 = vmatpush1.bf16.msra.mxu0 %v433
    %467 = vmatprep.subr.bf16.mxu0 %v436
    %468 = vmatpush1.bf16.msra.mxu0 %v435
    %469 = vmatprep.subr.bf16.mxu0 %v438
    %470 = vmatpush1.bf16.msra.mxu0 %v437
    %471 = vmatprep.subr.bf16.mxu0 %v440
    %472 = vmatpush1.bf16.msra.mxu0 %v439
    %473 = vmatprep.subr.bf16.mxu0 0
    %474 = vmatpush1.bf16.msra.mxu0 0
    %475 = vmatprep.subr.bf16.mxu0 0
    %476 = vmatpush1.bf16.msra.mxu0 0
    %477 = vmatprep.subr.bf16.mxu0 0
    %478 = vmatpush1.bf16.msra.mxu0 0
    %479 = vmatprep.subr.bf16.mxu0 0
    %480 = vmatpush1.bf16.msra.mxu0 0
    %481 = vmatprep.subr.bf16.mxu0 0
    %482 = vmatpush1.bf16.msra.mxu0 0
    %483 = vmatprep.subr.bf16.mxu0 0
    %484 = vmatpush1.bf16.msra.mxu0 0
    %485 = vmatprep.subr.bf16.mxu0 0
    %486 = vmatpush1.bf16.msra.mxu0 0
    %487 = vmatprep.subr.bf16.mxu0 0
    %488 = vmatpush1.bf16.msra.mxu0 0
    %489 = vmatprep.mubr.bf16.mxu0 0
    %490 = vmatmul.mubr.bf16.gmra.mrb[0].mxu0 %v360
    %v491 = vpop.f32.mrb[0].mxu0
    %v492 = vadd.f32 0.0, %v491
    %v493 = vpop.f32.mrb[0].mxu0
    %v494 = vadd.f32 0.0, %v493
    %v495 = vpop.f32.mrb[0].mxu0
    %v496 = vpop.f32.mrb[0].mxu0
    %497 = vdwg.mxu0
    %v498 = vld [vmem:[#allocation15] sm:$0x3]
    %v499 = vld [vmem:[#allocation16] sm:$0x3]
    %v500 = vrot.slane %v492, 4
    %v501 = vadd.f32 %v492, %v500
    %v502 = vrot.slane %v501, 2
    %v503 = vadd.f32 %v501, %v502
    %v504 = vrot.slane %v503, 1
    %v505 = vadd.f32 %v503, %v504
    %v506 = vrot.slane %v494, 4
    %v507 = vadd.f32 %v494, %v506
    %v508 = vrot.slane %v507, 2
    %v509 = vadd.f32 %v507, %v508
    %v510 = vrot.slane %v509, 1
    %v511 = vadd.f32 %v509, %v510
    %v512 = vrcp.pop 8.0
    %v513 = vmul.f32 %v505, %v512
    %v514 = vmul.f32 %v511, %v512
    %v515 = vsub.f32 %v492, %v513
    %v516 = vsub.f32 %v494, %v514
    %v517 = vmul.f32 %v515, %v515
    %v518 = vmul.f32 %v516, %v516
    %v519 = vrot.slane %v517, 4
    %v520 = vadd.f32 %v517, %v519
    %v521 = vrot.slane %v520, 2
    %v522 = vadd.f32 %v520, %v521
    %v523 = vrot.slane %v522, 1
    %v524 = vadd.f32 %v522, %v523
    %v525 = vrot.slane %v518, 4
    %v526 = vadd.f32 %v518, %v525
    %v527 = vrot.slane %v526, 2
    %v528 = vadd.f32 %v526, %v527
    %v529 = vrot.slane %v528, 1
    %v530 = vadd.f32 %v528, %v529
    %v531 = vmul.f32 %v524, %v512
    %v532 = vmul.f32 %v530, %v512
    %v533 = vadd.f32 %v531, 0.8
    %v534 = vadd.f32 %v532, 0.8
    %v535 = vrsqrt.pop %v533
    %v536 = vrsqrt.pop %v534
    %v539 = vcombine.low %v535, %v536
    %v541 = vunpack.c.l.s4 1966171168
    %v542 = vunpack.c.0.s8 %v541
    %v543 = vlaneseq
    %v544 = vshrl.u32 %v543, 7
    %v545 = vsub.s32 %v542, %v544
    %v546 = vrot.slane %v539, %v545
    %v548 = vunpack.c.l.s4 1966171168
    %v549 = vunpack.c.0.s8 %v548
    %v550 = vlaneseq
    %v551 = vshrl.u32 %v550, 7
    %v552 = vsub.s32 %v549, %v551
    %v553 = vrot.slane %v546, %v552
    %v555 = vmul.f32 %v498, %v553
    %v557 = vlaneseq
    %v558 = vshrl.u32 %v557, 7
    %v559 = vsub.s32 0, %v558
    %v560 = vrot.slane %v555, %v559
    %v561 = vlaneseq
    %v562 = vshrl.u32 %v561, 7
    %v563 = vsub.s32 1, %v562
    %v564 = vrot.slane %v555, %v563
    %v567 = vmul.f32 %v515, %v560
    %v568 = vmul.f32 %v516, %v564
    %v570 = vlaneseq
    %v571 = vshrl.u32 %v570, 7
    %v572 = vsub.s32 0, %v571
    %v573 = vrot.slane %v499, %v572
    %v574 = vlaneseq
    %v575 = vshrl.u32 %v574, 7
    %v576 = vsub.s32 1, %v575
    %v577 = vrot.slane %v499, %v576
    %v580 = vadd.f32 %v567, %v573
    %v581 = vadd.f32 %v568, %v577
    %vm582 = vcmp.gt.f32.partialorder %v580, 0.0
    %vm583 = vcmp.gt.f32.partialorder %v581, 0.0
    %v584 = vmul.f32 %v580, 0.2
    %v585 = vmul.f32 %v581, 0.2
    %v586 = vsel %vm582, %v580, %v584
    %v587 = vsel %vm583, %v581, %v585
    %v588 = vpack.c.bf16 %v586, %v586
    %v589 = vpack.c.bf16 %v587, %v587
    %v590 = vld [vmem:[#allocation18] sm:$0xff]
    %v591 = vld [vmem:[#allocation18 + $0x8] sm:$0xff]
    %v592 = vld [vmem:[#allocation18 + $0x10] sm:$0xff]
    %v593 = vld [vmem:[#allocation18 + $0x18] sm:$0xff]
    %v594 = vld [vmem:[#allocation18 + $0x20] sm:$0xff]
    %v595 = vld [vmem:[#allocation18 + $0x28] sm:$0xff]
    %v596 = vld [vmem:[#allocation18 + $0x30] sm:$0xff]
    %v597 = vld [vmem:[#allocation18 + $0x38] sm:$0xff]
    %v598 = vld [vmem:[#allocation18 + $0x40] sm:$0xff]
    %v599 = vld [vmem:[#allocation18 + $0x48] sm:$0xff]
    %v600 = vld [vmem:[#allocation18 + $0x50] sm:$0xff]
    %v601 = vld [vmem:[#allocation18 + $0x58] sm:$0xff]
    %v602 = vld [vmem:[#allocation18 + $0x60] sm:$0xff]
    %v603 = vld [vmem:[#allocation18 + $0x68] sm:$0xff]
    %v604 = vld [vmem:[#allocation18 + $0x70] sm:$0xff]
    %v605 = vld [vmem:[#allocation18 + $0x78] sm:$0xff]
    %v606 = vld [vmem:[#allocation18 + $0x80] sm:$0xff]
    %v607 = vld [vmem:[#allocation18 + $0x88] sm:$0xff]
    %v608 = vld [vmem:[#allocation18 + $0x90] sm:$0xff]
    %v609 = vld [vmem:[#allocation18 + $0x98] sm:$0xff]
    %v610 = vld [vmem:[#allocation18 + $0xa0] sm:$0xff]
    %v611 = vld [vmem:[#allocation18 + $0xa8] sm:$0xff]
    %v612 = vld [vmem:[#allocation18 + $0xb0] sm:$0xff]
    %v613 = vld [vmem:[#allocation18 + $0xb8] sm:$0xff]
    %v614 = vld [vmem:[#allocation18 + $0xc0] sm:$0xff]
    %v615 = vld [vmem:[#allocation18 + $0xc8] sm:$0xff]
    %v616 = vld [vmem:[#allocation18 + $0xd0] sm:$0xff]
    %v617 = vld [vmem:[#allocation18 + $0xd8] sm:$0xff]
    %v618 = vld [vmem:[#allocation18 + $0xe0] sm:$0xff]
    %v619 = vld [vmem:[#allocation18 + $0xe8] sm:$0xff]
    %v620 = vld [vmem:[#allocation18 + $0xf0] sm:$0xff]
    %v621 = vld [vmem:[#allocation18 + $0xf8] sm:$0xff]
    %v622 = vld [vmem:[#allocation18 + $0x100] sm:$0xff]
    %v623 = vld [vmem:[#allocation18 + $0x108] sm:$0xff]
    %v624 = vld [vmem:[#allocation18 + $0x110] sm:$0xff]
    %v625 = vld [vmem:[#allocation18 + $0x118] sm:$0xff]
    %v626 = vld [vmem:[#allocation18 + $0x120] sm:$0xff]
    %v627 = vld [vmem:[#allocation18 + $0x128] sm:$0xff]
    %v628 = vld [vmem:[#allocation18 + $0x130] sm:$0xff]
    %v629 = vld [vmem:[#allocation18 + $0x138] sm:$0xff]
    %v630 = vld [vmem:[#allocation18 + $0x140] sm:$0xff]
    %v631 = vld [vmem:[#allocation18 + $0x148] sm:$0xff]
    %v632 = vld [vmem:[#allocation18 + $0x150] sm:$0xff]
    %v633 = vld [vmem:[#allocation18 + $0x158] sm:$0xff]
    %v634 = vld [vmem:[#allocation18 + $0x160] sm:$0xff]
    %v635 = vld [vmem:[#allocation18 + $0x168] sm:$0xff]
    %v636 = vld [vmem:[#allocation18 + $0x170] sm:$0xff]
    %v637 = vld [vmem:[#allocation18 + $0x178] sm:$0xff]
    %v638 = vld [vmem:[#allocation18 + $0x180] sm:$0xff]
    %v639 = vld [vmem:[#allocation18 + $0x188] sm:$0xff]
    %v640 = vld [vmem:[#allocation18 + $0x190] sm:$0xff]
    %v641 = vld [vmem:[#allocation18 + $0x198] sm:$0xff]
    %v642 = vld [vmem:[#allocation18 + $0x1a0] sm:$0xff]
    %v643 = vld [vmem:[#allocation18 + $0x1a8] sm:$0xff]
    %v644 = vld [vmem:[#allocation18 + $0x1b0] sm:$0xff]
    %v645 = vld [vmem:[#allocation18 + $0x1b8] sm:$0xff]
    %v646 = vld [vmem:[#allocation18 + $0x1c0] sm:$0xff]
    %v647 = vld [vmem:[#allocation18 + $0x1c8] sm:$0xff]
    %v648 = vld [vmem:[#allocation18 + $0x1d0] sm:$0xff]
    %v649 = vld [vmem:[#allocation18 + $0x1d8] sm:$0xff]
    %v650 = vld [vmem:[#allocation18 + $0x1e0] sm:$0xff]
    %v651 = vld [vmem:[#allocation18 + $0x1e8] sm:$0xff]
    %v652 = vld [vmem:[#allocation18 + $0x1f0] sm:$0xff]
    %v653 = vld [vmem:[#allocation18 + $0x1f8] sm:$0xff]
    %v718 = vunpack.c.l.b16 %v590
    %v719 = vunpack.c.h.b16 %v590
    %v720 = vunpack.c.l.b16 %v591
    %v721 = vunpack.c.h.b16 %v591
    %v722 = vunpack.c.l.b16 %v592
    %v723 = vunpack.c.h.b16 %v592
    %v724 = vunpack.c.l.b16 %v593
    %v725 = vunpack.c.h.b16 %v593
    %v726 = vunpack.c.l.b16 %v594
    %v727 = vunpack.c.h.b16 %v594
    %v728 = vunpack.c.l.b16 %v595
    %v729 = vunpack.c.h.b16 %v595
    %v730 = vunpack.c.l.b16 %v596
    %v731 = vunpack.c.h.b16 %v596
    %v732 = vunpack.c.l.b16 %v597
    %v733 = vunpack.c.h.b16 %v597
    %v734 = vunpack.c.l.b16 %v598
    %v735 = vunpack.c.h.b16 %v598
    %v736 = vunpack.c.l.b16 %v599
    %v737 = vunpack.c.h.b16 %v599
    %v738 = vunpack.c.l.b16 %v600
    %v739 = vunpack.c.h.b16 %v600
    %v740 = vunpack.c.l.b16 %v601
    %v741 = vunpack.c.h.b16 %v601
    %v742 = vunpack.c.l.b16 %v602
    %v743 = vunpack.c.h.b16 %v602
    %v744 = vunpack.c.l.b16 %v603
    %v745 = vunpack.c.h.b16 %v603
    %v746 = vunpack.c.l.b16 %v604
    %v747 = vunpack.c.h.b16 %v604
    %v748 = vunpack.c.l.b16 %v605
    %v749 = vunpack.c.h.b16 %v605
    %v750 = vunpack.c.l.b16 %v606
    %v751 = vunpack.c.h.b16 %v606
    %v752 = vunpack.c.l.b16 %v607
    %v753 = vunpack.c.h.b16 %v607
    %v754 = vunpack.c.l.b16 %v608
    %v755 = vunpack.c.h.b16 %v608
    %v756 = vunpack.c.l.b16 %v609
    %v757 = vunpack.c.h.b16 %v609
    %v758 = vunpack.c.l.b16 %v610
    %v759 = vunpack.c.h.b16 %v610
    %v760 = vunpack.c.l.b16 %v611
    %v761 = vunpack.c.h.b16 %v611
    %v762 = vunpack.c.l.b16 %v612
    %v763 = vunpack.c.h.b16 %v612
    %v764 = vunpack.c.l.b16 %v613
    %v765 = vunpack.c.h.b16 %v613
    %v766 = vunpack.c.l.b16 %v614
    %v767 = vunpack.c.h.b16 %v614
    %v768 = vunpack.c.l.b16 %v615
    %v769 = vunpack.c.h.b16 %v615
    %v770 = vunpack.c.l.b16 %v616
    %v771 = vunpack.c.h.b16 %v616
    %v772 = vunpack.c.l.b16 %v617
    %v773 = vunpack.c.h.b16 %v617
    %v774 = vunpack.c.l.b16 %v618
    %v775 = vunpack.c.h.b16 %v618
    %v776 = vunpack.c.l.b16 %v619
    %v777 = vunpack.c.h.b16 %v619
    %v778 = vunpack.c.l.b16 %v620
    %v779 = vunpack.c.h.b16 %v620
    %v780 = vunpack.c.l.b16 %v621
    %v781 = vunpack.c.h.b16 %v621
    %v782 = vunpack.c.l.b16 %v622
    %v783 = vunpack.c.h.b16 %v622
    %v784 = vunpack.c.l.b16 %v623
    %v785 = vunpack.c.h.b16 %v623
    %v786 = vunpack.c.l.b16 %v624
    %v787 = vunpack.c.h.b16 %v624
    %v788 = vunpack.c.l.b16 %v625
    %v789 = vunpack.c.h.b16 %v625
    %v790 = vunpack.c.l.b16 %v626
    %v791 = vunpack.c.h.b16 %v626
    %v792 = vunpack.c.l.b16 %v627
    %v793 = vunpack.c.h.b16 %v627
    %v794 = vunpack.c.l.b16 %v628
    %v795 = vunpack.c.h.b16 %v628
    %v796 = vunpack.c.l.b16 %v629
    %v797 = vunpack.c.h.b16 %v629
    %v798 = vunpack.c.l.b16 %v630
    %v799 = vunpack.c.h.b16 %v630
    %v800 = vunpack.c.l.b16 %v631
    %v801 = vunpack.c.h.b16 %v631
    %v802 = vunpack.c.l.b16 %v632
    %v803 = vunpack.c.h.b16 %v632
    %v804 = vunpack.c.l.b16 %v633
    %v805 = vunpack.c.h.b16 %v633
    %v806 = vunpack.c.l.b16 %v634
    %v807 = vunpack.c.h.b16 %v634
    %v808 = vunpack.c.l.b16 %v635
    %v809 = vunpack.c.h.b16 %v635
    %v810 = vunpack.c.l.b16 %v636
    %v811 = vunpack.c.h.b16 %v636
    %v812 = vunpack.c.l.b16 %v637
    %v813 = vunpack.c.h.b16 %v637
    %v814 = vunpack.c.l.b16 %v638
    %v815 = vunpack.c.h.b16 %v638
    %v816 = vunpack.c.l.b16 %v639
    %v817 = vunpack.c.h.b16 %v639
    %v818 = vunpack.c.l.b16 %v640
    %v819 = vunpack.c.h.b16 %v640
    %v820 = vunpack.c.l.b16 %v641
    %v821 = vunpack.c.h.b16 %v641
    %v822 = vunpack.c.l.b16 %v642
    %v823 = vunpack.c.h.b16 %v642
    %v824 = vunpack.c.l.b16 %v643
    %v825 = vunpack.c.h.b16 %v643
    %v826 = vunpack.c.l.b16 %v644
    %v827 = vunpack.c.h.b16 %v644
    %v828 = vunpack.c.l.b16 %v645
    %v829 = vunpack.c.h.b16 %v645
    %v830 = vunpack.c.l.b16 %v646
    %v831 = vunpack.c.h.b16 %v646
    %v832 = vunpack.c.l.b16 %v647
    %v833 = vunpack.c.h.b16 %v647
    %v834 = vunpack.c.l.b16 %v648
    %v835 = vunpack.c.h.b16 %v648
    %v836 = vunpack.c.l.b16 %v649
    %v837 = vunpack.c.h.b16 %v649
    %v838 = vunpack.c.l.b16 %v650
    %v839 = vunpack.c.h.b16 %v650
    %v840 = vunpack.c.l.b16 %v651
    %v841 = vunpack.c.h.b16 %v651
    %v842 = vunpack.c.l.b16 %v652
    %v843 = vunpack.c.h.b16 %v652
    %v844 = vunpack.c.l.b16 %v653
    %v845 = vunpack.c.h.b16 %v653
    %v846 = vpack.c.b16 %v722, %v718
    %v847 = vpack.c.b16 %v723, %v719
    %v848 = vpack.c.b16 %v724, %v720
    %v849 = vpack.c.b16 %v725, %v721
    %v850 = vpack.c.b16 %v730, %v726
    %v851 = vpack.c.b16 %v731, %v727
    %v852 = vpack.c.b16 %v732, %v728
    %v853 = vpack.c.b16 %v733, %v729
    %v854 = vpack.c.b16 %v738, %v734
    %v855 = vpack.c.b16 %v739, %v735
    %v856 = vpack.c.b16 %v740, %v736
    %v857 = vpack.c.b16 %v741, %v737
    %v858 = vpack.c.b16 %v746, %v742
    %v859 = vpack.c.b16 %v747, %v743
    %v860 = vpack.c.b16 %v748, %v744
    %v861 = vpack.c.b16 %v749, %v745
    %v862 = vpack.c.b16 %v754, %v750
    %v863 = vpack.c.b16 %v755, %v751
    %v864 = vpack.c.b16 %v756, %v752
    %v865 = vpack.c.b16 %v757, %v753
    %v866 = vpack.c.b16 %v762, %v758
    %v867 = vpack.c.b16 %v763, %v759
    %v868 = vpack.c.b16 %v764, %v760
    %v869 = vpack.c.b16 %v765, %v761
    %v870 = vpack.c.b16 %v770, %v766
    %v871 = vpack.c.b16 %v771, %v767
    %v872 = vpack.c.b16 %v772, %v768
    %v873 = vpack.c.b16 %v773, %v769
    %v874 = vpack.c.b16 %v778, %v774
    %v875 = vpack.c.b16 %v779, %v775
    %v876 = vpack.c.b16 %v780, %v776
    %v877 = vpack.c.b16 %v781, %v777
    %v878 = vpack.c.b16 %v786, %v782
    %v879 = vpack.c.b16 %v787, %v783
    %v880 = vpack.c.b16 %v788, %v784
    %v881 = vpack.c.b16 %v789, %v785
    %v882 = vpack.c.b16 %v794, %v790
    %v883 = vpack.c.b16 %v795, %v791
    %v884 = vpack.c.b16 %v796, %v792
    %v885 = vpack.c.b16 %v797, %v793
    %v886 = vpack.c.b16 %v802, %v798
    %v887 = vpack.c.b16 %v803, %v799
    %v888 = vpack.c.b16 %v804, %v800
    %v889 = vpack.c.b16 %v805, %v801
    %v890 = vpack.c.b16 %v810, %v806
    %v891 = vpack.c.b16 %v811, %v807
    %v892 = vpack.c.b16 %v812, %v808
    %v893 = vpack.c.b16 %v813, %v809
    %v894 = vpack.c.b16 %v818, %v814
    %v895 = vpack.c.b16 %v819, %v815
    %v896 = vpack.c.b16 %v820, %v816
    %v897 = vpack.c.b16 %v821, %v817
    %v898 = vpack.c.b16 %v826, %v822
    %v899 = vpack.c.b16 %v827, %v823
    %v900 = vpack.c.b16 %v828, %v824
    %v901 = vpack.c.b16 %v829, %v825
    %v902 = vpack.c.b16 %v834, %v830
    %v903 = vpack.c.b16 %v835, %v831
    %v904 = vpack.c.b16 %v836, %v832
    %v905 = vpack.c.b16 %v837, %v833
    %v906 = vpack.c.b16 %v842, %v838
    %v907 = vpack.c.b16 %v843, %v839
    %v908 = vpack.c.b16 %v844, %v840
    %v909 = vpack.c.b16 %v845, %v841
    %974 = vmatprep.subr.bf16.mxu0 %v847
    %975 = vmatpush1.bf16.msra.mxu0 %v846
    %976 = vmatprep.subr.bf16.mxu0 %v851
    %977 = vmatpush1.bf16.msra.mxu0 %v850
    %978 = vmatprep.subr.bf16.mxu0 %v855
    %979 = vmatpush1.bf16.msra.mxu0 %v854
    %980 = vmatprep.subr.bf16.mxu0 %v859
    %981 = vmatpush1.bf16.msra.mxu0 %v858
    %982 = vmatprep.subr.bf16.mxu0 %v863
    %983 = vmatpush1.bf16.msra.mxu0 %v862
    %984 = vmatprep.subr.bf16.mxu0 %v867
    %985 = vmatpush1.bf16.msra.mxu0 %v866
    %986 = vmatprep.subr.bf16.mxu0 %v871
    %987 = vmatpush1.bf16.msra.mxu0 %v870
    %988 = vmatprep.subr.bf16.mxu0 %v875
    %989 = vmatpush1.bf16.msra.mxu0 %v874
    %990 = vmatprep.subr.bf16.mxu0 %v879
    %991 = vmatpush1.bf16.msra.mxu0 %v878
    %992 = vmatprep.subr.bf16.mxu0 %v883
    %993 = vmatpush1.bf16.msra.mxu0 %v882
    %994 = vmatprep.subr.bf16.mxu0 %v887
    %995 = vmatpush1.bf16.msra.mxu0 %v886
    %996 = vmatprep.subr.bf16.mxu0 %v891
    %997 = vmatpush1.bf16.msra.mxu0 %v890
    %998 = vmatprep.subr.bf16.mxu0 %v895
    %999 = vmatpush1.bf16.msra.mxu0 %v894
    %1000 = vmatprep.subr.bf16.mxu0 %v899
    %1001 = vmatpush1.bf16.msra.mxu0 %v898
    %1002 = vmatprep.subr.bf16.mxu0 %v903
    %1003 = vmatpush1.bf16.msra.mxu0 %v902
    %1004 = vmatprep.subr.bf16.mxu0 %v907
    %1005 = vmatpush1.bf16.msra.mxu0 %v906
    %1006 = vmatprep.mubr.bf16.mxu0 %v589
    %1007 = vmatmul.mubr.bf16.gmra.mrb[0].mxu0 %v588
    %v1008 = vpop.f32.mrb[0].mxu0
    %v1009 = vadd.f32 0.0, %v1008
    %v1010 = vpop.f32.mrb[0].mxu0
    %v1011 = vadd.f32 0.0, %v1010
    %v1012 = vpop.f32.mrb[0].mxu0
    %v1013 = vpop.f32.mrb[0].mxu0
    %1014 = vdwg.mxu0
    %1015 = vmatprep.subr.bf16.mxu0 %v849
    %1016 = vmatpush1.bf16.msra.mxu0 %v848
    %1017 = vmatprep.subr.bf16.mxu0 %v853
    %1018 = vmatpush1.bf16.msra.mxu0 %v852
    %1019 = vmatprep.subr.bf16.mxu0 %v857
    %1020 = vmatpush1.bf16.msra.mxu0 %v856
    %1021 = vmatprep.subr.bf16.mxu0 %v861
    %1022 = vmatpush1.bf16.msra.mxu0 %v860
    %1023 = vmatprep.subr.bf16.mxu0 %v865
    %1024 = vmatpush1.bf16.msra.mxu0 %v864
    %1025 = vmatprep.subr.bf16.mxu0 %v869
    %1026 = vmatpush1.bf16.msra.mxu0 %v868
    %1027 = vmatprep.subr.bf16.mxu0 %v873
    %1028 = vmatpush1.bf16.msra.mxu0 %v872
    %1029 = vmatprep.subr.bf16.mxu0 %v877
    %1030 = vmatpush1.bf16.msra.mxu0 %v876
    %1031 = vmatprep.subr.bf16.mxu0 %v881
    %1032 = vmatpush1.bf16.msra.mxu0 %v880
    %1033 = vmatprep.subr.bf16.mxu0 %v885
    %1034 = vmatpush1.bf16.msra.mxu0 %v884
    %1035 = vmatprep.subr.bf16.mxu0 %v889
    %1036 = vmatpush1.bf16.msra.mxu0 %v888
    %1037 = vmatprep.subr.bf16.mxu0 %v893
    %1038 = vmatpush1.bf16.msra.mxu0 %v892
    %1039 = vmatprep.subr.bf16.mxu0 %v897
    %1040 = vmatpush1.bf16.msra.mxu0 %v896
    %1041 = vmatprep.subr.bf16.mxu0 %v901
    %1042 = vmatpush1.bf16.msra.mxu0 %v900
    %1043 = vmatprep.subr.bf16.mxu0 %v905
    %1044 = vmatpush1.bf16.msra.mxu0 %v904
    %1045 = vmatprep.subr.bf16.mxu0 %v909
    %1046 = vmatpush1.bf16.msra.mxu0 %v908
    %1047 = vmatprep.mubr.bf16.mxu0 %v589
    %1048 = vmatmul.mubr.bf16.gmra.mrb[0].mxu0 %v588
    %v1049 = vpop.f32.mrb[0].mxu0
    %v1050 = vadd.f32 0.0, %v1049
    %v1051 = vpop.f32.mrb[0].mxu0
    %v1052 = vadd.f32 0.0, %v1051
    %v1053 = vpop.f32.mrb[0].mxu0
    %v1054 = vpop.f32.mrb[0].mxu0
    %1055 = vdwg.mxu0
    %v1056 = vld [vmem:[#allocation19] sm:$0xf]
    %v1057 = vld [vmem:[#allocation21] sm:$0xf]
    %v1058 = vrot.slane %v1009, 4
    %v1059 = vadd.f32 %v1009, %v1058
    %v1060 = vrot.slane %v1059, 2
    %v1061 = vadd.f32 %v1059, %v1060
    %v1062 = vrot.slane %v1061, 1
    %v1063 = vadd.f32 %v1061, %v1062
    %v1064 = vrot.slane %v1011, 4
    %v1065 = vadd.f32 %v1011, %v1064
    %v1066 = vrot.slane %v1065, 2
    %v1067 = vadd.f32 %v1065, %v1066
    %v1068 = vrot.slane %v1067, 1
    %v1069 = vadd.f32 %v1067, %v1068
    %v1070 = vrot.slane %v1050, 4
    %v1071 = vadd.f32 %v1050, %v1070
    %v1072 = vrot.slane %v1071, 2
    %v1073 = vadd.f32 %v1071, %v1072
    %v1074 = vrot.slane %v1073, 1
    %v1075 = vadd.f32 %v1073, %v1074
    %v1076 = vrot.slane %v1052, 4
    %v1077 = vadd.f32 %v1052, %v1076
    %v1078 = vrot.slane %v1077, 2
    %v1079 = vadd.f32 %v1077, %v1078
    %v1080 = vrot.slane %v1079, 1
    %v1081 = vadd.f32 %v1079, %v1080
    %v1082 = vmul.f32 %v1063, %v512
    %v1083 = vmul.f32 %v1069, %v512
    %v1084 = vmul.f32 %v1075, %v512
    %v1085 = vmul.f32 %v1081, %v512
    %v1086 = vsub.f32 %v1009, %v1082
    %v1087 = vsub.f32 %v1011, %v1083
    %v1088 = vsub.f32 %v1050, %v1084
    %v1089 = vsub.f32 %v1052, %v1085
    %v1090 = vmul.f32 %v1086, %v1086
    %v1091 = vmul.f32 %v1087, %v1087
    %v1092 = vmul.f32 %v1088, %v1088
    %v1093 = vmul.f32 %v1089, %v1089
    %v1094 = vrot.slane %v1090, 4
    %v1095 = vadd.f32 %v1090, %v1094
    %v1096 = vrot.slane %v1095, 2
    %v1097 = vadd.f32 %v1095, %v1096
    %v1098 = vrot.slane %v1097, 1
    %v1099 = vadd.f32 %v1097, %v1098
    %v1100 = vrot.slane %v1091, 4
    %v1101 = vadd.f32 %v1091, %v1100
    %v1102 = vrot.slane %v1101, 2
    %v1103 = vadd.f32 %v1101, %v1102
    %v1104 = vrot.slane %v1103, 1
    %v1105 = vadd.f32 %v1103, %v1104
    %v1106 = vrot.slane %v1092, 4
    %v1107 = vadd.f32 %v1092, %v1106
    %v1108 = vrot.slane %v1107, 2
    %v1109 = vadd.f32 %v1107, %v1108
    %v1110 = vrot.slane %v1109, 1
    %v1111 = vadd.f32 %v1109, %v1110
    %v1112 = vrot.slane %v1093, 4
    %v1113 = vadd.f32 %v1093, %v1112
    %v1114 = vrot.slane %v1113, 2
    %v1115 = vadd.f32 %v1113, %v1114
    %v1116 = vrot.slane %v1115, 1
    %v1117 = vadd.f32 %v1115, %v1116
    %v1118 = vmul.f32 %v1099, %v512
    %v1119 = vmul.f32 %v1105, %v512
    %v1120 = vmul.f32 %v1111, %v512
    %v1121 = vmul.f32 %v1117, %v512
    %v1122 = vadd.f32 %v1118, 0.8
    %v1123 = vadd.f32 %v1119, 0.8
    %v1124 = vadd.f32 %v1120, 0.8
    %v1125 = vadd.f32 %v1121, 0.8
    %v1126 = vrsqrt.pop %v1122
    %v1127 = vrsqrt.pop %v1123
    %v1128 = vrsqrt.pop %v1124
    %v1129 = vrsqrt.pop %v1125
    %v1134 = vcombine.low %v1126, %v1127
    %v1135 = vcombine.low %v1128, %v1129
    %v1137 = vunpack.c.l.s4 1966171168
    %v1138 = vunpack.c.0.s8 %v1137
    %v1139 = vlaneseq
    %v1140 = vshrl.u32 %v1139, 7
    %v1141 = vsub.s32 %v1138, %v1140
    %v1142 = vrot.slane %v1134, %v1141
    %v1144 = vunpack.c.l.s4 1966171168
    %v1145 = vunpack.c.0.s8 %v1144
    %v1146 = vlaneseq
    %v1147 = vshrl.u32 %v1146, 7
    %v1148 = vsub.s32 %v1145, %v1147
    %v1149 = vrot.slane %v1135, %v1148
    %v1150 = vcombine.low %v1142, %v1149
    %v1152 = vunpack.c.l.s4 1966171168
    %v1153 = vunpack.c.0.s8 %v1152
    %v1154 = vlaneseq
    %v1155 = vshrl.u32 %v1154, 7
    %v1156 = vsub.s32 %v1153, %v1155
    %v1157 = vrot.slane %v1150, %v1156
    %v1159 = vmul.f32 %v1056, %v1157
    %v1161 = vlaneseq
    %v1162 = vshrl.u32 %v1161, 7
    %v1163 = vsub.s32 0, %v1162
    %v1164 = vrot.slane %v1159, %v1163
    %v1165 = vlaneseq
    %v1166 = vshrl.u32 %v1165, 7
    %v1167 = vsub.s32 1, %v1166
    %v1168 = vrot.slane %v1159, %v1167
    %v1169 = vlaneseq
    %v1170 = vshrl.u32 %v1169, 7
    %v1171 = vsub.s32 2, %v1170
    %v1172 = vrot.slane %v1159, %v1171
    %v1173 = vlaneseq
    %v1174 = vshrl.u32 %v1173, 7
    %v1175 = vsub.s32 3, %v1174
    %v1176 = vrot.slane %v1159, %v1175
    %v1181 = vmul.f32 %v1086, %v1164
    %v1182 = vmul.f32 %v1087, %v1168
    %v1183 = vmul.f32 %v1088, %v1172
    %v1184 = vmul.f32 %v1089, %v1176
    %v1186 = vlaneseq
    %v1187 = vshrl.u32 %v1186, 7
    %v1188 = vsub.s32 0, %v1187
    %v1189 = vrot.slane %v1057, %v1188
    %v1190 = vlaneseq
    %v1191 = vshrl.u32 %v1190, 7
    %v1192 = vsub.s32 1, %v1191
    %v1193 = vrot.slane %v1057, %v1192
    %v1194 = vlaneseq
    %v1195 = vshrl.u32 %v1194, 7
    %v1196 = vsub.s32 2, %v1195
    %v1197 = vrot.slane %v1057, %v1196
    %v1198 = vlaneseq
    %v1199 = vshrl.u32 %v1198, 7
    %v1200 = vsub.s32 3, %v1199
    %v1201 = vrot.slane %v1057, %v1200
    %v1206 = vadd.f32 %v1181, %v1189
    %v1207 = vadd.f32 %v1182, %v1193
    %v1208 = vadd.f32 %v1183, %v1197
    %v1209 = vadd.f32 %v1184, %v1201
    %vm1210 = vcmp.gt.f32.partialorder %v1206, 0.0
    %vm1211 = vcmp.gt.f32.partialorder %v1207, 0.0
    %vm1212 = vcmp.gt.f32.partialorder %v1208, 0.0
    %vm1213 = vcmp.gt.f32.partialorder %v1209, 0.0
    %v1214 = vmul.f32 %v1206, 0.2
    %v1215 = vmul.f32 %v1207, 0.2
    %v1216 = vmul.f32 %v1208, 0.2
    %v1217 = vmul.f32 %v1209, 0.2
    %v1218 = vsel %vm1210, %v1206, %v1214
    %v1219 = vsel %vm1211, %v1207, %v1215
    %v1220 = vsel %vm1212, %v1208, %v1216
    %v1221 = vsel %vm1213, %v1209, %v1217
    // Predicated region
    $region138: #{_generator_pallas.1} parent=1 // pred_check
      %p1222 = pneg %p219
    $region139: #{_generator_pallas.1} parent=1 // pred_check_branch
      %1224 = sbr.rel (%p1222) target = $region141
    $region140: #{_generator_pallas.1} parent=1 // pred_region
      %s1225 = smul.u32 2, 64
      %s1226 = smul.u32 %s1225, 8
      %s1227 = sshll.u32 %s1226, 4
      %1228 = dma.done [#allocation6], %s1227
      %v1229 = vld [vmem:[#allocation2] sm:$0xff]
      %v1230 = vld [vmem:[#allocation2 + $0x8] sm:$0xff]
      %v1231 = vld [vmem:[#allocation2 + $0x10] sm:$0xff]
      %v1232 = vld [vmem:[#allocation2 + $0x18] sm:$0xff]
      %v1233 = vld [vmem:[#allocation2 + $0x20] sm:$0xff]
      %v1234 = vld [vmem:[#allocation2 + $0x28] sm:$0xff]
      %v1235 = vld [vmem:[#allocation2 + $0x30] sm:$0xff]
      %v1236 = vld [vmem:[#allocation2 + $0x38] sm:$0xff]
      %v1237 = vld [vmem:[#allocation2 + $0x40] sm:$0xff]
      %v1238 = vld [vmem:[#allocation2 + $0x48] sm:$0xff]
      %v1239 = vld [vmem:[#allocation2 + $0x50] sm:$0xff]
      %v1240 = vld [vmem:[#allocation2 + $0x58] sm:$0xff]
      %v1241 = vld [vmem:[#allocation2 + $0x60] sm:$0xff]
      %v1242 = vld [vmem:[#allocation2 + $0x68] sm:$0xff]
      %v1243 = vld [vmem:[#allocation2 + $0x70] sm:$0xff]
      %v1244 = vld [vmem:[#allocation2 + $0x78] sm:$0xff]
      %v1245 = vld [vmem:[#allocation2 + $0x80] sm:$0xff]
      %v1246 = vld [vmem:[#allocation2 + $0x88] sm:$0xff]
      %v1247 = vld [vmem:[#allocation2 + $0x90] sm:$0xff]
      %v1248 = vld [vmem:[#allocation2 + $0x98] sm:$0xff]
      %v1249 = vld [vmem:[#allocation2 + $0xa0] sm:$0xff]
      %v1250 = vld [vmem:[#allocation2 + $0xa8] sm:$0xff]
      %v1251 = vld [vmem:[#allocation2 + $0xb0] sm:$0xff]
      %v1252 = vld [vmem:[#allocation2 + $0xb8] sm:$0xff]
      %v1253 = vld [vmem:[#allocation2 + $0xc0] sm:$0xff]
      %v1254 = vld [vmem:[#allocation2 + $0xc8] sm:$0xff]
      %v1255 = vld [vmem:[#allocation2 + $0xd0] sm:$0xff]
      %v1256 = vld [vmem:[#allocation2 + $0xd8] sm:$0xff]
      %v1257 = vld [vmem:[#allocation2 + $0xe0] sm:$0xff]
      %v1258 = vld [vmem:[#allocation2 + $0xe8] sm:$0xff]
      %v1259 = vld [vmem:[#allocation2 + $0xf0] sm:$0xff]
      %v1260 = vld [vmem:[#allocation2 + $0xf8] sm:$0xff]
      %v1261 = vld [vmem:[#allocation2 + $0x100] sm:$0xff]
      %v1262 = vld [vmem:[#allocation2 + $0x108] sm:$0xff]
      %v1263 = vld [vmem:[#allocation2 + $0x110] sm:$0xff]
      %v1264 = vld [vmem:[#allocation2 + $0x118] sm:$0xff]
      %v1265 = vld [vmem:[#allocation2 + $0x120] sm:$0xff]
      %v1266 = vld [vmem:[#allocation2 + $0x128] sm:$0xff]
      %v1267 = vld [vmem:[#allocation2 + $0x130] sm:$0xff]
      %v1268 = vld [vmem:[#allocation2 + $0x138] sm:$0xff]
      %v1269 = vld [vmem:[#allocation2 + $0x140] sm:$0xff]
      %v1270 = vld [vmem:[#allocation2 + $0x148] sm:$0xff]
      %v1271 = vld [vmem:[#allocation2 + $0x150] sm:$0xff]
      %v1272 = vld [vmem:[#allocation2 + $0x158] sm:$0xff]
      %v1273 = vld [vmem:[#allocation2 + $0x160] sm:$0xff]
      %v1274 = vld [vmem:[#allocation2 + $0x168] sm:$0xff]
      %v1275 = vld [vmem:[#allocation2 + $0x170] sm:$0xff]
      %v1276 = vld [vmem:[#allocation2 + $0x178] sm:$0xff]
      %v1277 = vld [vmem:[#allocation2 + $0x180] sm:$0xff]
      %v1278 = vld [vmem:[#allocation2 + $0x188] sm:$0xff]
      %v1279 = vld [vmem:[#allocation2 + $0x190] sm:$0xff]
      %v1280 = vld [vmem:[#allocation2 + $0x198] sm:$0xff]
      %v1281 = vld [vmem:[#allocation2 + $0x1a0] sm:$0xff]
      %v1282 = vld [vmem:[#allocation2 + $0x1a8] sm:$0xff]
      %v1283 = vld [vmem:[#allocation2 + $0x1b0] sm:$0xff]
      %v1284 = vld [vmem:[#allocation2 + $0x1b8] sm:$0xff]
      %v1285 = vld [vmem:[#allocation2 + $0x1c0] sm:$0xff]
      %v1286 = vld [vmem:[#allocation2 + $0x1c8] sm:$0xff]
      %v1287 = vld [vmem:[#allocation2 + $0x1d0] sm:$0xff]
      %v1288 = vld [vmem:[#allocation2 + $0x1d8] sm:$0xff]
      %v1289 = vld [vmem:[#allocation2 + $0x1e0] sm:$0xff]
      %v1290 = vld [vmem:[#allocation2 + $0x1e8] sm:$0xff]
      %v1291 = vld [vmem:[#allocation2 + $0x1f0] sm:$0xff]
      %v1292 = vld [vmem:[#allocation2 + $0x1f8] sm:$0xff]
      %v1293 = vld [vmem:[#allocation2 + $0x200] sm:$0xff]
      %v1294 = vld [vmem:[#allocation2 + $0x208] sm:$0xff]
      %v1295 = vld [vmem:[#allocation2 + $0x210] sm:$0xff]
      %v1296 = vld [vmem:[#allocation2 + $0x218] sm:$0xff]
      %v1297 = vld [vmem:[#allocation2 + $0x220] sm:$0xff]
      %v1298 = vld [vmem:[#allocation2 + $0x228] sm:$0xff]
      %v1299 = vld [vmem:[#allocation2 + $0x230] sm:$0xff]
      %v1300 = vld [vmem:[#allocation2 + $0x238] sm:$0xff]
      %v1301 = vld [vmem:[#allocation2 + $0x240] sm:$0xff]
      %v1302 = vld [vmem:[#allocation2 + $0x248] sm:$0xff]
      %v1303 = vld [vmem:[#allocation2 + $0x250] sm:$0xff]
      %v1304 = vld [vmem:[#allocation2 + $0x258] sm:$0xff]
      %v1305 = vld [vmem:[#allocation2 + $0x260] sm:$0xff]
      %v1306 = vld [vmem:[#allocation2 + $0x268] sm:$0xff]
      %v1307 = vld [vmem:[#allocation2 + $0x270] sm:$0xff]
      %v1308 = vld [vmem:[#allocation2 + $0x278] sm:$0xff]
      %v1309 = vld [vmem:[#allocation2 + $0x280] sm:$0xff]
      %v1310 = vld [vmem:[#allocation2 + $0x288] sm:$0xff]
      %v1311 = vld [vmem:[#allocation2 + $0x290] sm:$0xff]
      %v1312 = vld [vmem:[#allocation2 + $0x298] sm:$0xff]
      %v1313 = vld [vmem:[#allocation2 + $0x2a0] sm:$0xff]
      %v1314 = vld [vmem:[#allocation2 + $0x2a8] sm:$0xff]
      %v1315 = vld [vmem:[#allocation2 + $0x2b0] sm:$0xff]
      %v1316 = vld [vmem:[#allocation2 + $0x2b8] sm:$0xff]
      %v1317 = vld [vmem:[#allocation2 + $0x2c0] sm:$0xff]
      %v1318 = vld [vmem:[#allocation2 + $0x2c8] sm:$0xff]
      %v1319 = vld [vmem:[#allocation2 + $0x2d0] sm:$0xff]
      %v1320 = vld [vmem:[#allocation2 + $0x2d8] sm:$0xff]
      %v1321 = vld [vmem:[#allocation2 + $0x2e0] sm:$0xff]
      %v1322 = vld [vmem:[#allocation2 + $0x2e8] sm:$0xff]
      %v1323 = vld [vmem:[#allocation2 + $0x2f0] sm:$0xff]
      %v1324 = vld [vmem:[#allocation2 + $0x2f8] sm:$0xff]
      %v1325 = vld [vmem:[#allocation2 + $0x300] sm:$0xff]
      %v1326 = vld [vmem:[#allocation2 + $0x308] sm:$0xff]
      %v1327 = vld [vmem:[#allocation2 + $0x310] sm:$0xff]
      %v1328 = vld [vmem:[#allocation2 + $0x318] sm:$0xff]
      %v1329 = vld [vmem:[#allocation2 + $0x320] sm:$0xff]
      %v1330 = vld [vmem:[#allocation2 + $0x328] sm:$0xff]
      %v1331 = vld [vmem:[#allocation2 + $0x330] sm:$0xff]
      %v1332 = vld [vmem:[#allocation2 + $0x338] sm:$0xff]
      %v1333 = vld [vmem:[#allocation2 + $0x340] sm:$0xff]
      %v1334 = vld [vmem:[#allocation2 + $0x348] sm:$0xff]
      %v1335 = vld [vmem:[#allocation2 + $0x350] sm:$0xff]
      %v1336 = vld [vmem:[#allocation2 + $0x358] sm:$0xff]
      %v1337 = vld [vmem:[#allocation2 + $0x360] sm:$0xff]
      %v1338 = vld [vmem:[#allocation2 + $0x368] sm:$0xff]
      %v1339 = vld [vmem:[#allocation2 + $0x370] sm:$0xff]
      %v1340 = vld [vmem:[#allocation2 + $0x378] sm:$0xff]
      %v1341 = vld [vmem:[#allocation2 + $0x380] sm:$0xff]
      %v1342 = vld [vmem:[#allocation2 + $0x388] sm:$0xff]
      %v1343 = vld [vmem:[#allocation2 + $0x390] sm:$0xff]
      %v1344 = vld [vmem:[#allocation2 + $0x398] sm:$0xff]
      %v1345 = vld [vmem:[#allocation2 + $0x3a0] sm:$0xff]
      %v1346 = vld [vmem:[#allocation2 + $0x3a8] sm:$0xff]
      %v1347 = vld [vmem:[#allocation2 + $0x3b0] sm:$0xff]
      %v1348 = vld [vmem:[#allocation2 + $0x3b8] sm:$0xff]
      %v1349 = vld [vmem:[#allocation2 + $0x3c0] sm:$0xff]
      %v1350 = vld [vmem:[#allocation2 + $0x3c8] sm:$0xff]
      %v1351 = vld [vmem:[#allocation2 + $0x3d0] sm:$0xff]
      %v1352 = vld [vmem:[#allocation2 + $0x3d8] sm:$0xff]
      %v1353 = vld [vmem:[#allocation2 + $0x3e0] sm:$0xff]
      %v1354 = vld [vmem:[#allocation2 + $0x3e8] sm:$0xff]
      %v1355 = vld [vmem:[#allocation2 + $0x3f0] sm:$0xff]
      %v1356 = vld [vmem:[#allocation2 + $0x3f8] sm:$0xff]
      %v1357 = vunpack.c.l.s8.bf16 %v1229
      %v1358 = vunpack.c.l.s8.bf16 %v1230
      %v1359 = vunpack.c.l.s8.bf16 %v1231
      %v1360 = vunpack.c.l.s8.bf16 %v1232
      %v1361 = vunpack.c.l.s8.bf16 %v1233
      %v1362 = vunpack.c.l.s8.bf16 %v1234
      %v1363 = vunpack.c.l.s8.bf16 %v1235
      %v1364 = vunpack.c.l.s8.bf16 %v1236
      %v1365 = vunpack.c.h.s8.bf16 %v1229
      %v1366 = vunpack.c.h.s8.bf16 %v1230
      %v1367 = vunpack.c.h.s8.bf16 %v1231
      %v1368 = vunpack.c.h.s8.bf16 %v1232
      %v1369 = vunpack.c.h.s8.bf16 %v1233
      %v1370 = vunpack.c.h.s8.bf16 %v1234
      %v1371 = vunpack.c.h.s8.bf16 %v1235
      %v1372 = vunpack.c.h.s8.bf16 %v1236
      %v1373 = vunpack.c.l.s8.bf16 %v1237
      %v1374 = vunpack.c.l.s8.bf16 %v1238
      %v1375 = vunpack.c.l.s8.bf16 %v1239
      %v1376 = vunpack.c.l.s8.bf16 %v1240
      %v1377 = vunpack.c.l.s8.bf16 %v1241
      %v1378 = vunpack.c.l.s8.bf16 %v1242
      %v1379 = vunpack.c.l.s8.bf16 %v1243
      %v1380 = vunpack.c.l.s8.bf16 %v1244
      %v1381 = vunpack.c.h.s8.bf16 %v1237
      %v1382 = vunpack.c.h.s8.bf16 %v1238
      %v1383 = vunpack.c.h.s8.bf16 %v1239
      %v1384 = vunpack.c.h.s8.bf16 %v1240
      %v1385 = vunpack.c.h.s8.bf16 %v1241
      %v1386 = vunpack.c.h.s8.bf16 %v1242
      %v1387 = vunpack.c.h.s8.bf16 %v1243
      %v1388 = vunpack.c.h.s8.bf16 %v1244
      %v1389 = vunpack.c.l.s8.bf16 %v1245
      %v1390 = vunpack.c.l.s8.bf16 %v1246
      %v1391 = vunpack.c.l.s8.bf16 %v1247
      %v1392 = vunpack.c.l.s8.bf16 %v1248
      %v1393 = vunpack.c.l.s8.bf16 %v1249
      %v1394 = vunpack.c.l.s8.bf16 %v1250
      %v1395 = vunpack.c.l.s8.bf16 %v1251
      %v1396 = vunpack.c.l.s8.bf16 %v1252
      %v1397 = vunpack.c.h.s8.bf16 %v1245
      %v1398 = vunpack.c.h.s8.bf16 %v1246
      %v1399 = vunpack.c.h.s8.bf16 %v1247
      %v1400 = vunpack.c.h.s8.bf16 %v1248
      %v1401 = vunpack.c.h.s8.bf16 %v1249
      %v1402 = vunpack.c.h.s8.bf16 %v1250
      %v1403 = vunpack.c.h.s8.bf16 %v1251
      %v1404 = vunpack.c.h.s8.bf16 %v1252
      %v1405 = vunpack.c.l.s8.bf16 %v1253
      %v1406 = vunpack.c.l.s8.bf16 %v1254
      %v1407 = vunpack.c.l.s8.bf16 %v1255
      %v1408 = vunpack.c.l.s8.bf16 %v1256
      %v1409 = vunpack.c.l.s8.bf16 %v1257
      %v1410 = vunpack.c.l.s8.bf16 %v1258
      %v1411 = vunpack.c.l.s8.bf16 %v1259
      %v1412 = vunpack.c.l.s8.bf16 %v1260
      %v1413 = vunpack.c.h.s8.bf16 %v1253
      %v1414 = vunpack.c.h.s8.bf16 %v1254
      %v1415 = vunpack.c.h.s8.bf16 %v1255
      %v1416 = vunpack.c.h.s8.bf16 %v1256
      %v1417 = vunpack.c.h.s8.bf16 %v1257
      %v1418 = vunpack.c.h.s8.bf16 %v1258
      %v1419 = vunpack.c.h.s8.bf16 %v1259
      %v1420 = vunpack.c.h.s8.bf16 %v1260
      %v1421 = vunpack.c.l.s8.bf16 %v1261
      %v1422 = vunpack.c.l.s8.bf16 %v1262
      %v1423 = vunpack.c.l.s8.bf16 %v1263
      %v1424 = vunpack.c.l.s8.bf16 %v1264
      %v1425 = vunpack.c.l.s8.bf16 %v1265
      %v1426 = vunpack.c.l.s8.bf16 %v1266
      %v1427 = vunpack.c.l.s8.bf16 %v1267
      %v1428 = vunpack.c.l.s8.bf16 %v1268
      %v1429 = vunpack.c.h.s8.bf16 %v1261
      %v1430 = vunpack.c.h.s8.bf16 %v1262
      %v1431 = vunpack.c.h.s8.bf16 %v1263
      %v1432 = vunpack.c.h.s8.bf16 %v1264
      %v1433 = vunpack.c.h.s8.bf16 %v1265
      %v1434 = vunpack.c.h.s8.bf16 %v1266
      %v1435 = vunpack.c.h.s8.bf16 %v1267
      %v1436 = vunpack.c.h.s8.bf16 %v1268
      %v1437 = vunpack.c.l.s8.bf16 %v1269
      %v1438 = vunpack.c.l.s8.bf16 %v1270
      %v1439 = vunpack.c.l.s8.bf16 %v1271
      %v1440 = vunpack.c.l.s8.bf16 %v1272
      %v1441 = vunpack.c.l.s8.bf16 %v1273
      %v1442 = vunpack.c.l.s8.bf16 %v1274
      %v1443 = vunpack.c.l.s8.bf16 %v1275
      %v1444 = vunpack.c.l.s8.bf16 %v1276
      %v1445 = vunpack.c.h.s8.bf16 %v1269
      %v1446 = vunpack.c.h.s8.bf16 %v1270
      %v1447 = vunpack.c.h.s8.bf16 %v1271
      %v1448 = vunpack.c.h.s8.bf16 %v1272
      %v1449 = vunpack.c.h.s8.bf16 %v1273
      %v1450 = vunpack.c.h.s8.bf16 %v1274
      %v1451 = vunpack.c.h.s8.bf16 %v1275
      %v1452 = vunpack.c.h.s8.bf16 %v1276
      %v1453 = vunpack.c.l.s8.bf16 %v1277
      %v1454 = vunpack.c.l.s8.bf16 %v1278
      %v1455 = vunpack.c.l.s8.bf16 %v1279
      %v1456 = vunpack.c.l.s8.bf16 %v1280
      %v1457 = vunpack.c.l.s8.bf16 %v1281
      %v1458 = vunpack.c.l.s8.bf16 %v1282
      %v1459 = vunpack.c.l.s8.bf16 %v1283
      %v1460 = vunpack.c.l.s8.bf16 %v1284
      %v1461 = vunpack.c.h.s8.bf16 %v1277
      %v1462 = vunpack.c.h.s8.bf16 %v1278
      %v1463 = vunpack.c.h.s8.bf16 %v1279
      %v1464 = vunpack.c.h.s8.bf16 %v1280
      %v1465 = vunpack.c.h.s8.bf16 %v1281
      %v1466 = vunpack.c.h.s8.bf16 %v1282
      %v1467 = vunpack.c.h.s8.bf16 %v1283
      %v1468 = vunpack.c.h.s8.bf16 %v1284
      %v1469 = vunpack.c.l.s8.bf16 %v1285
      %v1470 = vunpack.c.l.s8.bf16 %v1286
      %v1471 = vunpack.c.l.s8.bf16 %v1287
      %v1472 = vunpack.c.l.s8.bf16 %v1288
      %v1473 = vunpack.c.l.s8.bf16 %v1289
      %v1474 = vunpack.c.l.s8.bf16 %v1290
      %v1475 = vunpack.c.l.s8.bf16 %v1291
      %v1476 = vunpack.c.l.s8.bf16 %v1292
      %v1477 = vunpack.c.h.s8.bf16 %v1285
      %v1478 = vunpack.c.h.s8.bf16 %v1286
      %v1479 = vunpack.c.h.s8.bf16 %v1287
      %v1480 = vunpack.c.h.s8.bf16 %v1288
      %v1481 = vunpack.c.h.s8.bf16 %v1289
      %v1482 = vunpack.c.h.s8.bf16 %v1290
      %v1483 = vunpack.c.h.s8.bf16 %v1291
      %v1484 = vunpack.c.h.s8.bf16 %v1292
      %v1485 = vunpack.c.l.s8.bf16 %v1293
      %v1486 = vunpack.c.l.s8.bf16 %v1294
      %v1487 = vunpack.c.l.s8.bf16 %v1295
      %v1488 = vunpack.c.l.s8.bf16 %v1296
      %v1489 = vunpack.c.l.s8.bf16 %v1297
      %v1490 = vunpack.c.l.s8.bf16 %v1298
      %v1491 = vunpack.c.l.s8.bf16 %v1299
      %v1492 = vunpack.c.l.s8.bf16 %v1300
      %v1493 = vunpack.c.h.s8.bf16 %v1293
      %v1494 = vunpack.c.h.s8.bf16 %v1294
      %v1495 = vunpack.c.h.s8.bf16 %v1295
      %v1496 = vunpack.c.h.s8.bf16 %v1296
      %v1497 = vunpack.c.h.s8.bf16 %v1297
      %v1498 = vunpack.c.h.s8.bf16 %v1298
      %v1499 = vunpack.c.h.s8.bf16 %v1299
      %v1500 = vunpack.c.h.s8.bf16 %v1300
      %v1501 = vunpack.c.l.s8.bf16 %v1301
      %v1502 = vunpack.c.l.s8.bf16 %v1302
      %v1503 = vunpack.c.l.s8.bf16 %v1303
      %v1504 = vunpack.c.l.s8.bf16 %v1304
      %v1505 = vunpack.c.l.s8.bf16 %v1305
      %v1506 = vunpack.c.l.s8.bf16 %v1306
      %v1507 = vunpack.c.l.s8.bf16 %v1307
      %v1508 = vunpack.c.l.s8.bf16 %v1308
      %v1509 = vunpack.c.h.s8.bf16 %v1301
      %v1510 = vunpack.c.h.s8.bf16 %v1302
      %v1511 = vunpack.c.h.s8.bf16 %v1303
      %v1512 = vunpack.c.h.s8.bf16 %v1304
      %v1513 = vunpack.c.h.s8.bf16 %v1305
      %v1514 = vunpack.c.h.s8.bf16 %v1306
      %v1515 = vunpack.c.h.s8.bf16 %v1307
      %v1516 = vunpack.c.h.s8.bf16 %v1308
      %v1517 = vunpack.c.l.s8.bf16 %v1309
      %v1518 = vunpack.c.l.s8.bf16 %v1310
      %v1519 = vunpack.c.l.s8.bf16 %v1311
      %v1520 = vunpack.c.l.s8.bf16 %v1312
      %v1521 = vunpack.c.l.s8.bf16 %v1313
      %v1522 = vunpack.c.l.s8.bf16 %v1314
      %v1523 = vunpack.c.l.s8.bf16 %v1315
      %v1524 = vunpack.c.l.s8.bf16 %v1316
      %v1525 = vunpack.c.h.s8.bf16 %v1309
      %v1526 = vunpack.c.h.s8.bf16 %v1310
      %v1527 = vunpack.c.h.s8.bf16 %v1311
      %v1528 = vunpack.c.h.s8.bf16 %v1312
      %v1529 = vunpack.c.h.s8.bf16 %v1313
      %v1530 = vunpack.c.h.s8.bf16 %v1314
      %v1531 = vunpack.c.h.s8.bf16 %v1315
      %v1532 = vunpack.c.h.s8.bf16 %v1316
      %v1533 = vunpack.c.l.s8.bf16 %v1317
      %v1534 = vunpack.c.l.s8.bf16 %v1318
      %v1535 = vunpack.c.l.s8.bf16 %v1319
      %v1536 = vunpack.c.l.s8.bf16 %v1320
      %v1537 = vunpack.c.l.s8.bf16 %v1321
      %v1538 = vunpack.c.l.s8.bf16 %v1322
      %v1539 = vunpack.c.l.s8.bf16 %v1323
      %v1540 = vunpack.c.l.s8.bf16 %v1324
      %v1541 = vunpack.c.h.s8.bf16 %v1317
      %v1542 = vunpack.c.h.s8.bf16 %v1318
      %v1543 = vunpack.c.h.s8.bf16 %v1319
      %v1544 = vunpack.c.h.s8.bf16 %v1320
      %v1545 = vunpack.c.h.s8.bf16 %v1321
      %v1546 = vunpack.c.h.s8.bf16 %v1322
      %v1547 = vunpack.c.h.s8.bf16 %v1323
      %v1548 = vunpack.c.h.s8.bf16 %v1324
      %v1549 = vunpack.c.l.s8.bf16 %v1325
      %v1550 = vunpack.c.l.s8.bf16 %v1326
      %v1551 = vunpack.c.l.s8.bf16 %v1327
      %v1552 = vunpack.c.l.s8.bf16 %v1328
      %v1553 = vunpack.c.l.s8.bf16 %v1329
      %v1554 = vunpack.c.l.s8.bf16 %v1330
      %v1555 = vunpack.c.l.s8.bf16 %v1331
      %v1556 = vunpack.c.l.s8.bf16 %v1332
      %v1557 = vunpack.c.h.s8.bf16 %v1325
      %v1558 = vunpack.c.h.s8.bf16 %v1326
      %v1559 = vunpack.c.h.s8.bf16 %v1327
      %v1560 = vunpack.c.h.s8.bf16 %v1328
      %v1561 = vunpack.c.h.s8.bf16 %v1329
      %v1562 = vunpack.c.h.s8.bf16 %v1330
      %v1563 = vunpack.c.h.s8.bf16 %v1331
      %v1564 = vunpack.c.h.s8.bf16 %v1332
      %v1565 = vunpack.c.l.s8.bf16 %v1333
      %v1566 = vunpack.c.l.s8.bf16 %v1334
      %v1567 = vunpack.c.l.s8.bf16 %v1335
      %v1568 = vunpack.c.l.s8.bf16 %v1336
      %v1569 = vunpack.c.l.s8.bf16 %v1337
      %v1570 = vunpack.c.l.s8.bf16 %v1338
      %v1571 = vunpack.c.l.s8.bf16 %v1339
      %v1572 = vunpack.c.l.s8.bf16 %v1340
      %v1573 = vunpack.c.h.s8.bf16 %v1333
      %v1574 = vunpack.c.h.s8.bf16 %v1334
      %v1575 = vunpack.c.h.s8.bf16 %v1335
      %v1576 = vunpack.c.h.s8.bf16 %v1336
      %v1577 = vunpack.c.h.s8.bf16 %v1337
      %v1578 = vunpack.c.h.s8.bf16 %v1338
      %v1579 = vunpack.c.h.s8.bf16 %v1339
      %v1580 = vunpack.c.h.s8.bf16 %v1340
      %v1581 = vunpack.c.l.s8.bf16 %v1341
      %v1582 = vunpack.c.l.s8.bf16 %v1342
      %v1583 = vunpack.c.l.s8.bf16 %v1343
      %v1584 = vunpack.c.l.s8.bf16 %v1344
      %v1585 = vunpack.c.l.s8.bf16 %v1345
      %v1586 = vunpack.c.l.s8.bf16 %v1346
      %v1587 = vunpack.c.l.s8.bf16 %v1347
      %v1588 = vunpack.c.l.s8.bf16 %v1348
      %v1589 = vunpack.c.h.s8.bf16 %v1341
      %v1590 = vunpack.c.h.s8.bf16 %v1342
      %v1591 = vunpack.c.h.s8.bf16 %v1343
      %v1592 = vunpack.c.h.s8.bf16 %v1344
      %v1593 = vunpack.c.h.s8.bf16 %v1345
      %v1594 = vunpack.c.h.s8.bf16 %v1346
      %v1595 = vunpack.c.h.s8.bf16 %v1347
      %v1596 = vunpack.c.h.s8.bf16 %v1348
      %v1597 = vunpack.c.l.s8.bf16 %v1349
      %v1598 = vunpack.c.l.s8.bf16 %v1350
      %v1599 = vunpack.c.l.s8.bf16 %v1351
      %v1600 = vunpack.c.l.s8.bf16 %v1352
      %v1601 = vunpack.c.l.s8.bf16 %v1353
      %v1602 = vunpack.c.l.s8.bf16 %v1354
      %v1603 = vunpack.c.l.s8.bf16 %v1355
      %v1604 = vunpack.c.l.s8.bf16 %v1356
      %v1605 = vunpack.c.h.s8.bf16 %v1349
      %v1606 = vunpack.c.h.s8.bf16 %v1350
      %v1607 = vunpack.c.h.s8.bf16 %v1351
      %v1608 = vunpack.c.h.s8.bf16 %v1352
      %v1609 = vunpack.c.h.s8.bf16 %v1353
      %v1610 = vunpack.c.h.s8.bf16 %v1354
      %v1611 = vunpack.c.h.s8.bf16 %v1355
      %v1612 = vunpack.c.h.s8.bf16 %v1356
      %1613 = vst [vmem:[#allocation3] sm:$0xff] %v1357
      %1614 = vst [vmem:[#allocation3 + $0x8] sm:$0xff] %v1358
      %1615 = vst [vmem:[#allocation3 + $0x10] sm:$0xff] %v1359
      %1616 = vst [vmem:[#allocation3 + $0x18] sm:$0xff] %v1360
      %1617 = vst [vmem:[#allocation3 + $0x20] sm:$0xff] %v1361
      %1618 = vst [vmem:[#allocation3 + $0x28] sm:$0xff] %v1362
      %1619 = vst [vmem:[#allocation3 + $0x30] sm:$0xff] %v1363
      %1620 = vst [vmem:[#allocation3 + $0x38] sm:$0xff] %v1364
      %1621 = vst [vmem:[#allocation3 + $0x40] sm:$0xff] %v1365
      %1622 = vst [vmem:[#allocation3 + $0x48] sm:$0xff] %v1366
      %1623 = vst [vmem:[#allocation3 + $0x50] sm:$0xff] %v1367
      %1624 = vst [vmem:[#allocation3 + $0x58] sm:$0xff] %v1368
      %1625 = vst [vmem:[#allocation3 + $0x60] sm:$0xff] %v1369
      %1626 = vst [vmem:[#allocation3 + $0x68] sm:$0xff] %v1370
      %1627 = vst [vmem:[#allocation3 + $0x70] sm:$0xff] %v1371
      %1628 = vst [vmem:[#allocation3 + $0x78] sm:$0xff] %v1372
      %1629 = vst [vmem:[#allocation3 + $0x80] sm:$0xff] %v1373
      %1630 = vst [vmem:[#allocation3 + $0x88] sm:$0xff] %v1374
      %1631 = vst [vmem:[#allocation3 + $0x90] sm:$0xff] %v1375
      %1632 = vst [vmem:[#allocation3 + $0x98] sm:$0xff] %v1376
      %1633 = vst [vmem:[#allocation3 + $0xa0] sm:$0xff] %v1377
      %1634 = vst [vmem:[#allocation3 + $0xa8] sm:$0xff] %v1378
      %1635 = vst [vmem:[#allocation3 + $0xb0] sm:$0xff] %v1379
      %1636 = vst [vmem:[#allocation3 + $0xb8] sm:$0xff] %v1380
      %1637 = vst [vmem:[#allocation3 + $0xc0] sm:$0xff] %v1381
      %1638 = vst [vmem:[#allocation3 + $0xc8] sm:$0xff] %v1382
      %1639 = vst [vmem:[#allocation3 + $0xd0] sm:$0xff] %v1383
      %1640 = vst [vmem:[#allocation3 + $0xd8] sm:$0xff] %v1384
      %1641 = vst [vmem:[#allocation3 + $0xe0] sm:$0xff] %v1385
      %1642 = vst [vmem:[#allocation3 + $0xe8] sm:$0xff] %v1386
      %1643 = vst [vmem:[#allocation3 + $0xf0] sm:$0xff] %v1387
      %1644 = vst [vmem:[#allocation3 + $0xf8] sm:$0xff] %v1388
      %1645 = vst [vmem:[#allocation3 + $0x100] sm:$0xff] %v1389
      %1646 = vst [vmem:[#allocation3 + $0x108] sm:$0xff] %v1390
      %1647 = vst [vmem:[#allocation3 + $0x110] sm:$0xff] %v1391
      %1648 = vst [vmem:[#allocation3 + $0x118] sm:$0xff] %v1392
      %1649 = vst [vmem:[#allocation3 + $0x120] sm:$0xff] %v1393
      %1650 = vst [vmem:[#allocation3 + $0x128] sm:$0xff] %v1394
      %1651 = vst [vmem:[#allocation3 + $0x130] sm:$0xff] %v1395
      %1652 = vst [vmem:[#allocation3 + $0x138] sm:$0xff] %v1396
      %1653 = vst [vmem:[#allocation3 + $0x140] sm:$0xff] %v1397
      %1654 = vst [vmem:[#allocation3 + $0x148] sm:$0xff] %v1398
      %1655 = vst [vmem:[#allocation3 + $0x150] sm:$0xff] %v1399
      %1656 = vst [vmem:[#allocation3 + $0x158] sm:$0xff] %v1400
      %1657 = vst [vmem:[#allocation3 + $0x160] sm:$0xff] %v1401
      %1658 = vst [vmem:[#allocation3 + $0x168] sm:$0xff] %v1402
      %1659 = vst [vmem:[#allocation3 + $0x170] sm:$0xff] %v1403
      %1660 = vst [vmem:[#allocation3 + $0x178] sm:$0xff] %v1404
      %1661 = vst [vmem:[#allocation3 + $0x180] sm:$0xff] %v1405
      %1662 = vst [vmem:[#allocation3 + $0x188] sm:$0xff] %v1406
      %1663 = vst [vmem:[#allocation3 + $0x190] sm:$0xff] %v1407
      %1664 = vst [vmem:[#allocation3 + $0x198] sm:$0xff] %v1408
      %1665 = vst [vmem:[#allocation3 + $0x1a0] sm:$0xff] %v1409
      %1666 = vst [vmem:[#allocation3 + $0x1a8] sm:$0xff] %v1410
      %1667 = vst [vmem:[#allocation3 + $0x1b0] sm:$0xff] %v1411
      %1668 = vst [vmem:[#allocation3 + $0x1b8] sm:$0xff] %v1412
      %1669 = vst [vmem:[#allocation3 + $0x1c0] sm:$0xff] %v1413
      %1670 = vst [vmem:[#allocation3 + $0x1c8] sm:$0xff] %v1414
      %1671 = vst [vmem:[#allocation3 + $0x1d0] sm:$0xff] %v1415
      %1672 = vst [vmem:[#allocation3 + $0x1d8] sm:$0xff] %v1416
      %1673 = vst [vmem:[#allocation3 + $0x1e0] sm:$0xff] %v1417
      %1674 = vst [vmem:[#allocation3 + $0x1e8] sm:$0xff] %v1418
      %1675 = vst [vmem:[#allocation3 + $0x1f0] sm:$0xff] %v1419
      %1676 = vst [vmem:[#allocation3 + $0x1f8] sm:$0xff] %v1420
      %1677 = vst [vmem:[#allocation3 + $0x200] sm:$0xff] %v1421
      %1678 = vst [vmem:[#allocation3 + $0x208] sm:$0xff] %v1422
      %1679 = vst [vmem:[#allocation3 + $0x210] sm:$0xff] %v1423
      %1680 = vst [vmem:[#allocation3 + $0x218] sm:$0xff] %v1424
      %1681 = vst [vmem:[#allocation3 + $0x220] sm:$0xff] %v1425
      %1682 = vst [vmem:[#allocation3 + $0x228] sm:$0xff] %v1426
      %1683 = vst [vmem:[#allocation3 + $0x230] sm:$0xff] %v1427
      %1684 = vst [vmem:[#allocation3 + $0x238] sm:$0xff] %v1428
      %1685 = vst [vmem:[#allocation3 + $0x240] sm:$0xff] %v1429
      %1686 = vst [vmem:[#allocation3 + $0x248] sm:$0xff] %v1430
      %1687 = vst [vmem:[#allocation3 + $0x250] sm:$0xff] %v1431
      %1688 = vst [vmem:[#allocation3 + $0x258] sm:$0xff] %v1432
      %1689 = vst [vmem:[#allocation3 + $0x260] sm:$0xff] %v1433
      %1690 = vst [vmem:[#allocation3 + $0x268] sm:$0xff] %v1434
      %1691 = vst [vmem:[#allocation3 + $0x270] sm:$0xff] %v1435
      %1692 = vst [vmem:[#allocation3 + $0x278] sm:$0xff] %v1436
      %1693 = vst [vmem:[#allocation3 + $0x280] sm:$0xff] %v1437
      %1694 = vst [vmem:[#allocation3 + $0x288] sm:$0xff] %v1438
      %1695 = vst [vmem:[#allocation3 + $0x290] sm:$0xff] %v1439
      %1696 = vst [vmem:[#allocation3 + $0x298] sm:$0xff] %v1440
      %1697 = vst [vmem:[#allocation3 + $0x2a0] sm:$0xff] %v1441
      %1698 = vst [vmem:[#allocation3 + $0x2a8] sm:$0xff] %v1442
      %1699 = vst [vmem:[#allocation3 + $0x2b0] sm:$0xff] %v1443
      %1700 = vst [vmem:[#allocation3 + $0x2b8] sm:$0xff] %v1444
      %1701 = vst [vmem:[#allocation3 + $0x2c0] sm:$0xff] %v1445
      %1702 = vst [vmem:[#allocation3 + $0x2c8] sm:$0xff] %v1446
      %1703 = vst [vmem:[#allocation3 + $0x2d0] sm:$0xff] %v1447
      %1704 = vst [vmem:[#allocation3 + $0x2d8] sm:$0xff] %v1448
      %1705 = vst [vmem:[#allocation3 + $0x2e0] sm:$0xff] %v1449
      %1706 = vst [vmem:[#allocation3 + $0x2e8] sm:$0xff] %v1450
      %1707 = vst [vmem:[#allocation3 + $0x2f0] sm:$0xff] %v1451
      %1708 = vst [vmem:[#allocation3 + $0x2f8] sm:$0xff] %v1452
      %1709 = vst [vmem:[#allocation3 + $0x300] sm:$0xff] %v1453
      %1710 = vst [vmem:[#allocation3 + $0x308] sm:$0xff] %v1454
      %1711 = vst [vmem:[#allocation3 + $0x310] sm:$0xff] %v1455
      %1712 = vst [vmem:[#allocation3 + $0x318] sm:$0xff] %v1456
      %1713 = vst [vmem:[#allocation3 + $0x320] sm:$0xff] %v1457
      %1714 = vst [vmem:[#allocation3 + $0x328] sm:$0xff] %v1458
      %1715 = vst [vmem:[#allocation3 + $0x330] sm:$0xff] %v1459
      %1716 = vst [vmem:[#allocation3 + $0x338] sm:$0xff] %v1460
      %1717 = vst [vmem:[#allocation3 + $0x340] sm:$0xff] %v1461
      %1718 = vst [vmem:[#allocation3 + $0x348] sm:$0xff] %v1462
      %1719 = vst [vmem:[#allocation3 + $0x350] sm:$0xff] %v1463
      %1720 = vst [vmem:[#allocation3 + $0x358] sm:$0xff] %v1464
      %1721 = vst [vmem:[#allocation3 + $0x360] sm:$0xff] %v1465
      %1722 = vst [vmem:[#allocation3 + $0x368] sm:$0xff] %v1466
      %1723 = vst [vmem:[#allocation3 + $0x370] sm:$0xff] %v1467
      %1724 = vst [vmem:[#allocation3 + $0x378] sm:$0xff] %v1468
      %1725 = vst [vmem:[#allocation3 + $0x380] sm:$0xff] %v1469
      %1726 = vst [vmem:[#allocation3 + $0x388] sm:$0xff] %v1470
      %1727 = vst [vmem:[#allocation3 + $0x390] sm:$0xff] %v1471
      %1728 = vst [vmem:[#allocation3 + $0x398] sm:$0xff] %v1472
      %1729 = vst [vmem:[#allocation3 + $0x3a0] sm:$0xff] %v1473
      %1730 = vst [vmem:[#allocation3 + $0x3a8] sm:$0xff] %v1474
      %1731 = vst [vmem:[#allocation3 + $0x3b0] sm:$0xff] %v1475
      %1732 = vst [vmem:[#allocation3 + $0x3b8] sm:$0xff] %v1476
      %1733 = vst [vmem:[#allocation3 + $0x3c0] sm:$0xff] %v1477
      %1734 = vst [vmem:[#allocation3 + $0x3c8] sm:$0xff] %v1478
      %1735 = vst [vmem:[#allocation3 + $0x3d0] sm:$0xff] %v1479
      %1736 = vst [vmem:[#allocation3 + $0x3d8] sm:$0xff] %v1480
      %1737 = vst [vmem:[#allocation3 + $0x3e0] sm:$0xff] %v1481
      %1738 = vst [vmem:[#allocation3 + $0x3e8] sm:$0xff] %v1482
      %1739 = vst [vmem:[#allocation3 + $0x3f0] sm:$0xff] %v1483
      %1740 = vst [vmem:[#allocation3 + $0x3f8] sm:$0xff] %v1484
      %1741 = vst [vmem:[#allocation3 + $0x400] sm:$0xff] %v1485
      %1742 = vst [vmem:[#allocation3 + $0x408] sm:$0xff] %v1486
      %1743 = vst [vmem:[#allocation3 + $0x410] sm:$0xff] %v1487
      %1744 = vst [vmem:[#allocation3 + $0x418] sm:$0xff] %v1488
      %1745 = vst [vmem:[#allocation3 + $0x420] sm:$0xff] %v1489
      %1746 = vst [vmem:[#allocation3 + $0x428] sm:$0xff] %v1490
      %1747 = vst [vmem:[#allocation3 + $0x430] sm:$0xff] %v1491
      %1748 = vst [vmem:[#allocation3 + $0x438] sm:$0xff] %v1492
      %1749 = vst [vmem:[#allocation3 + $0x440] sm:$0xff] %v1493
      %1750 = vst [vmem:[#allocation3 + $0x448] sm:$0xff] %v1494
      %1751 = vst [vmem:[#allocation3 + $0x450] sm:$0xff] %v1495
      %1752 = vst [vmem:[#allocation3 + $0x458] sm:$0xff] %v1496
      %1753 = vst [vmem:[#allocation3 + $0x460] sm:$0xff] %v1497
      %1754 = vst [vmem:[#allocation3 + $0x468] sm:$0xff] %v1498
      %1755 = vst [vmem:[#allocation3 + $0x470] sm:$0xff] %v1499
      %1756 = vst [vmem:[#allocation3 + $0x478] sm:$0xff] %v1500
      %1757 = vst [vmem:[#allocation3 + $0x480] sm:$0xff] %v1501
      %1758 = vst [vmem:[#allocation3 + $0x488] sm:$0xff] %v1502
      %1759 = vst [vmem:[#allocation3 + $0x490] sm:$0xff] %v1503
      %1760 = vst [vmem:[#allocation3 + $0x498] sm:$0xff] %v1504
      %1761 = vst [vmem:[#allocation3 + $0x4a0] sm:$0xff] %v1505
      %1762 = vst [vmem:[#allocation3 + $0x4a8] sm:$0xff] %v1506
      %1763 = vst [vmem:[#allocation3 + $0x4b0] sm:$0xff] %v1507
      %1764 = vst [vmem:[#allocation3 + $0x4b8] sm:$0xff] %v1508
      %1765 = vst [vmem:[#allocation3 + $0x4c0] sm:$0xff] %v1509
      %1766 = vst [vmem:[#allocation3 + $0x4c8] sm:$0xff] %v1510
      %1767 = vst [vmem:[#allocation3 + $0x4d0] sm:$0xff] %v1511
      %1768 = vst [vmem:[#allocation3 + $0x4d8] sm:$0xff] %v1512
      %1769 = vst [vmem:[#allocation3 + $0x4e0] sm:$0xff] %v1513
      %1770 = vst [vmem:[#allocation3 + $0x4e8] sm:$0xff] %v1514
      %1771 = vst [vmem:[#allocation3 + $0x4f0] sm:$0xff] %v1515
      %1772 = vst [vmem:[#allocation3 + $0x4f8] sm:$0xff] %v1516
      %1773 = vst [vmem:[#allocation3 + $0x500] sm:$0xff] %v1517
      %1774 = vst [vmem:[#allocation3 + $0x508] sm:$0xff] %v1518
      %1775 = vst [vmem:[#allocation3 + $0x510] sm:$0xff] %v1519
      %1776 = vst [vmem:[#allocation3 + $0x518] sm:$0xff] %v1520
      %1777 = vst [vmem:[#allocation3 + $0x520] sm:$0xff] %v1521
      %1778 = vst [vmem:[#allocation3 + $0x528] sm:$0xff] %v1522
      %1779 = vst [vmem:[#allocation3 + $0x530] sm:$0xff] %v1523
      %1780 = vst [vmem:[#allocation3 + $0x538] sm:$0xff] %v1524
      %1781 = vst [vmem:[#allocation3 + $0x540] sm:$0xff] %v1525
      %1782 = vst [vmem:[#allocation3 + $0x548] sm:$0xff] %v1526
      %1783 = vst [vmem:[#allocation3 + $0x550] sm:$0xff] %v1527
      %1784 = vst [vmem:[#allocation3 + $0x558] sm:$0xff] %v1528
      %1785 = vst [vmem:[#allocation3 + $0x560] sm:$0xff] %v1529
      %1786 = vst [vmem:[#allocation3 + $0x568] sm:$0xff] %v1530
      %1787 = vst [vmem:[#allocation3 + $0x570] sm:$0xff] %v1531
      %1788 = vst [vmem:[#allocation3 + $0x578] sm:$0xff] %v1532
      %1789 = vst [vmem:[#allocation3 + $0x580] sm:$0xff] %v1533
      %1790 = vst [vmem:[#allocation3 + $0x588] sm:$0xff] %v1534
      %1791 = vst [vmem:[#allocation3 + $0x590] sm:$0xff] %v1535
      %1792 = vst [vmem:[#allocation3 + $0x598] sm:$0xff] %v1536
      %1793 = vst [vmem:[#allocation3 + $0x5a0] sm:$0xff] %v1537
      %1794 = vst [vmem:[#allocation3 + $0x5a8] sm:$0xff] %v1538
      %1795 = vst [vmem:[#allocation3 + $0x5b0] sm:$0xff] %v1539
      %1796 = vst [vmem:[#allocation3 + $0x5b8] sm:$0xff] %v1540
      %1797 = vst [vmem:[#allocation3 + $0x5c0] sm:$0xff] %v1541
      %1798 = vst [vmem:[#allocation3 + $0x5c8] sm:$0xff] %v1542
      %1799 = vst [vmem:[#allocation3 + $0x5d0] sm:$0xff] %v1543
      %1800 = vst [vmem:[#allocation3 + $0x5d8] sm:$0xff] %v1544
      %1801 = vst [vmem:[#allocation3 + $0x5e0] sm:$0xff] %v1545
      %1802 = vst [vmem:[#allocation3 + $0x5e8] sm:$0xff] %v1546
      %1803 = vst [vmem:[#allocation3 + $0x5f0] sm:$0xff] %v1547
      %1804 = vst [vmem:[#allocation3 + $0x5f8] sm:$0xff] %v1548
      %1805 = vst [vmem:[#allocation3 + $0x600] sm:$0xff] %v1549
      %1806 = vst [vmem:[#allocation3 + $0x608] sm:$0xff] %v1550
      %1807 = vst [vmem:[#allocation3 + $0x610] sm:$0xff] %v1551
      %1808 = vst [vmem:[#allocation3 + $0x618] sm:$0xff] %v1552
      %1809 = vst [vmem:[#allocation3 + $0x620] sm:$0xff] %v1553
      %1810 = vst [vmem:[#allocation3 + $0x628] sm:$0xff] %v1554
      %1811 = vst [vmem:[#allocation3 + $0x630] sm:$0xff] %v1555
      %1812 = vst [vmem:[#allocation3 + $0x638] sm:$0xff] %v1556
      %1813 = vst [vmem:[#allocation3 + $0x640] sm:$0xff] %v1557
      %1814 = vst [vmem:[#allocation3 + $0x648] sm:$0xff] %v1558
      %1815 = vst [vmem:[#allocation3 + $0x650] sm:$0xff] %v1559
      %1816 = vst [vmem:[#allocation3 + $0x658] sm:$0xff] %v1560
      %1817 = vst [vmem:[#allocation3 + $0x660] sm:$0xff] %v1561
      %1818 = vst [vmem:[#allocation3 + $0x668] sm:$0xff] %v1562
      %1819 = vst [vmem:[#allocation3 + $0x670] sm:$0xff] %v1563
      %1820 = vst [vmem:[#allocation3 + $0x678] sm:$0xff] %v1564
      %1821 = vst [vmem:[#allocation3 + $0x680] sm:$0xff] %v1565
      %1822 = vst [vmem:[#allocation3 + $0x688] sm:$0xff] %v1566
      %1823 = vst [vmem:[#allocation3 + $0x690] sm:$0xff] %v1567
      %1824 = vst [vmem:[#allocation3 + $0x698] sm:$0xff] %v1568
      %1825 = vst [vmem:[#allocation3 + $0x6a0] sm:$0xff] %v1569
      %1826 = vst [vmem:[#allocation3 + $0x6a8] sm:$0xff] %v1570
      %1827 = vst [vmem:[#allocation3 + $0x6b0] sm:$0xff] %v1571
      %1828 = vst [vmem:[#allocation3 + $0x6b8] sm:$0xff] %v1572
      %1829 = vst [vmem:[#allocation3 + $0x6c0] sm:$0xff] %v1573
      %1830 = vst [vmem:[#allocation3 + $0x6c8] sm:$0xff] %v1574
      %1831 = vst [vmem:[#allocation3 + $0x6d0] sm:$0xff] %v1575
      %1832 = vst [vmem:[#allocation3 + $0x6d8] sm:$0xff] %v1576
      %1833 = vst [vmem:[#allocation3 + $0x6e0] sm:$0xff] %v1577
      %1834 = vst [vmem:[#allocation3 + $0x6e8] sm:$0xff] %v1578
      %1835 = vst [vmem:[#allocation3 + $0x6f0] sm:$0xff] %v1579
      %1836 = vst [vmem:[#allocation3 + $0x6f8] sm:$0xff] %v1580
      %1837 = vst [vmem:[#allocation3 + $0x700] sm:$0xff] %v1581
      %1838 = vst [vmem:[#allocation3 + $0x708] sm:$0xff] %v1582
      %1839 = vst [vmem:[#allocation3 + $0x710] sm:$0xff] %v1583
      %1840 = vst [vmem:[#allocation3 + $0x718] sm:$0xff] %v1584
      %1841 = vst [vmem:[#allocation3 + $0x720] sm:$0xff] %v1585
      %1842 = vst [vmem:[#allocation3 + $0x728] sm:$0xff] %v1586
      %1843 = vst [vmem:[#allocation3 + $0x730] sm:$0xff] %v1587
      %1844 = vst [vmem:[#allocation3 + $0x738] sm:$0xff] %v1588
      %1845 = vst [vmem:[#allocation3 + $0x740] sm:$0xff] %v1589
      %1846 = vst [vmem:[#allocation3 + $0x748] sm:$0xff] %v1590
      %1847 = vst [vmem:[#allocation3 + $0x750] sm:$0xff] %v1591
      %1848 = vst [vmem:[#allocation3 + $0x758] sm:$0xff] %v1592
      %1849 = vst [vmem:[#allocation3 + $0x760] sm:$0xff] %v1593
      %1850 = vst [vmem:[#allocation3 + $0x768] sm:$0xff] %v1594
      %1851 = vst [vmem:[#allocation3 + $0x770] sm:$0xff] %v1595
      %1852 = vst [vmem:[#allocation3 + $0x778] sm:$0xff] %v1596
      %1853 = vst [vmem:[#allocation3 + $0x780] sm:$0xff] %v1597
      %1854 = vst [vmem:[#allocation3 + $0x788] sm:$0xff] %v1598
      %1855 = vst [vmem:[#allocation3 + $0x790] sm:$0xff] %v1599
      %1856 = vst [vmem:[#allocation3 + $0x798] sm:$0xff] %v1600
      %1857 = vst [vmem:[#allocation3 + $0x7a0] sm:$0xff] %v1601
      %1858 = vst [vmem:[#allocation3 + $0x7a8] sm:$0xff] %v1602
      %1859 = vst [vmem:[#allocation3 + $0x7b0] sm:$0xff] %v1603
      %1860 = vst [vmem:[#allocation3 + $0x7b8] sm:$0xff] %v1604
      %1861 = vst [vmem:[#allocation3 + $0x7c0] sm:$0xff] %v1605
      %1862 = vst [vmem:[#allocation3 + $0x7c8] sm:$0xff] %v1606
      %1863 = vst [vmem:[#allocation3 + $0x7d0] sm:$0xff] %v1607
      %1864 = vst [vmem:[#allocation3 + $0x7d8] sm:$0xff] %v1608
      %1865 = vst [vmem:[#allocation3 + $0x7e0] sm:$0xff] %v1609
      %1866 = vst [vmem:[#allocation3 + $0x7e8] sm:$0xff] %v1610
      %1867 = vst [vmem:[#allocation3 + $0x7f0] sm:$0xff] %v1611
      %1868 = vst [vmem:[#allocation3 + $0x7f8] sm:$0xff] %v1612
    $region141: #{_generator_pallas.1} parent=1 // pred_fallthru
      _
    %v1869 = vpack.c.bf16 %v1218, %v1218
    %v1870 = vpack.c.bf16 %v1219, %v1219
    %v1871 = vpack.c.bf16 %v1220, %v1220
    %v1872 = vpack.c.bf16 %v1221, %v1221
    %v1873 = vld [vmem:[#allocation3] sm:$0xff]
    %v1874 = vld [vmem:[#allocation3 + $0x8] sm:$0xff]
    %v1875 = vld [vmem:[#allocation3 + $0x10] sm:$0xff]
    %v1876 = vld [vmem:[#allocation3 + $0x18] sm:$0xff]
    %v1877 = vld [vmem:[#allocation3 + $0x20] sm:$0xff]
    %v1878 = vld [vmem:[#allocation3 + $0x28] sm:$0xff]
    %v1879 = vld [vmem:[#allocation3 + $0x30] sm:$0xff]
    %v1880 = vld [vmem:[#allocation3 + $0x38] sm:$0xff]
    %v1881 = vld [vmem:[#allocation3 + $0x40] sm:$0xff]
    %v1882 = vld [vmem:[#allocation3 + $0x48] sm:$0xff]
    %v1883 = vld [vmem:[#allocation3 + $0x50] sm:$0xff]
    %v1884 = vld [vmem:[#allocation3 + $0x58] sm:$0xff]
    %v1885 = vld [vmem:[#allocation3 + $0x60] sm:$0xff]
    %v1886 = vld [vmem:[#allocation3 + $0x68] sm:$0xff]
    %v1887 = vld [vmem:[#allocation3 + $0x70] sm:$0xff]
    %v1888 = vld [vmem:[#allocation3 + $0x78] sm:$0xff]
    %v1889 = vld [vmem:[#allocation3 + $0x80] sm:$0xff]
    %v1890 = vld [vmem:[#allocation3 + $0x88] sm:$0xff]
    %v1891 = vld [vmem:[#allocation3 + $0x90] sm:$0xff]
    %v1892 = vld [vmem:[#allocation3 + $0x98] sm:$0xff]
    %v1893 = vld [vmem:[#allocation3 + $0xa0] sm:$0xff]
    %v1894 = vld [vmem:[#allocation3 + $0xa8] sm:$0xff]
    %v1895 = vld [vmem:[#allocation3 + $0xb0] sm:$0xff]
    %v1896 = vld [vmem:[#allocation3 + $0xb8] sm:$0xff]
    %v1897 = vld [vmem:[#allocation3 + $0xc0] sm:$0xff]
    %v1898 = vld [vmem:[#allocation3 + $0xc8] sm:$0xff]
    %v1899 = vld [vmem:[#allocation3 + $0xd0] sm:$0xff]
    %v1900 = vld [vmem:[#allocation3 + $0xd8] sm:$0xff]
    %v1901 = vld [vmem:[#allocation3 + $0xe0] sm:$0xff]
    %v1902 = vld [vmem:[#allocation3 + $0xe8] sm:$0xff]
    %v1903 = vld [vmem:[#allocation3 + $0xf0] sm:$0xff]
    %v1904 = vld [vmem:[#allocation3 + $0xf8] sm:$0xff]
    %v1905 = vld [vmem:[#allocation3 + $0x100] sm:$0xff]
    %v1906 = vld [vmem:[#allocation3 + $0x108] sm:$0xff]
    %v1907 = vld [vmem:[#allocation3 + $0x110] sm:$0xff]
    %v1908 = vld [vmem:[#allocation3 + $0x118] sm:$0xff]
    %v1909 = vld [vmem:[#allocation3 + $0x120] sm:$0xff]
    %v1910 = vld [vmem:[#allocation3 + $0x128] sm:$0xff]
    %v1911 = vld [vmem:[#allocation3 + $0x130] sm:$0xff]
    %v1912 = vld [vmem:[#allocation3 + $0x138] sm:$0xff]
    %v1913 = vld [vmem:[#allocation3 + $0x140] sm:$0xff]
    %v1914 = vld [vmem:[#allocation3 + $0x148] sm:$0xff]
    %v1915 = vld [vmem:[#allocation3 + $0x150] sm:$0xff]
    %v1916 = vld [vmem:[#allocation3 + $0x158] sm:$0xff]
    %v1917 = vld [vmem:[#allocation3 + $0x160] sm:$0xff]
    %v1918 = vld [vmem:[#allocation3 + $0x168] sm:$0xff]
    %v1919 = vld [vmem:[#allocation3 + $0x170] sm:$0xff]
    %v1920 = vld [vmem:[#allocation3 + $0x178] sm:$0xff]
    %v1921 = vld [vmem:[#allocation3 + $0x180] sm:$0xff]
    %v1922 = vld [vmem:[#allocation3 + $0x188] sm:$0xff]
    %v1923 = vld [vmem:[#allocation3 + $0x190] sm:$0xff]
    %v1924 = vld [vmem:[#allocation3 + $0x198] sm:$0xff]
    %v1925 = vld [vmem:[#allocation3 + $0x1a0] sm:$0xff]
    %v1926 = vld [vmem:[#allocation3 + $0x1a8] sm:$0xff]
    %v1927 = vld [vmem:[#allocation3 + $0x1b0] sm:$0xff]
    %v1928 = vld [vmem:[#allocation3 + $0x1b8] sm:$0xff]
    %v1929 = vld [vmem:[#allocation3 + $0x1c0] sm:$0xff]
    %v1930 = vld [vmem:[#allocation3 + $0x1c8] sm:$0xff]
    %v1931 = vld [vmem:[#allocation3 + $0x1d0] sm:$0xff]
    %v1932 = vld [vmem:[#allocation3 + $0x1d8] sm:$0xff]
    %v1933 = vld [vmem:[#allocation3 + $0x1e0] sm:$0xff]
    %v1934 = vld [vmem:[#allocation3 + $0x1e8] sm:$0xff]
    %v1935 = vld [vmem:[#allocation3 + $0x1f0] sm:$0xff]
    %v1936 = vld [vmem:[#allocation3 + $0x1f8] sm:$0xff]
    %v1937 = vld [vmem:[#allocation3 + $0x200] sm:$0xff]
    %v1938 = vld [vmem:[#allocation3 + $0x208] sm:$0xff]
    %v1939 = vld [vmem:[#allocation3 + $0x210] sm:$0xff]
    %v1940 = vld [vmem:[#allocation3 + $0x218] sm:$0xff]
    %v1941 = vld [vmem:[#allocation3 + $0x220] sm:$0xff]
    %v1942 = vld [vmem:[#allocation3 + $0x228] sm:$0xff]
    %v1943 = vld [vmem:[#allocation3 + $0x230] sm:$0xff]
    %v1944 = vld [vmem:[#allocation3 + $0x238] sm:$0xff]
    %v1945 = vld [vmem:[#allocation3 + $0x240] sm:$0xff]
    %v1946 = vld [vmem:[#allocation3 + $0x248] sm:$0xff]
    %v1947 = vld [vmem:[#allocation3 + $0x250] sm:$0xff]
    %v1948 = vld [vmem:[#allocation3 + $0x258] sm:$0xff]
    %v1949 = vld [vmem:[#allocation3 + $0x260] sm:$0xff]
    %v1950 = vld [vmem:[#allocation3 + $0x268] sm:$0xff]
    %v1951 = vld [vmem:[#allocation3 + $0x270] sm:$0xff]
    %v1952 = vld [vmem:[#allocation3 + $0x278] sm:$0xff]
    %v1953 = vld [vmem:[#allocation3 + $0x280] sm:$0xff]
    %v1954 = vld [vmem:[#allocation3 + $0x288] sm:$0xff]
    %v1955 = vld [vmem:[#allocation3 + $0x290] sm:$0xff]
    %v1956 = vld [vmem:[#allocation3 + $0x298] sm:$0xff]
    %v1957 = vld [vmem:[#allocation3 + $0x2a0] sm:$0xff]
    %v1958 = vld [vmem:[#allocation3 + $0x2a8] sm:$0xff]
    %v1959 = vld [vmem:[#allocation3 + $0x2b0] sm:$0xff]
    %v1960 = vld [vmem:[#allocation3 + $0x2b8] sm:$0xff]
    %v1961 = vld [vmem:[#allocation3 + $0x2c0] sm:$0xff]
    %v1962 = vld [vmem:[#allocation3 + $0x2c8] sm:$0xff]
    %v1963 = vld [vmem:[#allocation3 + $0x2d0] sm:$0xff]
    %v1964 = vld [vmem:[#allocation3 + $0x2d8] sm:$0xff]
    %v1965 = vld [vmem:[#allocation3 + $0x2e0] sm:$0xff]
    %v1966 = vld [vmem:[#allocation3 + $0x2e8] sm:$0xff]
    %v1967 = vld [vmem:[#allocation3 + $0x2f0] sm:$0xff]
    %v1968 = vld [vmem:[#allocation3 + $0x2f8] sm:$0xff]
    %v1969 = vld [vmem:[#allocation3 + $0x300] sm:$0xff]
    %v1970 = vld [vmem:[#allocation3 + $0x308] sm:$0xff]
    %v1971 = vld [vmem:[#allocation3 + $0x310] sm:$0xff]
    %v1972 = vld [vmem:[#allocation3 + $0x318] sm:$0xff]
    %v1973 = vld [vmem:[#allocation3 + $0x320] sm:$0xff]
    %v1974 = vld [vmem:[#allocation3 + $0x328] sm:$0xff]
    %v1975 = vld [vmem:[#allocation3 + $0x330] sm:$0xff]
    %v1976 = vld [vmem:[#allocation3 + $0x338] sm:$0xff]
    %v1977 = vld [vmem:[#allocation3 + $0x340] sm:$0xff]
    %v1978 = vld [vmem:[#allocation3 + $0x348] sm:$0xff]
    %v1979 = vld [vmem:[#allocation3 + $0x350] sm:$0xff]
    %v1980 = vld [vmem:[#allocation3 + $0x358] sm:$0xff]
    %v1981 = vld [vmem:[#allocation3 + $0x360] sm:$0xff]
    %v1982 = vld [vmem:[#allocation3 + $0x368] sm:$0xff]
    %v1983 = vld [vmem:[#allocation3 + $0x370] sm:$0xff]
    %v1984 = vld [vmem:[#allocation3 + $0x378] sm:$0xff]
    %v1985 = vld [vmem:[#allocation3 + $0x380] sm:$0xff]
    %v1986 = vld [vmem:[#allocation3 + $0x388] sm:$0xff]
    %v1987 = vld [vmem:[#allocation3 + $0x390] sm:$0xff]
    %v1988 = vld [vmem:[#allocation3 + $0x398] sm:$0xff]
    %v1989 = vld [vmem:[#allocation3 + $0x3a0] sm:$0xff]
    %v1990 = vld [vmem:[#allocation3 + $0x3a8] sm:$0xff]
    %v1991 = vld [vmem:[#allocation3 + $0x3b0] sm:$0xff]
    %v1992 = vld [vmem:[#allocation3 + $0x3b8] sm:$0xff]
    %v1993 = vld [vmem:[#allocation3 + $0x3c0] sm:$0xff]
    %v1994 = vld [vmem:[#allocation3 + $0x3c8] sm:$0xff]
    %v1995 = vld [vmem:[#allocation3 + $0x3d0] sm:$0xff]
    %v1996 = vld [vmem:[#allocation3 + $0x3d8] sm:$0xff]
    %v1997 = vld [vmem:[#allocation3 + $0x3e0] sm:$0xff]
    %v1998 = vld [vmem:[#allocation3 + $0x3e8] sm:$0xff]
    %v1999 = vld [vmem:[#allocation3 + $0x3f0] sm:$0xff]
    %v2000 = vld [vmem:[#allocation3 + $0x3f8] sm:$0xff]
    %v2001 = vld [vmem:[#allocation3 + $0x400] sm:$0xff]
    %v2002 = vld [vmem:[#allocation3 + $0x408] sm:$0xff]
    %v2003 = vld [vmem:[#allocation3 + $0x410] sm:$0xff]
    %v2004 = vld [vmem:[#allocation3 + $0x418] sm:$0xff]
    %v2005 = vld [vmem:[#allocation3 + $0x420] sm:$0xff]
    %v2006 = vld [vmem:[#allocation3 + $0x428] sm:$0xff]
    %v2007 = vld [vmem:[#allocation3 + $0x430] sm:$0xff]
    %v2008 = vld [vmem:[#allocation3 + $0x438] sm:$0xff]
    %v2009 = vld [vmem:[#allocation3 + $0x440] sm:$0xff]
    %v2010 = vld [vmem:[#allocation3 + $0x448] sm:$0xff]
    %v2011 = vld [vmem:[#allocation3 + $0x450] sm:$0xff]
    %v2012 = vld [vmem:[#allocation3 + $0x458] sm:$0xff]
    %v2013 = vld [vmem:[#allocation3 + $0x460] sm:$0xff]
    %v2014 = vld [vmem:[#allocation3 + $0x468] sm:$0xff]
    %v2015 = vld [vmem:[#allocation3 + $0x470] sm:$0xff]
    %v2016 = vld [vmem:[#allocation3 + $0x478] sm:$0xff]
    %v2017 = vld [vmem:[#allocation3 + $0x480] sm:$0xff]
    %v2018 = vld [vmem:[#allocation3 + $0x488] sm:$0xff]
    %v2019 = vld [vmem:[#allocation3 + $0x490] sm:$0xff]
    %v2020 = vld [vmem:[#allocation3 + $0x498] sm:$0xff]
    %v2021 = vld [vmem:[#allocation3 + $0x4a0] sm:$0xff]
    %v2022 = vld [vmem:[#allocation3 + $0x4a8] sm:$0xff]
    %v2023 = vld [vmem:[#allocation3 + $0x4b0] sm:$0xff]
    %v2024 = vld [vmem:[#allocation3 + $0x4b8] sm:$0xff]
    %v2025 = vld [vmem:[#allocation3 + $0x4c0] sm:$0xff]
    %v2026 = vld [vmem:[#allocation3 + $0x4c8] sm:$0xff]
    %v2027 = vld [vmem:[#allocation3 + $0x4d0] sm:$0xff]
    %v2028 = vld [vmem:[#allocation3 + $0x4d8] sm:$0xff]
    %v2029 = vld [vmem:[#allocation3 + $0x4e0] sm:$0xff]
    %v2030 = vld [vmem:[#allocation3 + $0x4e8] sm:$0xff]
    %v2031 = vld [vmem:[#allocation3 + $0x4f0] sm:$0xff]
    %v2032 = vld [vmem:[#allocation3 + $0x4f8] sm:$0xff]
    %v2033 = vld [vmem:[#allocation3 + $0x500] sm:$0xff]
    %v2034 = vld [vmem:[#allocation3 + $0x508] sm:$0xff]
    %v2035 = vld [vmem:[#allocation3 + $0x510] sm:$0xff]
    %v2036 = vld [vmem:[#allocation3 + $0x518] sm:$0xff]
    %v2037 = vld [vmem:[#allocation3 + $0x520] sm:$0xff]
    %v2038 = vld [vmem:[#allocation3 + $0x528] sm:$0xff]
    %v2039 = vld [vmem:[#allocation3 + $0x530] sm:$0xff]
    %v2040 = vld [vmem:[#allocation3 + $0x538] sm:$0xff]
    %v2041 = vld [vmem:[#allocation3 + $0x540] sm:$0xff]
    %v2042 = vld [vmem:[#allocation3 + $0x548] sm:$0xff]
    %v2043 = vld [vmem:[#allocation3 + $0x550] sm:$0xff]
    %v2044 = vld [vmem:[#allocation3 + $0x558] sm:$0xff]
    %v2045 = vld [vmem:[#allocation3 + $0x560] sm:$0xff]
    %v2046 = vld [vmem:[#allocation3 + $0x568] sm:$0xff]
    %v2047 = vld [vmem:[#allocation3 + $0x570] sm:$0xff]
    %v2048 = vld [vmem:[#allocation3 + $0x578] sm:$0xff]
    %v2049 = vld [vmem:[#allocation3 + $0x580] sm:$0xff]
    %v2050 = vld [vmem:[#allocation3 + $0x588] sm:$0xff]
    %v2051 = vld [vmem:[#allocation3 + $0x590] sm:$0xff]
    %v2052 = vld [vmem:[#allocation3 + $0x598] sm:$0xff]
    %v2053 = vld [vmem:[#allocation3 + $0x5a0] sm:$0xff]
    %v2054 = vld [vmem:[#allocation3 + $0x5a8] sm:$0xff]
    %v2055 = vld [vmem:[#allocation3 + $0x5b0] sm:$0xff]
    %v2056 = vld [vmem:[#allocation3 + $0x5b8] sm:$0xff]
    %v2057 = vld [vmem:[#allocation3 + $0x5c0] sm:$0xff]
    %v2058 = vld [vmem:[#allocation3 + $0x5c8] sm:$0xff]
    %v2059 = vld [vmem:[#allocation3 + $0x5d0] sm:$0xff]
    %v2060 = vld [vmem:[#allocation3 + $0x5d8] sm:$0xff]
    %v2061 = vld [vmem:[#allocation3 + $0x5e0] sm:$0xff]
    %v2062 = vld [vmem:[#allocation3 + $0x5e8] sm:$0xff]
    %v2063 = vld [vmem:[#allocation3 + $0x5f0] sm:$0xff]
    %v2064 = vld [vmem:[#allocation3 + $0x5f8] sm:$0xff]
    %v2065 = vld [vmem:[#allocation3 + $0x600] sm:$0xff]
    %v2066 = vld [vmem:[#allocation3 + $0x608] sm:$0xff]
    %v2067 = vld [vmem:[#allocation3 + $0x610] sm:$0xff]
    %v2068 = vld [vmem:[#allocation3 + $0x618] sm:$0xff]
    %v2069 = vld [vmem:[#allocation3 + $0x620] sm:$0xff]
    %v2070 = vld [vmem:[#allocation3 + $0x628] sm:$0xff]
    %v2071 = vld [vmem:[#allocation3 + $0x630] sm:$0xff]
    %v2072 = vld [vmem:[#allocation3 + $0x638] sm:$0xff]
    %v2073 = vld [vmem:[#allocation3 + $0x640] sm:$0xff]
    %v2074 = vld [vmem:[#allocation3 + $0x648] sm:$0xff]
    %v2075 = vld [vmem:[#allocation3 + $0x650] sm:$0xff]
    %v2076 = vld [vmem:[#allocation3 + $0x658] sm:$0xff]
    %v2077 = vld [vmem:[#allocation3 + $0x660] sm:$0xff]
    %v2078 = vld [vmem:[#allocation3 + $0x668] sm:$0xff]
    %v2079 = vld [vmem:[#allocation3 + $0x670] sm:$0xff]
    %v2080 = vld [vmem:[#allocation3 + $0x678] sm:$0xff]
    %v2081 = vld [vmem:[#allocation3 + $0x680] sm:$0xff]
    %v2082 = vld [vmem:[#allocation3 + $0x688] sm:$0xff]
    %v2083 = vld [vmem:[#allocation3 + $0x690] sm:$0xff]
    %v2084 = vld [vmem:[#allocation3 + $0x698] sm:$0xff]
    %v2085 = vld [vmem:[#allocation3 + $0x6a0] sm:$0xff]
    %v2086 = vld [vmem:[#allocation3 + $0x6a8] sm:$0xff]
    %v2087 = vld [vmem:[#allocation3 + $0x6b0] sm:$0xff]
    %v2088 = vld [vmem:[#allocation3 + $0x6b8] sm:$0xff]
    %v2089 = vld [vmem:[#allocation3 + $0x6c0] sm:$0xff]
    %v2090 = vld [vmem:[#allocation3 + $0x6c8] sm:$0xff]
    %v2091 = vld [vmem:[#allocation3 + $0x6d0] sm:$0xff]
    %v2092 = vld [vmem:[#allocation3 + $0x6d8] sm:$0xff]
    %v2093 = vld [vmem:[#allocation3 + $0x6e0] sm:$0xff]
    %v2094 = vld [vmem:[#allocation3 + $0x6e8] sm:$0xff]
    %v2095 = vld [vmem:[#allocation3 + $0x6f0] sm:$0xff]
    %v2096 = vld [vmem:[#allocation3 + $0x6f8] sm:$0xff]
    %v2097 = vld [vmem:[#allocation3 + $0x700] sm:$0xff]
    %v2098 = vld [vmem:[#allocation3 + $0x708] sm:$0xff]
    %v2099 = vld [vmem:[#allocation3 + $0x710] sm:$0xff]
    %v2100 = vld [vmem:[#allocation3 + $0x718] sm:$0xff]
    %v2101 = vld [vmem:[#allocation3 + $0x720] sm:$0xff]
    %v2102 = vld [vmem:[#allocation3 + $0x728] sm:$0xff]
    %v2103 = vld [vmem:[#allocation3 + $0x730] sm:$0xff]
    %v2104 = vld [vmem:[#allocation3 + $0x738] sm:$0xff]
    %v2105 = vld [vmem:[#allocation3 + $0x740] sm:$0xff]
    %v2106 = vld [vmem:[#allocation3 + $0x748] sm:$0xff]
    %v2107 = vld [vmem:[#allocation3 + $0x750] sm:$0xff]
    %v2108 = vld [vmem:[#allocation3 + $0x758] sm:$0xff]
    %v2109 = vld [vmem:[#allocation3 + $0x760] sm:$0xff]
    %v2110 = vld [vmem:[#allocation3 + $0x768] sm:$0xff]
    %v2111 = vld [vmem:[#allocation3 + $0x770] sm:$0xff]
    %v2112 = vld [vmem:[#allocation3 + $0x778] sm:$0xff]
    %v2113 = vld [vmem:[#allocation3 + $0x780] sm:$0xff]
    %v2114 = vld [vmem:[#allocation3 + $0x788] sm:$0xff]
    %v2115 = vld [vmem:[#allocation3 + $0x790] sm:$0xff]
    %v2116 = vld [vmem:[#allocation3 + $0x798] sm:$0xff]
    %v2117 = vld [vmem:[#allocation3 + $0x7a0] sm:$0xff]
    %v2118 = vld [vmem:[#allocation3 + $0x7a8] sm:$0xff]
    %v2119 = vld [vmem:[#allocation3 + $0x7b0] sm:$0xff]
    %v2120 = vld [vmem:[#allocation3 + $0x7b8] sm:$0xff]
    %v2121 = vld [vmem:[#allocation3 + $0x7c0] sm:$0xff]
    %v2122 = vld [vmem:[#allocation3 + $0x7c8] sm:$0xff]
    %v2123 = vld [vmem:[#allocation3 + $0x7d0] sm:$0xff]
    %v2124 = vld [vmem:[#allocation3 + $0x7d8] sm:$0xff]
    %v2125 = vld [vmem:[#allocation3 + $0x7e0] sm:$0xff]
    %v2126 = vld [vmem:[#allocation3 + $0x7e8] sm:$0xff]
    %v2127 = vld [vmem:[#allocation3 + $0x7f0] sm:$0xff]
    %v2128 = vld [vmem:[#allocation3 + $0x7f8] sm:$0xff]
    %2129 = vmatprep.subr.bf16.mxu0 %v1874
    %2130 = vmatpush1.bf16.msra.mxu0 %v1873
    %2131 = vmatprep.subr.bf16.mxu0 %v1882
    %2132 = vmatpush1.bf16.msra.mxu0 %v1881
    %2133 = vmatprep.subr.bf16.mxu0 %v1890
    %2134 = vmatpush1.bf16.msra.mxu0 %v1889
    %2135 = vmatprep.subr.bf16.mxu0 %v1898
    %2136 = vmatpush1.bf16.msra.mxu0 %v1897
    %2137 = vmatprep.subr.bf16.mxu0 %v1906
    %2138 = vmatpush1.bf16.msra.mxu0 %v1905
    %2139 = vmatprep.subr.bf16.mxu0 %v1914
    %2140 = vmatpush1.bf16.msra.mxu0 %v1913
    %2141 = vmatprep.subr.bf16.mxu0 %v1922
    %2142 = vmatpush1.bf16.msra.mxu0 %v1921
    %2143 = vmatprep.subr.bf16.mxu0 %v1930
    %2144 = vmatpush1.bf16.msra.mxu0 %v1929
    %2145 = vmatprep.subr.bf16.mxu0 %v1938
    %2146 = vmatpush1.bf16.msra.mxu0 %v1937
    %2147 = vmatprep.subr.bf16.mxu0 %v1946
    %2148 = vmatpush1.bf16.msra.mxu0 %v1945
    %2149 = vmatprep.subr.bf16.mxu0 %v1954
    %2150 = vmatpush1.bf16.msra.mxu0 %v1953
    %2151 = vmatprep.subr.bf16.mxu0 %v1962
    %2152 = vmatpush1.bf16.msra.mxu0 %v1961
    %2153 = vmatprep.subr.bf16.mxu0 %v1970
    %2154 = vmatpush1.bf16.msra.mxu0 %v1969
    %2155 = vmatprep.subr.bf16.mxu0 %v1978
    %2156 = vmatpush1.bf16.msra.mxu0 %v1977
    %2157 = vmatprep.subr.bf16.mxu0 %v1986
    %2158 = vmatpush1.bf16.msra.mxu0 %v1985
    %2159 = vmatprep.subr.bf16.mxu0 %v1994
    %2160 = vmatpush1.bf16.msra.mxu0 %v1993
    %2161 = vmatprep.mubr.bf16.mxu0 %v1870
    %2162 = vmatmul.mubr.bf16.gmra.mrb[0].mxu0 %v1869
    %v2163 = vpop.f32.mrb[0].mxu0
    %v2164 = vadd.f32 0.0, %v2163
    %v2165 = vpop.f32.mrb[0].mxu0
    %v2166 = vadd.f32 0.0, %v2165
    %v2167 = vpop.f32.mrb[0].mxu0
    %v2168 = vpop.f32.mrb[0].mxu0
    %2169 = vdwg.mxu0
    %2170 = vmatprep.subr.bf16.mxu0 %v2002
    %2171 = vmatpush1.bf16.msra.mxu0 %v2001
    %2172 = vmatprep.subr.bf16.mxu0 %v2010
    %2173 = vmatpush1.bf16.msra.mxu0 %v2009
    %2174 = vmatprep.subr.bf16.mxu0 %v2018
    %2175 = vmatpush1.bf16.msra.mxu0 %v2017
    %2176 = vmatprep.subr.bf16.mxu0 %v2026
    %2177 = vmatpush1.bf16.msra.mxu0 %v2025
    %2178 = vmatprep.subr.bf16.mxu0 %v2034
    %2179 = vmatpush1.bf16.msra.mxu0 %v2033
    %2180 = vmatprep.subr.bf16.mxu0 %v2042
    %2181 = vmatpush1.bf16.msra.mxu0 %v2041
    %2182 = vmatprep.subr.bf16.mxu0 %v2050
    %2183 = vmatpush1.bf16.msra.mxu0 %v2049
    %2184 = vmatprep.subr.bf16.mxu0 %v2058
    %2185 = vmatpush1.bf16.msra.mxu0 %v2057
    %2186 = vmatprep.subr.bf16.mxu0 %v2066
    %2187 = vmatpush1.bf16.msra.mxu0 %v2065
    %2188 = vmatprep.subr.bf16.mxu0 %v2074
    %2189 = vmatpush1.bf16.msra.mxu0 %v2073
    %2190 = vmatprep.subr.bf16.mxu0 %v2082
    %2191 = vmatpush1.bf16.msra.mxu0 %v2081
    %2192 = vmatprep.subr.bf16.mxu0 %v2090
    %2193 = vmatpush1.bf16.msra.mxu0 %v2089
    %2194 = vmatprep.subr.bf16.mxu0 %v2098
    %2195 = vmatpush1.bf16.msra.mxu0 %v2097
    %2196 = vmatprep.subr.bf16.mxu0 %v2106
    %2197 = vmatpush1.bf16.msra.mxu0 %v2105
    %2198 = vmatprep.subr.bf16.mxu0 %v2114
    %2199 = vmatpush1.bf16.msra.mxu0 %v2113
    %2200 = vmatprep.subr.bf16.mxu0 %v2122
    %2201 = vmatpush1.bf16.msra.mxu0 %v2121
    %2202 = vmatprep.mubr.bf16.mxu0 %v1872
    %2203 = vmatmul.mubr.bf16.gmra.mrb[0].mxu0 %v1871
    %v2204 = vpop.f32.mrb[0].mxu0
    %v2205 = vadd.f32 %v2164, %v2204
    %v2206 = vpop.f32.mrb[0].mxu0
    %v2207 = vadd.f32 %v2166, %v2206
    %v2208 = vpop.f32.mrb[0].mxu0
    %v2209 = vpop.f32.mrb[0].mxu0
    %2210 = vdwg.mxu0
    %2211 = vmatprep.subr.bf16.mxu0 %v1876
    %2212 = vmatpush1.bf16.msra.mxu0 %v1875
    %2213 = vmatprep.subr.bf16.mxu0 %v1884
    %2214 = vmatpush1.bf16.msra.mxu0 %v1883
    %2215 = vmatprep.subr.bf16.mxu0 %v1892
    %2216 = vmatpush1.bf16.msra.mxu0 %v1891
    %2217 = vmatprep.subr.bf16.mxu0 %v1900
    %2218 = vmatpush1.bf16.msra.mxu0 %v1899
    %2219 = vmatprep.subr.bf16.mxu0 %v1908
    %2220 = vmatpush1.bf16.msra.mxu0 %v1907
    %2221 = vmatprep.subr.bf16.mxu0 %v1916
    %2222 = vmatpush1.bf16.msra.mxu0 %v1915
    %2223 = vmatprep.subr.bf16.mxu0 %v1924
    %2224 = vmatpush1.bf16.msra.mxu0 %v1923
    %2225 = vmatprep.subr.bf16.mxu0 %v1932
    %2226 = vmatpush1.bf16.msra.mxu0 %v1931
    %2227 = vmatprep.subr.bf16.mxu0 %v1940
    %2228 = vmatpush1.bf16.msra.mxu0 %v1939
    %2229 = vmatprep.subr.bf16.mxu0 %v1948
    %2230 = vmatpush1.bf16.msra.mxu0 %v1947
    %2231 = vmatprep.subr.bf16.mxu0 %v1956
    %2232 = vmatpush1.bf16.msra.mxu0 %v1955
    %2233 = vmatprep.subr.bf16.mxu0 %v1964
    %2234 = vmatpush1.bf16.msra.mxu0 %v1963
    %2235 = vmatprep.subr.bf16.mxu0 %v1972
    %2236 = vmatpush1.bf16.msra.mxu0 %v1971
    %2237 = vmatprep.subr.bf16.mxu0 %v1980
    %2238 = vmatpush1.bf16.msra.mxu0 %v1979
    %2239 = vmatprep.subr.bf16.mxu0 %v1988
    %2240 = vmatpush1.bf16.msra.mxu0 %v1987
    %2241 = vmatprep.subr.bf16.mxu0 %v1996
    %2242 = vmatpush1.bf16.msra.mxu0 %v1995
    %2243 = vmatprep.mubr.bf16.mxu0 %v1870
    %2244 = vmatmul.mubr.bf16.gmra.mrb[0].mxu0 %v1869
    %v2245 = vpop.f32.mrb[0].mxu0
    %v2246 = vadd.f32 0.0, %v2245
    %v2247 = vpop.f32.mrb[0].mxu0
    %v2248 = vadd.f32 0.0, %v2247
    %v2249 = vpop.f32.mrb[0].mxu0
    %v2250 = vpop.f32.mrb[0].mxu0
    %2251 = vdwg.mxu0
    %2252 = vmatprep.subr.bf16.mxu0 %v2004
    %2253 = vmatpush1.bf16.msra.mxu0 %v2003
    %2254 = vmatprep.subr.bf16.mxu0 %v2012
    %2255 = vmatpush1.bf16.msra.mxu0 %v2011
    %2256 = vmatprep.subr.bf16.mxu0 %v2020
    %2257 = vmatpush1.bf16.msra.mxu0 %v2019
    %2258 = vmatprep.subr.bf16.mxu0 %v2028
    %2259 = vmatpush1.bf16.msra.mxu0 %v2027
    %2260 = vmatprep.subr.bf16.mxu0 %v2036
    %2261 = vmatpush1.bf16.msra.mxu0 %v2035
    %2262 = vmatprep.subr.bf16.mxu0 %v2044
    %2263 = vmatpush1.bf16.msra.mxu0 %v2043
    %2264 = vmatprep.subr.bf16.mxu0 %v2052
    %2265 = vmatpush1.bf16.msra.mxu0 %v2051
    %2266 = vmatprep.subr.bf16.mxu0 %v2060
    %2267 = vmatpush1.bf16.msra.mxu0 %v2059
    %2268 = vmatprep.subr.bf16.mxu0 %v2068
    %2269 = vmatpush1.bf16.msra.mxu0 %v2067
    %2270 = vmatprep.subr.bf16.mxu0 %v2076
    %2271 = vmatpush1.bf16.msra.mxu0 %v2075
    %2272 = vmatprep.subr.bf16.mxu0 %v2084
    %2273 = vmatpush1.bf16.msra.mxu0 %v2083
    %2274 = vmatprep.subr.bf16.mxu0 %v2092
    %2275 = vmatpush1.bf16.msra.mxu0 %v2091
    %2276 = vmatprep.subr.bf16.mxu0 %v2100
    %2277 = vmatpush1.bf16.msra.mxu0 %v2099
    %2278 = vmatprep.subr.bf16.mxu0 %v2108
    %2279 = vmatpush1.bf16.msra.mxu0 %v2107
    %2280 = vmatprep.subr.bf16.mxu0 %v2116
    %2281 = vmatpush1.bf16.msra.mxu0 %v2115
    %2282 = vmatprep.subr.bf16.mxu0 %v2124
    %2283 = vmatpush1.bf16.msra.mxu0 %v2123
    %2284 = vmatprep.mubr.bf16.mxu0 %v1872
    %2285 = vmatmul.mubr.bf16.gmra.mrb[0].mxu0 %v1871
    %v2286 = vpop.f32.mrb[0].mxu0
    %v2287 = vadd.f32 %v2246, %v2286
    %v2288 = vpop.f32.mrb[0].mxu0
    %v2289 = vadd.f32 %v2248, %v2288
    %v2290 = vpop.f32.mrb[0].mxu0
    %v2291 = vpop.f32.mrb[0].mxu0
    %2292 = vdwg.mxu0
    %2293 = vmatprep.subr.bf16.mxu0 %v1878
    %2294 = vmatpush1.bf16.msra.mxu0 %v1877
    %2295 = vmatprep.subr.bf16.mxu0 %v1886
    %2296 = vmatpush1.bf16.msra.mxu0 %v1885
    %2297 = vmatprep.subr.bf16.mxu0 %v1894
    %2298 = vmatpush1.bf16.msra.mxu0 %v1893
    %2299 = vmatprep.subr.bf16.mxu0 %v1902
    %2300 = vmatpush1.bf16.msra.mxu0 %v1901
    %2301 = vmatprep.subr.bf16.mxu0 %v1910
    %2302 = vmatpush1.bf16.msra.mxu0 %v1909
    %2303 = vmatprep.subr.bf16.mxu0 %v1918
    %2304 = vmatpush1.bf16.msra.mxu0 %v1917
    %2305 = vmatprep.subr.bf16.mxu0 %v1926
    %2306 = vmatpush1.bf16.msra.mxu0 %v1925
    %2307 = vmatprep.subr.bf16.mxu0 %v1934
    %2308 = vmatpush1.bf16.msra.mxu0 %v1933
    %2309 = vmatprep.subr.bf16.mxu0 %v1942
    %2310 = vmatpush1.bf16.msra.mxu0 %v1941
    %2311 = vmatprep.subr.bf16.mxu0 %v1950
    %2312 = vmatpush1.bf16.msra.mxu0 %v1949
    %2313 = vmatprep.subr.bf16.mxu0 %v1958
    %2314 = vmatpush1.bf16.msra.mxu0 %v1957
    %2315 = vmatprep.subr.bf16.mxu0 %v1966
    %2316 = vmatpush1.bf16.msra.mxu0 %v1965
    %2317 = vmatprep.subr.bf16.mxu0 %v1974
    %2318 = vmatpush1.bf16.msra.mxu0 %v1973
    %2319 = vmatprep.subr.bf16.mxu0 %v1982
    %2320 = vmatpush1.bf16.msra.mxu0 %v1981
    %2321 = vmatprep.subr.bf16.mxu0 %v1990
    %2322 = vmatpush1.bf16.msra.mxu0 %v1989
    %2323 = vmatprep.subr.bf16.mxu0 %v1998
    %2324 = vmatpush1.bf16.msra.mxu0 %v1997
    %2325 = vmatprep.mubr.bf16.mxu0 %v1870
    %2326 = vmatmul.mubr.bf16.gmra.mrb[0].mxu0 %v1869
    %v2327 = vpop.f32.mrb[0].mxu0
    %v2328 = vadd.f32 0.0, %v2327
    %v2329 = vpop.f32.mrb[0].mxu0
    %v2330 = vadd.f32 0.0, %v2329
    %v2331 = vpop.f32.mrb[0].mxu0
    %v2332 = vpop.f32.mrb[0].mxu0
    %2333 = vdwg.mxu0
    %2334 = vmatprep.subr.bf16.mxu0 %v2006
    %2335 = vmatpush1.bf16.msra.mxu0 %v2005
    %2336 = vmatprep.subr.bf16.mxu0 %v2014
    %2337 = vmatpush1.bf16.msra.mxu0 %v2013
    %2338 = vmatprep.subr.bf16.mxu0 %v2022
    %2339 = vmatpush1.bf16.msra.mxu0 %v2021
    %2340 = vmatprep.subr.bf16.mxu0 %v2030
    %2341 = vmatpush1.bf16.msra.mxu0 %v2029
    %2342 = vmatprep.subr.bf16.mxu0 %v2038
    %2343 = vmatpush1.bf16.msra.mxu0 %v2037
    %2344 = vmatprep.subr.bf16.mxu0 %v2046
    %2345 = vmatpush1.bf16.msra.mxu0 %v2045
    %2346 = vmatprep.subr.bf16.mxu0 %v2054
    %2347 = vmatpush1.bf16.msra.mxu0 %v2053
    %2348 = vmatprep.subr.bf16.mxu0 %v2062
    %2349 = vmatpush1.bf16.msra.mxu0 %v2061
    %2350 = vmatprep.subr.bf16.mxu0 %v2070
    %2351 = vmatpush1.bf16.msra.mxu0 %v2069
    %2352 = vmatprep.subr.bf16.mxu0 %v2078
    %2353 = vmatpush1.bf16.msra.mxu0 %v2077
    %2354 = vmatprep.subr.bf16.mxu0 %v2086
    %2355 = vmatpush1.bf16.msra.mxu0 %v2085
    %2356 = vmatprep.subr.bf16.mxu0 %v2094
    %2357 = vmatpush1.bf16.msra.mxu0 %v2093
    %2358 = vmatprep.subr.bf16.mxu0 %v2102
    %2359 = vmatpush1.bf16.msra.mxu0 %v2101
    %2360 = vmatprep.subr.bf16.mxu0 %v2110
    %2361 = vmatpush1.bf16.msra.mxu0 %v2109
    %2362 = vmatprep.subr.bf16.mxu0 %v2118
    %2363 = vmatpush1.bf16.msra.mxu0 %v2117
    %2364 = vmatprep.subr.bf16.mxu0 %v2126
    %2365 = vmatpush1.bf16.msra.mxu0 %v2125
    %2366 = vmatprep.mubr.bf16.mxu0 %v1872
    %2367 = vmatmul.mubr.bf16.gmra.mrb[0].mxu0 %v1871
    %v2368 = vpop.f32.mrb[0].mxu0
    %v2369 = vadd.f32 %v2328, %v2368
    %v2370 = vpop.f32.mrb[0].mxu0
    %v2371 = vadd.f32 %v2330, %v2370
    %v2372 = vpop.f32.mrb[0].mxu0
    %v2373 = vpop.f32.mrb[0].mxu0
    %2374 = vdwg.mxu0
    %2375 = vmatprep.subr.bf16.mxu0 %v1880
    %2376 = vmatpush1.bf16.msra.mxu0 %v1879
    %2377 = vmatprep.subr.bf16.mxu0 %v1888
    %2378 = vmatpush1.bf16.msra.mxu0 %v1887
    %2379 = vmatprep.subr.bf16.mxu0 %v1896
    %2380 = vmatpush1.bf16.msra.mxu0 %v1895
    %2381 = vmatprep.subr.bf16.mxu0 %v1904
    %2382 = vmatpush1.bf16.msra.mxu0 %v1903
    %2383 = vmatprep.subr.bf16.mxu0 %v1912
    %2384 = vmatpush1.bf16.msra.mxu0 %v1911
    %2385 = vmatprep.subr.bf16.mxu0 %v1920
    %2386 = vmatpush1.bf16.msra.mxu0 %v1919
    %2387 = vmatprep.subr.bf16.mxu0 %v1928
    %2388 = vmatpush1.bf16.msra.mxu0 %v1927
    %2389 = vmatprep.subr.bf16.mxu0 %v1936
    %2390 = vmatpush1.bf16.msra.mxu0 %v1935
    %2391 = vmatprep.subr.bf16.mxu0 %v1944
    %2392 = vmatpush1.bf16.msra.mxu0 %v1943
    %2393 = vmatprep.subr.bf16.mxu0 %v1952
    %2394 = vmatpush1.bf16.msra.mxu0 %v1951
    %2395 = vmatprep.subr.bf16.mxu0 %v1960
    %2396 = vmatpush1.bf16.msra.mxu0 %v1959
    %2397 = vmatprep.subr.bf16.mxu0 %v1968
    %2398 = vmatpush1.bf16.msra.mxu0 %v1967
    %2399 = vmatprep.subr.bf16.mxu0 %v1976
    %2400 = vmatpush1.bf16.msra.mxu0 %v1975
    %2401 = vmatprep.subr.bf16.mxu0 %v1984
    %2402 = vmatpush1.bf16.msra.mxu0 %v1983
    %2403 = vmatprep.subr.bf16.mxu0 %v1992
    %2404 = vmatpush1.bf16.msra.mxu0 %v1991
    %2405 = vmatprep.subr.bf16.mxu0 %v2000
    %2406 = vmatpush1.bf16.msra.mxu0 %v1999
    %2407 = vmatprep.mubr.bf16.mxu0 %v1870
    %2408 = vmatmul.mubr.bf16.gmra.mrb[0].mxu0 %v1869
    %v2409 = vpop.f32.mrb[0].mxu0
    %v2410 = vadd.f32 0.0, %v2409
    %v2411 = vpop.f32.mrb[0].mxu0
    %v2412 = vadd.f32 0.0, %v2411
    %v2413 = vpop.f32.mrb[0].mxu0
    %v2414 = vpop.f32.mrb[0].mxu0
    %2415 = vdwg.mxu0
    %2416 = vmatprep.subr.bf16.mxu0 %v2008
    %2417 = vmatpush1.bf16.msra.mxu0 %v2007
    %2418 = vmatprep.subr.bf16.mxu0 %v2016
    %2419 = vmatpush1.bf16.msra.mxu0 %v2015
    %2420 = vmatprep.subr.bf16.mxu0 %v2024
    %2421 = vmatpush1.bf16.msra.mxu0 %v2023
    %2422 = vmatprep.subr.bf16.mxu0 %v2032
    %2423 = vmatpush1.bf16.msra.mxu0 %v2031
    %2424 = vmatprep.subr.bf16.mxu0 %v2040
    %2425 = vmatpush1.bf16.msra.mxu0 %v2039
    %2426 = vmatprep.subr.bf16.mxu0 %v2048
    %2427 = vmatpush1.bf16.msra.mxu0 %v2047
    %2428 = vmatprep.subr.bf16.mxu0 %v2056
    %2429 = vmatpush1.bf16.msra.mxu0 %v2055
    %2430 = vmatprep.subr.bf16.mxu0 %v2064
    %2431 = vmatpush1.bf16.msra.mxu0 %v2063
    %2432 = vmatprep.subr.bf16.mxu0 %v2072
    %2433 = vmatpush1.bf16.msra.mxu0 %v2071
    %2434 = vmatprep.subr.bf16.mxu0 %v2080
    %2435 = vmatpush1.bf16.msra.mxu0 %v2079
    %2436 = vmatprep.subr.bf16.mxu0 %v2088
    %2437 = vmatpush1.bf16.msra.mxu0 %v2087
    %2438 = vmatprep.subr.bf16.mxu0 %v2096
    %2439 = vmatpush1.bf16.msra.mxu0 %v2095
    %2440 = vmatprep.subr.bf16.mxu0 %v2104
    %2441 = vmatpush1.bf16.msra.mxu0 %v2103
    %2442 = vmatprep.subr.bf16.mxu0 %v2112
    %2443 = vmatpush1.bf16.msra.mxu0 %v2111
    %2444 = vmatprep.subr.bf16.mxu0 %v2120
    %2445 = vmatpush1.bf16.msra.mxu0 %v2119
    %2446 = vmatprep.subr.bf16.mxu0 %v2128
    %2447 = vmatpush1.bf16.msra.mxu0 %v2127
    %2448 = vmatprep.mubr.bf16.mxu0 %v1872
    %2449 = vmatmul.mubr.bf16.gmra.mrb[0].mxu0 %v1871
    %v2450 = vpop.f32.mrb[0].mxu0
    %v2451 = vadd.f32 %v2410, %v2450
    %v2452 = vpop.f32.mrb[0].mxu0
    %v2453 = vadd.f32 %v2412, %v2452
    %v2454 = vpop.f32.mrb[0].mxu0
    %v2455 = vpop.f32.mrb[0].mxu0
    %2456 = vdwg.mxu0
    %v2457 = vld [vmem:[#allocation22] sm:$0xff]
    %v2458 = vld [vmem:[#allocation24] sm:$0xff]
    %v2459 = vld [vmem:[#allocation25] sm:$0xff]
    %v2460 = vrot.slane %v2205, 4
    %v2461 = vadd.f32 %v2205, %v2460
    %v2462 = vrot.slane %v2461, 2
    %v2463 = vadd.f32 %v2461, %v2462
    %v2464 = vrot.slane %v2463, 1
    %v2465 = vadd.f32 %v2463, %v2464
    %v2466 = vrot.slane %v2207, 4
    %v2467 = vadd.f32 %v2207, %v2466
    %v2468 = vrot.slane %v2467, 2
    %v2469 = vadd.f32 %v2467, %v2468
    %v2470 = vrot.slane %v2469, 1
    %v2471 = vadd.f32 %v2469, %v2470
    %v2472 = vrot.slane %v2287, 4
    %v2473 = vadd.f32 %v2287, %v2472
    %v2474 = vrot.slane %v2473, 2
    %v2475 = vadd.f32 %v2473, %v2474
    %v2476 = vrot.slane %v2475, 1
    %v2477 = vadd.f32 %v2475, %v2476
    %v2478 = vrot.slane %v2289, 4
    %v2479 = vadd.f32 %v2289, %v2478
    %v2480 = vrot.slane %v2479, 2
    %v2481 = vadd.f32 %v2479, %v2480
    %v2482 = vrot.slane %v2481, 1
    %v2483 = vadd.f32 %v2481, %v2482
    %v2484 = vrot.slane %v2369, 4
    %v2485 = vadd.f32 %v2369, %v2484
    %v2486 = vrot.slane %v2485, 2
    %v2487 = vadd.f32 %v2485, %v2486
    %v2488 = vrot.slane %v2487, 1
    %v2489 = vadd.f32 %v2487, %v2488
    %v2490 = vrot.slane %v2371, 4
    %v2491 = vadd.f32 %v2371, %v2490
    %v2492 = vrot.slane %v2491, 2
    %v2493 = vadd.f32 %v2491, %v2492
    %v2494 = vrot.slane %v2493, 1
    %v2495 = vadd.f32 %v2493, %v2494
    %v2496 = vrot.slane %v2451, 4
    %v2497 = vadd.f32 %v2451, %v2496
    %v2498 = vrot.slane %v2497, 2
    %v2499 = vadd.f32 %v2497, %v2498
    %v2500 = vrot.slane %v2499, 1
    %v2501 = vadd.f32 %v2499, %v2500
    %v2502 = vrot.slane %v2453, 4
    %v2503 = vadd.f32 %v2453, %v2502
    %v2504 = vrot.slane %v2503, 2
    %v2505 = vadd.f32 %v2503, %v2504
    %v2506 = vrot.slane %v2505, 1
    %v2507 = vadd.f32 %v2505, %v2506
    %v2508 = vmul.f32 %v2465, %v512
    %v2509 = vmul.f32 %v2471, %v512
    %v2510 = vmul.f32 %v2477, %v512
    %v2511 = vmul.f32 %v2483, %v512
    %v2512 = vmul.f32 %v2489, %v512
    %v2513 = vmul.f32 %v2495, %v512
    %v2514 = vmul.f32 %v2501, %v512
    %v2515 = vmul.f32 %v2507, %v512
    %v2516 = vsub.f32 %v2205, %v2508
    %v2517 = vsub.f32 %v2207, %v2509
    %v2518 = vsub.f32 %v2287, %v2510
    %v2519 = vsub.f32 %v2289, %v2511
    %v2520 = vsub.f32 %v2369, %v2512
    %v2521 = vsub.f32 %v2371, %v2513
    %v2522 = vsub.f32 %v2451, %v2514
    %v2523 = vsub.f32 %v2453, %v2515
    %v2524 = vmul.f32 %v2516, %v2516
    %v2525 = vmul.f32 %v2517, %v2517
    %v2526 = vmul.f32 %v2518, %v2518
    %v2527 = vmul.f32 %v2519, %v2519
    %v2528 = vmul.f32 %v2520, %v2520
    %v2529 = vmul.f32 %v2521, %v2521
    %v2530 = vmul.f32 %v2522, %v2522
    %v2531 = vmul.f32 %v2523, %v2523
    %v2532 = vrot.slane %v2524, 4
    %v2533 = vadd.f32 %v2524, %v2532
    %v2534 = vrot.slane %v2533, 2
    %v2535 = vadd.f32 %v2533, %v2534
    %v2536 = vrot.slane %v2535, 1
    %v2537 = vadd.f32 %v2535, %v2536
    %v2538 = vrot.slane %v2525, 4
    %v2539 = vadd.f32 %v2525, %v2538
    %v2540 = vrot.slane %v2539, 2
    %v2541 = vadd.f32 %v2539, %v2540
    %v2542 = vrot.slane %v2541, 1
    %v2543 = vadd.f32 %v2541, %v2542
    %v2544 = vrot.slane %v2526, 4
    %v2545 = vadd.f32 %v2526, %v2544
    %v2546 = vrot.slane %v2545, 2
    %v2547 = vadd.f32 %v2545, %v2546
    %v2548 = vrot.slane %v2547, 1
    %v2549 = vadd.f32 %v2547, %v2548
    %v2550 = vrot.slane %v2527, 4
    %v2551 = vadd.f32 %v2527, %v2550
    %v2552 = vrot.slane %v2551, 2
    %v2553 = vadd.f32 %v2551, %v2552
    %v2554 = vrot.slane %v2553, 1
    %v2555 = vadd.f32 %v2553, %v2554
    %v2556 = vrot.slane %v2528, 4
    %v2557 = vadd.f32 %v2528, %v2556
    %v2558 = vrot.slane %v2557, 2
    %v2559 = vadd.f32 %v2557, %v2558
    %v2560 = vrot.slane %v2559, 1
    %v2561 = vadd.f32 %v2559, %v2560
    %v2562 = vrot.slane %v2529, 4
    %v2563 = vadd.f32 %v2529, %v2562
    %v2564 = vrot.slane %v2563, 2
    %v2565 = vadd.f32 %v2563, %v2564
    %v2566 = vrot.slane %v2565, 1
    %v2567 = vadd.f32 %v2565, %v2566
    %v2568 = vrot.slane %v2530, 4
    %v2569 = vadd.f32 %v2530, %v2568
    %v2570 = vrot.slane %v2569, 2
    %v2571 = vadd.f32 %v2569, %v2570
    %v2572 = vrot.slane %v2571, 1
    %v2573 = vadd.f32 %v2571, %v2572
    %v2574 = vrot.slane %v2531, 4
    %v2575 = vadd.f32 %v2531, %v2574
    %v2576 = vrot.slane %v2575, 2
    %v2577 = vadd.f32 %v2575, %v2576
    %v2578 = vrot.slane %v2577, 1
    %v2579 = vadd.f32 %v2577, %v2578
    %v2580 = vmul.f32 %v2537, %v512
    %v2581 = vmul.f32 %v2543, %v512
    %v2582 = vmul.f32 %v2549, %v512
    %v2583 = vmul.f32 %v2555, %v512
    %v2584 = vmul.f32 %v2561, %v512
    %v2585 = vmul.f32 %v2567, %v512
    %v2586 = vmul.f32 %v2573, %v512
    %v2587 = vmul.f32 %v2579, %v512
    %v2589 = vlaneseq
    %v2590 = vshrl.u32 %v2589, 7
    %v2591 = vsub.s32 0, %v2590
    %v2592 = vrot.slane %v2459, %v2591
    %v2593 = vlaneseq
    %v2594 = vshrl.u32 %v2593, 7
    %v2595 = vsub.s32 1, %v2594
    %v2596 = vrot.slane %v2459, %v2595
    %v2597 = vlaneseq
    %v2598 = vshrl.u32 %v2597, 7
    %v2599 = vsub.s32 2, %v2598
    %v2600 = vrot.slane %v2459, %v2599
    %v2601 = vlaneseq
    %v2602 = vshrl.u32 %v2601, 7
    %v2603 = vsub.s32 3, %v2602
    %v2604 = vrot.slane %v2459, %v2603
    %v2605 = vlaneseq
    %v2606 = vshrl.u32 %v2605, 7
    %v2607 = vsub.s32 4, %v2606
    %v2608 = vrot.slane %v2459, %v2607
    %v2609 = vlaneseq
    %v2610 = vshrl.u32 %v2609, 7
    %v2611 = vsub.s32 5, %v2610
    %v2612 = vrot.slane %v2459, %v2611
    %v2613 = vlaneseq
    %v2614 = vshrl.u32 %v2613, 7
    %v2615 = vsub.s32 6, %v2614
    %v2616 = vrot.slane %v2459, %v2615
    %v2617 = vlaneseq
    %v2618 = vshrl.u32 %v2617, 7
    %v2619 = vsub.s32 7, %v2618
    %v2620 = vrot.slane %v2459, %v2619
    %v2629 = vadd.f32 %v2580, %v2592
    %v2630 = vadd.f32 %v2581, %v2596
    %v2631 = vadd.f32 %v2582, %v2600
    %v2632 = vadd.f32 %v2583, %v2604
    %v2633 = vadd.f32 %v2584, %v2608
    %v2634 = vadd.f32 %v2585, %v2612
    %v2635 = vadd.f32 %v2586, %v2616
    %v2636 = vadd.f32 %v2587, %v2620
    %v2637 = vrsqrt.pop %v2629
    %v2638 = vrsqrt.pop %v2630
    %v2639 = vrsqrt.pop %v2631
    %v2640 = vrsqrt.pop %v2632
    %v2641 = vrsqrt.pop %v2633
    %v2642 = vrsqrt.pop %v2634
    %v2643 = vrsqrt.pop %v2635
    %v2644 = vrsqrt.pop %v2636
    %v2653 = vcombine.low %v2637, %v2638
    %v2654 = vcombine.low %v2639, %v2640
    %v2655 = vcombine.low %v2641, %v2642
    %v2656 = vcombine.low %v2643, %v2644
    %v2658 = vunpack.c.l.s4 1966171168
    %v2659 = vunpack.c.0.s8 %v2658
    %v2660 = vlaneseq
    %v2661 = vshrl.u32 %v2660, 7
    %v2662 = vsub.s32 %v2659, %v2661
    %v2663 = vrot.slane %v2653, %v2662
    %v2665 = vunpack.c.l.s4 1966171168
    %v2666 = vunpack.c.0.s8 %v2665
    %v2667 = vlaneseq
    %v2668 = vshrl.u32 %v2667, 7
    %v2669 = vsub.s32 %v2666, %v2668
    %v2670 = vrot.slane %v2654, %v2669
    %v2672 = vunpack.c.l.s4 1966171168
    %v2673 = vunpack.c.0.s8 %v2672
    %v2674 = vlaneseq
    %v2675 = vshrl.u32 %v2674, 7
    %v2676 = vsub.s32 %v2673, %v2675
    %v2677 = vrot.slane %v2655, %v2676
    %v2679 = vunpack.c.l.s4 1966171168
    %v2680 = vunpack.c.0.s8 %v2679
    %v2681 = vlaneseq
    %v2682 = vshrl.u32 %v2681, 7
    %v2683 = vsub.s32 %v2680, %v2682
    %v2684 = vrot.slane %v2656, %v2683
    %v2685 = vcombine.low %v2663, %v2670
    %v2686 = vcombine.low %v2677, %v2684
    %v2688 = vunpack.c.l.s4 1966171168
    %v2689 = vunpack.c.0.s8 %v2688
    %v2690 = vlaneseq
    %v2691 = vshrl.u32 %v2690, 7
    %v2692 = vsub.s32 %v2689, %v2691
    %v2693 = vrot.slane %v2685, %v2692
    %v2695 = vunpack.c.l.s4 1966171168
    %v2696 = vunpack.c.0.s8 %v2695
    %v2697 = vlaneseq
    %v2698 = vshrl.u32 %v2697, 7
    %v2699 = vsub.s32 %v2696, %v2698
    %v2700 = vrot.slane %v2686, %v2699
    %v2701 = vcombine.low %v2693, %v2700
    %v2703 = vmul.f32 %v2457, %v2701
    %v2705 = vlaneseq
    %v2706 = vshrl.u32 %v2705, 7
    %v2707 = vsub.s32 0, %v2706
    %v2708 = vrot.slane %v2703, %v2707
    %v2709 = vlaneseq
    %v2710 = vshrl.u32 %v2709, 7
    %v2711 = vsub.s32 1, %v2710
    %v2712 = vrot.slane %v2703, %v2711
    %v2713 = vlaneseq
    %v2714 = vshrl.u32 %v2713, 7
    %v2715 = vsub.s32 2, %v2714
    %v2716 = vrot.slane %v2703, %v2715
    %v2717 = vlaneseq
    %v2718 = vshrl.u32 %v2717, 7
    %v2719 = vsub.s32 3, %v2718
    %v2720 = vrot.slane %v2703, %v2719
    %v2721 = vlaneseq
    %v2722 = vshrl.u32 %v2721, 7
    %v2723 = vsub.s32 4, %v2722
    %v2724 = vrot.slane %v2703, %v2723
    %v2725 = vlaneseq
    %v2726 = vshrl.u32 %v2725, 7
    %v2727 = vsub.s32 5, %v2726
    %v2728 = vrot.slane %v2703, %v2727
    %v2729 = vlaneseq
    %v2730 = vshrl.u32 %v2729, 7
    %v2731 = vsub.s32 6, %v2730
    %v2732 = vrot.slane %v2703, %v2731
    %v2733 = vlaneseq
    %v2734 = vshrl.u32 %v2733, 7
    %v2735 = vsub.s32 7, %v2734
    %v2736 = vrot.slane %v2703, %v2735
    %v2745 = vmul.f32 %v2516, %v2708
    %v2746 = vmul.f32 %v2517, %v2712
    %v2747 = vmul.f32 %v2518, %v2716
    %v2748 = vmul.f32 %v2519, %v2720
    %v2749 = vmul.f32 %v2520, %v2724
    %v2750 = vmul.f32 %v2521, %v2728
    %v2751 = vmul.f32 %v2522, %v2732
    %v2752 = vmul.f32 %v2523, %v2736
    %v2754 = vlaneseq
    %v2755 = vshrl.u32 %v2754, 7
    %v2756 = vsub.s32 0, %v2755
    %v2757 = vrot.slane %v2458, %v2756
    %v2758 = vlaneseq
    %v2759 = vshrl.u32 %v2758, 7
    %v2760 = vsub.s32 1, %v2759
    %v2761 = vrot.slane %v2458, %v2760
    %v2762 = vlaneseq
    %v2763 = vshrl.u32 %v2762, 7
    %v2764 = vsub.s32 2, %v2763
    %v2765 = vrot.slane %v2458, %v2764
    %v2766 = vlaneseq
    %v2767 = vshrl.u32 %v2766, 7
    %v2768 = vsub.s32 3, %v2767
    %v2769 = vrot.slane %v2458, %v2768
    %v2770 = vlaneseq
    %v2771 = vshrl.u32 %v2770, 7
    %v2772 = vsub.s32 4, %v2771
    %v2773 = vrot.slane %v2458, %v2772
    %v2774 = vlaneseq
    %v2775 = vshrl.u32 %v2774, 7
    %v2776 = vsub.s32 5, %v2775
    %v2777 = vrot.slane %v2458, %v2776
    %v2778 = vlaneseq
    %v2779 = vshrl.u32 %v2778, 7
    %v2780 = vsub.s32 6, %v2779
    %v2781 = vrot.slane %v2458, %v2780
    %v2782 = vlaneseq
    %v2783 = vshrl.u32 %v2782, 7
    %v2784 = vsub.s32 7, %v2783
    %v2785 = vrot.slane %v2458, %v2784
    %v2794 = vadd.f32 %v2745, %v2757
    %v2795 = vadd.f32 %v2746, %v2761
    %v2796 = vadd.f32 %v2747, %v2765
    %v2797 = vadd.f32 %v2748, %v2769
    %v2798 = vadd.f32 %v2749, %v2773
    %v2799 = vadd.f32 %v2750, %v2777
    %v2800 = vadd.f32 %v2751, %v2781
    %v2801 = vadd.f32 %v2752, %v2785
    %vm2802 = vcmp.gt.f32.partialorder %v2794, 0.0
    %vm2803 = vcmp.gt.f32.partialorder %v2795, 0.0
    %vm2804 = vcmp.gt.f32.partialorder %v2796, 0.0
    %vm2805 = vcmp.gt.f32.partialorder %v2797, 0.0
    %vm2806 = vcmp.gt.f32.partialorder %v2798, 0.0
    %vm2807 = vcmp.gt.f32.partialorder %v2799, 0.0
    %vm2808 = vcmp.gt.f32.partialorder %v2800, 0.0
    %vm2809 = vcmp.gt.f32.partialorder %v2801, 0.0
    %v2810 = vmul.f32 %v2794, 0.2
    %v2811 = vmul.f32 %v2795, 0.2
    %v2812 = vmul.f32 %v2796, 0.2
    %v2813 = vmul.f32 %v2797, 0.2
    %v2814 = vmul.f32 %v2798, 0.2
    %v2815 = vmul.f32 %v2799, 0.2
    %v2816 = vmul.f32 %v2800, 0.2
    %v2817 = vmul.f32 %v2801, 0.2
    %v2818 = vsel %vm2802, %v2794, %v2810
    %v2819 = vsel %vm2803, %v2795, %v2811
    %v2820 = vsel %vm2804, %v2796, %v2812
    %v2821 = vsel %vm2805, %v2797, %v2813
    %v2822 = vsel %vm2806, %v2798, %v2814
    %v2823 = vsel %vm2807, %v2799, %v2815
    %v2824 = vsel %vm2808, %v2800, %v2816
    %v2825 = vsel %vm2809, %v2801, %v2817
    %v2826 = vpack.c.bf16 %v2818, %v2818
    %v2827 = vpack.c.bf16 %v2819, %v2819
    %v2828 = vpack.c.bf16 %v2820, %v2820
    %v2829 = vpack.c.bf16 %v2821, %v2821
    %v2830 = vpack.c.bf16 %v2822, %v2822
    %v2831 = vpack.c.bf16 %v2823, %v2823
    %v2832 = vpack.c.bf16 %v2824, %v2824
    %v2833 = vpack.c.bf16 %v2825, %v2825
    // Predicated region
    $region142: #{_generator_pallas.1} parent=1 // pred_check
      %p2834 = pneg %p219
    $region143: #{_generator_pallas.1} parent=1 // pred_check_branch
      %2836 = sbr.rel (%p2834) target = $region145
    $region144: #{_generator_pallas.1} parent=1 // pred_region
      %s2837 = scalar_lea.sflag [#allocation6], 1
      %s2838 = smul.u32 2, 32
      %s2839 = smul.u32 %s2838, 10
      %s2840 = sshll.u32 %s2839, 4
      %2841 = dma.done %s2837, %s2840
      %v2842 = vld [vmem:[#allocation4] sm:$0xff]
      %v2843 = vld [vmem:[#allocation4 + $0x8] sm:$0xff]
      %v2844 = vld [vmem:[#allocation4 + $0x10] sm:$0xff]
      %v2845 = vld [vmem:[#allocation4 + $0x18] sm:$0xff]
      %v2846 = vld [vmem:[#allocation4 + $0x20] sm:$0xff]
      %v2847 = vld [vmem:[#allocation4 + $0x28] sm:$0xff]
      %v2848 = vld [vmem:[#allocation4 + $0x30] sm:$0xff]
      %v2849 = vld [vmem:[#allocation4 + $0x38] sm:$0xff]
      %v2850 = vld [vmem:[#allocation4 + $0x40] sm:$0xff]
      %v2851 = vld [vmem:[#allocation4 + $0x48] sm:$0xff]
      %v2852 = vld [vmem:[#allocation4 + $0x50] sm:$0xff]
      %v2853 = vld [vmem:[#allocation4 + $0x58] sm:$0xff]
      %v2854 = vld [vmem:[#allocation4 + $0x60] sm:$0xff]
      %v2855 = vld [vmem:[#allocation4 + $0x68] sm:$0xff]
      %v2856 = vld [vmem:[#allocation4 + $0x70] sm:$0xff]
      %v2857 = vld [vmem:[#allocation4 + $0x78] sm:$0xff]
      %v2858 = vld [vmem:[#allocation4 + $0x80] sm:$0xff]
      %v2859 = vld [vmem:[#allocation4 + $0x88] sm:$0xff]
      %v2860 = vld [vmem:[#allocation4 + $0x90] sm:$0xff]
      %v2861 = vld [vmem:[#allocation4 + $0x98] sm:$0xff]
      %v2862 = vld [vmem:[#allocation4 + $0xa0] sm:$0xff]
      %v2863 = vld [vmem:[#allocation4 + $0xa8] sm:$0xff]
      %v2864 = vld [vmem:[#allocation4 + $0xb0] sm:$0xff]
      %v2865 = vld [vmem:[#allocation4 + $0xb8] sm:$0xff]
      %v2866 = vld [vmem:[#allocation4 + $0xc0] sm:$0xff]
      %v2867 = vld [vmem:[#allocation4 + $0xc8] sm:$0xff]
      %v2868 = vld [vmem:[#allocation4 + $0xd0] sm:$0xff]
      %v2869 = vld [vmem:[#allocation4 + $0xd8] sm:$0xff]
      %v2870 = vld [vmem:[#allocation4 + $0xe0] sm:$0xff]
      %v2871 = vld [vmem:[#allocation4 + $0xe8] sm:$0xff]
      %v2872 = vld [vmem:[#allocation4 + $0xf0] sm:$0xff]
      %v2873 = vld [vmem:[#allocation4 + $0xf8] sm:$0xff]
      %v2874 = vld [vmem:[#allocation4 + $0x100] sm:$0xff]
      %v2875 = vld [vmem:[#allocation4 + $0x108] sm:$0xff]
      %v2876 = vld [vmem:[#allocation4 + $0x110] sm:$0xff]
      %v2877 = vld [vmem:[#allocation4 + $0x118] sm:$0xff]
      %v2878 = vld [vmem:[#allocation4 + $0x120] sm:$0xff]
      %v2879 = vld [vmem:[#allocation4 + $0x128] sm:$0xff]
      %v2880 = vld [vmem:[#allocation4 + $0x130] sm:$0xff]
      %v2881 = vld [vmem:[#allocation4 + $0x138] sm:$0xff]
      %v2882 = vld [vmem:[#allocation4 + $0x140] sm:$0xff]
      %v2883 = vld [vmem:[#allocation4 + $0x148] sm:$0xff]
      %v2884 = vld [vmem:[#allocation4 + $0x150] sm:$0xff]
      %v2885 = vld [vmem:[#allocation4 + $0x158] sm:$0xff]
      %v2886 = vld [vmem:[#allocation4 + $0x160] sm:$0xff]
      %v2887 = vld [vmem:[#allocation4 + $0x168] sm:$0xff]
      %v2888 = vld [vmem:[#allocation4 + $0x170] sm:$0xff]
      %v2889 = vld [vmem:[#allocation4 + $0x178] sm:$0xff]
      %v2890 = vld [vmem:[#allocation4 + $0x180] sm:$0xff]
      %v2891 = vld [vmem:[#allocation4 + $0x188] sm:$0xff]
      %v2892 = vld [vmem:[#allocation4 + $0x190] sm:$0xff]
      %v2893 = vld [vmem:[#allocation4 + $0x198] sm:$0xff]
      %v2894 = vld [vmem:[#allocation4 + $0x1a0] sm:$0xff]
      %v2895 = vld [vmem:[#allocation4 + $0x1a8] sm:$0xff]
      %v2896 = vld [vmem:[#allocation4 + $0x1b0] sm:$0xff]
      %v2897 = vld [vmem:[#allocation4 + $0x1b8] sm:$0xff]
      %v2898 = vld [vmem:[#allocation4 + $0x1c0] sm:$0xff]
      %v2899 = vld [vmem:[#allocation4 + $0x1c8] sm:$0xff]
      %v2900 = vld [vmem:[#allocation4 + $0x1d0] sm:$0xff]
      %v2901 = vld [vmem:[#allocation4 + $0x1d8] sm:$0xff]
      %v2902 = vld [vmem:[#allocation4 + $0x1e0] sm:$0xff]
      %v2903 = vld [vmem:[#allocation4 + $0x1e8] sm:$0xff]
      %v2904 = vld [vmem:[#allocation4 + $0x1f0] sm:$0xff]
      %v2905 = vld [vmem:[#allocation4 + $0x1f8] sm:$0xff]
      %v2906 = vld [vmem:[#allocation4 + $0x200] sm:$0xff]
      %v2907 = vld [vmem:[#allocation4 + $0x208] sm:$0xff]
      %v2908 = vld [vmem:[#allocation4 + $0x210] sm:$0xff]
      %v2909 = vld [vmem:[#allocation4 + $0x218] sm:$0xff]
      %v2910 = vld [vmem:[#allocation4 + $0x220] sm:$0xff]
      %v2911 = vld [vmem:[#allocation4 + $0x228] sm:$0xff]
      %v2912 = vld [vmem:[#allocation4 + $0x230] sm:$0xff]
      %v2913 = vld [vmem:[#allocation4 + $0x238] sm:$0xff]
      %v2914 = vld [vmem:[#allocation4 + $0x240] sm:$0xff]
      %v2915 = vld [vmem:[#allocation4 + $0x248] sm:$0xff]
      %v2916 = vld [vmem:[#allocation4 + $0x250] sm:$0xff]
      %v2917 = vld [vmem:[#allocation4 + $0x258] sm:$0xff]
      %v2918 = vld [vmem:[#allocation4 + $0x260] sm:$0xff]
      %v2919 = vld [vmem:[#allocation4 + $0x268] sm:$0xff]
      %v2920 = vld [vmem:[#allocation4 + $0x270] sm:$0xff]
      %v2921 = vld [vmem:[#allocation4 + $0x278] sm:$0xff]
      %v2922 = vunpack.c.l.s8.bf16 %v2842
      %v2923 = vunpack.c.l.s8.bf16 %v2843
      %v2924 = vunpack.c.l.s8.bf16 %v2844
      %v2925 = vunpack.c.l.s8.bf16 %v2845
      %v2926 = vunpack.c.l.s8.bf16 %v2846
      %v2927 = vunpack.c.l.s8.bf16 %v2847
      %v2928 = vunpack.c.l.s8.bf16 %v2848
      %v2929 = vunpack.c.l.s8.bf16 %v2849
      %v2930 = vunpack.c.l.s8.bf16 %v2850
      %v2931 = vunpack.c.l.s8.bf16 %v2851
      %v2932 = vunpack.c.h.s8.bf16 %v2842
      %v2933 = vunpack.c.h.s8.bf16 %v2843
      %v2934 = vunpack.c.h.s8.bf16 %v2844
      %v2935 = vunpack.c.h.s8.bf16 %v2845
      %v2936 = vunpack.c.h.s8.bf16 %v2846
      %v2937 = vunpack.c.h.s8.bf16 %v2847
      %v2938 = vunpack.c.h.s8.bf16 %v2848
      %v2939 = vunpack.c.h.s8.bf16 %v2849
      %v2940 = vunpack.c.h.s8.bf16 %v2850
      %v2941 = vunpack.c.h.s8.bf16 %v2851
      %v2942 = vunpack.c.l.s8.bf16 %v2852
      %v2943 = vunpack.c.l.s8.bf16 %v2853
      %v2944 = vunpack.c.l.s8.bf16 %v2854
      %v2945 = vunpack.c.l.s8.bf16 %v2855
      %v2946 = vunpack.c.l.s8.bf16 %v2856
      %v2947 = vunpack.c.l.s8.bf16 %v2857
      %v2948 = vunpack.c.l.s8.bf16 %v2858
      %v2949 = vunpack.c.l.s8.bf16 %v2859
      %v2950 = vunpack.c.l.s8.bf16 %v2860
      %v2951 = vunpack.c.l.s8.bf16 %v2861
      %v2952 = vunpack.c.h.s8.bf16 %v2852
      %v2953 = vunpack.c.h.s8.bf16 %v2853
      %v2954 = vunpack.c.h.s8.bf16 %v2854
      %v2955 = vunpack.c.h.s8.bf16 %v2855
      %v2956 = vunpack.c.h.s8.bf16 %v2856
      %v2957 = vunpack.c.h.s8.bf16 %v2857
      %v2958 = vunpack.c.h.s8.bf16 %v2858
      %v2959 = vunpack.c.h.s8.bf16 %v2859
      %v2960 = vunpack.c.h.s8.bf16 %v2860
      %v2961 = vunpack.c.h.s8.bf16 %v2861
      %v2962 = vunpack.c.l.s8.bf16 %v2862
      %v2963 = vunpack.c.l.s8.bf16 %v2863
      %v2964 = vunpack.c.l.s8.bf16 %v2864
      %v2965 = vunpack.c.l.s8.bf16 %v2865
      %v2966 = vunpack.c.l.s8.bf16 %v2866
      %v2967 = vunpack.c.l.s8.bf16 %v2867
      %v2968 = vunpack.c.l.s8.bf16 %v2868
      %v2969 = vunpack.c.l.s8.bf16 %v2869
      %v2970 = vunpack.c.l.s8.bf16 %v2870
      %v2971 = vunpack.c.l.s8.bf16 %v2871
      %v2972 = vunpack.c.h.s8.bf16 %v2862
      %v2973 = vunpack.c.h.s8.bf16 %v2863
      %v2974 = vunpack.c.h.s8.bf16 %v2864
      %v2975 = vunpack.c.h.s8.bf16 %v2865
      %v2976 = vunpack.c.h.s8.bf16 %v2866
      %v2977 = vunpack.c.h.s8.bf16 %v2867
      %v2978 = vunpack.c.h.s8.bf16 %v2868
      %v2979 = vunpack.c.h.s8.bf16 %v2869
      %v2980 = vunpack.c.h.s8.bf16 %v2870
      %v2981 = vunpack.c.h.s8.bf16 %v2871
      %v2982 = vunpack.c.l.s8.bf16 %v2872
      %v2983 = vunpack.c.l.s8.bf16 %v2873
      %v2984 = vunpack.c.l.s8.bf16 %v2874
      %v2985 = vunpack.c.l.s8.bf16 %v2875
      %v2986 = vunpack.c.l.s8.bf16 %v2876
      %v2987 = vunpack.c.l.s8.bf16 %v2877
      %v2988 = vunpack.c.l.s8.bf16 %v2878
      %v2989 = vunpack.c.l.s8.bf16 %v2879
      %v2990 = vunpack.c.l.s8.bf16 %v2880
      %v2991 = vunpack.c.l.s8.bf16 %v2881
      %v2992 = vunpack.c.h.s8.bf16 %v2872
      %v2993 = vunpack.c.h.s8.bf16 %v2873
      %v2994 = vunpack.c.h.s8.bf16 %v2874
      %v2995 = vunpack.c.h.s8.bf16 %v2875
      %v2996 = vunpack.c.h.s8.bf16 %v2876
      %v2997 = vunpack.c.h.s8.bf16 %v2877
      %v2998 = vunpack.c.h.s8.bf16 %v2878
      %v2999 = vunpack.c.h.s8.bf16 %v2879
      %v3000 = vunpack.c.h.s8.bf16 %v2880
      %v3001 = vunpack.c.h.s8.bf16 %v2881
      %v3002 = vunpack.c.l.s8.bf16 %v2882
      %v3003 = vunpack.c.l.s8.bf16 %v2883
      %v3004 = vunpack.c.l.s8.bf16 %v2884
      %v3005 = vunpack.c.l.s8.bf16 %v2885
      %v3006 = vunpack.c.l.s8.bf16 %v2886
      %v3007 = vunpack.c.l.s8.bf16 %v2887
      %v3008 = vunpack.c.l.s8.bf16 %v2888
      %v3009 = vunpack.c.l.s8.bf16 %v2889
      %v3010 = vunpack.c.l.s8.bf16 %v2890
      %v3011 = vunpack.c.l.s8.bf16 %v2891
      %v3012 = vunpack.c.h.s8.bf16 %v2882
      %v3013 = vunpack.c.h.s8.bf16 %v2883
      %v3014 = vunpack.c.h.s8.bf16 %v2884
      %v3015 = vunpack.c.h.s8.bf16 %v2885
      %v3016 = vunpack.c.h.s8.bf16 %v2886
      %v3017 = vunpack.c.h.s8.bf16 %v2887
      %v3018 = vunpack.c.h.s8.bf16 %v2888
      %v3019 = vunpack.c.h.s8.bf16 %v2889
      %v3020 = vunpack.c.h.s8.bf16 %v2890
      %v3021 = vunpack.c.h.s8.bf16 %v2891
      %v3022 = vunpack.c.l.s8.bf16 %v2892
      %v3023 = vunpack.c.l.s8.bf16 %v2893
      %v3024 = vunpack.c.l.s8.bf16 %v2894
      %v3025 = vunpack.c.l.s8.bf16 %v2895
      %v3026 = vunpack.c.l.s8.bf16 %v2896
      %v3027 = vunpack.c.l.s8.bf16 %v2897
      %v3028 = vunpack.c.l.s8.bf16 %v2898
      %v3029 = vunpack.c.l.s8.bf16 %v2899
      %v3030 = vunpack.c.l.s8.bf16 %v2900
      %v3031 = vunpack.c.l.s8.bf16 %v2901
      %v3032 = vunpack.c.h.s8.bf16 %v2892
      %v3033 = vunpack.c.h.s8.bf16 %v2893
      %v3034 = vunpack.c.h.s8.bf16 %v2894
      %v3035 = vunpack.c.h.s8.bf16 %v2895
      %v3036 = vunpack.c.h.s8.bf16 %v2896
      %v3037 = vunpack.c.h.s8.bf16 %v2897
      %v3038 = vunpack.c.h.s8.bf16 %v2898
      %v3039 = vunpack.c.h.s8.bf16 %v2899
      %v3040 = vunpack.c.h.s8.bf16 %v2900
      %v3041 = vunpack.c.h.s8.bf16 %v2901
      %v3042 = vunpack.c.l.s8.bf16 %v2902
      %v3043 = vunpack.c.l.s8.bf16 %v2903
      %v3044 = vunpack.c.l.s8.bf16 %v2904
      %v3045 = vunpack.c.l.s8.bf16 %v2905
      %v3046 = vunpack.c.l.s8.bf16 %v2906
      %v3047 = vunpack.c.l.s8.bf16 %v2907
      %v3048 = vunpack.c.l.s8.bf16 %v2908
      %v3049 = vunpack.c.l.s8.bf16 %v2909
      %v3050 = vunpack.c.l.s8.bf16 %v2910
      %v3051 = vunpack.c.l.s8.bf16 %v2911
      %v3052 = vunpack.c.h.s8.bf16 %v2902
      %v3053 = vunpack.c.h.s8.bf16 %v2903
      %v3054 = vunpack.c.h.s8.bf16 %v2904
      %v3055 = vunpack.c.h.s8.bf16 %v2905
      %v3056 = vunpack.c.h.s8.bf16 %v2906
      %v3057 = vunpack.c.h.s8.bf16 %v2907
      %v3058 = vunpack.c.h.s8.bf16 %v2908
      %v3059 = vunpack.c.h.s8.bf16 %v2909
      %v3060 = vunpack.c.h.s8.bf16 %v2910
      %v3061 = vunpack.c.h.s8.bf16 %v2911
      %v3062 = vunpack.c.l.s8.bf16 %v2912
      %v3063 = vunpack.c.l.s8.bf16 %v2913
      %v3064 = vunpack.c.l.s8.bf16 %v2914
      %v3065 = vunpack.c.l.s8.bf16 %v2915
      %v3066 = vunpack.c.l.s8.bf16 %v2916
      %v3067 = vunpack.c.l.s8.bf16 %v2917
      %v3068 = vunpack.c.l.s8.bf16 %v2918
      %v3069 = vunpack.c.l.s8.bf16 %v2919
      %v3070 = vunpack.c.l.s8.bf16 %v2920
      %v3071 = vunpack.c.l.s8.bf16 %v2921
      %v3072 = vunpack.c.h.s8.bf16 %v2912
      %v3073 = vunpack.c.h.s8.bf16 %v2913
      %v3074 = vunpack.c.h.s8.bf16 %v2914
      %v3075 = vunpack.c.h.s8.bf16 %v2915
      %v3076 = vunpack.c.h.s8.bf16 %v2916
      %v3077 = vunpack.c.h.s8.bf16 %v2917
      %v3078 = vunpack.c.h.s8.bf16 %v2918
      %v3079 = vunpack.c.h.s8.bf16 %v2919
      %v3080 = vunpack.c.h.s8.bf16 %v2920
      %v3081 = vunpack.c.h.s8.bf16 %v2921
      %3082 = vst [vmem:[#allocation5] sm:$0xff] %v2922
      %3083 = vst [vmem:[#allocation5 + $0x8] sm:$0xff] %v2923
      %3084 = vst [vmem:[#allocation5 + $0x10] sm:$0xff] %v2924
      %3085 = vst [vmem:[#allocation5 + $0x18] sm:$0xff] %v2925
      %3086 = vst [vmem:[#allocation5 + $0x20] sm:$0xff] %v2926
      %3087 = vst [vmem:[#allocation5 + $0x28] sm:$0xff] %v2927
      %3088 = vst [vmem:[#allocation5 + $0x30] sm:$0xff] %v2928
      %3089 = vst [vmem:[#allocation5 + $0x38] sm:$0xff] %v2929
      %3090 = vst [vmem:[#allocation5 + $0x40] sm:$0xff] %v2930
      %3091 = vst [vmem:[#allocation5 + $0x48] sm:$0xff] %v2931
      %3092 = vst [vmem:[#allocation5 + $0x50] sm:$0xff] %v2932
      %3093 = vst [vmem:[#allocation5 + $0x58] sm:$0xff] %v2933
      %3094 = vst [vmem:[#allocation5 + $0x60] sm:$0xff] %v2934
      %3095 = vst [vmem:[#allocation5 + $0x68] sm:$0xff] %v2935
      %3096 = vst [vmem:[#allocation5 + $0x70] sm:$0xff] %v2936
      %3097 = vst [vmem:[#allocation5 + $0x78] sm:$0xff] %v2937
      %3098 = vst [vmem:[#allocation5 + $0x80] sm:$0xff] %v2938
      %3099 = vst [vmem:[#allocation5 + $0x88] sm:$0xff] %v2939
      %3100 = vst [vmem:[#allocation5 + $0x90] sm:$0xff] %v2940
      %3101 = vst [vmem:[#allocation5 + $0x98] sm:$0xff] %v2941
      %3102 = vst [vmem:[#allocation5 + $0xa0] sm:$0xff] %v2942
      %3103 = vst [vmem:[#allocation5 + $0xa8] sm:$0xff] %v2943
      %3104 = vst [vmem:[#allocation5 + $0xb0] sm:$0xff] %v2944
      %3105 = vst [vmem:[#allocation5 + $0xb8] sm:$0xff] %v2945
      %3106 = vst [vmem:[#allocation5 + $0xc0] sm:$0xff] %v2946
      %3107 = vst [vmem:[#allocation5 + $0xc8] sm:$0xff] %v2947
      %3108 = vst [vmem:[#allocation5 + $0xd0] sm:$0xff] %v2948
      %3109 = vst [vmem:[#allocation5 + $0xd8] sm:$0xff] %v2949
      %3110 = vst [vmem:[#allocation5 + $0xe0] sm:$0xff] %v2950
      %3111 = vst [vmem:[#allocation5 + $0xe8] sm:$0xff] %v2951
      %3112 = vst [vmem:[#allocation5 + $0xf0] sm:$0xff] %v2952
      %3113 = vst [vmem:[#allocation5 + $0xf8] sm:$0xff] %v2953
      %3114 = vst [vmem:[#allocation5 + $0x100] sm:$0xff] %v2954
      %3115 = vst [vmem:[#allocation5 + $0x108] sm:$0xff] %v2955
      %3116 = vst [vmem:[#allocation5 + $0x110] sm:$0xff] %v2956
      %3117 = vst [vmem:[#allocation5 + $0x118] sm:$0xff] %v2957
      %3118 = vst [vmem:[#allocation5 + $0x120] sm:$0xff] %v2958
      %3119 = vst [vmem:[#allocation5 + $0x128] sm:$0xff] %v2959
      %3120 = vst [vmem:[#allocation5 + $0x130] sm:$0xff] %v2960
      %3121 = vst [vmem:[#allocation5 + $0x138] sm:$0xff] %v2961
      %3122 = vst [vmem:[#allocation5 + $0x140] sm:$0xff] %v2962
      %3123 = vst [vmem:[#allocation5 + $0x148] sm:$0xff] %v2963
      %3124 = vst [vmem:[#allocation5 + $0x150] sm:$0xff] %v2964
      %3125 = vst [vmem:[#allocation5 + $0x158] sm:$0xff] %v2965
      %3126 = vst [vmem:[#allocation5 + $0x160] sm:$0xff] %v2966
      %3127 = vst [vmem:[#allocation5 + $0x168] sm:$0xff] %v2967
      %3128 = vst [vmem:[#allocation5 + $0x170] sm:$0xff] %v2968
      %3129 = vst [vmem:[#allocation5 + $0x178] sm:$0xff] %v2969
      %3130 = vst [vmem:[#allocation5 + $0x180] sm:$0xff] %v2970
      %3131 = vst [vmem:[#allocation5 + $0x188] sm:$0xff] %v2971
      %3132 = vst [vmem:[#allocation5 + $0x190] sm:$0xff] %v2972
      %3133 = vst [vmem:[#allocation5 + $0x198] sm:$0xff] %v2973
      %3134 = vst [vmem:[#allocation5 + $0x1a0] sm:$0xff] %v2974
      %3135 = vst [vmem:[#allocation5 + $0x1a8] sm:$0xff] %v2975
      %3136 = vst [vmem:[#allocation5 + $0x1b0] sm:$0xff] %v2976
      %3137 = vst [vmem:[#allocation5 + $0x1b8] sm:$0xff] %v2977
      %3138 = vst [vmem:[#allocation5 + $0x1c0] sm:$0xff] %v2978
      %3139 = vst [vmem:[#allocation5 + $0x1c8] sm:$0xff] %v2979
      %3140 = vst [vmem:[#allocation5 + $0x1d0] sm:$0xff] %v2980
      %3141 = vst [vmem:[#allocation5 + $0x1d8] sm:$0xff] %v2981
      %3142 = vst [vmem:[#allocation5 + $0x1e0] sm:$0xff] %v2982
      %3143 = vst [vmem:[#allocation5 + $0x1e8] sm:$0xff] %v2983
      %3144 = vst [vmem:[#allocation5 + $0x1f0] sm:$0xff] %v2984
      %3145 = vst [vmem:[#allocation5 + $0x1f8] sm:$0xff] %v2985
      %3146 = vst [vmem:[#allocation5 + $0x200] sm:$0xff] %v2986
      %3147 = vst [vmem:[#allocation5 + $0x208] sm:$0xff] %v2987
      %3148 = vst [vmem:[#allocation5 + $0x210] sm:$0xff] %v2988
      %3149 = vst [vmem:[#allocation5 + $0x218] sm:$0xff] %v2989
      %3150 = vst [vmem:[#allocation5 + $0x220] sm:$0xff] %v2990
      %3151 = vst [vmem:[#allocation5 + $0x228] sm:$0xff] %v2991
      %3152 = vst [vmem:[#allocation5 + $0x230] sm:$0xff] %v2992
      %3153 = vst [vmem:[#allocation5 + $0x238] sm:$0xff] %v2993
      %3154 = vst [vmem:[#allocation5 + $0x240] sm:$0xff] %v2994
      %3155 = vst [vmem:[#allocation5 + $0x248] sm:$0xff] %v2995
      %3156 = vst [vmem:[#allocation5 + $0x250] sm:$0xff] %v2996
      %3157 = vst [vmem:[#allocation5 + $0x258] sm:$0xff] %v2997
      %3158 = vst [vmem:[#allocation5 + $0x260] sm:$0xff] %v2998
      %3159 = vst [vmem:[#allocation5 + $0x268] sm:$0xff] %v2999
      %3160 = vst [vmem:[#allocation5 + $0x270] sm:$0xff] %v3000
      %3161 = vst [vmem:[#allocation5 + $0x278] sm:$0xff] %v3001
      %3162 = vst [vmem:[#allocation5 + $0x280] sm:$0xff] %v3002
      %3163 = vst [vmem:[#allocation5 + $0x288] sm:$0xff] %v3003
      %3164 = vst [vmem:[#allocation5 + $0x290] sm:$0xff] %v3004
      %3165 = vst [vmem:[#allocation5 + $0x298] sm:$0xff] %v3005
      %3166 = vst [vmem:[#allocation5 + $0x2a0] sm:$0xff] %v3006
      %3167 = vst [vmem:[#allocation5 + $0x2a8] sm:$0xff] %v3007
      %3168 = vst [vmem:[#allocation5 + $0x2b0] sm:$0xff] %v3008
      %3169 = vst [vmem:[#allocation5 + $0x2b8] sm:$0xff] %v3009
      %3170 = vst [vmem:[#allocation5 + $0x2c0] sm:$0xff] %v3010
      %3171 = vst [vmem:[#allocation5 + $0x2c8] sm:$0xff] %v3011
      %3172 = vst [vmem:[#allocation5 + $0x2d0] sm:$0xff] %v3012
      %3173 = vst [vmem:[#allocation5 + $0x2d8] sm:$0xff] %v3013
      %3174 = vst [vmem:[#allocation5 + $0x2e0] sm:$0xff] %v3014
      %3175 = vst [vmem:[#allocation5 + $0x2e8] sm:$0xff] %v3015
      %3176 = vst [vmem:[#allocation5 + $0x2f0] sm:$0xff] %v3016
      %3177 = vst [vmem:[#allocation5 + $0x2f8] sm:$0xff] %v3017
      %3178 = vst [vmem:[#allocation5 + $0x300] sm:$0xff] %v3018
      %3179 = vst [vmem:[#allocation5 + $0x308] sm:$0xff] %v3019
      %3180 = vst [vmem:[#allocation5 + $0x310] sm:$0xff] %v3020
      %3181 = vst [vmem:[#allocation5 + $0x318] sm:$0xff] %v3021
      %3182 = vst [vmem:[#allocation5 + $0x320] sm:$0xff] %v3022
      %3183 = vst [vmem:[#allocation5 + $0x328] sm:$0xff] %v3023
      %3184 = vst [vmem:[#allocation5 + $0x330] sm:$0xff] %v3024
      %3185 = vst [vmem:[#allocation5 + $0x338] sm:$0xff] %v3025
      %3186 = vst [vmem:[#allocation5 + $0x340] sm:$0xff] %v3026
      %3187 = vst [vmem:[#allocation5 + $0x348] sm:$0xff] %v3027
      %3188 = vst [vmem:[#allocation5 + $0x350] sm:$0xff] %v3028
      %3189 = vst [vmem:[#allocation5 + $0x358] sm:$0xff] %v3029
      %3190 = vst [vmem:[#allocation5 + $0x360] sm:$0xff] %v3030
      %3191 = vst [vmem:[#allocation5 + $0x368] sm:$0xff] %v3031
      %3192 = vst [vmem:[#allocation5 + $0x370] sm:$0xff] %v3032
      %3193 = vst [vmem:[#allocation5 + $0x378] sm:$0xff] %v3033
      %3194 = vst [vmem:[#allocation5 + $0x380] sm:$0xff] %v3034
      %3195 = vst [vmem:[#allocation5 + $0x388] sm:$0xff] %v3035
      %3196 = vst [vmem:[#allocation5 + $0x390] sm:$0xff] %v3036
      %3197 = vst [vmem:[#allocation5 + $0x398] sm:$0xff] %v3037
      %3198 = vst [vmem:[#allocation5 + $0x3a0] sm:$0xff] %v3038
      %3199 = vst [vmem:[#allocation5 + $0x3a8] sm:$0xff] %v3039
      %3200 = vst [vmem:[#allocation5 + $0x3b0] sm:$0xff] %v3040
      %3201 = vst [vmem:[#allocation5 + $0x3b8] sm:$0xff] %v3041
      %3202 = vst [vmem:[#allocation5 + $0x3c0] sm:$0xff] %v3042
      %3203 = vst [vmem:[#allocation5 + $0x3c8] sm:$0xff] %v3043
      %3204 = vst [vmem:[#allocation5 + $0x3d0] sm:$0xff] %v3044
      %3205 = vst [vmem:[#allocation5 + $0x3d8] sm:$0xff] %v3045
      %3206 = vst [vmem:[#allocation5 + $0x3e0] sm:$0xff] %v3046
      %3207 = vst [vmem:[#allocation5 + $0x3e8] sm:$0xff] %v3047
      %3208 = vst [vmem:[#allocation5 + $0x3f0] sm:$0xff] %v3048
      %3209 = vst [vmem:[#allocation5 + $0x3f8] sm:$0xff] %v3049
      %3210 = vst [vmem:[#allocation5 + $0x400] sm:$0xff] %v3050
      %3211 = vst [vmem:[#allocation5 + $0x408] sm:$0xff] %v3051
      %3212 = vst [vmem:[#allocation5 + $0x410] sm:$0xff] %v3052
      %3213 = vst [vmem:[#allocation5 + $0x418] sm:$0xff] %v3053
      %3214 = vst [vmem:[#allocation5 + $0x420] sm:$0xff] %v3054
      %3215 = vst [vmem:[#allocation5 + $0x428] sm:$0xff] %v3055
      %3216 = vst [vmem:[#allocation5 + $0x430] sm:$0xff] %v3056
      %3217 = vst [vmem:[#allocation5 + $0x438] sm:$0xff] %v3057
      %3218 = vst [vmem:[#allocation5 + $0x440] sm:$0xff] %v3058
      %3219 = vst [vmem:[#allocation5 + $0x448] sm:$0xff] %v3059
      %3220 = vst [vmem:[#allocation5 + $0x450] sm:$0xff] %v3060
      %3221 = vst [vmem:[#allocation5 + $0x458] sm:$0xff] %v3061
      %3222 = vst [vmem:[#allocation5 + $0x460] sm:$0xff] %v3062
      %3223 = vst [vmem:[#allocation5 + $0x468] sm:$0xff] %v3063
      %3224 = vst [vmem:[#allocation5 + $0x470] sm:$0xff] %v3064
      %3225 = vst [vmem:[#allocation5 + $0x478] sm:$0xff] %v3065
      %3226 = vst [vmem:[#allocation5 + $0x480] sm:$0xff] %v3066
      %3227 = vst [vmem:[#allocation5 + $0x488] sm:$0xff] %v3067
      %3228 = vst [vmem:[#allocation5 + $0x490] sm:$0xff] %v3068
      %3229 = vst [vmem:[#allocation5 + $0x498] sm:$0xff] %v3069
      %3230 = vst [vmem:[#allocation5 + $0x4a0] sm:$0xff] %v3070
      %3231 = vst [vmem:[#allocation5 + $0x4a8] sm:$0xff] %v3071
      %3232 = vst [vmem:[#allocation5 + $0x4b0] sm:$0xff] %v3072
      %3233 = vst [vmem:[#allocation5 + $0x4b8] sm:$0xff] %v3073
      %3234 = vst [vmem:[#allocation5 + $0x4c0] sm:$0xff] %v3074
      %3235 = vst [vmem:[#allocation5 + $0x4c8] sm:$0xff] %v3075
      %3236 = vst [vmem:[#allocation5 + $0x4d0] sm:$0xff] %v3076
      %3237 = vst [vmem:[#allocation5 + $0x4d8] sm:$0xff] %v3077
      %3238 = vst [vmem:[#allocation5 + $0x4e0] sm:$0xff] %v3078
      %3239 = vst [vmem:[#allocation5 + $0x4e8] sm:$0xff] %v3079
      %3240 = vst [vmem:[#allocation5 + $0x4f0] sm:$0xff] %v3080
      %3241 = vst [vmem:[#allocation5 + $0x4f8] sm:$0xff] %v3081
    $region145: #{_generator_pallas.1} parent=1 // pred_fallthru
      _
    %v3242 = vld [vmem:[#allocation5] sm:$0xff]
    %v3243 = vld [vmem:[#allocation5 + $0x8] sm:$0xff]
    %v3244 = vld [vmem:[#allocation5 + $0x10] sm:$0xff]
    %v3245 = vld [vmem:[#allocation5 + $0x18] sm:$0xff]
    %v3246 = vld [vmem:[#allocation5 + $0x20] sm:$0xff]
    %v3247 = vld [vmem:[#allocation5 + $0x28] sm:$0xff]
    %v3248 = vld [vmem:[#allocation5 + $0x30] sm:$0xff]
    %v3249 = vld [vmem:[#allocation5 + $0x38] sm:$0xff]
    %v3250 = vld [vmem:[#allocation5 + $0x40] sm:$0xff]
    %v3251 = vld [vmem:[#allocation5 + $0x48] sm:$0xff]
    %v3252 = vld [vmem:[#allocation5 + $0x50] sm:$0xff]
    %v3253 = vld [vmem:[#allocation5 + $0x58] sm:$0xff]
    %v3254 = vld [vmem:[#allocation5 + $0x60] sm:$0xff]
    %v3255 = vld [vmem:[#allocation5 + $0x68] sm:$0xff]
    %v3256 = vld [vmem:[#allocation5 + $0x70] sm:$0xff]
    %v3257 = vld [vmem:[#allocation5 + $0x78] sm:$0xff]
    %v3258 = vld [vmem:[#allocation5 + $0x80] sm:$0xff]
    %v3259 = vld [vmem:[#allocation5 + $0x88] sm:$0xff]
    %v3260 = vld [vmem:[#allocation5 + $0x90] sm:$0xff]
    %v3261 = vld [vmem:[#allocation5 + $0x98] sm:$0xff]
    %v3262 = vld [vmem:[#allocation5 + $0xa0] sm:$0xff]
    %v3263 = vld [vmem:[#allocation5 + $0xa8] sm:$0xff]
    %v3264 = vld [vmem:[#allocation5 + $0xb0] sm:$0xff]
    %v3265 = vld [vmem:[#allocation5 + $0xb8] sm:$0xff]
    %v3266 = vld [vmem:[#allocation5 + $0xc0] sm:$0xff]
    %v3267 = vld [vmem:[#allocation5 + $0xc8] sm:$0xff]
    %v3268 = vld [vmem:[#allocation5 + $0xd0] sm:$0xff]
    %v3269 = vld [vmem:[#allocation5 + $0xd8] sm:$0xff]
    %v3270 = vld [vmem:[#allocation5 + $0xe0] sm:$0xff]
    %v3271 = vld [vmem:[#allocation5 + $0xe8] sm:$0xff]
    %v3272 = vld [vmem:[#allocation5 + $0xf0] sm:$0xff]
    %v3273 = vld [vmem:[#allocation5 + $0xf8] sm:$0xff]
    %v3274 = vld [vmem:[#allocation5 + $0x100] sm:$0xff]
    %v3275 = vld [vmem:[#allocation5 + $0x108] sm:$0xff]
    %v3276 = vld [vmem:[#allocation5 + $0x110] sm:$0xff]
    %v3277 = vld [vmem:[#allocation5 + $0x118] sm:$0xff]
    %v3278 = vld [vmem:[#allocation5 + $0x120] sm:$0xff]
    %v3279 = vld [vmem:[#allocation5 + $0x128] sm:$0xff]
    %v3280 = vld [vmem:[#allocation5 + $0x130] sm:$0xff]
    %v3281 = vld [vmem:[#allocation5 + $0x138] sm:$0xff]
    %v3282 = vld [vmem:[#allocation5 + $0x140] sm:$0xff]
    %v3283 = vld [vmem:[#allocation5 + $0x148] sm:$0xff]
    %v3284 = vld [vmem:[#allocation5 + $0x150] sm:$0xff]
    %v3285 = vld [vmem:[#allocation5 + $0x158] sm:$0xff]
    %v3286 = vld [vmem:[#allocation5 + $0x160] sm:$0xff]
    %v3287 = vld [vmem:[#allocation5 + $0x168] sm:$0xff]
    %v3288 = vld [vmem:[#allocation5 + $0x170] sm:$0xff]
    %v3289 = vld [vmem:[#allocation5 + $0x178] sm:$0xff]
    %v3290 = vld [vmem:[#allocation5 + $0x180] sm:$0xff]
    %v3291 = vld [vmem:[#allocation5 + $0x188] sm:$0xff]
    %v3292 = vld [vmem:[#allocation5 + $0x190] sm:$0xff]
    %v3293 = vld [vmem:[#allocation5 + $0x198] sm:$0xff]
    %v3294 = vld [vmem:[#allocation5 + $0x1a0] sm:$0xff]
    %v3295 = vld [vmem:[#allocation5 + $0x1a8] sm:$0xff]
    %v3296 = vld [vmem:[#allocation5 + $0x1b0] sm:$0xff]
    %v3297 = vld [vmem:[#allocation5 + $0x1b8] sm:$0xff]
    %v3298 = vld [vmem:[#allocation5 + $0x1c0] sm:$0xff]
    %v3299 = vld [vmem:[#allocation5 + $0x1c8] sm:$0xff]
    %v3300 = vld [vmem:[#allocation5 + $0x1d0] sm:$0xff]
    %v3301 = vld [vmem:[#allocation5 + $0x1d8] sm:$0xff]
    %v3302 = vld [vmem:[#allocation5 + $0x1e0] sm:$0xff]
    %v3303 = vld [vmem:[#allocation5 + $0x1e8] sm:$0xff]
    %v3304 = vld [vmem:[#allocation5 + $0x1f0] sm:$0xff]
    %v3305 = vld [vmem:[#allocation5 + $0x1f8] sm:$0xff]
    %v3306 = vld [vmem:[#allocation5 + $0x200] sm:$0xff]
    %v3307 = vld [vmem:[#allocation5 + $0x208] sm:$0xff]
    %v3308 = vld [vmem:[#allocation5 + $0x210] sm:$0xff]
    %v3309 = vld [vmem:[#allocation5 + $0x218] sm:$0xff]
    %v3310 = vld [vmem:[#allocation5 + $0x220] sm:$0xff]
    %v3311 = vld [vmem:[#allocation5 + $0x228] sm:$0xff]
    %v3312 = vld [vmem:[#allocation5 + $0x230] sm:$0xff]
    %v3313 = vld [vmem:[#allocation5 + $0x238] sm:$0xff]
    %v3314 = vld [vmem:[#allocation5 + $0x240] sm:$0xff]
    %v3315 = vld [vmem:[#allocation5 + $0x248] sm:$0xff]
    %v3316 = vld [vmem:[#allocation5 + $0x250] sm:$0xff]
    %v3317 = vld [vmem:[#allocation5 + $0x258] sm:$0xff]
    %v3318 = vld [vmem:[#allocation5 + $0x260] sm:$0xff]
    %v3319 = vld [vmem:[#allocation5 + $0x268] sm:$0xff]
    %v3320 = vld [vmem:[#allocation5 + $0x270] sm:$0xff]
    %v3321 = vld [vmem:[#allocation5 + $0x278] sm:$0xff]
    %v3322 = vld [vmem:[#allocation5 + $0x280] sm:$0xff]
    %v3323 = vld [vmem:[#allocation5 + $0x288] sm:$0xff]
    %v3324 = vld [vmem:[#allocation5 + $0x290] sm:$0xff]
    %v3325 = vld [vmem:[#allocation5 + $0x298] sm:$0xff]
    %v3326 = vld [vmem:[#allocation5 + $0x2a0] sm:$0xff]
    %v3327 = vld [vmem:[#allocation5 + $0x2a8] sm:$0xff]
    %v3328 = vld [vmem:[#allocation5 + $0x2b0] sm:$0xff]
    %v3329 = vld [vmem:[#allocation5 + $0x2b8] sm:$0xff]
    %v3330 = vld [vmem:[#allocation5 + $0x2c0] sm:$0xff]
    %v3331 = vld [vmem:[#allocation5 + $0x2c8] sm:$0xff]
    %v3332 = vld [vmem:[#allocation5 + $0x2d0] sm:$0xff]
    %v3333 = vld [vmem:[#allocation5 + $0x2d8] sm:$0xff]
    %v3334 = vld [vmem:[#allocation5 + $0x2e0] sm:$0xff]
    %v3335 = vld [vmem:[#allocation5 + $0x2e8] sm:$0xff]
    %v3336 = vld [vmem:[#allocation5 + $0x2f0] sm:$0xff]
    %v3337 = vld [vmem:[#allocation5 + $0x2f8] sm:$0xff]
    %v3338 = vld [vmem:[#allocation5 + $0x300] sm:$0xff]
    %v3339 = vld [vmem:[#allocation5 + $0x308] sm:$0xff]
    %v3340 = vld [vmem:[#allocation5 + $0x310] sm:$0xff]
    %v3341 = vld [vmem:[#allocation5 + $0x318] sm:$0xff]
    %v3342 = vld [vmem:[#allocation5 + $0x320] sm:$0xff]
    %v3343 = vld [vmem:[#allocation5 + $0x328] sm:$0xff]
    %v3344 = vld [vmem:[#allocation5 + $0x330] sm:$0xff]
    %v3345 = vld [vmem:[#allocation5 + $0x338] sm:$0xff]
    %v3346 = vld [vmem:[#allocation5 + $0x340] sm:$0xff]
    %v3347 = vld [vmem:[#allocation5 + $0x348] sm:$0xff]
    %v3348 = vld [vmem:[#allocation5 + $0x350] sm:$0xff]
    %v3349 = vld [vmem:[#allocation5 + $0x358] sm:$0xff]
    %v3350 = vld [vmem:[#allocation5 + $0x360] sm:$0xff]
    %v3351 = vld [vmem:[#allocation5 + $0x368] sm:$0xff]
    %v3352 = vld [vmem:[#allocation5 + $0x370] sm:$0xff]
    %v3353 = vld [vmem:[#allocation5 + $0x378] sm:$0xff]
    %v3354 = vld [vmem:[#allocation5 + $0x380] sm:$0xff]
    %v3355 = vld [vmem:[#allocation5 + $0x388] sm:$0xff]
    %v3356 = vld [vmem:[#allocation5 + $0x390] sm:$0xff]
    %v3357 = vld [vmem:[#allocation5 + $0x398] sm:$0xff]
    %v3358 = vld [vmem:[#allocation5 + $0x3a0] sm:$0xff]
    %v3359 = vld [vmem:[#allocation5 + $0x3a8] sm:$0xff]
    %v3360 = vld [vmem:[#allocation5 + $0x3b0] sm:$0xff]
    %v3361 = vld [vmem:[#allocation5 + $0x3b8] sm:$0xff]
    %v3362 = vld [vmem:[#allocation5 + $0x3c0] sm:$0xff]
    %v3363 = vld [vmem:[#allocation5 + $0x3c8] sm:$0xff]
    %v3364 = vld [vmem:[#allocation5 + $0x3d0] sm:$0xff]
    %v3365 = vld [vmem:[#allocation5 + $0x3d8] sm:$0xff]
    %v3366 = vld [vmem:[#allocation5 + $0x3e0] sm:$0xff]
    %v3367 = vld [vmem:[#allocation5 + $0x3e8] sm:$0xff]
    %v3368 = vld [vmem:[#allocation5 + $0x3f0] sm:$0xff]
    %v3369 = vld [vmem:[#allocation5 + $0x3f8] sm:$0xff]
    %v3370 = vld [vmem:[#allocation5 + $0x400] sm:$0xff]
    %v3371 = vld [vmem:[#allocation5 + $0x408] sm:$0xff]
    %v3372 = vld [vmem:[#allocation5 + $0x410] sm:$0xff]
    %v3373 = vld [vmem:[#allocation5 + $0x418] sm:$0xff]
    %v3374 = vld [vmem:[#allocation5 + $0x420] sm:$0xff]
    %v3375 = vld [vmem:[#allocation5 + $0x428] sm:$0xff]
    %v3376 = vld [vmem:[#allocation5 + $0x430] sm:$0xff]
    %v3377 = vld [vmem:[#allocation5 + $0x438] sm:$0xff]
    %v3378 = vld [vmem:[#allocation5 + $0x440] sm:$0xff]
    %v3379 = vld [vmem:[#allocation5 + $0x448] sm:$0xff]
    %v3380 = vld [vmem:[#allocation5 + $0x450] sm:$0xff]
    %v3381 = vld [vmem:[#allocation5 + $0x458] sm:$0xff]
    %v3382 = vld [vmem:[#allocation5 + $0x460] sm:$0xff]
    %v3383 = vld [vmem:[#allocation5 + $0x468] sm:$0xff]
    %v3384 = vld [vmem:[#allocation5 + $0x470] sm:$0xff]
    %v3385 = vld [vmem:[#allocation5 + $0x478] sm:$0xff]
    %v3386 = vld [vmem:[#allocation5 + $0x480] sm:$0xff]
    %v3387 = vld [vmem:[#allocation5 + $0x488] sm:$0xff]
    %v3388 = vld [vmem:[#allocation5 + $0x490] sm:$0xff]
    %v3389 = vld [vmem:[#allocation5 + $0x498] sm:$0xff]
    %v3390 = vld [vmem:[#allocation5 + $0x4a0] sm:$0xff]
    %v3391 = vld [vmem:[#allocation5 + $0x4a8] sm:$0xff]
    %v3392 = vld [vmem:[#allocation5 + $0x4b0] sm:$0xff]
    %v3393 = vld [vmem:[#allocation5 + $0x4b8] sm:$0xff]
    %v3394 = vld [vmem:[#allocation5 + $0x4c0] sm:$0xff]
    %v3395 = vld [vmem:[#allocation5 + $0x4c8] sm:$0xff]
    %v3396 = vld [vmem:[#allocation5 + $0x4d0] sm:$0xff]
    %v3397 = vld [vmem:[#allocation5 + $0x4d8] sm:$0xff]
    %v3398 = vld [vmem:[#allocation5 + $0x4e0] sm:$0xff]
    %v3399 = vld [vmem:[#allocation5 + $0x4e8] sm:$0xff]
    %v3400 = vld [vmem:[#allocation5 + $0x4f0] sm:$0xff]
    %v3401 = vld [vmem:[#allocation5 + $0x4f8] sm:$0xff]
    // Predicated region
    $region146: #{_generator_pallas.1} parent=1 // pred_check
      %p3402 = pneg %p219
    $region147: #{_generator_pallas.1} parent=1 // pred_check_branch
      %3404 = sbr.rel (%p3402) target = $region149
    $region148: #{_generator_pallas.1} parent=1 // pred_region
      %s3405 = scalar_lea.sflag [#allocation6], 2
      %s3406 = smul.u32 2, 32
      %s3407 = smul.u32 %s3406, 10
      %s3408 = sshll.u32 %s3407, 4
      %3409 = dma.done %s3405, %s3408
      %v3410 = vld [vmem:[#allocation4 + $0x280] sm:$0xff]
      %v3411 = vld [vmem:[#allocation4 + $0x288] sm:$0xff]
      %v3412 = vld [vmem:[#allocation4 + $0x290] sm:$0xff]
      %v3413 = vld [vmem:[#allocation4 + $0x298] sm:$0xff]
      %v3414 = vld [vmem:[#allocation4 + $0x2a0] sm:$0xff]
      %v3415 = vld [vmem:[#allocation4 + $0x2a8] sm:$0xff]
      %v3416 = vld [vmem:[#allocation4 + $0x2b0] sm:$0xff]
      %v3417 = vld [vmem:[#allocation4 + $0x2b8] sm:$0xff]
      %v3418 = vld [vmem:[#allocation4 + $0x2c0] sm:$0xff]
      %v3419 = vld [vmem:[#allocation4 + $0x2c8] sm:$0xff]
      %v3420 = vld [vmem:[#allocation4 + $0x2d0] sm:$0xff]
      %v3421 = vld [vmem:[#allocation4 + $0x2d8] sm:$0xff]
      %v3422 = vld [vmem:[#allocation4 + $0x2e0] sm:$0xff]
      %v3423 = vld [vmem:[#allocation4 + $0x2e8] sm:$0xff]
      %v3424 = vld [vmem:[#allocation4 + $0x2f0] sm:$0xff]
      %v3425 = vld [vmem:[#allocation4 + $0x2f8] sm:$0xff]
      %v3426 = vld [vmem:[#allocation4 + $0x300] sm:$0xff]
      %v3427 = vld [vmem:[#allocation4 + $0x308] sm:$0xff]
      %v3428 = vld [vmem:[#allocation4 + $0x310] sm:$0xff]
      %v3429 = vld [vmem:[#allocation4 + $0x318] sm:$0xff]
      %v3430 = vld [vmem:[#allocation4 + $0x320] sm:$0xff]
      %v3431 = vld [vmem:[#allocation4 + $0x328] sm:$0xff]
      %v3432 = vld [vmem:[#allocation4 + $0x330] sm:$0xff]
      %v3433 = vld [vmem:[#allocation4 + $0x338] sm:$0xff]
      %v3434 = vld [vmem:[#allocation4 + $0x340] sm:$0xff]
      %v3435 = vld [vmem:[#allocation4 + $0x348] sm:$0xff]
      %v3436 = vld [vmem:[#allocation4 + $0x350] sm:$0xff]
      %v3437 = vld [vmem:[#allocation4 + $0x358] sm:$0xff]
      %v3438 = vld [vmem:[#allocation4 + $0x360] sm:$0xff]
      %v3439 = vld [vmem:[#allocation4 + $0x368] sm:$0xff]
      %v3440 = vld [vmem:[#allocation4 + $0x370] sm:$0xff]
      %v3441 = vld [vmem:[#allocation4 + $0x378] sm:$0xff]
      %v3442 = vld [vmem:[#allocation4 + $0x380] sm:$0xff]
      %v3443 = vld [vmem:[#allocation4 + $0x388] sm:$0xff]
      %v3444 = vld [vmem:[#allocation4 + $0x390] sm:$0xff]
      %v3445 = vld [vmem:[#allocation4 + $0x398] sm:$0xff]
      %v3446 = vld [vmem:[#allocation4 + $0x3a0] sm:$0xff]
      %v3447 = vld [vmem:[#allocation4 + $0x3a8] sm:$0xff]
      %v3448 = vld [vmem:[#allocation4 + $0x3b0] sm:$0xff]
      %v3449 = vld [vmem:[#allocation4 + $0x3b8] sm:$0xff]
      %v3450 = vld [vmem:[#allocation4 + $0x3c0] sm:$0xff]
      %v3451 = vld [vmem:[#allocation4 + $0x3c8] sm:$0xff]
      %v3452 = vld [vmem:[#allocation4 + $0x3d0] sm:$0xff]
      %v3453 = vld [vmem:[#allocation4 + $0x3d8] sm:$0xff]
      %v3454 = vld [vmem:[#allocation4 + $0x3e0] sm:$0xff]
      %v3455 = vld [vmem:[#allocation4 + $0x3e8] sm:$0xff]
      %v3456 = vld [vmem:[#allocation4 + $0x3f0] sm:$0xff]
      %v3457 = vld [vmem:[#allocation4 + $0x3f8] sm:$0xff]
      %v3458 = vld [vmem:[#allocation4 + $0x400] sm:$0xff]
      %v3459 = vld [vmem:[#allocation4 + $0x408] sm:$0xff]
      %v3460 = vld [vmem:[#allocation4 + $0x410] sm:$0xff]
      %v3461 = vld [vmem:[#allocation4 + $0x418] sm:$0xff]
      %v3462 = vld [vmem:[#allocation4 + $0x420] sm:$0xff]
      %v3463 = vld [vmem:[#allocation4 + $0x428] sm:$0xff]
      %v3464 = vld [vmem:[#allocation4 + $0x430] sm:$0xff]
      %v3465 = vld [vmem:[#allocation4 + $0x438] sm:$0xff]
      %v3466 = vld [vmem:[#allocation4 + $0x440] sm:$0xff]
      %v3467 = vld [vmem:[#allocation4 + $0x448] sm:$0xff]
      %v3468 = vld [vmem:[#allocation4 + $0x450] sm:$0xff]
      %v3469 = vld [vmem:[#allocation4 + $0x458] sm:$0xff]
      %v3470 = vld [vmem:[#allocation4 + $0x460] sm:$0xff]
      %v3471 = vld [vmem:[#allocation4 + $0x468] sm:$0xff]
      %v3472 = vld [vmem:[#allocation4 + $0x470] sm:$0xff]
      %v3473 = vld [vmem:[#allocation4 + $0x478] sm:$0xff]
      %v3474 = vld [vmem:[#allocation4 + $0x480] sm:$0xff]
      %v3475 = vld [vmem:[#allocation4 + $0x488] sm:$0xff]
      %v3476 = vld [vmem:[#allocation4 + $0x490] sm:$0xff]
      %v3477 = vld [vmem:[#allocation4 + $0x498] sm:$0xff]
      %v3478 = vld [vmem:[#allocation4 + $0x4a0] sm:$0xff]
      %v3479 = vld [vmem:[#allocation4 + $0x4a8] sm:$0xff]
      %v3480 = vld [vmem:[#allocation4 + $0x4b0] sm:$0xff]
      %v3481 = vld [vmem:[#allocation4 + $0x4b8] sm:$0xff]
      %v3482 = vld [vmem:[#allocation4 + $0x4c0] sm:$0xff]
      %v3483 = vld [vmem:[#allocation4 + $0x4c8] sm:$0xff]
      %v3484 = vld [vmem:[#allocation4 + $0x4d0] sm:$0xff]
      %v3485 = vld [vmem:[#allocation4 + $0x4d8] sm:$0xff]
      %v3486 = vld [vmem:[#allocation4 + $0x4e0] sm:$0xff]
      %v3487 = vld [vmem:[#allocation4 + $0x4e8] sm:$0xff]
      %v3488 = vld [vmem:[#allocation4 + $0x4f0] sm:$0xff]
      %v3489 = vld [vmem:[#allocation4 + $0x4f8] sm:$0xff]
      %v3490 = vunpack.c.l.s8.bf16 %v3410
      %v3491 = vunpack.c.l.s8.bf16 %v3411
      %v3492 = vunpack.c.l.s8.bf16 %v3412
      %v3493 = vunpack.c.l.s8.bf16 %v3413
      %v3494 = vunpack.c.l.s8.bf16 %v3414
      %v3495 = vunpack.c.l.s8.bf16 %v3415
      %v3496 = vunpack.c.l.s8.bf16 %v3416
      %v3497 = vunpack.c.l.s8.bf16 %v3417
      %v3498 = vunpack.c.l.s8.bf16 %v3418
      %v3499 = vunpack.c.l.s8.bf16 %v3419
      %v3500 = vunpack.c.h.s8.bf16 %v3410
      %v3501 = vunpack.c.h.s8.bf16 %v3411
      %v3502 = vunpack.c.h.s8.bf16 %v3412
      %v3503 = vunpack.c.h.s8.bf16 %v3413
      %v3504 = vunpack.c.h.s8.bf16 %v3414
      %v3505 = vunpack.c.h.s8.bf16 %v3415
      %v3506 = vunpack.c.h.s8.bf16 %v3416
      %v3507 = vunpack.c.h.s8.bf16 %v3417
      %v3508 = vunpack.c.h.s8.bf16 %v3418
      %v3509 = vunpack.c.h.s8.bf16 %v3419
      %v3510 = vunpack.c.l.s8.bf16 %v3420
      %v3511 = vunpack.c.l.s8.bf16 %v3421
      %v3512 = vunpack.c.l.s8.bf16 %v3422
      %v3513 = vunpack.c.l.s8.bf16 %v3423
      %v3514 = vunpack.c.l.s8.bf16 %v3424
      %v3515 = vunpack.c.l.s8.bf16 %v3425
      %v3516 = vunpack.c.l.s8.bf16 %v3426
      %v3517 = vunpack.c.l.s8.bf16 %v3427
      %v3518 = vunpack.c.l.s8.bf16 %v3428
      %v3519 = vunpack.c.l.s8.bf16 %v3429
      %v3520 = vunpack.c.h.s8.bf16 %v3420
      %v3521 = vunpack.c.h.s8.bf16 %v3421
      %v3522 = vunpack.c.h.s8.bf16 %v3422
      %v3523 = vunpack.c.h.s8.bf16 %v3423
      %v3524 = vunpack.c.h.s8.bf16 %v3424
      %v3525 = vunpack.c.h.s8.bf16 %v3425
      %v3526 = vunpack.c.h.s8.bf16 %v3426
      %v3527 = vunpack.c.h.s8.bf16 %v3427
      %v3528 = vunpack.c.h.s8.bf16 %v3428
      %v3529 = vunpack.c.h.s8.bf16 %v3429
      %v3530 = vunpack.c.l.s8.bf16 %v3430
      %v3531 = vunpack.c.l.s8.bf16 %v3431
      %v3532 = vunpack.c.l.s8.bf16 %v3432
      %v3533 = vunpack.c.l.s8.bf16 %v3433
      %v3534 = vunpack.c.l.s8.bf16 %v3434
      %v3535 = vunpack.c.l.s8.bf16 %v3435
      %v3536 = vunpack.c.l.s8.bf16 %v3436
      %v3537 = vunpack.c.l.s8.bf16 %v3437
      %v3538 = vunpack.c.l.s8.bf16 %v3438
      %v3539 = vunpack.c.l.s8.bf16 %v3439
      %v3540 = vunpack.c.h.s8.bf16 %v3430
      %v3541 = vunpack.c.h.s8.bf16 %v3431
      %v3542 = vunpack.c.h.s8.bf16 %v3432
      %v3543 = vunpack.c.h.s8.bf16 %v3433
      %v3544 = vunpack.c.h.s8.bf16 %v3434
      %v3545 = vunpack.c.h.s8.bf16 %v3435
      %v3546 = vunpack.c.h.s8.bf16 %v3436
      %v3547 = vunpack.c.h.s8.bf16 %v3437
      %v3548 = vunpack.c.h.s8.bf16 %v3438
      %v3549 = vunpack.c.h.s8.bf16 %v3439
      %v3550 = vunpack.c.l.s8.bf16 %v3440
      %v3551 = vunpack.c.l.s8.bf16 %v3441
      %v3552 = vunpack.c.l.s8.bf16 %v3442
      %v3553 = vunpack.c.l.s8.bf16 %v3443
      %v3554 = vunpack.c.l.s8.bf16 %v3444
      %v3555 = vunpack.c.l.s8.bf16 %v3445
      %v3556 = vunpack.c.l.s8.bf16 %v3446
      %v3557 = vunpack.c.l.s8.bf16 %v3447
      %v3558 = vunpack.c.l.s8.bf16 %v3448
      %v3559 = vunpack.c.l.s8.bf16 %v3449
      %v3560 = vunpack.c.h.s8.bf16 %v3440
      %v3561 = vunpack.c.h.s8.bf16 %v3441
      %v3562 = vunpack.c.h.s8.bf16 %v3442
      %v3563 = vunpack.c.h.s8.bf16 %v3443
      %v3564 = vunpack.c.h.s8.bf16 %v3444
      %v3565 = vunpack.c.h.s8.bf16 %v3445
      %v3566 = vunpack.c.h.s8.bf16 %v3446
      %v3567 = vunpack.c.h.s8.bf16 %v3447
      %v3568 = vunpack.c.h.s8.bf16 %v3448
      %v3569 = vunpack.c.h.s8.bf16 %v3449
      %v3570 = vunpack.c.l.s8.bf16 %v3450
      %v3571 = vunpack.c.l.s8.bf16 %v3451
      %v3572 = vunpack.c.l.s8.bf16 %v3452
      %v3573 = vunpack.c.l.s8.bf16 %v3453
      %v3574 = vunpack.c.l.s8.bf16 %v3454
      %v3575 = vunpack.c.l.s8.bf16 %v3455
      %v3576 = vunpack.c.l.s8.bf16 %v3456
      %v3577 = vunpack.c.l.s8.bf16 %v3457
      %v3578 = vunpack.c.l.s8.bf16 %v3458
      %v3579 = vunpack.c.l.s8.bf16 %v3459
      %v3580 = vunpack.c.h.s8.bf16 %v3450
      %v3581 = vunpack.c.h.s8.bf16 %v3451
      %v3582 = vunpack.c.h.s8.bf16 %v3452
      %v3583 = vunpack.c.h.s8.bf16 %v3453
      %v3584 = vunpack.c.h.s8.bf16 %v3454
      %v3585 = vunpack.c.h.s8.bf16 %v3455
      %v3586 = vunpack.c.h.s8.bf16 %v3456
      %v3587 = vunpack.c.h.s8.bf16 %v3457
      %v3588 = vunpack.c.h.s8.bf16 %v3458
      %v3589 = vunpack.c.h.s8.bf16 %v3459
      %v3590 = vunpack.c.l.s8.bf16 %v3460
      %v3591 = vunpack.c.l.s8.bf16 %v3461
      %v3592 = vunpack.c.l.s8.bf16 %v3462
      %v3593 = vunpack.c.l.s8.bf16 %v3463
      %v3594 = vunpack.c.l.s8.bf16 %v3464
      %v3595 = vunpack.c.l.s8.bf16 %v3465
      %v3596 = vunpack.c.l.s8.bf16 %v3466
      %v3597 = vunpack.c.l.s8.bf16 %v3467
      %v3598 = vunpack.c.l.s8.bf16 %v3468
      %v3599 = vunpack.c.l.s8.bf16 %v3469
      %v3600 = vunpack.c.h.s8.bf16 %v3460
      %v3601 = vunpack.c.h.s8.bf16 %v3461
      %v3602 = vunpack.c.h.s8.bf16 %v3462
      %v3603 = vunpack.c.h.s8.bf16 %v3463
      %v3604 = vunpack.c.h.s8.bf16 %v3464
      %v3605 = vunpack.c.h.s8.bf16 %v3465
      %v3606 = vunpack.c.h.s8.bf16 %v3466
      %v3607 = vunpack.c.h.s8.bf16 %v3467
      %v3608 = vunpack.c.h.s8.bf16 %v3468
      %v3609 = vunpack.c.h.s8.bf16 %v3469
      %v3610 = vunpack.c.l.s8.bf16 %v3470
      %v3611 = vunpack.c.l.s8.bf16 %v3471
      %v3612 = vunpack.c.l.s8.bf16 %v3472
      %v3613 = vunpack.c.l.s8.bf16 %v3473
      %v3614 = vunpack.c.l.s8.bf16 %v3474
      %v3615 = vunpack.c.l.s8.bf16 %v3475
      %v3616 = vunpack.c.l.s8.bf16 %v3476
      %v3617 = vunpack.c.l.s8.bf16 %v3477
      %v3618 = vunpack.c.l.s8.bf16 %v3478
      %v3619 = vunpack.c.l.s8.bf16 %v3479
      %v3620 = vunpack.c.h.s8.bf16 %v3470
      %v3621 = vunpack.c.h.s8.bf16 %v3471
      %v3622 = vunpack.c.h.s8.bf16 %v3472
      %v3623 = vunpack.c.h.s8.bf16 %v3473
      %v3624 = vunpack.c.h.s8.bf16 %v3474
      %v3625 = vunpack.c.h.s8.bf16 %v3475
      %v3626 = vunpack.c.h.s8.bf16 %v3476
      %v3627 = vunpack.c.h.s8.bf16 %v3477
      %v3628 = vunpack.c.h.s8.bf16 %v3478
      %v3629 = vunpack.c.h.s8.bf16 %v3479
      %v3630 = vunpack.c.l.s8.bf16 %v3480
      %v3631 = vunpack.c.l.s8.bf16 %v3481
      %v3632 = vunpack.c.l.s8.bf16 %v3482
      %v3633 = vunpack.c.l.s8.bf16 %v3483
      %v3634 = vunpack.c.l.s8.bf16 %v3484
      %v3635 = vunpack.c.l.s8.bf16 %v3485
      %v3636 = vunpack.c.l.s8.bf16 %v3486
      %v3637 = vunpack.c.l.s8.bf16 %v3487
      %v3638 = vunpack.c.l.s8.bf16 %v3488
      %v3639 = vunpack.c.l.s8.bf16 %v3489
      %v3640 = vunpack.c.h.s8.bf16 %v3480
      %v3641 = vunpack.c.h.s8.bf16 %v3481
      %v3642 = vunpack.c.h.s8.bf16 %v3482
      %v3643 = vunpack.c.h.s8.bf16 %v3483
      %v3644 = vunpack.c.h.s8.bf16 %v3484
      %v3645 = vunpack.c.h.s8.bf16 %v3485
      %v3646 = vunpack.c.h.s8.bf16 %v3486
      %v3647 = vunpack.c.h.s8.bf16 %v3487
      %v3648 = vunpack.c.h.s8.bf16 %v3488
      %v3649 = vunpack.c.h.s8.bf16 %v3489
      %3650 = vst [vmem:[#allocation5 + $0x500] sm:$0xff] %v3490
      %3651 = vst [vmem:[#allocation5 + $0x508] sm:$0xff] %v3491
      %3652 = vst [vmem:[#allocation5 + $0x510] sm:$0xff] %v3492
      %3653 = vst [vmem:[#allocation5 + $0x518] sm:$0xff] %v3493
      %3654 = vst [vmem:[#allocation5 + $0x520] sm:$0xff] %v3494
      %3655 = vst [vmem:[#allocation5 + $0x528] sm:$0xff] %v3495
      %3656 = vst [vmem:[#allocation5 + $0x530] sm:$0xff] %v3496
      %3657 = vst [vmem:[#allocation5 + $0x538] sm:$0xff] %v3497
      %3658 = vst [vmem:[#allocation5 + $0x540] sm:$0xff] %v3498
      %3659 = vst [vmem:[#allocation5 + $0x548] sm:$0xff] %v3499
      %3660 = vst [vmem:[#allocation5 + $0x550] sm:$0xff] %v3500
      %3661 = vst [vmem:[#allocation5 + $0x558] sm:$0xff] %v3501
      %3662 = vst [vmem:[#allocation5 + $0x560] sm:$0xff] %v3502
      %3663 = vst [vmem:[#allocation5 + $0x568] sm:$0xff] %v3503
      %3664 = vst [vmem:[#allocation5 + $0x570] sm:$0xff] %v3504
      %3665 = vst [vmem:[#allocation5 + $0x578] sm:$0xff] %v3505
      %3666 = vst [vmem:[#allocation5 + $0x580] sm:$0xff] %v3506
      %3667 = vst [vmem:[#allocation5 + $0x588] sm:$0xff] %v3507
      %3668 = vst [vmem:[#allocation5 + $0x590] sm:$0xff] %v3508
      %3669 = vst [vmem:[#allocation5 + $0x598] sm:$0xff] %v3509
      %3670 = vst [vmem:[#allocation5 + $0x5a0] sm:$0xff] %v3510
      %3671 = vst [vmem:[#allocation5 + $0x5a8] sm:$0xff] %v3511
      %3672 = vst [vmem:[#allocation5 + $0x5b0] sm:$0xff] %v3512
      %3673 = vst [vmem:[#allocation5 + $0x5b8] sm:$0xff] %v3513
      %3674 = vst [vmem:[#allocation5 + $0x5c0] sm:$0xff] %v3514
      %3675 = vst [vmem:[#allocation5 + $0x5c8] sm:$0xff] %v3515
      %3676 = vst [vmem:[#allocation5 + $0x5d0] sm:$0xff] %v3516
      %3677 = vst [vmem:[#allocation5 + $0x5d8] sm:$0xff] %v3517
      %3678 = vst [vmem:[#allocation5 + $0x5e0] sm:$0xff] %v3518
      %3679 = vst [vmem:[#allocation5 + $0x5e8] sm:$0xff] %v3519
      %3680 = vst [vmem:[#allocation5 + $0x5f0] sm:$0xff] %v3520
      %3681 = vst [vmem:[#allocation5 + $0x5f8] sm:$0xff] %v3521
      %3682 = vst [vmem:[#allocation5 + $0x600] sm:$0xff] %v3522
      %3683 = vst [vmem:[#allocation5 + $0x608] sm:$0xff] %v3523
      %3684 = vst [vmem:[#allocation5 + $0x610] sm:$0xff] %v3524
      %3685 = vst [vmem:[#allocation5 + $0x618] sm:$0xff] %v3525
      %3686 = vst [vmem:[#allocation5 + $0x620] sm:$0xff] %v3526
      %3687 = vst [vmem:[#allocation5 + $0x628] sm:$0xff] %v3527
      %3688 = vst [vmem:[#allocation5 + $0x630] sm:$0xff] %v3528
      %3689 = vst [vmem:[#allocation5 + $0x638] sm:$0xff] %v3529
      %3690 = vst [vmem:[#allocation5 + $0x640] sm:$0xff] %v3530
      %3691 = vst [vmem:[#allocation5 + $0x648] sm:$0xff] %v3531
      %3692 = vst [vmem:[#allocation5 + $0x650] sm:$0xff] %v3532
      %3693 = vst [vmem:[#allocation5 + $0x658] sm:$0xff] %v3533
      %3694 = vst [vmem:[#allocation5 + $0x660] sm:$0xff] %v3534
      %3695 = vst [vmem:[#allocation5 + $0x668] sm:$0xff] %v3535
      %3696 = vst [vmem:[#allocation5 + $0x670] sm:$0xff] %v3536
      %3697 = vst [vmem:[#allocation5 + $0x678] sm:$0xff] %v3537
      %3698 = vst [vmem:[#allocation5 + $0x680] sm:$0xff] %v3538
      %3699 = vst [vmem:[#allocation5 + $0x688] sm:$0xff] %v3539
      %3700 = vst [vmem:[#allocation5 + $0x690] sm:$0xff] %v3540
      %3701 = vst [vmem:[#allocation5 + $0x698] sm:$0xff] %v3541
      %3702 = vst [vmem:[#allocation5 + $0x6a0] sm:$0xff] %v3542
      %3703 = vst [vmem:[#allocation5 + $0x6a8] sm:$0xff] %v3543
      %3704 = vst [vmem:[#allocation5 + $0x6b0] sm:$0xff] %v3544
      %3705 = vst [vmem:[#allocation5 + $0x6b8] sm:$0xff] %v3545
      %3706 = vst [vmem:[#allocation5 + $0x6c0] sm:$0xff] %v3546
      %3707 = vst [vmem:[#allocation5 + $0x6c8] sm:$0xff] %v3547
      %3708 = vst [vmem:[#allocation5 + $0x6d0] sm:$0xff] %v3548
      %3709 = vst [vmem:[#allocation5 + $0x6d8] sm:$0xff] %v3549
      %3710 = vst [vmem:[#allocation5 + $0x6e0] sm:$0xff] %v3550
      %3711 = vst [vmem:[#allocation5 + $0x6e8] sm:$0xff] %v3551
      %3712 = vst [vmem:[#allocation5 + $0x6f0] sm:$0xff] %v3552
      %3713 = vst [vmem:[#allocation5 + $0x6f8] sm:$0xff] %v3553
      %3714 = vst [vmem:[#allocation5 + $0x700] sm:$0xff] %v3554
      %3715 = vst [vmem:[#allocation5 + $0x708] sm:$0xff] %v3555
      %3716 = vst [vmem:[#allocation5 + $0x710] sm:$0xff] %v3556
      %3717 = vst [vmem:[#allocation5 + $0x718] sm:$0xff] %v3557
      %3718 = vst [vmem:[#allocation5 + $0x720] sm:$0xff] %v3558
      %3719 = vst [vmem:[#allocation5 + $0x728] sm:$0xff] %v3559
      %3720 = vst [vmem:[#allocation5 + $0x730] sm:$0xff] %v3560
      %3721 = vst [vmem:[#allocation5 + $0x738] sm:$0xff] %v3561
      %3722 = vst [vmem:[#allocation5 + $0x740] sm:$0xff] %v3562
      %3723 = vst [vmem:[#allocation5 + $0x748] sm:$0xff] %v3563
      %3724 = vst [vmem:[#allocation5 + $0x750] sm:$0xff] %v3564
      %3725 = vst [vmem:[#allocation5 + $0x758] sm:$0xff] %v3565
      %3726 = vst [vmem:[#allocation5 + $0x760] sm:$0xff] %v3566
      %3727 = vst [vmem:[#allocation5 + $0x768] sm:$0xff] %v3567
      %3728 = vst [vmem:[#allocation5 + $0x770] sm:$0xff] %v3568
      %3729 = vst [vmem:[#allocation5 + $0x778] sm:$0xff] %v3569
      %3730 = vst [vmem:[#allocation5 + $0x780] sm:$0xff] %v3570
      %3731 = vst [vmem:[#allocation5 + $0x788] sm:$0xff] %v3571
      %3732 = vst [vmem:[#allocation5 + $0x790] sm:$0xff] %v3572
      %3733 = vst [vmem:[#allocation5 + $0x798] sm:$0xff] %v3573
      %3734 = vst [vmem:[#allocation5 + $0x7a0] sm:$0xff] %v3574
      %3735 = vst [vmem:[#allocation5 + $0x7a8] sm:$0xff] %v3575
      %3736 = vst [vmem:[#allocation5 + $0x7b0] sm:$0xff] %v3576
      %3737 = vst [vmem:[#allocation5 + $0x7b8] sm:$0xff] %v3577
      %3738 = vst [vmem:[#allocation5 + $0x7c0] sm:$0xff] %v3578
      %3739 = vst [vmem:[#allocation5 + $0x7c8] sm:$0xff] %v3579
      %3740 = vst [vmem:[#allocation5 + $0x7d0] sm:$0xff] %v3580
      %3741 = vst [vmem:[#allocation5 + $0x7d8] sm:$0xff] %v3581
      %3742 = vst [vmem:[#allocation5 + $0x7e0] sm:$0xff] %v3582
      %3743 = vst [vmem:[#allocation5 + $0x7e8] sm:$0xff] %v3583
      %3744 = vst [vmem:[#allocation5 + $0x7f0] sm:$0xff] %v3584
      %3745 = vst [vmem:[#allocation5 + $0x7f8] sm:$0xff] %v3585
      %3746 = vst [vmem:[#allocation5 + $0x800] sm:$0xff] %v3586
      %3747 = vst [vmem:[#allocation5 + $0x808] sm:$0xff] %v3587
      %3748 = vst [vmem:[#allocation5 + $0x810] sm:$0xff] %v3588
      %3749 = vst [vmem:[#allocation5 + $0x818] sm:$0xff] %v3589
      %3750 = vst [vmem:[#allocation5 + $0x820] sm:$0xff] %v3590
      %3751 = vst [vmem:[#allocation5 + $0x828] sm:$0xff] %v3591
      %3752 = vst [vmem:[#allocation5 + $0x830] sm:$0xff] %v3592
      %3753 = vst [vmem:[#allocation5 + $0x838] sm:$0xff] %v3593
      %3754 = vst [vmem:[#allocation5 + $0x840] sm:$0xff] %v3594
      %3755 = vst [vmem:[#allocation5 + $0x848] sm:$0xff] %v3595
      %3756 = vst [vmem:[#allocation5 + $0x850] sm:$0xff] %v3596
      %3757 = vst [vmem:[#allocation5 + $0x858] sm:$0xff] %v3597
      %3758 = vst [vmem:[#allocation5 + $0x860] sm:$0xff] %v3598
      %3759 = vst [vmem:[#allocation5 + $0x868] sm:$0xff] %v3599
      %3760 = vst [vmem:[#allocation5 + $0x870] sm:$0xff] %v3600
      %3761 = vst [vmem:[#allocation5 + $0x878] sm:$0xff] %v3601
      %3762 = vst [vmem:[#allocation5 + $0x880] sm:$0xff] %v3602
      %3763 = vst [vmem:[#allocation5 + $0x888] sm:$0xff] %v3603
      %3764 = vst [vmem:[#allocation5 + $0x890] sm:$0xff] %v3604
      %3765 = vst [vmem:[#allocation5 + $0x898] sm:$0xff] %v3605
      %3766 = vst [vmem:[#allocation5 + $0x8a0] sm:$0xff] %v3606
      %3767 = vst [vmem:[#allocation5 + $0x8a8] sm:$0xff] %v3607
      %3768 = vst [vmem:[#allocation5 + $0x8b0] sm:$0xff] %v3608
      %3769 = vst [vmem:[#allocation5 + $0x8b8] sm:$0xff] %v3609
      %3770 = vst [vmem:[#allocation5 + $0x8c0] sm:$0xff] %v3610
      %3771 = vst [vmem:[#allocation5 + $0x8c8] sm:$0xff] %v3611
      %3772 = vst [vmem:[#allocation5 + $0x8d0] sm:$0xff] %v3612
      %3773 = vst [vmem:[#allocation5 + $0x8d8] sm:$0xff] %v3613
      %3774 = vst [vmem:[#allocation5 + $0x8e0] sm:$0xff] %v3614
      %3775 = vst [vmem:[#allocation5 + $0x8e8] sm:$0xff] %v3615
      %3776 = vst [vmem:[#allocation5 + $0x8f0] sm:$0xff] %v3616
      %3777 = vst [vmem:[#allocation5 + $0x8f8] sm:$0xff] %v3617
      %3778 = vst [vmem:[#allocation5 + $0x900] sm:$0xff] %v3618
      %3779 = vst [vmem:[#allocation5 + $0x908] sm:$0xff] %v3619
      %3780 = vst [vmem:[#allocation5 + $0x910] sm:$0xff] %v3620
      %3781 = vst [vmem:[#allocation5 + $0x918] sm:$0xff] %v3621
      %3782 = vst [vmem:[#allocation5 + $0x920] sm:$0xff] %v3622
      %3783 = vst [vmem:[#allocation5 + $0x928] sm:$0xff] %v3623
      %3784 = vst [vmem:[#allocation5 + $0x930] sm:$0xff] %v3624
      %3785 = vst [vmem:[#allocation5 + $0x938] sm:$0xff] %v3625
      %3786 = vst [vmem:[#allocation5 + $0x940] sm:$0xff] %v3626
      %3787 = vst [vmem:[#allocation5 + $0x948] sm:$0xff] %v3627
      %3788 = vst [vmem:[#allocation5 + $0x950] sm:$0xff] %v3628
      %3789 = vst [vmem:[#allocation5 + $0x958] sm:$0xff] %v3629
      %3790 = vst [vmem:[#allocation5 + $0x960] sm:$0xff] %v3630
      %3791 = vst [vmem:[#allocation5 + $0x968] sm:$0xff] %v3631
      %3792 = vst [vmem:[#allocation5 + $0x970] sm:$0xff] %v3632
      %3793 = vst [vmem:[#allocation5 + $0x978] sm:$0xff] %v3633
      %3794 = vst [vmem:[#allocation5 + $0x980] sm:$0xff] %v3634
      %3795 = vst [vmem:[#allocation5 + $0x988] sm:$0xff] %v3635
      %3796 = vst [vmem:[#allocation5 + $0x990] sm:$0xff] %v3636
      %3797 = vst [vmem:[#allocation5 + $0x998] sm:$0xff] %v3637
      %3798 = vst [vmem:[#allocation5 + $0x9a0] sm:$0xff] %v3638
      %3799 = vst [vmem:[#allocation5 + $0x9a8] sm:$0xff] %v3639
      %3800 = vst [vmem:[#allocation5 + $0x9b0] sm:$0xff] %v3640
      %3801 = vst [vmem:[#allocation5 + $0x9b8] sm:$0xff] %v3641
      %3802 = vst [vmem:[#allocation5 + $0x9c0] sm:$0xff] %v3642
      %3803 = vst [vmem:[#allocation5 + $0x9c8] sm:$0xff] %v3643
      %3804 = vst [vmem:[#allocation5 + $0x9d0] sm:$0xff] %v3644
      %3805 = vst [vmem:[#allocation5 + $0x9d8] sm:$0xff] %v3645
      %3806 = vst [vmem:[#allocation5 + $0x9e0] sm:$0xff] %v3646
      %3807 = vst [vmem:[#allocation5 + $0x9e8] sm:$0xff] %v3647
      %3808 = vst [vmem:[#allocation5 + $0x9f0] sm:$0xff] %v3648
      %3809 = vst [vmem:[#allocation5 + $0x9f8] sm:$0xff] %v3649
    $region149: #{_generator_pallas.1} parent=1 // pred_fallthru
      _
    %v3810 = vld [vmem:[#allocation5 + $0x500] sm:$0xff]
    %v3811 = vld [vmem:[#allocation5 + $0x508] sm:$0xff]
    %v3812 = vld [vmem:[#allocation5 + $0x510] sm:$0xff]
    %v3813 = vld [vmem:[#allocation5 + $0x518] sm:$0xff]
    %v3814 = vld [vmem:[#allocation5 + $0x520] sm:$0xff]
    %v3815 = vld [vmem:[#allocation5 + $0x528] sm:$0xff]
    %v3816 = vld [vmem:[#allocation5 + $0x530] sm:$0xff]
    %v3817 = vld [vmem:[#allocation5 + $0x538] sm:$0xff]
    %v3818 = vld [vmem:[#allocation5 + $0x540] sm:$0xff]
    %v3819 = vld [vmem:[#allocation5 + $0x548] sm:$0xff]
    %v3820 = vld [vmem:[#allocation5 + $0x550] sm:$0xff]
    %v3821 = vld [vmem:[#allocation5 + $0x558] sm:$0xff]
    %v3822 = vld [vmem:[#allocation5 + $0x560] sm:$0xff]
    %v3823 = vld [vmem:[#allocation5 + $0x568] sm:$0xff]
    %v3824 = vld [vmem:[#allocation5 + $0x570] sm:$0xff]
    %v3825 = vld [vmem:[#allocation5 + $0x578] sm:$0xff]
    %v3826 = vld [vmem:[#allocation5 + $0x580] sm:$0xff]
    %v3827 = vld [vmem:[#allocation5 + $0x588] sm:$0xff]
    %v3828 = vld [vmem:[#allocation5 + $0x590] sm:$0xff]
    %v3829 = vld [vmem:[#allocation5 + $0x598] sm:$0xff]
    %v3830 = vld [vmem:[#allocation5 + $0x5a0] sm:$0xff]
    %v3831 = vld [vmem:[#allocation5 + $0x5a8] sm:$0xff]
    %v3832 = vld [vmem:[#allocation5 + $0x5b0] sm:$0xff]
    %v3833 = vld [vmem:[#allocation5 + $0x5b8] sm:$0xff]
    %v3834 = vld [vmem:[#allocation5 + $0x5c0] sm:$0xff]
    %v3835 = vld [vmem:[#allocation5 + $0x5c8] sm:$0xff]
    %v3836 = vld [vmem:[#allocation5 + $0x5d0] sm:$0xff]
    %v3837 = vld [vmem:[#allocation5 + $0x5d8] sm:$0xff]
    %v3838 = vld [vmem:[#allocation5 + $0x5e0] sm:$0xff]
    %v3839 = vld [vmem:[#allocation5 + $0x5e8] sm:$0xff]
    %v3840 = vld [vmem:[#allocation5 + $0x5f0] sm:$0xff]
    %v3841 = vld [vmem:[#allocation5 + $0x5f8] sm:$0xff]
    %v3842 = vld [vmem:[#allocation5 + $0x600] sm:$0xff]
    %v3843 = vld [vmem:[#allocation5 + $0x608] sm:$0xff]
    %v3844 = vld [vmem:[#allocation5 + $0x610] sm:$0xff]
    %v3845 = vld [vmem:[#allocation5 + $0x618] sm:$0xff]
    %v3846 = vld [vmem:[#allocation5 + $0x620] sm:$0xff]
    %v3847 = vld [vmem:[#allocation5 + $0x628] sm:$0xff]
    %v3848 = vld [vmem:[#allocation5 + $0x630] sm:$0xff]
    %v3849 = vld [vmem:[#allocation5 + $0x638] sm:$0xff]
    %v3850 = vld [vmem:[#allocation5 + $0x640] sm:$0xff]
    %v3851 = vld [vmem:[#allocation5 + $0x648] sm:$0xff]
    %v3852 = vld [vmem:[#allocation5 + $0x650] sm:$0xff]
    %v3853 = vld [vmem:[#allocation5 + $0x658] sm:$0xff]
    %v3854 = vld [vmem:[#allocation5 + $0x660] sm:$0xff]
    %v3855 = vld [vmem:[#allocation5 + $0x668] sm:$0xff]
    %v3856 = vld [vmem:[#allocation5 + $0x670] sm:$0xff]
    %v3857 = vld [vmem:[#allocation5 + $0x678] sm:$0xff]
    %v3858 = vld [vmem:[#allocation5 + $0x680] sm:$0xff]
    %v3859 = vld [vmem:[#allocation5 + $0x688] sm:$0xff]
    %v3860 = vld [vmem:[#allocation5 + $0x690] sm:$0xff]
    %v3861 = vld [vmem:[#allocation5 + $0x698] sm:$0xff]
    %v3862 = vld [vmem:[#allocation5 + $0x6a0] sm:$0xff]
    %v3863 = vld [vmem:[#allocation5 + $0x6a8] sm:$0xff]
    %v3864 = vld [vmem:[#allocation5 + $0x6b0] sm:$0xff]
    %v3865 = vld [vmem:[#allocation5 + $0x6b8] sm:$0xff]
    %v3866 = vld [vmem:[#allocation5 + $0x6c0] sm:$0xff]
    %v3867 = vld [vmem:[#allocation5 + $0x6c8] sm:$0xff]
    %v3868 = vld [vmem:[#allocation5 + $0x6d0] sm:$0xff]
    %v3869 = vld [vmem:[#allocation5 + $0x6d8] sm:$0xff]
    %v3870 = vld [vmem:[#allocation5 + $0x6e0] sm:$0xff]
    %v3871 = vld [vmem:[#allocation5 + $0x6e8] sm:$0xff]
    %v3872 = vld [vmem:[#allocation5 + $0x6f0] sm:$0xff]
    %v3873 = vld [vmem:[#allocation5 + $0x6f8] sm:$0xff]
    %v3874 = vld [vmem:[#allocation5 + $0x700] sm:$0xff]
    %v3875 = vld [vmem:[#allocation5 + $0x708] sm:$0xff]
    %v3876 = vld [vmem:[#allocation5 + $0x710] sm:$0xff]
    %v3877 = vld [vmem:[#allocation5 + $0x718] sm:$0xff]
    %v3878 = vld [vmem:[#allocation5 + $0x720] sm:$0xff]
    %v3879 = vld [vmem:[#allocation5 + $0x728] sm:$0xff]
    %v3880 = vld [vmem:[#allocation5 + $0x730] sm:$0xff]
    %v3881 = vld [vmem:[#allocation5 + $0x738] sm:$0xff]
    %v3882 = vld [vmem:[#allocation5 + $0x740] sm:$0xff]
    %v3883 = vld [vmem:[#allocation5 + $0x748] sm:$0xff]
    %v3884 = vld [vmem:[#allocation5 + $0x750] sm:$0xff]
    %v3885 = vld [vmem:[#allocation5 + $0x758] sm:$0xff]
    %v3886 = vld [vmem:[#allocation5 + $0x760] sm:$0xff]
    %v3887 = vld [vmem:[#allocation5 + $0x768] sm:$0xff]
    %v3888 = vld [vmem:[#allocation5 + $0x770] sm:$0xff]
    %v3889 = vld [vmem:[#allocation5 + $0x778] sm:$0xff]
    %v3890 = vld [vmem:[#allocation5 + $0x780] sm:$0xff]
    %v3891 = vld [vmem:[#allocation5 + $0x788] sm:$0xff]
    %v3892 = vld [vmem:[#allocation5 + $0x790] sm:$0xff]
    %v3893 = vld [vmem:[#allocation5 + $0x798] sm:$0xff]
    %v3894 = vld [vmem:[#allocation5 + $0x7a0] sm:$0xff]
    %v3895 = vld [vmem:[#allocation5 + $0x7a8] sm:$0xff]
    %v3896 = vld [vmem:[#allocation5 + $0x7b0] sm:$0xff]
    %v3897 = vld [vmem:[#allocation5 + $0x7b8] sm:$0xff]
    %v3898 = vld [vmem:[#allocation5 + $0x7c0] sm:$0xff]
    %v3899 = vld [vmem:[#allocation5 + $0x7c8] sm:$0xff]
    %v3900 = vld [vmem:[#allocation5 + $0x7d0] sm:$0xff]
    %v3901 = vld [vmem:[#allocation5 + $0x7d8] sm:$0xff]
    %v3902 = vld [vmem:[#allocation5 + $0x7e0] sm:$0xff]
    %v3903 = vld [vmem:[#allocation5 + $0x7e8] sm:$0xff]
    %v3904 = vld [vmem:[#allocation5 + $0x7f0] sm:$0xff]
    %v3905 = vld [vmem:[#allocation5 + $0x7f8] sm:$0xff]
    %v3906 = vld [vmem:[#allocation5 + $0x800] sm:$0xff]
    %v3907 = vld [vmem:[#allocation5 + $0x808] sm:$0xff]
    %v3908 = vld [vmem:[#allocation5 + $0x810] sm:$0xff]
    %v3909 = vld [vmem:[#allocation5 + $0x818] sm:$0xff]
    %v3910 = vld [vmem:[#allocation5 + $0x820] sm:$0xff]
    %v3911 = vld [vmem:[#allocation5 + $0x828] sm:$0xff]
    %v3912 = vld [vmem:[#allocation5 + $0x830] sm:$0xff]
    %v3913 = vld [vmem:[#allocation5 + $0x838] sm:$0xff]
    %v3914 = vld [vmem:[#allocation5 + $0x840] sm:$0xff]
    %v3915 = vld [vmem:[#allocation5 + $0x848] sm:$0xff]
    %v3916 = vld [vmem:[#allocation5 + $0x850] sm:$0xff]
    %v3917 = vld [vmem:[#allocation5 + $0x858] sm:$0xff]
    %v3918 = vld [vmem:[#allocation5 + $0x860] sm:$0xff]
    %v3919 = vld [vmem:[#allocation5 + $0x868] sm:$0xff]
    %v3920 = vld [vmem:[#allocation5 + $0x870] sm:$0xff]
    %v3921 = vld [vmem:[#allocation5 + $0x878] sm:$0xff]
    %v3922 = vld [vmem:[#allocation5 + $0x880] sm:$0xff]
    %v3923 = vld [vmem:[#allocation5 + $0x888] sm:$0xff]
    %v3924 = vld [vmem:[#allocation5 + $0x890] sm:$0xff]
    %v3925 = vld [vmem:[#allocation5 + $0x898] sm:$0xff]
    %v3926 = vld [vmem:[#allocation5 + $0x8a0] sm:$0xff]
    %v3927 = vld [vmem:[#allocation5 + $0x8a8] sm:$0xff]
    %v3928 = vld [vmem:[#allocation5 + $0x8b0] sm:$0xff]
    %v3929 = vld [vmem:[#allocation5 + $0x8b8] sm:$0xff]
    %v3930 = vld [vmem:[#allocation5 + $0x8c0] sm:$0xff]
    %v3931 = vld [vmem:[#allocation5 + $0x8c8] sm:$0xff]
    %v3932 = vld [vmem:[#allocation5 + $0x8d0] sm:$0xff]
    %v3933 = vld [vmem:[#allocation5 + $0x8d8] sm:$0xff]
    %v3934 = vld [vmem:[#allocation5 + $0x8e0] sm:$0xff]
    %v3935 = vld [vmem:[#allocation5 + $0x8e8] sm:$0xff]
    %v3936 = vld [vmem:[#allocation5 + $0x8f0] sm:$0xff]
    %v3937 = vld [vmem:[#allocation5 + $0x8f8] sm:$0xff]
    %v3938 = vld [vmem:[#allocation5 + $0x900] sm:$0xff]
    %v3939 = vld [vmem:[#allocation5 + $0x908] sm:$0xff]
    %v3940 = vld [vmem:[#allocation5 + $0x910] sm:$0xff]
    %v3941 = vld [vmem:[#allocation5 + $0x918] sm:$0xff]
    %v3942 = vld [vmem:[#allocation5 + $0x920] sm:$0xff]
    %v3943 = vld [vmem:[#allocation5 + $0x928] sm:$0xff]
    %v3944 = vld [vmem:[#allocation5 + $0x930] sm:$0xff]
    %v3945 = vld [vmem:[#allocation5 + $0x938] sm:$0xff]
    %v3946 = vld [vmem:[#allocation5 + $0x940] sm:$0xff]
    %v3947 = vld [vmem:[#allocation5 + $0x948] sm:$0xff]
    %v3948 = vld [vmem:[#allocation5 + $0x950] sm:$0xff]
    %v3949 = vld [vmem:[#allocation5 + $0x958] sm:$0xff]
    %v3950 = vld [vmem:[#allocation5 + $0x960] sm:$0xff]
    %v3951 = vld [vmem:[#allocation5 + $0x968] sm:$0xff]
    %v3952 = vld [vmem:[#allocation5 + $0x970] sm:$0xff]
    %v3953 = vld [vmem:[#allocation5 + $0x978] sm:$0xff]
    %v3954 = vld [vmem:[#allocation5 + $0x980] sm:$0xff]
    %v3955 = vld [vmem:[#allocation5 + $0x988] sm:$0xff]
    %v3956 = vld [vmem:[#allocation5 + $0x990] sm:$0xff]
    %v3957 = vld [vmem:[#allocation5 + $0x998] sm:$0xff]
    %v3958 = vld [vmem:[#allocation5 + $0x9a0] sm:$0xff]
    %v3959 = vld [vmem:[#allocation5 + $0x9a8] sm:$0xff]
    %v3960 = vld [vmem:[#allocation5 + $0x9b0] sm:$0xff]
    %v3961 = vld [vmem:[#allocation5 + $0x9b8] sm:$0xff]
    %v3962 = vld [vmem:[#allocation5 + $0x9c0] sm:$0xff]
    %v3963 = vld [vmem:[#allocation5 + $0x9c8] sm:$0xff]
    %v3964 = vld [vmem:[#allocation5 + $0x9d0] sm:$0xff]
    %v3965 = vld [vmem:[#allocation5 + $0x9d8] sm:$0xff]
    %v3966 = vld [vmem:[#allocation5 + $0x9e0] sm:$0xff]
    %v3967 = vld [vmem:[#allocation5 + $0x9e8] sm:$0xff]
    %v3968 = vld [vmem:[#allocation5 + $0x9f0] sm:$0xff]
    %v3969 = vld [vmem:[#allocation5 + $0x9f8] sm:$0xff]
    %3970 = vmatprep.subr.bf16.mxu0 %v3811
    %3971 = vmatpush1.bf16.msra.mxu0 %v3810
    %3972 = vmatprep.subr.bf16.mxu0 %v3821
    %3973 = vmatpush1.bf16.msra.mxu0 %v3820
    %3974 = vmatprep.subr.bf16.mxu0 %v3831
    %3975 = vmatpush1.bf16.msra.mxu0 %v3830
    %3976 = vmatprep.subr.bf16.mxu0 %v3841
    %3977 = vmatpush1.bf16.msra.mxu0 %v3840
    %3978 = vmatprep.subr.bf16.mxu0 %v3851
    %3979 = vmatpush1.bf16.msra.mxu0 %v3850
    %3980 = vmatprep.subr.bf16.mxu0 %v3861
    %3981 = vmatpush1.bf16.msra.mxu0 %v3860
    %3982 = vmatprep.subr.bf16.mxu0 %v3871
    %3983 = vmatpush1.bf16.msra.mxu0 %v3870
    %3984 = vmatprep.subr.bf16.mxu0 %v3881
    %3985 = vmatpush1.bf16.msra.mxu0 %v3880
    %3986 = vmatprep.subr.bf16.mxu0 %v3891
    %3987 = vmatpush1.bf16.msra.mxu0 %v3890
    %3988 = vmatprep.subr.bf16.mxu0 %v3901
    %3989 = vmatpush1.bf16.msra.mxu0 %v3900
    %3990 = vmatprep.subr.bf16.mxu0 %v3911
    %3991 = vmatpush1.bf16.msra.mxu0 %v3910
    %3992 = vmatprep.subr.bf16.mxu0 %v3921
    %3993 = vmatpush1.bf16.msra.mxu0 %v3920
    %3994 = vmatprep.subr.bf16.mxu0 %v3931
    %3995 = vmatpush1.bf16.msra.mxu0 %v3930
    %3996 = vmatprep.subr.bf16.mxu0 %v3941
    %3997 = vmatpush1.bf16.msra.mxu0 %v3940
    %3998 = vmatprep.subr.bf16.mxu0 %v3951
    %3999 = vmatpush1.bf16.msra.mxu0 %v3950
    %4000 = vmatprep.subr.bf16.mxu0 %v3961
    %4001 = vmatpush1.bf16.msra.mxu0 %v3960
    %4002 = vmatprep.mubr.bf16.mxu0 %v2829
    %4003 = vmatmul.mubr.bf16.gmra.mrb[0].mxu0 %v2828
    %v4004 = vpop.f32.mrb[0].mxu0
    %v4005 = vadd.f32 0.0, %v4004
    %v4006 = vpop.f32.mrb[0].mxu0
    %v4007 = vadd.f32 0.0, %v4006
    %v4008 = vpop.f32.mrb[0].mxu0
    %v4009 = vpop.f32.mrb[0].mxu0
    %4010 = vdwg.mxu0
    %4011 = vmatprep.subr.bf16.mxu0 %v3813
    %4012 = vmatpush1.bf16.msra.mxu0 %v3812
    %4013 = vmatprep.subr.bf16.mxu0 %v3823
    %4014 = vmatpush1.bf16.msra.mxu0 %v3822
    %4015 = vmatprep.subr.bf16.mxu0 %v3833
    %4016 = vmatpush1.bf16.msra.mxu0 %v3832
    %4017 = vmatprep.subr.bf16.mxu0 %v3843
    %4018 = vmatpush1.bf16.msra.mxu0 %v3842
    %4019 = vmatprep.subr.bf16.mxu0 %v3853
    %4020 = vmatpush1.bf16.msra.mxu0 %v3852
    %4021 = vmatprep.subr.bf16.mxu0 %v3863
    %4022 = vmatpush1.bf16.msra.mxu0 %v3862
    %4023 = vmatprep.subr.bf16.mxu0 %v3873
    %4024 = vmatpush1.bf16.msra.mxu0 %v3872
    %4025 = vmatprep.subr.bf16.mxu0 %v3883
    %4026 = vmatpush1.bf16.msra.mxu0 %v3882
    %4027 = vmatprep.subr.bf16.mxu0 %v3893
    %4028 = vmatpush1.bf16.msra.mxu0 %v3892
    %4029 = vmatprep.subr.bf16.mxu0 %v3903
    %4030 = vmatpush1.bf16.msra.mxu0 %v3902
    %4031 = vmatprep.subr.bf16.mxu0 %v3913
    %4032 = vmatpush1.bf16.msra.mxu0 %v3912
    %4033 = vmatprep.subr.bf16.mxu0 %v3923
    %4034 = vmatpush1.bf16.msra.mxu0 %v3922
    %4035 = vmatprep.subr.bf16.mxu0 %v3933
    %4036 = vmatpush1.bf16.msra.mxu0 %v3932
    %4037 = vmatprep.subr.bf16.mxu0 %v3943
    %4038 = vmatpush1.bf16.msra.mxu0 %v3942
    %4039 = vmatprep.subr.bf16.mxu0 %v3953
    %4040 = vmatpush1.bf16.msra.mxu0 %v3952
    %4041 = vmatprep.subr.bf16.mxu0 %v3963
    %4042 = vmatpush1.bf16.msra.mxu0 %v3962
    %4043 = vmatprep.mubr.bf16.mxu0 %v2829
    %4044 = vmatmul.mubr.bf16.gmra.mrb[0].mxu0 %v2828
    %v4045 = vpop.f32.mrb[0].mxu0
    %v4046 = vadd.f32 0.0, %v4045
    %v4047 = vpop.f32.mrb[0].mxu0
    %v4048 = vadd.f32 0.0, %v4047
    %v4049 = vpop.f32.mrb[0].mxu0
    %v4050 = vpop.f32.mrb[0].mxu0
    %4051 = vdwg.mxu0
    %4052 = vmatprep.subr.bf16.mxu0 %v3815
    %4053 = vmatpush1.bf16.msra.mxu0 %v3814
    %4054 = vmatprep.subr.bf16.mxu0 %v3825
    %4055 = vmatpush1.bf16.msra.mxu0 %v3824
    %4056 = vmatprep.subr.bf16.mxu0 %v3835
    %4057 = vmatpush1.bf16.msra.mxu0 %v3834
    %4058 = vmatprep.subr.bf16.mxu0 %v3845
    %4059 = vmatpush1.bf16.msra.mxu0 %v3844
    %4060 = vmatprep.subr.bf16.mxu0 %v3855
    %4061 = vmatpush1.bf16.msra.mxu0 %v3854
    %4062 = vmatprep.subr.bf16.mxu0 %v3865
    %4063 = vmatpush1.bf16.msra.mxu0 %v3864
    %4064 = vmatprep.subr.bf16.mxu0 %v3875
    %4065 = vmatpush1.bf16.msra.mxu0 %v3874
    %4066 = vmatprep.subr.bf16.mxu0 %v3885
    %4067 = vmatpush1.bf16.msra.mxu0 %v3884
    %4068 = vmatprep.subr.bf16.mxu0 %v3895
    %4069 = vmatpush1.bf16.msra.mxu0 %v3894
    %4070 = vmatprep.subr.bf16.mxu0 %v3905
    %4071 = vmatpush1.bf16.msra.mxu0 %v3904
    %4072 = vmatprep.subr.bf16.mxu0 %v3915
    %4073 = vmatpush1.bf16.msra.mxu0 %v3914
    %4074 = vmatprep.subr.bf16.mxu0 %v3925
    %4075 = vmatpush1.bf16.msra.mxu0 %v3924
    %4076 = vmatprep.subr.bf16.mxu0 %v3935
    %4077 = vmatpush1.bf16.msra.mxu0 %v3934
    %4078 = vmatprep.subr.bf16.mxu0 %v3945
    %4079 = vmatpush1.bf16.msra.mxu0 %v3944
    %4080 = vmatprep.subr.bf16.mxu0 %v3955
    %4081 = vmatpush1.bf16.msra.mxu0 %v3954
    %4082 = vmatprep.subr.bf16.mxu0 %v3965
    %4083 = vmatpush1.bf16.msra.mxu0 %v3964
    %4084 = vmatprep.mubr.bf16.mxu0 %v2829
    %4085 = vmatmul.mubr.bf16.gmra.mrb[0].mxu0 %v2828
    %v4086 = vpop.f32.mrb[0].mxu0
    %v4087 = vadd.f32 0.0, %v4086
    %v4088 = vpop.f32.mrb[0].mxu0
    %v4089 = vadd.f32 0.0, %v4088
    %v4090 = vpop.f32.mrb[0].mxu0
    %v4091 = vpop.f32.mrb[0].mxu0
    %4092 = vdwg.mxu0
    %4093 = vmatprep.subr.bf16.mxu0 %v3817
    %4094 = vmatpush1.bf16.msra.mxu0 %v3816
    %4095 = vmatprep.subr.bf16.mxu0 %v3827
    %4096 = vmatpush1.bf16.msra.mxu0 %v3826
    %4097 = vmatprep.subr.bf16.mxu0 %v3837
    %4098 = vmatpush1.bf16.msra.mxu0 %v3836
    %4099 = vmatprep.subr.bf16.mxu0 %v3847
    %4100 = vmatpush1.bf16.msra.mxu0 %v3846
    %4101 = vmatprep.subr.bf16.mxu0 %v3857
    %4102 = vmatpush1.bf16.msra.mxu0 %v3856
    %4103 = vmatprep.subr.bf16.mxu0 %v3867
    %4104 = vmatpush1.bf16.msra.mxu0 %v3866
    %4105 = vmatprep.subr.bf16.mxu0 %v3877
    %4106 = vmatpush1.bf16.msra.mxu0 %v3876
    %4107 = vmatprep.subr.bf16.mxu0 %v3887
    %4108 = vmatpush1.bf16.msra.mxu0 %v3886
    %4109 = vmatprep.subr.bf16.mxu0 %v3897
    %4110 = vmatpush1.bf16.msra.mxu0 %v3896
    %4111 = vmatprep.subr.bf16.mxu0 %v3907
    %4112 = vmatpush1.bf16.msra.mxu0 %v3906
    %4113 = vmatprep.subr.bf16.mxu0 %v3917
    %4114 = vmatpush1.bf16.msra.mxu0 %v3916
    %4115 = vmatprep.subr.bf16.mxu0 %v3927
    %4116 = vmatpush1.bf16.msra.mxu0 %v3926
    %4117 = vmatprep.subr.bf16.mxu0 %v3937
    %4118 = vmatpush1.bf16.msra.mxu0 %v3936
    %4119 = vmatprep.subr.bf16.mxu0 %v3947
    %4120 = vmatpush1.bf16.msra.mxu0 %v3946
    %4121 = vmatprep.subr.bf16.mxu0 %v3957
    %4122 = vmatpush1.bf16.msra.mxu0 %v3956
    %4123 = vmatprep.subr.bf16.mxu0 %v3967
    %4124 = vmatpush1.bf16.msra.mxu0 %v3966
    %4125 = vmatprep.mubr.bf16.mxu0 %v2829
    %4126 = vmatmul.mubr.bf16.gmra.mrb[0].mxu0 %v2828
    %v4127 = vpop.f32.mrb[0].mxu0
    %v4128 = vadd.f32 0.0, %v4127
    %v4129 = vpop.f32.mrb[0].mxu0
    %v4130 = vadd.f32 0.0, %v4129
    %v4131 = vpop.f32.mrb[0].mxu0
    %v4132 = vpop.f32.mrb[0].mxu0
    %4133 = vdwg.mxu0
    %4134 = vmatprep.subr.bf16.mxu0 %v3819
    %4135 = vmatpush1.bf16.msra.mxu0 %v3818
    %4136 = vmatprep.subr.bf16.mxu0 %v3829
    %4137 = vmatpush1.bf16.msra.mxu0 %v3828
    %4138 = vmatprep.subr.bf16.mxu0 %v3839
    %4139 = vmatpush1.bf16.msra.mxu0 %v3838
    %4140 = vmatprep.subr.bf16.mxu0 %v3849
    %4141 = vmatpush1.bf16.msra.mxu0 %v3848
    %4142 = vmatprep.subr.bf16.mxu0 %v3859
    %4143 = vmatpush1.bf16.msra.mxu0 %v3858
    %4144 = vmatprep.subr.bf16.mxu0 %v3869
    %4145 = vmatpush1.bf16.msra.mxu0 %v3868
    %4146 = vmatprep.subr.bf16.mxu0 %v3879
    %4147 = vmatpush1.bf16.msra.mxu0 %v3878
    %4148 = vmatprep.subr.bf16.mxu0 %v3889
    %4149 = vmatpush1.bf16.msra.mxu0 %v3888
    %4150 = vmatprep.subr.bf16.mxu0 %v3899
    %4151 = vmatpush1.bf16.msra.mxu0 %v3898
    %4152 = vmatprep.subr.bf16.mxu0 %v3909
    %4153 = vmatpush1.bf16.msra.mxu0 %v3908
    %4154 = vmatprep.subr.bf16.mxu0 %v3919
    %4155 = vmatpush1.bf16.msra.mxu0 %v3918
    %4156 = vmatprep.subr.bf16.mxu0 %v3929
    %4157 = vmatpush1.bf16.msra.mxu0 %v3928
    %4158 = vmatprep.subr.bf16.mxu0 %v3939
    %4159 = vmatpush1.bf16.msra.mxu0 %v3938
    %4160 = vmatprep.subr.bf16.mxu0 %v3949
    %4161 = vmatpush1.bf16.msra.mxu0 %v3948
    %4162 = vmatprep.subr.bf16.mxu0 %v3959
    %4163 = vmatpush1.bf16.msra.mxu0 %v3958
    %4164 = vmatprep.subr.bf16.mxu0 %v3969
    %4165 = vmatpush1.bf16.msra.mxu0 %v3968
    %4166 = vmatprep.mubr.bf16.mxu0 %v2829
    %4167 = vmatmul.mubr.bf16.gmra.mrb[0].mxu0 %v2828
    %v4168 = vpop.f32.mrb[0].mxu0
    %v4169 = vadd.f32 0.0, %v4168
    %v4170 = vpop.f32.mrb[0].mxu0
    %v4171 = vadd.f32 0.0, %v4170
    %v4172 = vpop.f32.mrb[0].mxu0
    %v4173 = vpop.f32.mrb[0].mxu0
    %4174 = vdwg.mxu0
    %4175 = vmatprep.subr.bf16.mxu0 %v3243
    %4176 = vmatpush1.bf16.msra.mxu0 %v3242
    %4177 = vmatprep.subr.bf16.mxu0 %v3253
    %4178 = vmatpush1.bf16.msra.mxu0 %v3252
    %4179 = vmatprep.subr.bf16.mxu0 %v3263
    %4180 = vmatpush1.bf16.msra.mxu0 %v3262
    %4181 = vmatprep.subr.bf16.mxu0 %v3273
    %4182 = vmatpush1.bf16.msra.mxu0 %v3272
    %4183 = vmatprep.subr.bf16.mxu0 %v3283
    %4184 = vmatpush1.bf16.msra.mxu0 %v3282
    %4185 = vmatprep.subr.bf16.mxu0 %v3293
    %4186 = vmatpush1.bf16.msra.mxu0 %v3292
    %4187 = vmatprep.subr.bf16.mxu0 %v3303
    %4188 = vmatpush1.bf16.msra.mxu0 %v3302
    %4189 = vmatprep.subr.bf16.mxu0 %v3313
    %4190 = vmatpush1.bf16.msra.mxu0 %v3312
    %4191 = vmatprep.subr.bf16.mxu0 %v3323
    %4192 = vmatpush1.bf16.msra.mxu0 %v3322
    %4193 = vmatprep.subr.bf16.mxu0 %v3333
    %4194 = vmatpush1.bf16.msra.mxu0 %v3332
    %4195 = vmatprep.subr.bf16.mxu0 %v3343
    %4196 = vmatpush1.bf16.msra.mxu0 %v3342
    %4197 = vmatprep.subr.bf16.mxu0 %v3353
    %4198 = vmatpush1.bf16.msra.mxu0 %v3352
    %4199 = vmatprep.subr.bf16.mxu0 %v3363
    %4200 = vmatpush1.bf16.msra.mxu0 %v3362
    %4201 = vmatprep.subr.bf16.mxu0 %v3373
    %4202 = vmatpush1.bf16.msra.mxu0 %v3372
    %4203 = vmatprep.subr.bf16.mxu0 %v3383
    %4204 = vmatpush1.bf16.msra.mxu0 %v3382
    %4205 = vmatprep.subr.bf16.mxu0 %v3393
    %4206 = vmatpush1.bf16.msra.mxu0 %v3392
    %4207 = vmatprep.mubr.bf16.mxu0 %v2827
    %4208 = vmatmul.mubr.bf16.gmra.mrb[0].mxu0 %v2826
    %v4209 = vpop.f32.mrb[0].mxu0
    %v4210 = vadd.f32 %v4005, %v4209
    %v4211 = vpop.f32.mrb[0].mxu0
    %v4212 = vadd.f32 %v4007, %v4211
    %v4213 = vpop.f32.mrb[0].mxu0
    %v4214 = vpop.f32.mrb[0].mxu0
    %4215 = vdwg.mxu0
    %4216 = vmatprep.subr.bf16.mxu0 %v3245
    %4217 = vmatpush1.bf16.msra.mxu0 %v3244
    %4218 = vmatprep.subr.bf16.mxu0 %v3255
    %4219 = vmatpush1.bf16.msra.mxu0 %v3254
    %4220 = vmatprep.subr.bf16.mxu0 %v3265
    %4221 = vmatpush1.bf16.msra.mxu0 %v3264
    %4222 = vmatprep.subr.bf16.mxu0 %v3275
    %4223 = vmatpush1.bf16.msra.mxu0 %v3274
    %4224 = vmatprep.subr.bf16.mxu0 %v3285
    %4225 = vmatpush1.bf16.msra.mxu0 %v3284
    %4226 = vmatprep.subr.bf16.mxu0 %v3295
    %4227 = vmatpush1.bf16.msra.mxu0 %v3294
    %4228 = vmatprep.subr.bf16.mxu0 %v3305
    %4229 = vmatpush1.bf16.msra.mxu0 %v3304
    %4230 = vmatprep.subr.bf16.mxu0 %v3315
    %4231 = vmatpush1.bf16.msra.mxu0 %v3314
    %4232 = vmatprep.subr.bf16.mxu0 %v3325
    %4233 = vmatpush1.bf16.msra.mxu0 %v3324
    %4234 = vmatprep.subr.bf16.mxu0 %v3335
    %4235 = vmatpush1.bf16.msra.mxu0 %v3334
    %4236 = vmatprep.subr.bf16.mxu0 %v3345
    %4237 = vmatpush1.bf16.msra.mxu0 %v3344
    %4238 = vmatprep.subr.bf16.mxu0 %v3355
    %4239 = vmatpush1.bf16.msra.mxu0 %v3354
    %4240 = vmatprep.subr.bf16.mxu0 %v3365
    %4241 = vmatpush1.bf16.msra.mxu0 %v3364
    %4242 = vmatprep.subr.bf16.mxu0 %v3375
    %4243 = vmatpush1.bf16.msra.mxu0 %v3374
    %4244 = vmatprep.subr.bf16.mxu0 %v3385
    %4245 = vmatpush1.bf16.msra.mxu0 %v3384
    %4246 = vmatprep.subr.bf16.mxu0 %v3395
    %4247 = vmatpush1.bf16.msra.mxu0 %v3394
    %4248 = vmatprep.mubr.bf16.mxu0 %v2827
    %4249 = vmatmul.mubr.bf16.gmra.mrb[0].mxu0 %v2826
    %v4250 = vpop.f32.mrb[0].mxu0
    %v4251 = vadd.f32 %v4046, %v4250
    %v4252 = vpop.f32.mrb[0].mxu0
    %v4253 = vadd.f32 %v4048, %v4252
    %v4254 = vpop.f32.mrb[0].mxu0
    %v4255 = vpop.f32.mrb[0].mxu0
    %4256 = vdwg.mxu0
    %4257 = vmatprep.subr.bf16.mxu0 %v3247
    %4258 = vmatpush1.bf16.msra.mxu0 %v3246
    %4259 = vmatprep.subr.bf16.mxu0 %v3257
    %4260 = vmatpush1.bf16.msra.mxu0 %v3256
    %4261 = vmatprep.subr.bf16.mxu0 %v3267
    %4262 = vmatpush1.bf16.msra.mxu0 %v3266
    %4263 = vmatprep.subr.bf16.mxu0 %v3277
    %4264 = vmatpush1.bf16.msra.mxu0 %v3276
    %4265 = vmatprep.subr.bf16.mxu0 %v3287
    %4266 = vmatpush1.bf16.msra.mxu0 %v3286
    %4267 = vmatprep.subr.bf16.mxu0 %v3297
    %4268 = vmatpush1.bf16.msra.mxu0 %v3296
    %4269 = vmatprep.subr.bf16.mxu0 %v3307
    %4270 = vmatpush1.bf16.msra.mxu0 %v3306
    %4271 = vmatprep.subr.bf16.mxu0 %v3317
    %4272 = vmatpush1.bf16.msra.mxu0 %v3316
    %4273 = vmatprep.subr.bf16.mxu0 %v3327
    %4274 = vmatpush1.bf16.msra.mxu0 %v3326
    %4275 = vmatprep.subr.bf16.mxu0 %v3337
    %4276 = vmatpush1.bf16.msra.mxu0 %v3336
    %4277 = vmatprep.subr.bf16.mxu0 %v3347
    %4278 = vmatpush1.bf16.msra.mxu0 %v3346
    %4279 = vmatprep.subr.bf16.mxu0 %v3357
    %4280 = vmatpush1.bf16.msra.mxu0 %v3356
    %4281 = vmatprep.subr.bf16.mxu0 %v3367
    %4282 = vmatpush1.bf16.msra.mxu0 %v3366
    %4283 = vmatprep.subr.bf16.mxu0 %v3377
    %4284 = vmatpush1.bf16.msra.mxu0 %v3376
    %4285 = vmatprep.subr.bf16.mxu0 %v3387
    %4286 = vmatpush1.bf16.msra.mxu0 %v3386
    %4287 = vmatprep.subr.bf16.mxu0 %v3397
    %4288 = vmatpush1.bf16.msra.mxu0 %v3396
    %4289 = vmatprep.mubr.bf16.mxu0 %v2827
    %4290 = vmatmul.mubr.bf16.gmra.mrb[0].mxu0 %v2826
    %v4291 = vpop.f32.mrb[0].mxu0
    %v4292 = vadd.f32 %v4087, %v4291
    %v4293 = vpop.f32.mrb[0].mxu0
    %v4294 = vadd.f32 %v4089, %v4293
    %v4295 = vpop.f32.mrb[0].mxu0
    %v4296 = vpop.f32.mrb[0].mxu0
    %4297 = vdwg.mxu0
    %4298 = vmatprep.subr.bf16.mxu0 %v3249
    %4299 = vmatpush1.bf16.msra.mxu0 %v3248
    %4300 = vmatprep.subr.bf16.mxu0 %v3259
    %4301 = vmatpush1.bf16.msra.mxu0 %v3258
    %4302 = vmatprep.subr.bf16.mxu0 %v3269
    %4303 = vmatpush1.bf16.msra.mxu0 %v3268
    %4304 = vmatprep.subr.bf16.mxu0 %v3279
    %4305 = vmatpush1.bf16.msra.mxu0 %v3278
    %4306 = vmatprep.subr.bf16.mxu0 %v3289
    %4307 = vmatpush1.bf16.msra.mxu0 %v3288
    %4308 = vmatprep.subr.bf16.mxu0 %v3299
    %4309 = vmatpush1.bf16.msra.mxu0 %v3298
    %4310 = vmatprep.subr.bf16.mxu0 %v3309
    %4311 = vmatpush1.bf16.msra.mxu0 %v3308
    %4312 = vmatprep.subr.bf16.mxu0 %v3319
    %4313 = vmatpush1.bf16.msra.mxu0 %v3318
    %4314 = vmatprep.subr.bf16.mxu0 %v3329
    %4315 = vmatpush1.bf16.msra.mxu0 %v3328
    %4316 = vmatprep.subr.bf16.mxu0 %v3339
    %4317 = vmatpush1.bf16.msra.mxu0 %v3338
    %4318 = vmatprep.subr.bf16.mxu0 %v3349
    %4319 = vmatpush1.bf16.msra.mxu0 %v3348
    %4320 = vmatprep.subr.bf16.mxu0 %v3359
    %4321 = vmatpush1.bf16.msra.mxu0 %v3358
    %4322 = vmatprep.subr.bf16.mxu0 %v3369
    %4323 = vmatpush1.bf16.msra.mxu0 %v3368
    %4324 = vmatprep.subr.bf16.mxu0 %v3379
    %4325 = vmatpush1.bf16.msra.mxu0 %v3378
    %4326 = vmatprep.subr.bf16.mxu0 %v3389
    %4327 = vmatpush1.bf16.msra.mxu0 %v3388
    %4328 = vmatprep.subr.bf16.mxu0 %v3399
    %4329 = vmatpush1.bf16.msra.mxu0 %v3398
    %4330 = vmatprep.mubr.bf16.mxu0 %v2827
    %4331 = vmatmul.mubr.bf16.gmra.mrb[0].mxu0 %v2826
    %v4332 = vpop.f32.mrb[0].mxu0
    %v4333 = vadd.f32 %v4128, %v4332
    %v4334 = vpop.f32.mrb[0].mxu0
    %v4335 = vadd.f32 %v4130, %v4334
    %v4336 = vpop.f32.mrb[0].mxu0
    %v4337 = vpop.f32.mrb[0].mxu0
    %4338 = vdwg.mxu0
    %4339 = vmatprep.subr.bf16.mxu0 %v3251
    %4340 = vmatpush1.bf16.msra.mxu0 %v3250
    %4341 = vmatprep.subr.bf16.mxu0 %v3261
    %4342 = vmatpush1.bf16.msra.mxu0 %v3260
    %4343 = vmatprep.subr.bf16.mxu0 %v3271
    %4344 = vmatpush1.bf16.msra.mxu0 %v3270
    %4345 = vmatprep.subr.bf16.mxu0 %v3281
    %4346 = vmatpush1.bf16.msra.mxu0 %v3280
    %4347 = vmatprep.subr.bf16.mxu0 %v3291
    %4348 = vmatpush1.bf16.msra.mxu0 %v3290
    %4349 = vmatprep.subr.bf16.mxu0 %v3301
    %4350 = vmatpush1.bf16.msra.mxu0 %v3300
    %4351 = vmatprep.subr.bf16.mxu0 %v3311
    %4352 = vmatpush1.bf16.msra.mxu0 %v3310
    %4353 = vmatprep.subr.bf16.mxu0 %v3321
    %4354 = vmatpush1.bf16.msra.mxu0 %v3320
    %4355 = vmatprep.subr.bf16.mxu0 %v3331
    %4356 = vmatpush1.bf16.msra.mxu0 %v3330
    %4357 = vmatprep.subr.bf16.mxu0 %v3341
    %4358 = vmatpush1.bf16.msra.mxu0 %v3340
    %4359 = vmatprep.subr.bf16.mxu0 %v3351
    %4360 = vmatpush1.bf16.msra.mxu0 %v3350
    %4361 = vmatprep.subr.bf16.mxu0 %v3361
    %4362 = vmatpush1.bf16.msra.mxu0 %v3360
    %4363 = vmatprep.subr.bf16.mxu0 %v3371
    %4364 = vmatpush1.bf16.msra.mxu0 %v3370
    %4365 = vmatprep.subr.bf16.mxu0 %v3381
    %4366 = vmatpush1.bf16.msra.mxu0 %v3380
    %4367 = vmatprep.subr.bf16.mxu0 %v3391
    %4368 = vmatpush1.bf16.msra.mxu0 %v3390
    %4369 = vmatprep.subr.bf16.mxu0 %v3401
    %4370 = vmatpush1.bf16.msra.mxu0 %v3400
    %4371 = vmatprep.mubr.bf16.mxu0 %v2827
    %4372 = vmatmul.mubr.bf16.gmra.mrb[0].mxu0 %v2826
    %v4373 = vpop.f32.mrb[0].mxu0
    %v4374 = vadd.f32 %v4169, %v4373
    %v4375 = vpop.f32.mrb[0].mxu0
    %v4376 = vadd.f32 %v4171, %v4375
    %v4377 = vpop.f32.mrb[0].mxu0
    %v4378 = vpop.f32.mrb[0].mxu0
    %4379 = vdwg.mxu0
    // Predicated region
    $region150: #{_generator_pallas.1} parent=1 // pred_check
      %p4380 = pneg %p219
    $region151: #{_generator_pallas.1} parent=1 // pred_check_branch
      %4382 = sbr.rel (%p4380) target = $region153
    $region152: #{_generator_pallas.1} parent=1 // pred_region
      %s4383 = scalar_lea.sflag [#allocation6], 3
      %s4384 = smul.u32 2, 32
      %s4385 = smul.u32 %s4384, 10
      %s4386 = sshll.u32 %s4385, 4
      %4387 = dma.done %s4383, %s4386
      %v4388 = vld [vmem:[#allocation4 + $0x500] sm:$0xff]
      %v4389 = vld [vmem:[#allocation4 + $0x508] sm:$0xff]
      %v4390 = vld [vmem:[#allocation4 + $0x510] sm:$0xff]
      %v4391 = vld [vmem:[#allocation4 + $0x518] sm:$0xff]
      %v4392 = vld [vmem:[#allocation4 + $0x520] sm:$0xff]
      %v4393 = vld [vmem:[#allocation4 + $0x528] sm:$0xff]
      %v4394 = vld [vmem:[#allocation4 + $0x530] sm:$0xff]
      %v4395 = vld [vmem:[#allocation4 + $0x538] sm:$0xff]
      %v4396 = vld [vmem:[#allocation4 + $0x540] sm:$0xff]
      %v4397 = vld [vmem:[#allocation4 + $0x548] sm:$0xff]
      %v4398 = vld [vmem:[#allocation4 + $0x550] sm:$0xff]
      %v4399 = vld [vmem:[#allocation4 + $0x558] sm:$0xff]
      %v4400 = vld [vmem:[#allocation4 + $0x560] sm:$0xff]
      %v4401 = vld [vmem:[#allocation4 + $0x568] sm:$0xff]
      %v4402 = vld [vmem:[#allocation4 + $0x570] sm:$0xff]
      %v4403 = vld [vmem:[#allocation4 + $0x578] sm:$0xff]
      %v4404 = vld [vmem:[#allocation4 + $0x580] sm:$0xff]
      %v4405 = vld [vmem:[#allocation4 + $0x588] sm:$0xff]
      %v4406 = vld [vmem:[#allocation4 + $0x590] sm:$0xff]
      %v4407 = vld [vmem:[#allocation4 + $0x598] sm:$0xff]
      %v4408 = vld [vmem:[#allocation4 + $0x5a0] sm:$0xff]
      %v4409 = vld [vmem:[#allocation4 + $0x5a8] sm:$0xff]
      %v4410 = vld [vmem:[#allocation4 + $0x5b0] sm:$0xff]
      %v4411 = vld [vmem:[#allocation4 + $0x5b8] sm:$0xff]
      %v4412 = vld [vmem:[#allocation4 + $0x5c0] sm:$0xff]
      %v4413 = vld [vmem:[#allocation4 + $0x5c8] sm:$0xff]
      %v4414 = vld [vmem:[#allocation4 + $0x5d0] sm:$0xff]
      %v4415 = vld [vmem:[#allocation4 + $0x5d8] sm:$0xff]
      %v4416 = vld [vmem:[#allocation4 + $0x5e0] sm:$0xff]
      %v4417 = vld [vmem:[#allocation4 + $0x5e8] sm:$0xff]
      %v4418 = vld [vmem:[#allocation4 + $0x5f0] sm:$0xff]
      %v4419 = vld [vmem:[#allocation4 + $0x5f8] sm:$0xff]
      %v4420 = vld [vmem:[#allocation4 + $0x600] sm:$0xff]
      %v4421 = vld [vmem:[#allocation4 + $0x608] sm:$0xff]
      %v4422 = vld [vmem:[#allocation4 + $0x610] sm:$0xff]
      %v4423 = vld [vmem:[#allocation4 + $0x618] sm:$0xff]
      %v4424 = vld [vmem:[#allocation4 + $0x620] sm:$0xff]
      %v4425 = vld [vmem:[#allocation4 + $0x628] sm:$0xff]
      %v4426 = vld [vmem:[#allocation4 + $0x630] sm:$0xff]
      %v4427 = vld [vmem:[#allocation4 + $0x638] sm:$0xff]
      %v4428 = vld [vmem:[#allocation4 + $0x640] sm:$0xff]
      %v4429 = vld [vmem:[#allocation4 + $0x648] sm:$0xff]
      %v4430 = vld [vmem:[#allocation4 + $0x650] sm:$0xff]
      %v4431 = vld [vmem:[#allocation4 + $0x658] sm:$0xff]
      %v4432 = vld [vmem:[#allocation4 + $0x660] sm:$0xff]
      %v4433 = vld [vmem:[#allocation4 + $0x668] sm:$0xff]
      %v4434 = vld [vmem:[#allocation4 + $0x670] sm:$0xff]
      %v4435 = vld [vmem:[#allocation4 + $0x678] sm:$0xff]
      %v4436 = vld [vmem:[#allocation4 + $0x680] sm:$0xff]
      %v4437 = vld [vmem:[#allocation4 + $0x688] sm:$0xff]
      %v4438 = vld [vmem:[#allocation4 + $0x690] sm:$0xff]
      %v4439 = vld [vmem:[#allocation4 + $0x698] sm:$0xff]
      %v4440 = vld [vmem:[#allocation4 + $0x6a0] sm:$0xff]
      %v4441 = vld [vmem:[#allocation4 + $0x6a8] sm:$0xff]
      %v4442 = vld [vmem:[#allocation4 + $0x6b0] sm:$0xff]
      %v4443 = vld [vmem:[#allocation4 + $0x6b8] sm:$0xff]
      %v4444 = vld [vmem:[#allocation4 + $0x6c0] sm:$0xff]
      %v4445 = vld [vmem:[#allocation4 + $0x6c8] sm:$0xff]
      %v4446 = vld [vmem:[#allocation4 + $0x6d0] sm:$0xff]
      %v4447 = vld [vmem:[#allocation4 + $0x6d8] sm:$0xff]
      %v4448 = vld [vmem:[#allocation4 + $0x6e0] sm:$0xff]
      %v4449 = vld [vmem:[#allocation4 + $0x6e8] sm:$0xff]
      %v4450 = vld [vmem:[#allocation4 + $0x6f0] sm:$0xff]
      %v4451 = vld [vmem:[#allocation4 + $0x6f8] sm:$0xff]
      %v4452 = vld [vmem:[#allocation4 + $0x700] sm:$0xff]
      %v4453 = vld [vmem:[#allocation4 + $0x708] sm:$0xff]
      %v4454 = vld [vmem:[#allocation4 + $0x710] sm:$0xff]
      %v4455 = vld [vmem:[#allocation4 + $0x718] sm:$0xff]
      %v4456 = vld [vmem:[#allocation4 + $0x720] sm:$0xff]
      %v4457 = vld [vmem:[#allocation4 + $0x728] sm:$0xff]
      %v4458 = vld [vmem:[#allocation4 + $0x730] sm:$0xff]
      %v4459 = vld [vmem:[#allocation4 + $0x738] sm:$0xff]
      %v4460 = vld [vmem:[#allocation4 + $0x740] sm:$0xff]
      %v4461 = vld [vmem:[#allocation4 + $0x748] sm:$0xff]
      %v4462 = vld [vmem:[#allocation4 + $0x750] sm:$0xff]
      %v4463 = vld [vmem:[#allocation4 + $0x758] sm:$0xff]
      %v4464 = vld [vmem:[#allocation4 + $0x760] sm:$0xff]
      %v4465 = vld [vmem:[#allocation4 + $0x768] sm:$0xff]
      %v4466 = vld [vmem:[#allocation4 + $0x770] sm:$0xff]
      %v4467 = vld [vmem:[#allocation4 + $0x778] sm:$0xff]
      %v4468 = vunpack.c.l.s8.bf16 %v4388
      %v4469 = vunpack.c.l.s8.bf16 %v4389
      %v4470 = vunpack.c.l.s8.bf16 %v4390
      %v4471 = vunpack.c.l.s8.bf16 %v4391
      %v4472 = vunpack.c.l.s8.bf16 %v4392
      %v4473 = vunpack.c.l.s8.bf16 %v4393
      %v4474 = vunpack.c.l.s8.bf16 %v4394
      %v4475 = vunpack.c.l.s8.bf16 %v4395
      %v4476 = vunpack.c.l.s8.bf16 %v4396
      %v4477 = vunpack.c.l.s8.bf16 %v4397
      %v4478 = vunpack.c.h.s8.bf16 %v4388
      %v4479 = vunpack.c.h.s8.bf16 %v4389
      %v4480 = vunpack.c.h.s8.bf16 %v4390
      %v4481 = vunpack.c.h.s8.bf16 %v4391
      %v4482 = vunpack.c.h.s8.bf16 %v4392
      %v4483 = vunpack.c.h.s8.bf16 %v4393
      %v4484 = vunpack.c.h.s8.bf16 %v4394
      %v4485 = vunpack.c.h.s8.bf16 %v4395
      %v4486 = vunpack.c.h.s8.bf16 %v4396
      %v4487 = vunpack.c.h.s8.bf16 %v4397
      %v4488 = vunpack.c.l.s8.bf16 %v4398
      %v4489 = vunpack.c.l.s8.bf16 %v4399
      %v4490 = vunpack.c.l.s8.bf16 %v4400
      %v4491 = vunpack.c.l.s8.bf16 %v4401
      %v4492 = vunpack.c.l.s8.bf16 %v4402
      %v4493 = vunpack.c.l.s8.bf16 %v4403
      %v4494 = vunpack.c.l.s8.bf16 %v4404
      %v4495 = vunpack.c.l.s8.bf16 %v4405
      %v4496 = vunpack.c.l.s8.bf16 %v4406
      %v4497 = vunpack.c.l.s8.bf16 %v4407
      %v4498 = vunpack.c.h.s8.bf16 %v4398
      %v4499 = vunpack.c.h.s8.bf16 %v4399
      %v4500 = vunpack.c.h.s8.bf16 %v4400
      %v4501 = vunpack.c.h.s8.bf16 %v4401
      %v4502 = vunpack.c.h.s8.bf16 %v4402
      %v4503 = vunpack.c.h.s8.bf16 %v4403
      %v4504 = vunpack.c.h.s8.bf16 %v4404
      %v4505 = vunpack.c.h.s8.bf16 %v4405
      %v4506 = vunpack.c.h.s8.bf16 %v4406
      %v4507 = vunpack.c.h.s8.bf16 %v4407
      %v4508 = vunpack.c.l.s8.bf16 %v4408
      %v4509 = vunpack.c.l.s8.bf16 %v4409
      %v4510 = vunpack.c.l.s8.bf16 %v4410
      %v4511 = vunpack.c.l.s8.bf16 %v4411
      %v4512 = vunpack.c.l.s8.bf16 %v4412
      %v4513 = vunpack.c.l.s8.bf16 %v4413
      %v4514 = vunpack.c.l.s8.bf16 %v4414
      %v4515 = vunpack.c.l.s8.bf16 %v4415
      %v4516 = vunpack.c.l.s8.bf16 %v4416
      %v4517 = vunpack.c.l.s8.bf16 %v4417
      %v4518 = vunpack.c.h.s8.bf16 %v4408
      %v4519 = vunpack.c.h.s8.bf16 %v4409
      %v4520 = vunpack.c.h.s8.bf16 %v4410
      %v4521 = vunpack.c.h.s8.bf16 %v4411
      %v4522 = vunpack.c.h.s8.bf16 %v4412
      %v4523 = vunpack.c.h.s8.bf16 %v4413
      %v4524 = vunpack.c.h.s8.bf16 %v4414
      %v4525 = vunpack.c.h.s8.bf16 %v4415
      %v4526 = vunpack.c.h.s8.bf16 %v4416
      %v4527 = vunpack.c.h.s8.bf16 %v4417
      %v4528 = vunpack.c.l.s8.bf16 %v4418
      %v4529 = vunpack.c.l.s8.bf16 %v4419
      %v4530 = vunpack.c.l.s8.bf16 %v4420
      %v4531 = vunpack.c.l.s8.bf16 %v4421
      %v4532 = vunpack.c.l.s8.bf16 %v4422
      %v4533 = vunpack.c.l.s8.bf16 %v4423
      %v4534 = vunpack.c.l.s8.bf16 %v4424
      %v4535 = vunpack.c.l.s8.bf16 %v4425
      %v4536 = vunpack.c.l.s8.bf16 %v4426
      %v4537 = vunpack.c.l.s8.bf16 %v4427
      %v4538 = vunpack.c.h.s8.bf16 %v4418
      %v4539 = vunpack.c.h.s8.bf16 %v4419
      %v4540 = vunpack.c.h.s8.bf16 %v4420
      %v4541 = vunpack.c.h.s8.bf16 %v4421
      %v4542 = vunpack.c.h.s8.bf16 %v4422
      %v4543 = vunpack.c.h.s8.bf16 %v4423
      %v4544 = vunpack.c.h.s8.bf16 %v4424
      %v4545 = vunpack.c.h.s8.bf16 %v4425
      %v4546 = vunpack.c.h.s8.bf16 %v4426
      %v4547 = vunpack.c.h.s8.bf16 %v4427
      %v4548 = vunpack.c.l.s8.bf16 %v4428
      %v4549 = vunpack.c.l.s8.bf16 %v4429
      %v4550 = vunpack.c.l.s8.bf16 %v4430
      %v4551 = vunpack.c.l.s8.bf16 %v4431
      %v4552 = vunpack.c.l.s8.bf16 %v4432
      %v4553 = vunpack.c.l.s8.bf16 %v4433
      %v4554 = vunpack.c.l.s8.bf16 %v4434
      %v4555 = vunpack.c.l.s8.bf16 %v4435
      %v4556 = vunpack.c.l.s8.bf16 %v4436
      %v4557 = vunpack.c.l.s8.bf16 %v4437
      %v4558 = vunpack.c.h.s8.bf16 %v4428
      %v4559 = vunpack.c.h.s8.bf16 %v4429
      %v4560 = vunpack.c.h.s8.bf16 %v4430
      %v4561 = vunpack.c.h.s8.bf16 %v4431
      %v4562 = vunpack.c.h.s8.bf16 %v4432
      %v4563 = vunpack.c.h.s8.bf16 %v4433
      %v4564 = vunpack.c.h.s8.bf16 %v4434
      %v4565 = vunpack.c.h.s8.bf16 %v4435
      %v4566 = vunpack.c.h.s8.bf16 %v4436
      %v4567 = vunpack.c.h.s8.bf16 %v4437
      %v4568 = vunpack.c.l.s8.bf16 %v4438
      %v4569 = vunpack.c.l.s8.bf16 %v4439
      %v4570 = vunpack.c.l.s8.bf16 %v4440
      %v4571 = vunpack.c.l.s8.bf16 %v4441
      %v4572 = vunpack.c.l.s8.bf16 %v4442
      %v4573 = vunpack.c.l.s8.bf16 %v4443
      %v4574 = vunpack.c.l.s8.bf16 %v4444
      %v4575 = vunpack.c.l.s8.bf16 %v4445
      %v4576 = vunpack.c.l.s8.bf16 %v4446
      %v4577 = vunpack.c.l.s8.bf16 %v4447
      %v4578 = vunpack.c.h.s8.bf16 %v4438
      %v4579 = vunpack.c.h.s8.bf16 %v4439
      %v4580 = vunpack.c.h.s8.bf16 %v4440
      %v4581 = vunpack.c.h.s8.bf16 %v4441
      %v4582 = vunpack.c.h.s8.bf16 %v4442
      %v4583 = vunpack.c.h.s8.bf16 %v4443
      %v4584 = vunpack.c.h.s8.bf16 %v4444
      %v4585 = vunpack.c.h.s8.bf16 %v4445
      %v4586 = vunpack.c.h.s8.bf16 %v4446
      %v4587 = vunpack.c.h.s8.bf16 %v4447
      %v4588 = vunpack.c.l.s8.bf16 %v4448
      %v4589 = vunpack.c.l.s8.bf16 %v4449
      %v4590 = vunpack.c.l.s8.bf16 %v4450
      %v4591 = vunpack.c.l.s8.bf16 %v4451
      %v4592 = vunpack.c.l.s8.bf16 %v4452
      %v4593 = vunpack.c.l.s8.bf16 %v4453
      %v4594 = vunpack.c.l.s8.bf16 %v4454
      %v4595 = vunpack.c.l.s8.bf16 %v4455
      %v4596 = vunpack.c.l.s8.bf16 %v4456
      %v4597 = vunpack.c.l.s8.bf16 %v4457
      %v4598 = vunpack.c.h.s8.bf16 %v4448
      %v4599 = vunpack.c.h.s8.bf16 %v4449
      %v4600 = vunpack.c.h.s8.bf16 %v4450
      %v4601 = vunpack.c.h.s8.bf16 %v4451
      %v4602 = vunpack.c.h.s8.bf16 %v4452
      %v4603 = vunpack.c.h.s8.bf16 %v4453
      %v4604 = vunpack.c.h.s8.bf16 %v4454
      %v4605 = vunpack.c.h.s8.bf16 %v4455
      %v4606 = vunpack.c.h.s8.bf16 %v4456
      %v4607 = vunpack.c.h.s8.bf16 %v4457
      %v4608 = vunpack.c.l.s8.bf16 %v4458
      %v4609 = vunpack.c.l.s8.bf16 %v4459
      %v4610 = vunpack.c.l.s8.bf16 %v4460
      %v4611 = vunpack.c.l.s8.bf16 %v4461
      %v4612 = vunpack.c.l.s8.bf16 %v4462
      %v4613 = vunpack.c.l.s8.bf16 %v4463
      %v4614 = vunpack.c.l.s8.bf16 %v4464
      %v4615 = vunpack.c.l.s8.bf16 %v4465
      %v4616 = vunpack.c.l.s8.bf16 %v4466
      %v4617 = vunpack.c.l.s8.bf16 %v4467
      %v4618 = vunpack.c.h.s8.bf16 %v4458
      %v4619 = vunpack.c.h.s8.bf16 %v4459
      %v4620 = vunpack.c.h.s8.bf16 %v4460
      %v4621 = vunpack.c.h.s8.bf16 %v4461
      %v4622 = vunpack.c.h.s8.bf16 %v4462
      %v4623 = vunpack.c.h.s8.bf16 %v4463
      %v4624 = vunpack.c.h.s8.bf16 %v4464
      %v4625 = vunpack.c.h.s8.bf16 %v4465
      %v4626 = vunpack.c.h.s8.bf16 %v4466
      %v4627 = vunpack.c.h.s8.bf16 %v4467
      %4628 = vst [vmem:[#allocation5 + $0xa00] sm:$0xff] %v4468
      %4629 = vst [vmem:[#allocation5 + $0xa08] sm:$0xff] %v4469
      %4630 = vst [vmem:[#allocation5 + $0xa10] sm:$0xff] %v4470
      %4631 = vst [vmem:[#allocation5 + $0xa18] sm:$0xff] %v4471
      %4632 = vst [vmem:[#allocation5 + $0xa20] sm:$0xff] %v4472
      %4633 = vst [vmem:[#allocation5 + $0xa28] sm:$0xff] %v4473
      %4634 = vst [vmem:[#allocation5 + $0xa30] sm:$0xff] %v4474
      %4635 = vst [vmem:[#allocation5 + $0xa38] sm:$0xff] %v4475
      %4636 = vst [vmem:[#allocation5 + $0xa40] sm:$0xff] %v4476
      %4637 = vst [vmem:[#allocation5 + $0xa48] sm:$0xff] %v4477
      %4638 = vst [vmem:[#allocation5 + $0xa50] sm:$0xff] %v4478
      %4639 = vst [vmem:[#allocation5 + $0xa58] sm:$0xff] %v4479
      %4640 = vst [vmem:[#allocation5 + $0xa60] sm:$0xff] %v4480
      %4641 = vst [vmem:[#allocation5 + $0xa68] sm:$0xff] %v4481
      %4642 = vst [vmem:[#allocation5 + $0xa70] sm:$0xff] %v4482
      %4643 = vst [vmem:[#allocation5 + $0xa78] sm:$0xff] %v4483
      %4644 = vst [vmem:[#allocation5 + $0xa80] sm:$0xff] %v4484
      %4645 = vst [vmem:[#allocation5 + $0xa88] sm:$0xff] %v4485
      %4646 = vst [vmem:[#allocation5 + $0xa90] sm:$0xff] %v4486
      %4647 = vst [vmem:[#allocation5 + $0xa98] sm:$0xff] %v4487
      %4648 = vst [vmem:[#allocation5 + $0xaa0] sm:$0xff] %v4488
      %4649 = vst [vmem:[#allocation5 + $0xaa8] sm:$0xff] %v4489
      %4650 = vst [vmem:[#allocation5 + $0xab0] sm:$0xff] %v4490
      %4651 = vst [vmem:[#allocation5 + $0xab8] sm:$0xff] %v4491
      %4652 = vst [vmem:[#allocation5 + $0xac0] sm:$0xff] %v4492
      %4653 = vst [vmem:[#allocation5 + $0xac8] sm:$0xff] %v4493
      %4654 = vst [vmem:[#allocation5 + $0xad0] sm:$0xff] %v4494
      %4655 = vst [vmem:[#allocation5 + $0xad8] sm:$0xff] %v4495
      %4656 = vst [vmem:[#allocation5 + $0xae0] sm:$0xff] %v4496
      %4657 = vst [vmem:[#allocation5 + $0xae8] sm:$0xff] %v4497
      %4658 = vst [vmem:[#allocation5 + $0xaf0] sm:$0xff] %v4498
      %4659 = vst [vmem:[#allocation5 + $0xaf8] sm:$0xff] %v4499
      %4660 = vst [vmem:[#allocation5 + $0xb00] sm:$0xff] %v4500
      %4661 = vst [vmem:[#allocation5 + $0xb08] sm:$0xff] %v4501
      %4662 = vst [vmem:[#allocation5 + $0xb10] sm:$0xff] %v4502
      %4663 = vst [vmem:[#allocation5 + $0xb18] sm:$0xff] %v4503
      %4664 = vst [vmem:[#allocation5 + $0xb20] sm:$0xff] %v4504
      %4665 = vst [vmem:[#allocation5 + $0xb28] sm:$0xff] %v4505
      %4666 = vst [vmem:[#allocation5 + $0xb30] sm:$0xff] %v4506
      %4667 = vst [vmem:[#allocation5 + $0xb38] sm:$0xff] %v4507
      %4668 = vst [vmem:[#allocation5 + $0xb40] sm:$0xff] %v4508
      %4669 = vst [vmem:[#allocation5 + $0xb48] sm:$0xff] %v4509
      %4670 = vst [vmem:[#allocation5 + $0xb50] sm:$0xff] %v4510
      %4671 = vst [vmem:[#allocation5 + $0xb58] sm:$0xff] %v4511
      %4672 = vst [vmem:[#allocation5 + $0xb60] sm:$0xff] %v4512
      %4673 = vst [vmem:[#allocation5 + $0xb68] sm:$0xff] %v4513
      %4674 = vst [vmem:[#allocation5 + $0xb70] sm:$0xff] %v4514
      %4675 = vst [vmem:[#allocation5 + $0xb78] sm:$0xff] %v4515
      %4676 = vst [vmem:[#allocation5 + $0xb80] sm:$0xff] %v4516
      %4677 = vst [vmem:[#allocation5 + $0xb88] sm:$0xff] %v4517
      %4678 = vst [vmem:[#allocation5 + $0xb90] sm:$0xff] %v4518
      %4679 = vst [vmem:[#allocation5 + $0xb98] sm:$0xff] %v4519
      %4680 = vst [vmem:[#allocation5 + $0xba0] sm:$0xff] %v4520
      %4681 = vst [vmem:[#allocation5 + $0xba8] sm:$0xff] %v4521
      %4682 = vst [vmem:[#allocation5 + $0xbb0] sm:$0xff] %v4522
      %4683 = vst [vmem:[#allocation5 + $0xbb8] sm:$0xff] %v4523
      %4684 = vst [vmem:[#allocation5 + $0xbc0] sm:$0xff] %v4524
      %4685 = vst [vmem:[#allocation5 + $0xbc8] sm:$0xff] %v4525
      %4686 = vst [vmem:[#allocation5 + $0xbd0] sm:$0xff] %v4526
      %4687 = vst [vmem:[#allocation5 + $0xbd8] sm:$0xff] %v4527
      %4688 = vst [vmem:[#allocation5 + $0xbe0] sm:$0xff] %v4528
      %4689 = vst [vmem:[#allocation5 + $0xbe8] sm:$0xff] %v4529
      %4690 = vst [vmem:[#allocation5 + $0xbf0] sm:$0xff] %v4530
      %4691 = vst [vmem:[#allocation5 + $0xbf8] sm:$0xff] %v4531
      %4692 = vst [vmem:[#allocation5 + $0xc00] sm:$0xff] %v4532
      %4693 = vst [vmem:[#allocation5 + $0xc08] sm:$0xff] %v4533
      %4694 = vst [vmem:[#allocation5 + $0xc10] sm:$0xff] %v4534
      %4695 = vst [vmem:[#allocation5 + $0xc18] sm:$0xff] %v4535
      %4696 = vst [vmem:[#allocation5 + $0xc20] sm:$0xff] %v4536
      %4697 = vst [vmem:[#allocation5 + $0xc28] sm:$0xff] %v4537
      %4698 = vst [vmem:[#allocation5 + $0xc30] sm:$0xff] %v4538
      %4699 = vst [vmem:[#allocation5 + $0xc38] sm:$0xff] %v4539
      %4700 = vst [vmem:[#allocation5 + $0xc40] sm:$0xff] %v4540
      %4701 = vst [vmem:[#allocation5 + $0xc48] sm:$0xff] %v4541
      %4702 = vst [vmem:[#allocation5 + $0xc50] sm:$0xff] %v4542
      %4703 = vst [vmem:[#allocation5 + $0xc58] sm:$0xff] %v4543
      %4704 = vst [vmem:[#allocation5 + $0xc60] sm:$0xff] %v4544
      %4705 = vst [vmem:[#allocation5 + $0xc68] sm:$0xff] %v4545
      %4706 = vst [vmem:[#allocation5 + $0xc70] sm:$0xff] %v4546
      %4707 = vst [vmem:[#allocation5 + $0xc78] sm:$0xff] %v4547
      %4708 = vst [vmem:[#allocation5 + $0xc80] sm:$0xff] %v4548
      %4709 = vst [vmem:[#allocation5 + $0xc88] sm:$0xff] %v4549
      %4710 = vst [vmem:[#allocation5 + $0xc90] sm:$0xff] %v4550
      %4711 = vst [vmem:[#allocation5 + $0xc98] sm:$0xff] %v4551
      %4712 = vst [vmem:[#allocation5 + $0xca0] sm:$0xff] %v4552
      %4713 = vst [vmem:[#allocation5 + $0xca8] sm:$0xff] %v4553
      %4714 = vst [vmem:[#allocation5 + $0xcb0] sm:$0xff] %v4554
      %4715 = vst [vmem:[#allocation5 + $0xcb8] sm:$0xff] %v4555
      %4716 = vst [vmem:[#allocation5 + $0xcc0] sm:$0xff] %v4556
      %4717 = vst [vmem:[#allocation5 + $0xcc8] sm:$0xff] %v4557
      %4718 = vst [vmem:[#allocation5 + $0xcd0] sm:$0xff] %v4558
      %4719 = vst [vmem:[#allocation5 + $0xcd8] sm:$0xff] %v4559
      %4720 = vst [vmem:[#allocation5 + $0xce0] sm:$0xff] %v4560
      %4721 = vst [vmem:[#allocation5 + $0xce8] sm:$0xff] %v4561
      %4722 = vst [vmem:[#allocation5 + $0xcf0] sm:$0xff] %v4562
      %4723 = vst [vmem:[#allocation5 + $0xcf8] sm:$0xff] %v4563
      %4724 = vst [vmem:[#allocation5 + $0xd00] sm:$0xff] %v4564
      %4725 = vst [vmem:[#allocation5 + $0xd08] sm:$0xff] %v4565
      %4726 = vst [vmem:[#allocation5 + $0xd10] sm:$0xff] %v4566
      %4727 = vst [vmem:[#allocation5 + $0xd18] sm:$0xff] %v4567
      %4728 = vst [vmem:[#allocation5 + $0xd20] sm:$0xff] %v4568
      %4729 = vst [vmem:[#allocation5 + $0xd28] sm:$0xff] %v4569
      %4730 = vst [vmem:[#allocation5 + $0xd30] sm:$0xff] %v4570
      %4731 = vst [vmem:[#allocation5 + $0xd38] sm:$0xff] %v4571
      %4732 = vst [vmem:[#allocation5 + $0xd40] sm:$0xff] %v4572
      %4733 = vst [vmem:[#allocation5 + $0xd48] sm:$0xff] %v4573
      %4734 = vst [vmem:[#allocation5 + $0xd50] sm:$0xff] %v4574
      %4735 = vst [vmem:[#allocation5 + $0xd58] sm:$0xff] %v4575
      %4736 = vst [vmem:[#allocation5 + $0xd60] sm:$0xff] %v4576
      %4737 = vst [vmem:[#allocation5 + $0xd68] sm:$0xff] %v4577
      %4738 = vst [vmem:[#allocation5 + $0xd70] sm:$0xff] %v4578
      %4739 = vst [vmem:[#allocation5 + $0xd78] sm:$0xff] %v4579
      %4740 = vst [vmem:[#allocation5 + $0xd80] sm:$0xff] %v4580
      %4741 = vst [vmem:[#allocation5 + $0xd88] sm:$0xff] %v4581
      %4742 = vst [vmem:[#allocation5 + $0xd90] sm:$0xff] %v4582
      %4743 = vst [vmem:[#allocation5 + $0xd98] sm:$0xff] %v4583
      %4744 = vst [vmem:[#allocation5 + $0xda0] sm:$0xff] %v4584
      %4745 = vst [vmem:[#allocation5 + $0xda8] sm:$0xff] %v4585
      %4746 = vst [vmem:[#allocation5 + $0xdb0] sm:$0xff] %v4586
      %4747 = vst [vmem:[#allocation5 + $0xdb8] sm:$0xff] %v4587
      %4748 = vst [vmem:[#allocation5 + $0xdc0] sm:$0xff] %v4588
      %4749 = vst [vmem:[#allocation5 + $0xdc8] sm:$0xff] %v4589
      %4750 = vst [vmem:[#allocation5 + $0xdd0] sm:$0xff] %v4590
      %4751 = vst [vmem:[#allocation5 + $0xdd8] sm:$0xff] %v4591
      %4752 = vst [vmem:[#allocation5 + $0xde0] sm:$0xff] %v4592
      %4753 = vst [vmem:[#allocation5 + $0xde8] sm:$0xff] %v4593
      %4754 = vst [vmem:[#allocation5 + $0xdf0] sm:$0xff] %v4594
      %4755 = vst [vmem:[#allocation5 + $0xdf8] sm:$0xff] %v4595
      %4756 = vst [vmem:[#allocation5 + $0xe00] sm:$0xff] %v4596
      %4757 = vst [vmem:[#allocation5 + $0xe08] sm:$0xff] %v4597
      %4758 = vst [vmem:[#allocation5 + $0xe10] sm:$0xff] %v4598
      %4759 = vst [vmem:[#allocation5 + $0xe18] sm:$0xff] %v4599
      %4760 = vst [vmem:[#allocation5 + $0xe20] sm:$0xff] %v4600
      %4761 = vst [vmem:[#allocation5 + $0xe28] sm:$0xff] %v4601
      %4762 = vst [vmem:[#allocation5 + $0xe30] sm:$0xff] %v4602
      %4763 = vst [vmem:[#allocation5 + $0xe38] sm:$0xff] %v4603
      %4764 = vst [vmem:[#allocation5 + $0xe40] sm:$0xff] %v4604
      %4765 = vst [vmem:[#allocation5 + $0xe48] sm:$0xff] %v4605
      %4766 = vst [vmem:[#allocation5 + $0xe50] sm:$0xff] %v4606
      %4767 = vst [vmem:[#allocation5 + $0xe58] sm:$0xff] %v4607
      %4768 = vst [vmem:[#allocation5 + $0xe60] sm:$0xff] %v4608
      %4769 = vst [vmem:[#allocation5 + $0xe68] sm:$0xff] %v4609
      %4770 = vst [vmem:[#allocation5 + $0xe70] sm:$0xff] %v4610
      %4771 = vst [vmem:[#allocation5 + $0xe78] sm:$0xff] %v4611
      %4772 = vst [vmem:[#allocation5 + $0xe80] sm:$0xff] %v4612
      %4773 = vst [vmem:[#allocation5 + $0xe88] sm:$0xff] %v4613
      %4774 = vst [vmem:[#allocation5 + $0xe90] sm:$0xff] %v4614
      %4775 = vst [vmem:[#allocation5 + $0xe98] sm:$0xff] %v4615
      %4776 = vst [vmem:[#allocation5 + $0xea0] sm:$0xff] %v4616
      %4777 = vst [vmem:[#allocation5 + $0xea8] sm:$0xff] %v4617
      %4778 = vst [vmem:[#allocation5 + $0xeb0] sm:$0xff] %v4618
      %4779 = vst [vmem:[#allocation5 + $0xeb8] sm:$0xff] %v4619
      %4780 = vst [vmem:[#allocation5 + $0xec0] sm:$0xff] %v4620
      %4781 = vst [vmem:[#allocation5 + $0xec8] sm:$0xff] %v4621
      %4782 = vst [vmem:[#allocation5 + $0xed0] sm:$0xff] %v4622
      %4783 = vst [vmem:[#allocation5 + $0xed8] sm:$0xff] %v4623
      %4784 = vst [vmem:[#allocation5 + $0xee0] sm:$0xff] %v4624
      %4785 = vst [vmem:[#allocation5 + $0xee8] sm:$0xff] %v4625
      %4786 = vst [vmem:[#allocation5 + $0xef0] sm:$0xff] %v4626
      %4787 = vst [vmem:[#allocation5 + $0xef8] sm:$0xff] %v4627
    $region153: #{_generator_pallas.1} parent=1 // pred_fallthru
      _
    %v4788 = vld [vmem:[#allocation5 + $0xa00] sm:$0xff]
    %v4789 = vld [vmem:[#allocation5 + $0xa08] sm:$0xff]
    %v4790 = vld [vmem:[#allocation5 + $0xa10] sm:$0xff]
    %v4791 = vld [vmem:[#allocation5 + $0xa18] sm:$0xff]
    %v4792 = vld [vmem:[#allocation5 + $0xa20] sm:$0xff]
    %v4793 = vld [vmem:[#allocation5 + $0xa28] sm:$0xff]
    %v4794 = vld [vmem:[#allocation5 + $0xa30] sm:$0xff]
    %v4795 = vld [vmem:[#allocation5 + $0xa38] sm:$0xff]
    %v4796 = vld [vmem:[#allocation5 + $0xa40] sm:$0xff]
    %v4797 = vld [vmem:[#allocation5 + $0xa48] sm:$0xff]
    %v4798 = vld [vmem:[#allocation5 + $0xa50] sm:$0xff]
    %v4799 = vld [vmem:[#allocation5 + $0xa58] sm:$0xff]
    %v4800 = vld [vmem:[#allocation5 + $0xa60] sm:$0xff]
    %v4801 = vld [vmem:[#allocation5 + $0xa68] sm:$0xff]
    %v4802 = vld [vmem:[#allocation5 + $0xa70] sm:$0xff]
    %v4803 = vld [vmem:[#allocation5 + $0xa78] sm:$0xff]
    %v4804 = vld [vmem:[#allocation5 + $0xa80] sm:$0xff]
    %v4805 = vld [vmem:[#allocation5 + $0xa88] sm:$0xff]
    %v4806 = vld [vmem:[#allocation5 + $0xa90] sm:$0xff]
    %v4807 = vld [vmem:[#allocation5 + $0xa98] sm:$0xff]
    %v4808 = vld [vmem:[#allocation5 + $0xaa0] sm:$0xff]
    %v4809 = vld [vmem:[#allocation5 + $0xaa8] sm:$0xff]
    %v4810 = vld [vmem:[#allocation5 + $0xab0] sm:$0xff]
    %v4811 = vld [vmem:[#allocation5 + $0xab8] sm:$0xff]
    %v4812 = vld [vmem:[#allocation5 + $0xac0] sm:$0xff]
    %v4813 = vld [vmem:[#allocation5 + $0xac8] sm:$0xff]
    %v4814 = vld [vmem:[#allocation5 + $0xad0] sm:$0xff]
    %v4815 = vld [vmem:[#allocation5 + $0xad8] sm:$0xff]
    %v4816 = vld [vmem:[#allocation5 + $0xae0] sm:$0xff]
    %v4817 = vld [vmem:[#allocation5 + $0xae8] sm:$0xff]
    %v4818 = vld [vmem:[#allocation5 + $0xaf0] sm:$0xff]
    %v4819 = vld [vmem:[#allocation5 + $0xaf8] sm:$0xff]
    %v4820 = vld [vmem:[#allocation5 + $0xb00] sm:$0xff]
    %v4821 = vld [vmem:[#allocation5 + $0xb08] sm:$0xff]
    %v4822 = vld [vmem:[#allocation5 + $0xb10] sm:$0xff]
    %v4823 = vld [vmem:[#allocation5 + $0xb18] sm:$0xff]
    %v4824 = vld [vmem:[#allocation5 + $0xb20] sm:$0xff]
    %v4825 = vld [vmem:[#allocation5 + $0xb28] sm:$0xff]
    %v4826 = vld [vmem:[#allocation5 + $0xb30] sm:$0xff]
    %v4827 = vld [vmem:[#allocation5 + $0xb38] sm:$0xff]
    %v4828 = vld [vmem:[#allocation5 + $0xb40] sm:$0xff]
    %v4829 = vld [vmem:[#allocation5 + $0xb48] sm:$0xff]
    %v4830 = vld [vmem:[#allocation5 + $0xb50] sm:$0xff]
    %v4831 = vld [vmem:[#allocation5 + $0xb58] sm:$0xff]
    %v4832 = vld [vmem:[#allocation5 + $0xb60] sm:$0xff]
    %v4833 = vld [vmem:[#allocation5 + $0xb68] sm:$0xff]
    %v4834 = vld [vmem:[#allocation5 + $0xb70] sm:$0xff]
    %v4835 = vld [vmem:[#allocation5 + $0xb78] sm:$0xff]
    %v4836 = vld [vmem:[#allocation5 + $0xb80] sm:$0xff]
    %v4837 = vld [vmem:[#allocation5 + $0xb88] sm:$0xff]
    %v4838 = vld [vmem:[#allocation5 + $0xb90] sm:$0xff]
    %v4839 = vld [vmem:[#allocation5 + $0xb98] sm:$0xff]
    %v4840 = vld [vmem:[#allocation5 + $0xba0] sm:$0xff]
    %v4841 = vld [vmem:[#allocation5 + $0xba8] sm:$0xff]
    %v4842 = vld [vmem:[#allocation5 + $0xbb0] sm:$0xff]
    %v4843 = vld [vmem:[#allocation5 + $0xbb8] sm:$0xff]
    %v4844 = vld [vmem:[#allocation5 + $0xbc0] sm:$0xff]
    %v4845 = vld [vmem:[#allocation5 + $0xbc8] sm:$0xff]
    %v4846 = vld [vmem:[#allocation5 + $0xbd0] sm:$0xff]
    %v4847 = vld [vmem:[#allocation5 + $0xbd8] sm:$0xff]
    %v4848 = vld [vmem:[#allocation5 + $0xbe0] sm:$0xff]
    %v4849 = vld [vmem:[#allocation5 + $0xbe8] sm:$0xff]
    %v4850 = vld [vmem:[#allocation5 + $0xbf0] sm:$0xff]
    %v4851 = vld [vmem:[#allocation5 + $0xbf8] sm:$0xff]
    %v4852 = vld [vmem:[#allocation5 + $0xc00] sm:$0xff]
    %v4853 = vld [vmem:[#allocation5 + $0xc08] sm:$0xff]
    %v4854 = vld [vmem:[#allocation5 + $0xc10] sm:$0xff]
    %v4855 = vld [vmem:[#allocation5 + $0xc18] sm:$0xff]
    %v4856 = vld [vmem:[#allocation5 + $0xc20] sm:$0xff]
    %v4857 = vld [vmem:[#allocation5 + $0xc28] sm:$0xff]
    %v4858 = vld [vmem:[#allocation5 + $0xc30] sm:$0xff]
    %v4859 = vld [vmem:[#allocation5 + $0xc38] sm:$0xff]
    %v4860 = vld [vmem:[#allocation5 + $0xc40] sm:$0xff]
    %v4861 = vld [vmem:[#allocation5 + $0xc48] sm:$0xff]
    %v4862 = vld [vmem:[#allocation5 + $0xc50] sm:$0xff]
    %v4863 = vld [vmem:[#allocation5 + $0xc58] sm:$0xff]
    %v4864 = vld [vmem:[#allocation5 + $0xc60] sm:$0xff]
    %v4865 = vld [vmem:[#allocation5 + $0xc68] sm:$0xff]
    %v4866 = vld [vmem:[#allocation5 + $0xc70] sm:$0xff]
    %v4867 = vld [vmem:[#allocation5 + $0xc78] sm:$0xff]
    %v4868 = vld [vmem:[#allocation5 + $0xc80] sm:$0xff]
    %v4869 = vld [vmem:[#allocation5 + $0xc88] sm:$0xff]
    %v4870 = vld [vmem:[#allocation5 + $0xc90] sm:$0xff]
    %v4871 = vld [vmem:[#allocation5 + $0xc98] sm:$0xff]
    %v4872 = vld [vmem:[#allocation5 + $0xca0] sm:$0xff]
    %v4873 = vld [vmem:[#allocation5 + $0xca8] sm:$0xff]
    %v4874 = vld [vmem:[#allocation5 + $0xcb0] sm:$0xff]
    %v4875 = vld [vmem:[#allocation5 + $0xcb8] sm:$0xff]
    %v4876 = vld [vmem:[#allocation5 + $0xcc0] sm:$0xff]
    %v4877 = vld [vmem:[#allocation5 + $0xcc8] sm:$0xff]
    %v4878 = vld [vmem:[#allocation5 + $0xcd0] sm:$0xff]
    %v4879 = vld [vmem:[#allocation5 + $0xcd8] sm:$0xff]
    %v4880 = vld [vmem:[#allocation5 + $0xce0] sm:$0xff]
    %v4881 = vld [vmem:[#allocation5 + $0xce8] sm:$0xff]
    %v4882 = vld [vmem:[#allocation5 + $0xcf0] sm:$0xff]
    %v4883 = vld [vmem:[#allocation5 + $0xcf8] sm:$0xff]
    %v4884 = vld [vmem:[#allocation5 + $0xd00] sm:$0xff]
    %v4885 = vld [vmem:[#allocation5 + $0xd08] sm:$0xff]
    %v4886 = vld [vmem:[#allocation5 + $0xd10] sm:$0xff]
    %v4887 = vld [vmem:[#allocation5 + $0xd18] sm:$0xff]
    %v4888 = vld [vmem:[#allocation5 + $0xd20] sm:$0xff]
    %v4889 = vld [vmem:[#allocation5 + $0xd28] sm:$0xff]
    %v4890 = vld [vmem:[#allocation5 + $0xd30] sm:$0xff]
    %v4891 = vld [vmem:[#allocation5 + $0xd38] sm:$0xff]
    %v4892 = vld [vmem:[#allocation5 + $0xd40] sm:$0xff]
    %v4893 = vld [vmem:[#allocation5 + $0xd48] sm:$0xff]
    %v4894 = vld [vmem:[#allocation5 + $0xd50] sm:$0xff]
    %v4895 = vld [vmem:[#allocation5 + $0xd58] sm:$0xff]
    %v4896 = vld [vmem:[#allocation5 + $0xd60] sm:$0xff]
    %v4897 = vld [vmem:[#allocation5 + $0xd68] sm:$0xff]
    %v4898 = vld [vmem:[#allocation5 + $0xd70] sm:$0xff]
    %v4899 = vld [vmem:[#allocation5 + $0xd78] sm:$0xff]
    %v4900 = vld [vmem:[#allocation5 + $0xd80] sm:$0xff]
    %v4901 = vld [vmem:[#allocation5 + $0xd88] sm:$0xff]
    %v4902 = vld [vmem:[#allocation5 + $0xd90] sm:$0xff]
    %v4903 = vld [vmem:[#allocation5 + $0xd98] sm:$0xff]
    %v4904 = vld [vmem:[#allocation5 + $0xda0] sm:$0xff]
    %v4905 = vld [vmem:[#allocation5 + $0xda8] sm:$0xff]
    %v4906 = vld [vmem:[#allocation5 + $0xdb0] sm:$0xff]
    %v4907 = vld [vmem:[#allocation5 + $0xdb8] sm:$0xff]
    %v4908 = vld [vmem:[#allocation5 + $0xdc0] sm:$0xff]
    %v4909 = vld [vmem:[#allocation5 + $0xdc8] sm:$0xff]
    %v4910 = vld [vmem:[#allocation5 + $0xdd0] sm:$0xff]
    %v4911 = vld [vmem:[#allocation5 + $0xdd8] sm:$0xff]
    %v4912 = vld [vmem:[#allocation5 + $0xde0] sm:$0xff]
    %v4913 = vld [vmem:[#allocation5 + $0xde8] sm:$0xff]
    %v4914 = vld [vmem:[#allocation5 + $0xdf0] sm:$0xff]
    %v4915 = vld [vmem:[#allocation5 + $0xdf8] sm:$0xff]
    %v4916 = vld [vmem:[#allocation5 + $0xe00] sm:$0xff]
    %v4917 = vld [vmem:[#allocation5 + $0xe08] sm:$0xff]
    %v4918 = vld [vmem:[#allocation5 + $0xe10] sm:$0xff]
    %v4919 = vld [vmem:[#allocation5 + $0xe18] sm:$0xff]
    %v4920 = vld [vmem:[#allocation5 + $0xe20] sm:$0xff]
    %v4921 = vld [vmem:[#allocation5 + $0xe28] sm:$0xff]
    %v4922 = vld [vmem:[#allocation5 + $0xe30] sm:$0xff]
    %v4923 = vld [vmem:[#allocation5 + $0xe38] sm:$0xff]
    %v4924 = vld [vmem:[#allocation5 + $0xe40] sm:$0xff]
    %v4925 = vld [vmem:[#allocation5 + $0xe48] sm:$0xff]
    %v4926 = vld [vmem:[#allocation5 + $0xe50] sm:$0xff]
    %v4927 = vld [vmem:[#allocation5 + $0xe58] sm:$0xff]
    %v4928 = vld [vmem:[#allocation5 + $0xe60] sm:$0xff]
    %v4929 = vld [vmem:[#allocation5 + $0xe68] sm:$0xff]
    %v4930 = vld [vmem:[#allocation5 + $0xe70] sm:$0xff]
    %v4931 = vld [vmem:[#allocation5 + $0xe78] sm:$0xff]
    %v4932 = vld [vmem:[#allocation5 + $0xe80] sm:$0xff]
    %v4933 = vld [vmem:[#allocation5 + $0xe88] sm:$0xff]
    %v4934 = vld [vmem:[#allocation5 + $0xe90] sm:$0xff]
    %v4935 = vld [vmem:[#allocation5 + $0xe98] sm:$0xff]
    %v4936 = vld [vmem:[#allocation5 + $0xea0] sm:$0xff]
    %v4937 = vld [vmem:[#allocation5 + $0xea8] sm:$0xff]
    %v4938 = vld [vmem:[#allocation5 + $0xeb0] sm:$0xff]
    %v4939 = vld [vmem:[#allocation5 + $0xeb8] sm:$0xff]
    %v4940 = vld [vmem:[#allocation5 + $0xec0] sm:$0xff]
    %v4941 = vld [vmem:[#allocation5 + $0xec8] sm:$0xff]
    %v4942 = vld [vmem:[#allocation5 + $0xed0] sm:$0xff]
    %v4943 = vld [vmem:[#allocation5 + $0xed8] sm:$0xff]
    %v4944 = vld [vmem:[#allocation5 + $0xee0] sm:$0xff]
    %v4945 = vld [vmem:[#allocation5 + $0xee8] sm:$0xff]
    %v4946 = vld [vmem:[#allocation5 + $0xef0] sm:$0xff]
    %v4947 = vld [vmem:[#allocation5 + $0xef8] sm:$0xff]
    %4948 = vmatprep.subr.bf16.mxu0 %v4789
    %4949 = vmatpush1.bf16.msra.mxu0 %v4788
    %4950 = vmatprep.subr.bf16.mxu0 %v4799
    %4951 = vmatpush1.bf16.msra.mxu0 %v4798
    %4952 = vmatprep.subr.bf16.mxu0 %v4809
    %4953 = vmatpush1.bf16.msra.mxu0 %v4808
    %4954 = vmatprep.subr.bf16.mxu0 %v4819
    %4955 = vmatpush1.bf16.msra.mxu0 %v4818
    %4956 = vmatprep.subr.bf16.mxu0 %v4829
    %4957 = vmatpush1.bf16.msra.mxu0 %v4828
    %4958 = vmatprep.subr.bf16.mxu0 %v4839
    %4959 = vmatpush1.bf16.msra.mxu0 %v4838
    %4960 = vmatprep.subr.bf16.mxu0 %v4849
    %4961 = vmatpush1.bf16.msra.mxu0 %v4848
    %4962 = vmatprep.subr.bf16.mxu0 %v4859
    %4963 = vmatpush1.bf16.msra.mxu0 %v4858
    %4964 = vmatprep.subr.bf16.mxu0 %v4869
    %4965 = vmatpush1.bf16.msra.mxu0 %v4868
    %4966 = vmatprep.subr.bf16.mxu0 %v4879
    %4967 = vmatpush1.bf16.msra.mxu0 %v4878
    %4968 = vmatprep.subr.bf16.mxu0 %v4889
    %4969 = vmatpush1.bf16.msra.mxu0 %v4888
    %4970 = vmatprep.subr.bf16.mxu0 %v4899
    %4971 = vmatpush1.bf16.msra.mxu0 %v4898
    %4972 = vmatprep.subr.bf16.mxu0 %v4909
    %4973 = vmatpush1.bf16.msra.mxu0 %v4908
    %4974 = vmatprep.subr.bf16.mxu0 %v4919
    %4975 = vmatpush1.bf16.msra.mxu0 %v4918
    %4976 = vmatprep.subr.bf16.mxu0 %v4929
    %4977 = vmatpush1.bf16.msra.mxu0 %v4928
    %4978 = vmatprep.subr.bf16.mxu0 %v4939
    %4979 = vmatpush1.bf16.msra.mxu0 %v4938
    %4980 = vmatprep.mubr.bf16.mxu0 %v2831
    %4981 = vmatmul.mubr.bf16.gmra.mrb[0].mxu0 %v2830
    %v4982 = vpop.f32.mrb[0].mxu0
    %v4983 = vadd.f32 0.0, %v4982
    %v4984 = vpop.f32.mrb[0].mxu0
    %v4985 = vadd.f32 0.0, %v4984
    %v4986 = vpop.f32.mrb[0].mxu0
    %v4987 = vpop.f32.mrb[0].mxu0
    %4988 = vdwg.mxu0
    %4989 = vmatprep.subr.bf16.mxu0 %v4791
    %4990 = vmatpush1.bf16.msra.mxu0 %v4790
    %4991 = vmatprep.subr.bf16.mxu0 %v4801
    %4992 = vmatpush1.bf16.msra.mxu0 %v4800
    %4993 = vmatprep.subr.bf16.mxu0 %v4811
    %4994 = vmatpush1.bf16.msra.mxu0 %v4810
    %4995 = vmatprep.subr.bf16.mxu0 %v4821
    %4996 = vmatpush1.bf16.msra.mxu0 %v4820
    %4997 = vmatprep.subr.bf16.mxu0 %v4831
    %4998 = vmatpush1.bf16.msra.mxu0 %v4830
    %4999 = vmatprep.subr.bf16.mxu0 %v4841
    %5000 = vmatpush1.bf16.msra.mxu0 %v4840
    %5001 = vmatprep.subr.bf16.mxu0 %v4851
    %5002 = vmatpush1.bf16.msra.mxu0 %v4850
    %5003 = vmatprep.subr.bf16.mxu0 %v4861
    %5004 = vmatpush1.bf16.msra.mxu0 %v4860
    %5005 = vmatprep.subr.bf16.mxu0 %v4871
    %5006 = vmatpush1.bf16.msra.mxu0 %v4870
    %5007 = vmatprep.subr.bf16.mxu0 %v4881
    %5008 = vmatpush1.bf16.msra.mxu0 %v4880
    %5009 = vmatprep.subr.bf16.mxu0 %v4891
    %5010 = vmatpush1.bf16.msra.mxu0 %v4890
    %5011 = vmatprep.subr.bf16.mxu0 %v4901
    %5012 = vmatpush1.bf16.msra.mxu0 %v4900
    %5013 = vmatprep.subr.bf16.mxu0 %v4911
    %5014 = vmatpush1.bf16.msra.mxu0 %v4910
    %5015 = vmatprep.subr.bf16.mxu0 %v4921
    %5016 = vmatpush1.bf16.msra.mxu0 %v4920
    %5017 = vmatprep.subr.bf16.mxu0 %v4931
    %5018 = vmatpush1.bf16.msra.mxu0 %v4930
    %5019 = vmatprep.subr.bf16.mxu0 %v4941
    %5020 = vmatpush1.bf16.msra.mxu0 %v4940
    %5021 = vmatprep.mubr.bf16.mxu0 %v2831
    %5022 = vmatmul.mubr.bf16.gmra.mrb[0].mxu0 %v2830
    %v5023 = vpop.f32.mrb[0].mxu0
    %v5024 = vadd.f32 0.0, %v5023
    %v5025 = vpop.f32.mrb[0].mxu0
    %v5026 = vadd.f32 0.0, %v5025
    %v5027 = vpop.f32.mrb[0].mxu0
    %v5028 = vpop.f32.mrb[0].mxu0
    %5029 = vdwg.mxu0
    %5030 = vmatprep.subr.bf16.mxu0 %v4793
    %5031 = vmatpush1.bf16.msra.mxu0 %v4792
    %5032 = vmatprep.subr.bf16.mxu0 %v4803
    %5033 = vmatpush1.bf16.msra.mxu0 %v4802
    %5034 = vmatprep.subr.bf16.mxu0 %v4813
    %5035 = vmatpush1.bf16.msra.mxu0 %v4812
    %5036 = vmatprep.subr.bf16.mxu0 %v4823
    %5037 = vmatpush1.bf16.msra.mxu0 %v4822
    %5038 = vmatprep.subr.bf16.mxu0 %v4833
    %5039 = vmatpush1.bf16.msra.mxu0 %v4832
    %5040 = vmatprep.subr.bf16.mxu0 %v4843
    %5041 = vmatpush1.bf16.msra.mxu0 %v4842
    %5042 = vmatprep.subr.bf16.mxu0 %v4853
    %5043 = vmatpush1.bf16.msra.mxu0 %v4852
    %5044 = vmatprep.subr.bf16.mxu0 %v4863
    %5045 = vmatpush1.bf16.msra.mxu0 %v4862
    %5046 = vmatprep.subr.bf16.mxu0 %v4873
    %5047 = vmatpush1.bf16.msra.mxu0 %v4872
    %5048 = vmatprep.subr.bf16.mxu0 %v4883
    %5049 = vmatpush1.bf16.msra.mxu0 %v4882
    %5050 = vmatprep.subr.bf16.mxu0 %v4893
    %5051 = vmatpush1.bf16.msra.mxu0 %v4892
    %5052 = vmatprep.subr.bf16.mxu0 %v4903
    %5053 = vmatpush1.bf16.msra.mxu0 %v4902
    %5054 = vmatprep.subr.bf16.mxu0 %v4913
    %5055 = vmatpush1.bf16.msra.mxu0 %v4912
    %5056 = vmatprep.subr.bf16.mxu0 %v4923
    %5057 = vmatpush1.bf16.msra.mxu0 %v4922
    %5058 = vmatprep.subr.bf16.mxu0 %v4933
    %5059 = vmatpush1.bf16.msra.mxu0 %v4932
    %5060 = vmatprep.subr.bf16.mxu0 %v4943
    %5061 = vmatpush1.bf16.msra.mxu0 %v4942
    %5062 = vmatprep.mubr.bf16.mxu0 %v2831
    %5063 = vmatmul.mubr.bf16.gmra.mrb[0].mxu0 %v2830
    %v5064 = vpop.f32.mrb[0].mxu0
    %v5065 = vadd.f32 0.0, %v5064
    %v5066 = vpop.f32.mrb[0].mxu0
    %v5067 = vadd.f32 0.0, %v5066
    %v5068 = vpop.f32.mrb[0].mxu0
    %v5069 = vpop.f32.mrb[0].mxu0
    %5070 = vdwg.mxu0
    %5071 = vmatprep.subr.bf16.mxu0 %v4795
    %5072 = vmatpush1.bf16.msra.mxu0 %v4794
    %5073 = vmatprep.subr.bf16.mxu0 %v4805
    %5074 = vmatpush1.bf16.msra.mxu0 %v4804
    %5075 = vmatprep.subr.bf16.mxu0 %v4815
    %5076 = vmatpush1.bf16.msra.mxu0 %v4814
    %5077 = vmatprep.subr.bf16.mxu0 %v4825
    %5078 = vmatpush1.bf16.msra.mxu0 %v4824
    %5079 = vmatprep.subr.bf16.mxu0 %v4835
    %5080 = vmatpush1.bf16.msra.mxu0 %v4834
    %5081 = vmatprep.subr.bf16.mxu0 %v4845
    %5082 = vmatpush1.bf16.msra.mxu0 %v4844
    %5083 = vmatprep.subr.bf16.mxu0 %v4855
    %5084 = vmatpush1.bf16.msra.mxu0 %v4854
    %5085 = vmatprep.subr.bf16.mxu0 %v4865
    %5086 = vmatpush1.bf16.msra.mxu0 %v4864
    %5087 = vmatprep.subr.bf16.mxu0 %v4875
    %5088 = vmatpush1.bf16.msra.mxu0 %v4874
    %5089 = vmatprep.subr.bf16.mxu0 %v4885
    %5090 = vmatpush1.bf16.msra.mxu0 %v4884
    %5091 = vmatprep.subr.bf16.mxu0 %v4895
    %5092 = vmatpush1.bf16.msra.mxu0 %v4894
    %5093 = vmatprep.subr.bf16.mxu0 %v4905
    %5094 = vmatpush1.bf16.msra.mxu0 %v4904
    %5095 = vmatprep.subr.bf16.mxu0 %v4915
    %5096 = vmatpush1.bf16.msra.mxu0 %v4914
    %5097 = vmatprep.subr.bf16.mxu0 %v4925
    %5098 = vmatpush1.bf16.msra.mxu0 %v4924
    %5099 = vmatprep.subr.bf16.mxu0 %v4935
    %5100 = vmatpush1.bf16.msra.mxu0 %v4934
    %5101 = vmatprep.subr.bf16.mxu0 %v4945
    %5102 = vmatpush1.bf16.msra.mxu0 %v4944
    %5103 = vmatprep.mubr.bf16.mxu0 %v2831
    %5104 = vmatmul.mubr.bf16.gmra.mrb[0].mxu0 %v2830
    %v5105 = vpop.f32.mrb[0].mxu0
    %v5106 = vadd.f32 0.0, %v5105
    %v5107 = vpop.f32.mrb[0].mxu0
    %v5108 = vadd.f32 0.0, %v5107
    %v5109 = vpop.f32.mrb[0].mxu0
    %v5110 = vpop.f32.mrb[0].mxu0
    %5111 = vdwg.mxu0
    %5112 = vmatprep.subr.bf16.mxu0 %v4797
    %5113 = vmatpush1.bf16.msra.mxu0 %v4796
    %5114 = vmatprep.subr.bf16.mxu0 %v4807
    %5115 = vmatpush1.bf16.msra.mxu0 %v4806
    %5116 = vmatprep.subr.bf16.mxu0 %v4817
    %5117 = vmatpush1.bf16.msra.mxu0 %v4816
    %5118 = vmatprep.subr.bf16.mxu0 %v4827
    %5119 = vmatpush1.bf16.msra.mxu0 %v4826
    %5120 = vmatprep.subr.bf16.mxu0 %v4837
    %5121 = vmatpush1.bf16.msra.mxu0 %v4836
    %5122 = vmatprep.subr.bf16.mxu0 %v4847
    %5123 = vmatpush1.bf16.msra.mxu0 %v4846
    %5124 = vmatprep.subr.bf16.mxu0 %v4857
    %5125 = vmatpush1.bf16.msra.mxu0 %v4856
    %5126 = vmatprep.subr.bf16.mxu0 %v4867
    %5127 = vmatpush1.bf16.msra.mxu0 %v4866
    %5128 = vmatprep.subr.bf16.mxu0 %v4877
    %5129 = vmatpush1.bf16.msra.mxu0 %v4876
    %5130 = vmatprep.subr.bf16.mxu0 %v4887
    %5131 = vmatpush1.bf16.msra.mxu0 %v4886
    %5132 = vmatprep.subr.bf16.mxu0 %v4897
    %5133 = vmatpush1.bf16.msra.mxu0 %v4896
    %5134 = vmatprep.subr.bf16.mxu0 %v4907
    %5135 = vmatpush1.bf16.msra.mxu0 %v4906
    %5136 = vmatprep.subr.bf16.mxu0 %v4917
    %5137 = vmatpush1.bf16.msra.mxu0 %v4916
    %5138 = vmatprep.subr.bf16.mxu0 %v4927
    %5139 = vmatpush1.bf16.msra.mxu0 %v4926
    %5140 = vmatprep.subr.bf16.mxu0 %v4937
    %5141 = vmatpush1.bf16.msra.mxu0 %v4936
    %5142 = vmatprep.subr.bf16.mxu0 %v4947
    %5143 = vmatpush1.bf16.msra.mxu0 %v4946
    %5144 = vmatprep.mubr.bf16.mxu0 %v2831
    %5145 = vmatmul.mubr.bf16.gmra.mrb[0].mxu0 %v2830
    %v5146 = vpop.f32.mrb[0].mxu0
    %v5147 = vadd.f32 0.0, %v5146
    %v5148 = vpop.f32.mrb[0].mxu0
    %v5149 = vadd.f32 0.0, %v5148
    %v5150 = vpop.f32.mrb[0].mxu0
    %v5151 = vpop.f32.mrb[0].mxu0
    %5152 = vdwg.mxu0
    %v5153 = vadd.f32 %v4210, %v4983
    %v5154 = vadd.f32 %v4212, %v4985
    %v5155 = vadd.f32 %v4251, %v5024
    %v5156 = vadd.f32 %v4253, %v5026
    %v5157 = vadd.f32 %v4292, %v5065
    %v5158 = vadd.f32 %v4294, %v5067
    %v5159 = vadd.f32 %v4333, %v5106
    %v5160 = vadd.f32 %v4335, %v5108
    %v5161 = vadd.f32 %v4374, %v5147
    %v5162 = vadd.f32 %v4376, %v5149
    // Predicated region
    $region154: #{_generator_pallas.1} parent=1 // pred_check
      %p5163 = pneg %p219
    $region155: #{_generator_pallas.1} parent=1 // pred_check_branch
      %5165 = sbr.rel (%p5163) target = $region157
    $region156: #{_generator_pallas.1} parent=1 // pred_region
      %s5166 = scalar_lea.sflag [#allocation6], 4
      %s5167 = smul.u32 2, 32
      %s5168 = smul.u32 %s5167, 10
      %s5169 = sshll.u32 %s5168, 4
      %5170 = dma.done %s5166, %s5169
      %v5171 = vld [vmem:[#allocation4 + $0x780] sm:$0xff]
      %v5172 = vld [vmem:[#allocation4 + $0x788] sm:$0xff]
      %v5173 = vld [vmem:[#allocation4 + $0x790] sm:$0xff]
      %v5174 = vld [vmem:[#allocation4 + $0x798] sm:$0xff]
      %v5175 = vld [vmem:[#allocation4 + $0x7a0] sm:$0xff]
      %v5176 = vld [vmem:[#allocation4 + $0x7a8] sm:$0xff]
      %v5177 = vld [vmem:[#allocation4 + $0x7b0] sm:$0xff]
      %v5178 = vld [vmem:[#allocation4 + $0x7b8] sm:$0xff]
      %v5179 = vld [vmem:[#allocation4 + $0x7c0] sm:$0xff]
      %v5180 = vld [vmem:[#allocation4 + $0x7c8] sm:$0xff]
      %v5181 = vld [vmem:[#allocation4 + $0x7d0] sm:$0xff]
      %v5182 = vld [vmem:[#allocation4 + $0x7d8] sm:$0xff]
      %v5183 = vld [vmem:[#allocation4 + $0x7e0] sm:$0xff]
      %v5184 = vld [vmem:[#allocation4 + $0x7e8] sm:$0xff]
      %v5185 = vld [vmem:[#allocation4 + $0x7f0] sm:$0xff]
      %v5186 = vld [vmem:[#allocation4 + $0x7f8] sm:$0xff]
      %v5187 = vld [vmem:[#allocation4 + $0x800] sm:$0xff]
      %v5188 = vld [vmem:[#allocation4 + $0x808] sm:$0xff]
      %v5189 = vld [vmem:[#allocation4 + $0x810] sm:$0xff]
      %v5190 = vld [vmem:[#allocation4 + $0x818] sm:$0xff]
      %v5191 = vld [vmem:[#allocation4 + $0x820] sm:$0xff]
      %v5192 = vld [vmem:[#allocation4 + $0x828] sm:$0xff]
      %v5193 = vld [vmem:[#allocation4 + $0x830] sm:$0xff]
      %v5194 = vld [vmem:[#allocation4 + $0x838] sm:$0xff]
      %v5195 = vld [vmem:[#allocation4 + $0x840] sm:$0xff]
      %v5196 = vld [vmem:[#allocation4 + $0x848] sm:$0xff]
      %v5197 = vld [vmem:[#allocation4 + $0x850] sm:$0xff]
      %v5198 = vld [vmem:[#allocation4 + $0x858] sm:$0xff]
      %v5199 = vld [vmem:[#allocation4 + $0x860] sm:$0xff]
      %v5200 = vld [vmem:[#allocation4 + $0x868] sm:$0xff]
      %v5201 = vld [vmem:[#allocation4 + $0x870] sm:$0xff]
      %v5202 = vld [vmem:[#allocation4 + $0x878] sm:$0xff]
      %v5203 = vld [vmem:[#allocation4 + $0x880] sm:$0xff]
      %v5204 = vld [vmem:[#allocation4 + $0x888] sm:$0xff]
      %v5205 = vld [vmem:[#allocation4 + $0x890] sm:$0xff]
      %v5206 = vld [vmem:[#allocation4 + $0x898] sm:$0xff]
      %v5207 = vld [vmem:[#allocation4 + $0x8a0] sm:$0xff]
      %v5208 = vld [vmem:[#allocation4 + $0x8a8] sm:$0xff]
      %v5209 = vld [vmem:[#allocation4 + $0x8b0] sm:$0xff]
      %v5210 = vld [vmem:[#allocation4 + $0x8b8] sm:$0xff]
      %v5211 = vld [vmem:[#allocation4 + $0x8c0] sm:$0xff]
      %v5212 = vld [vmem:[#allocation4 + $0x8c8] sm:$0xff]
      %v5213 = vld [vmem:[#allocation4 + $0x8d0] sm:$0xff]
      %v5214 = vld [vmem:[#allocation4 + $0x8d8] sm:$0xff]
      %v5215 = vld [vmem:[#allocation4 + $0x8e0] sm:$0xff]
      %v5216 = vld [vmem:[#allocation4 + $0x8e8] sm:$0xff]
      %v5217 = vld [vmem:[#allocation4 + $0x8f0] sm:$0xff]
      %v5218 = vld [vmem:[#allocation4 + $0x8f8] sm:$0xff]
      %v5219 = vld [vmem:[#allocation4 + $0x900] sm:$0xff]
      %v5220 = vld [vmem:[#allocation4 + $0x908] sm:$0xff]
      %v5221 = vld [vmem:[#allocation4 + $0x910] sm:$0xff]
      %v5222 = vld [vmem:[#allocation4 + $0x918] sm:$0xff]
      %v5223 = vld [vmem:[#allocation4 + $0x920] sm:$0xff]
      %v5224 = vld [vmem:[#allocation4 + $0x928] sm:$0xff]
      %v5225 = vld [vmem:[#allocation4 + $0x930] sm:$0xff]
      %v5226 = vld [vmem:[#allocation4 + $0x938] sm:$0xff]
      %v5227 = vld [vmem:[#allocation4 + $0x940] sm:$0xff]
      %v5228 = vld [vmem:[#allocation4 + $0x948] sm:$0xff]
      %v5229 = vld [vmem:[#allocation4 + $0x950] sm:$0xff]
      %v5230 = vld [vmem:[#allocation4 + $0x958] sm:$0xff]
      %v5231 = vld [vmem:[#allocation4 + $0x960] sm:$0xff]
      %v5232 = vld [vmem:[#allocation4 + $0x968] sm:$0xff]
      %v5233 = vld [vmem:[#allocation4 + $0x970] sm:$0xff]
      %v5234 = vld [vmem:[#allocation4 + $0x978] sm:$0xff]
      %v5235 = vld [vmem:[#allocation4 + $0x980] sm:$0xff]
      %v5236 = vld [vmem:[#allocation4 + $0x988] sm:$0xff]
      %v5237 = vld [vmem:[#allocation4 + $0x990] sm:$0xff]
      %v5238 = vld [vmem:[#allocation4 + $0x998] sm:$0xff]
      %v5239 = vld [vmem:[#allocation4 + $0x9a0] sm:$0xff]
      %v5240 = vld [vmem:[#allocation4 + $0x9a8] sm:$0xff]
      %v5241 = vld [vmem:[#allocation4 + $0x9b0] sm:$0xff]
      %v5242 = vld [vmem:[#allocation4 + $0x9b8] sm:$0xff]
      %v5243 = vld [vmem:[#allocation4 + $0x9c0] sm:$0xff]
      %v5244 = vld [vmem:[#allocation4 + $0x9c8] sm:$0xff]
      %v5245 = vld [vmem:[#allocation4 + $0x9d0] sm:$0xff]
      %v5246 = vld [vmem:[#allocation4 + $0x9d8] sm:$0xff]
      %v5247 = vld [vmem:[#allocation4 + $0x9e0] sm:$0xff]
      %v5248 = vld [vmem:[#allocation4 + $0x9e8] sm:$0xff]
      %v5249 = vld [vmem:[#allocation4 + $0x9f0] sm:$0xff]
      %v5250 = vld [vmem:[#allocation4 + $0x9f8] sm:$0xff]
      %v5251 = vunpack.c.l.s8.bf16 %v5171
      %v5252 = vunpack.c.l.s8.bf16 %v5172
      %v5253 = vunpack.c.l.s8.bf16 %v5173
      %v5254 = vunpack.c.l.s8.bf16 %v5174
      %v5255 = vunpack.c.l.s8.bf16 %v5175
      %v5256 = vunpack.c.l.s8.bf16 %v5176
      %v5257 = vunpack.c.l.s8.bf16 %v5177
      %v5258 = vunpack.c.l.s8.bf16 %v5178
      %v5259 = vunpack.c.l.s8.bf16 %v5179
      %v5260 = vunpack.c.l.s8.bf16 %v5180
      %v5261 = vunpack.c.h.s8.bf16 %v5171
      %v5262 = vunpack.c.h.s8.bf16 %v5172
      %v5263 = vunpack.c.h.s8.bf16 %v5173
      %v5264 = vunpack.c.h.s8.bf16 %v5174
      %v5265 = vunpack.c.h.s8.bf16 %v5175
      %v5266 = vunpack.c.h.s8.bf16 %v5176
      %v5267 = vunpack.c.h.s8.bf16 %v5177
      %v5268 = vunpack.c.h.s8.bf16 %v5178
      %v5269 = vunpack.c.h.s8.bf16 %v5179
      %v5270 = vunpack.c.h.s8.bf16 %v5180
      %v5271 = vunpack.c.l.s8.bf16 %v5181
      %v5272 = vunpack.c.l.s8.bf16 %v5182
      %v5273 = vunpack.c.l.s8.bf16 %v5183
      %v5274 = vunpack.c.l.s8.bf16 %v5184
      %v5275 = vunpack.c.l.s8.bf16 %v5185
      %v5276 = vunpack.c.l.s8.bf16 %v5186
      %v5277 = vunpack.c.l.s8.bf16 %v5187
      %v5278 = vunpack.c.l.s8.bf16 %v5188
      %v5279 = vunpack.c.l.s8.bf16 %v5189
      %v5280 = vunpack.c.l.s8.bf16 %v5190
      %v5281 = vunpack.c.h.s8.bf16 %v5181
      %v5282 = vunpack.c.h.s8.bf16 %v5182
      %v5283 = vunpack.c.h.s8.bf16 %v5183
      %v5284 = vunpack.c.h.s8.bf16 %v5184
      %v5285 = vunpack.c.h.s8.bf16 %v5185
      %v5286 = vunpack.c.h.s8.bf16 %v5186
      %v5287 = vunpack.c.h.s8.bf16 %v5187
      %v5288 = vunpack.c.h.s8.bf16 %v5188
      %v5289 = vunpack.c.h.s8.bf16 %v5189
      %v5290 = vunpack.c.h.s8.bf16 %v5190
      %v5291 = vunpack.c.l.s8.bf16 %v5191
      %v5292 = vunpack.c.l.s8.bf16 %v5192
      %v5293 = vunpack.c.l.s8.bf16 %v5193
      %v5294 = vunpack.c.l.s8.bf16 %v5194
      %v5295 = vunpack.c.l.s8.bf16 %v5195
      %v5296 = vunpack.c.l.s8.bf16 %v5196
      %v5297 = vunpack.c.l.s8.bf16 %v5197
      %v5298 = vunpack.c.l.s8.bf16 %v5198
      %v5299 = vunpack.c.l.s8.bf16 %v5199
      %v5300 = vunpack.c.l.s8.bf16 %v5200
      %v5301 = vunpack.c.h.s8.bf16 %v5191
      %v5302 = vunpack.c.h.s8.bf16 %v5192
      %v5303 = vunpack.c.h.s8.bf16 %v5193
      %v5304 = vunpack.c.h.s8.bf16 %v5194
      %v5305 = vunpack.c.h.s8.bf16 %v5195
      %v5306 = vunpack.c.h.s8.bf16 %v5196
      %v5307 = vunpack.c.h.s8.bf16 %v5197
      %v5308 = vunpack.c.h.s8.bf16 %v5198
      %v5309 = vunpack.c.h.s8.bf16 %v5199
      %v5310 = vunpack.c.h.s8.bf16 %v5200
      %v5311 = vunpack.c.l.s8.bf16 %v5201
      %v5312 = vunpack.c.l.s8.bf16 %v5202
      %v5313 = vunpack.c.l.s8.bf16 %v5203
      %v5314 = vunpack.c.l.s8.bf16 %v5204
      %v5315 = vunpack.c.l.s8.bf16 %v5205
      %v5316 = vunpack.c.l.s8.bf16 %v5206
      %v5317 = vunpack.c.l.s8.bf16 %v5207
      %v5318 = vunpack.c.l.s8.bf16 %v5208
      %v5319 = vunpack.c.l.s8.bf16 %v5209
      %v5320 = vunpack.c.l.s8.bf16 %v5210
      %v5321 = vunpack.c.h.s8.bf16 %v5201
      %v5322 = vunpack.c.h.s8.bf16 %v5202
      %v5323 = vunpack.c.h.s8.bf16 %v5203
      %v5324 = vunpack.c.h.s8.bf16 %v5204
      %v5325 = vunpack.c.h.s8.bf16 %v5205
      %v5326 = vunpack.c.h.s8.bf16 %v5206
      %v5327 = vunpack.c.h.s8.bf16 %v5207
      %v5328 = vunpack.c.h.s8.bf16 %v5208
      %v5329 = vunpack.c.h.s8.bf16 %v5209
      %v5330 = vunpack.c.h.s8.bf16 %v5210
      %v5331 = vunpack.c.l.s8.bf16 %v5211
      %v5332 = vunpack.c.l.s8.bf16 %v5212
      %v5333 = vunpack.c.l.s8.bf16 %v5213
      %v5334 = vunpack.c.l.s8.bf16 %v5214
      %v5335 = vunpack.c.l.s8.bf16 %v5215
      %v5336 = vunpack.c.l.s8.bf16 %v5216
      %v5337 = vunpack.c.l.s8.bf16 %v5217
      %v5338 = vunpack.c.l.s8.bf16 %v5218
      %v5339 = vunpack.c.l.s8.bf16 %v5219
      %v5340 = vunpack.c.l.s8.bf16 %v5220
      %v5341 = vunpack.c.h.s8.bf16 %v5211
      %v5342 = vunpack.c.h.s8.bf16 %v5212
      %v5343 = vunpack.c.h.s8.bf16 %v5213
      %v5344 = vunpack.c.h.s8.bf16 %v5214
      %v5345 = vunpack.c.h.s8.bf16 %v5215
      %v5346 = vunpack.c.h.s8.bf16 %v5216
      %v5347 = vunpack.c.h.s8.bf16 %v5217
      %v5348 = vunpack.c.h.s8.bf16 %v5218
      %v5349 = vunpack.c.h.s8.bf16 %v5219
      %v5350 = vunpack.c.h.s8.bf16 %v5220
      %v5351 = vunpack.c.l.s8.bf16 %v5221
      %v5352 = vunpack.c.l.s8.bf16 %v5222
      %v5353 = vunpack.c.l.s8.bf16 %v5223
      %v5354 = vunpack.c.l.s8.bf16 %v5224
      %v5355 = vunpack.c.l.s8.bf16 %v5225
      %v5356 = vunpack.c.l.s8.bf16 %v5226
      %v5357 = vunpack.c.l.s8.bf16 %v5227
      %v5358 = vunpack.c.l.s8.bf16 %v5228
      %v5359 = vunpack.c.l.s8.bf16 %v5229
      %v5360 = vunpack.c.l.s8.bf16 %v5230
      %v5361 = vunpack.c.h.s8.bf16 %v5221
      %v5362 = vunpack.c.h.s8.bf16 %v5222
      %v5363 = vunpack.c.h.s8.bf16 %v5223
      %v5364 = vunpack.c.h.s8.bf16 %v5224
      %v5365 = vunpack.c.h.s8.bf16 %v5225
      %v5366 = vunpack.c.h.s8.bf16 %v5226
      %v5367 = vunpack.c.h.s8.bf16 %v5227
      %v5368 = vunpack.c.h.s8.bf16 %v5228
      %v5369 = vunpack.c.h.s8.bf16 %v5229
      %v5370 = vunpack.c.h.s8.bf16 %v5230
      %v5371 = vunpack.c.l.s8.bf16 %v5231
      %v5372 = vunpack.c.l.s8.bf16 %v5232
      %v5373 = vunpack.c.l.s8.bf16 %v5233
      %v5374 = vunpack.c.l.s8.bf16 %v5234
      %v5375 = vunpack.c.l.s8.bf16 %v5235
      %v5376 = vunpack.c.l.s8.bf16 %v5236
      %v5377 = vunpack.c.l.s8.bf16 %v5237
      %v5378 = vunpack.c.l.s8.bf16 %v5238
      %v5379 = vunpack.c.l.s8.bf16 %v5239
      %v5380 = vunpack.c.l.s8.bf16 %v5240
      %v5381 = vunpack.c.h.s8.bf16 %v5231
      %v5382 = vunpack.c.h.s8.bf16 %v5232
      %v5383 = vunpack.c.h.s8.bf16 %v5233
      %v5384 = vunpack.c.h.s8.bf16 %v5234
      %v5385 = vunpack.c.h.s8.bf16 %v5235
      %v5386 = vunpack.c.h.s8.bf16 %v5236
      %v5387 = vunpack.c.h.s8.bf16 %v5237
      %v5388 = vunpack.c.h.s8.bf16 %v5238
      %v5389 = vunpack.c.h.s8.bf16 %v5239
      %v5390 = vunpack.c.h.s8.bf16 %v5240
      %v5391 = vunpack.c.l.s8.bf16 %v5241
      %v5392 = vunpack.c.l.s8.bf16 %v5242
      %v5393 = vunpack.c.l.s8.bf16 %v5243
      %v5394 = vunpack.c.l.s8.bf16 %v5244
      %v5395 = vunpack.c.l.s8.bf16 %v5245
      %v5396 = vunpack.c.l.s8.bf16 %v5246
      %v5397 = vunpack.c.l.s8.bf16 %v5247
      %v5398 = vunpack.c.l.s8.bf16 %v5248
      %v5399 = vunpack.c.l.s8.bf16 %v5249
      %v5400 = vunpack.c.l.s8.bf16 %v5250
      %v5401 = vunpack.c.h.s8.bf16 %v5241
      %v5402 = vunpack.c.h.s8.bf16 %v5242
      %v5403 = vunpack.c.h.s8.bf16 %v5243
      %v5404 = vunpack.c.h.s8.bf16 %v5244
      %v5405 = vunpack.c.h.s8.bf16 %v5245
      %v5406 = vunpack.c.h.s8.bf16 %v5246
      %v5407 = vunpack.c.h.s8.bf16 %v5247
      %v5408 = vunpack.c.h.s8.bf16 %v5248
      %v5409 = vunpack.c.h.s8.bf16 %v5249
      %v5410 = vunpack.c.h.s8.bf16 %v5250
      %5411 = vst [vmem:[#allocation5 + $0xf00] sm:$0xff] %v5251
      %5412 = vst [vmem:[#allocation5 + $0xf08] sm:$0xff] %v5252
      %5413 = vst [vmem:[#allocation5 + $0xf10] sm:$0xff] %v5253
      %5414 = vst [vmem:[#allocation5 + $0xf18] sm:$0xff] %v5254
      %5415 = vst [vmem:[#allocation5 + $0xf20] sm:$0xff] %v5255
      %5416 = vst [vmem:[#allocation5 + $0xf28] sm:$0xff] %v5256
      %5417 = vst [vmem:[#allocation5 + $0xf30] sm:$0xff] %v5257
      %5418 = vst [vmem:[#allocation5 + $0xf38] sm:$0xff] %v5258
      %5419 = vst [vmem:[#allocation5 + $0xf40] sm:$0xff] %v5259
      %5420 = vst [vmem:[#allocation5 + $0xf48] sm:$0xff] %v5260
      %5421 = vst [vmem:[#allocation5 + $0xf50] sm:$0xff] %v5261
      %5422 = vst [vmem:[#allocation5 + $0xf58] sm:$0xff] %v5262
      %5423 = vst [vmem:[#allocation5 + $0xf60] sm:$0xff] %v5263
      %5424 = vst [vmem:[#allocation5 + $0xf68] sm:$0xff] %v5264
      %5425 = vst [vmem:[#allocation5 + $0xf70] sm:$0xff] %v5265
      %5426 = vst [vmem:[#allocation5 + $0xf78] sm:$0xff] %v5266
      %5427 = vst [vmem:[#allocation5 + $0xf80] sm:$0xff] %v5267
      %5428 = vst [vmem:[#allocation5 + $0xf88] sm:$0xff] %v5268
      %5429 = vst [vmem:[#allocation5 + $0xf90] sm:$0xff] %v5269
      %5430 = vst [vmem:[#allocation5 + $0xf98] sm:$0xff] %v5270
      %5431 = vst [vmem:[#allocation5 + $0xfa0] sm:$0xff] %v5271
      %5432 = vst [vmem:[#allocation5 + $0xfa8] sm:$0xff] %v5272
      %5433 = vst [vmem:[#allocation5 + $0xfb0] sm:$0xff] %v5273
      %5434 = vst [vmem:[#allocation5 + $0xfb8] sm:$0xff] %v5274
      %5435 = vst [vmem:[#allocation5 + $0xfc0] sm:$0xff] %v5275
      %5436 = vst [vmem:[#allocation5 + $0xfc8] sm:$0xff] %v5276
      %5437 = vst [vmem:[#allocation5 + $0xfd0] sm:$0xff] %v5277
      %5438 = vst [vmem:[#allocation5 + $0xfd8] sm:$0xff] %v5278
      %5439 = vst [vmem:[#allocation5 + $0xfe0] sm:$0xff] %v5279
      %5440 = vst [vmem:[#allocation5 + $0xfe8] sm:$0xff] %v5280
      %5441 = vst [vmem:[#allocation5 + $0xff0] sm:$0xff] %v5281
      %5442 = vst [vmem:[#allocation5 + $0xff8] sm:$0xff] %v5282
      %5443 = vst [vmem:[#allocation5 + $0x1000] sm:$0xff] %v5283
      %5444 = vst [vmem:[#allocation5 + $0x1008] sm:$0xff] %v5284
      %5445 = vst [vmem:[#allocation5 + $0x1010] sm:$0xff] %v5285
      %5446 = vst [vmem:[#allocation5 + $0x1018] sm:$0xff] %v5286
      %5447 = vst [vmem:[#allocation5 + $0x1020] sm:$0xff] %v5287
      %5448 = vst [vmem:[#allocation5 + $0x1028] sm:$0xff] %v5288
      %5449 = vst [vmem:[#allocation5 + $0x1030] sm:$0xff] %v5289
      %5450 = vst [vmem:[#allocation5 + $0x1038] sm:$0xff] %v5290
      %5451 = vst [vmem:[#allocation5 + $0x1040] sm:$0xff] %v5291
      %5452 = vst [vmem:[#allocation5 + $0x1048] sm:$0xff] %v5292
      %5453 = vst [vmem:[#allocation5 + $0x1050] sm:$0xff] %v5293
      %5454 = vst [vmem:[#allocation5 + $0x1058] sm:$0xff] %v5294
      %5455 = vst [vmem:[#allocation5 + $0x1060] sm:$0xff] %v5295
      %5456 = vst [vmem:[#allocation5 + $0x1068] sm:$0xff] %v5296
      %5457 = vst [vmem:[#allocation5 + $0x1070] sm:$0xff] %v5297
      %5458 = vst [vmem:[#allocation5 + $0x1078] sm:$0xff] %v5298
      %5459 = vst [vmem:[#allocation5 + $0x1080] sm:$0xff] %v5299
      %5460 = vst [vmem:[#allocation5 + $0x1088] sm:$0xff] %v5300
      %5461 = vst [vmem:[#allocation5 + $0x1090] sm:$0xff] %v5301
      %5462 = vst [vmem:[#allocation5 + $0x1098] sm:$0xff] %v5302
      %5463 = vst [vmem:[#allocation5 + $0x10a0] sm:$0xff] %v5303
      %5464 = vst [vmem:[#allocation5 + $0x10a8] sm:$0xff] %v5304
      %5465 = vst [vmem:[#allocation5 + $0x10b0] sm:$0xff] %v5305
      %5466 = vst [vmem:[#allocation5 + $0x10b8] sm:$0xff] %v5306
      %5467 = vst [vmem:[#allocation5 + $0x10c0] sm:$0xff] %v5307
      %5468 = vst [vmem:[#allocation5 + $0x10c8] sm:$0xff] %v5308
      %5469 = vst [vmem:[#allocation5 + $0x10d0] sm:$0xff] %v5309
      %5470 = vst [vmem:[#allocation5 + $0x10d8] sm:$0xff] %v5310
      %5471 = vst [vmem:[#allocation5 + $0x10e0] sm:$0xff] %v5311
      %5472 = vst [vmem:[#allocation5 + $0x10e8] sm:$0xff] %v5312
      %5473 = vst [vmem:[#allocation5 + $0x10f0] sm:$0xff] %v5313
      %5474 = vst [vmem:[#allocation5 + $0x10f8] sm:$0xff] %v5314
      %5475 = vst [vmem:[#allocation5 + $0x1100] sm:$0xff] %v5315
      %5476 = vst [vmem:[#allocation5 + $0x1108] sm:$0xff] %v5316
      %5477 = vst [vmem:[#allocation5 + $0x1110] sm:$0xff] %v5317
      %5478 = vst [vmem:[#allocation5 + $0x1118] sm:$0xff] %v5318
      %5479 = vst [vmem:[#allocation5 + $0x1120] sm:$0xff] %v5319
      %5480 = vst [vmem:[#allocation5 + $0x1128] sm:$0xff] %v5320
      %5481 = vst [vmem:[#allocation5 + $0x1130] sm:$0xff] %v5321
      %5482 = vst [vmem:[#allocation5 + $0x1138] sm:$0xff] %v5322
      %5483 = vst [vmem:[#allocation5 + $0x1140] sm:$0xff] %v5323
      %5484 = vst [vmem:[#allocation5 + $0x1148] sm:$0xff] %v5324
      %5485 = vst [vmem:[#allocation5 + $0x1150] sm:$0xff] %v5325
      %5486 = vst [vmem:[#allocation5 + $0x1158] sm:$0xff] %v5326
      %5487 = vst [vmem:[#allocation5 + $0x1160] sm:$0xff] %v5327
      %5488 = vst [vmem:[#allocation5 + $0x1168] sm:$0xff] %v5328
      %5489 = vst [vmem:[#allocation5 + $0x1170] sm:$0xff] %v5329
      %5490 = vst [vmem:[#allocation5 + $0x1178] sm:$0xff] %v5330
      %5491 = vst [vmem:[#allocation5 + $0x1180] sm:$0xff] %v5331
      %5492 = vst [vmem:[#allocation5 + $0x1188] sm:$0xff] %v5332
      %5493 = vst [vmem:[#allocation5 + $0x1190] sm:$0xff] %v5333
      %5494 = vst [vmem:[#allocation5 + $0x1198] sm:$0xff] %v5334
      %5495 = vst [vmem:[#allocation5 + $0x11a0] sm:$0xff] %v5335
      %5496 = vst [vmem:[#allocation5 + $0x11a8] sm:$0xff] %v5336
      %5497 = vst [vmem:[#allocation5 + $0x11b0] sm:$0xff] %v5337
      %5498 = vst [vmem:[#allocation5 + $0x11b8] sm:$0xff] %v5338
      %5499 = vst [vmem:[#allocation5 + $0x11c0] sm:$0xff] %v5339
      %5500 = vst [vmem:[#allocation5 + $0x11c8] sm:$0xff] %v5340
      %5501 = vst [vmem:[#allocation5 + $0x11d0] sm:$0xff] %v5341
      %5502 = vst [vmem:[#allocation5 + $0x11d8] sm:$0xff] %v5342
      %5503 = vst [vmem:[#allocation5 + $0x11e0] sm:$0xff] %v5343
      %5504 = vst [vmem:[#allocation5 + $0x11e8] sm:$0xff] %v5344
      %5505 = vst [vmem:[#allocation5 + $0x11f0] sm:$0xff] %v5345
      %5506 = vst [vmem:[#allocation5 + $0x11f8] sm:$0xff] %v5346
      %5507 = vst [vmem:[#allocation5 + $0x1200] sm:$0xff] %v5347
      %5508 = vst [vmem:[#allocation5 + $0x1208] sm:$0xff] %v5348
      %5509 = vst [vmem:[#allocation5 + $0x1210] sm:$0xff] %v5349
      %5510 = vst [vmem:[#allocation5 + $0x1218] sm:$0xff] %v5350
      %5511 = vst [vmem:[#allocation5 + $0x1220] sm:$0xff] %v5351
      %5512 = vst [vmem:[#allocation5 + $0x1228] sm:$0xff] %v5352
      %5513 = vst [vmem:[#allocation5 + $0x1230] sm:$0xff] %v5353
      %5514 = vst [vmem:[#allocation5 + $0x1238] sm:$0xff] %v5354
      %5515 = vst [vmem:[#allocation5 + $0x1240] sm:$0xff] %v5355
      %5516 = vst [vmem:[#allocation5 + $0x1248] sm:$0xff] %v5356
      %5517 = vst [vmem:[#allocation5 + $0x1250] sm:$0xff] %v5357
      %5518 = vst [vmem:[#allocation5 + $0x1258] sm:$0xff] %v5358
      %5519 = vst [vmem:[#allocation5 + $0x1260] sm:$0xff] %v5359
      %5520 = vst [vmem:[#allocation5 + $0x1268] sm:$0xff] %v5360
      %5521 = vst [vmem:[#allocation5 + $0x1270] sm:$0xff] %v5361
      %5522 = vst [vmem:[#allocation5 + $0x1278] sm:$0xff] %v5362
      %5523 = vst [vmem:[#allocation5 + $0x1280] sm:$0xff] %v5363
      %5524 = vst [vmem:[#allocation5 + $0x1288] sm:$0xff] %v5364
      %5525 = vst [vmem:[#allocation5 + $0x1290] sm:$0xff] %v5365
      %5526 = vst [vmem:[#allocation5 + $0x1298] sm:$0xff] %v5366
      %5527 = vst [vmem:[#allocation5 + $0x12a0] sm:$0xff] %v5367
      %5528 = vst [vmem:[#allocation5 + $0x12a8] sm:$0xff] %v5368
      %5529 = vst [vmem:[#allocation5 + $0x12b0] sm:$0xff] %v5369
      %5530 = vst [vmem:[#allocation5 + $0x12b8] sm:$0xff] %v5370
      %5531 = vst [vmem:[#allocation5 + $0x12c0] sm:$0xff] %v5371
      %5532 = vst [vmem:[#allocation5 + $0x12c8] sm:$0xff] %v5372
      %5533 = vst [vmem:[#allocation5 + $0x12d0] sm:$0xff] %v5373
      %5534 = vst [vmem:[#allocation5 + $0x12d8] sm:$0xff] %v5374
      %5535 = vst [vmem:[#allocation5 + $0x12e0] sm:$0xff] %v5375
      %5536 = vst [vmem:[#allocation5 + $0x12e8] sm:$0xff] %v5376
      %5537 = vst [vmem:[#allocation5 + $0x12f0] sm:$0xff] %v5377
      %5538 = vst [vmem:[#allocation5 + $0x12f8] sm:$0xff] %v5378
      %5539 = vst [vmem:[#allocation5 + $0x1300] sm:$0xff] %v5379
      %5540 = vst [vmem:[#allocation5 + $0x1308] sm:$0xff] %v5380
      %5541 = vst [vmem:[#allocation5 + $0x1310] sm:$0xff] %v5381
      %5542 = vst [vmem:[#allocation5 + $0x1318] sm:$0xff] %v5382
      %5543 = vst [vmem:[#allocation5 + $0x1320] sm:$0xff] %v5383
      %5544 = vst [vmem:[#allocation5 + $0x1328] sm:$0xff] %v5384
      %5545 = vst [vmem:[#allocation5 + $0x1330] sm:$0xff] %v5385
      %5546 = vst [vmem:[#allocation5 + $0x1338] sm:$0xff] %v5386
      %5547 = vst [vmem:[#allocation5 + $0x1340] sm:$0xff] %v5387
      %5548 = vst [vmem:[#allocation5 + $0x1348] sm:$0xff] %v5388
      %5549 = vst [vmem:[#allocation5 + $0x1350] sm:$0xff] %v5389
      %5550 = vst [vmem:[#allocation5 + $0x1358] sm:$0xff] %v5390
      %5551 = vst [vmem:[#allocation5 + $0x1360] sm:$0xff] %v5391
      %5552 = vst [vmem:[#allocation5 + $0x1368] sm:$0xff] %v5392
      %5553 = vst [vmem:[#allocation5 + $0x1370] sm:$0xff] %v5393
      %5554 = vst [vmem:[#allocation5 + $0x1378] sm:$0xff] %v5394
      %5555 = vst [vmem:[#allocation5 + $0x1380] sm:$0xff] %v5395
      %5556 = vst [vmem:[#allocation5 + $0x1388] sm:$0xff] %v5396
      %5557 = vst [vmem:[#allocation5 + $0x1390] sm:$0xff] %v5397
      %5558 = vst [vmem:[#allocation5 + $0x1398] sm:$0xff] %v5398
      %5559 = vst [vmem:[#allocation5 + $0x13a0] sm:$0xff] %v5399
      %5560 = vst [vmem:[#allocation5 + $0x13a8] sm:$0xff] %v5400
      %5561 = vst [vmem:[#allocation5 + $0x13b0] sm:$0xff] %v5401
      %5562 = vst [vmem:[#allocation5 + $0x13b8] sm:$0xff] %v5402
      %5563 = vst [vmem:[#allocation5 + $0x13c0] sm:$0xff] %v5403
      %5564 = vst [vmem:[#allocation5 + $0x13c8] sm:$0xff] %v5404
      %5565 = vst [vmem:[#allocation5 + $0x13d0] sm:$0xff] %v5405
      %5566 = vst [vmem:[#allocation5 + $0x13d8] sm:$0xff] %v5406
      %5567 = vst [vmem:[#allocation5 + $0x13e0] sm:$0xff] %v5407
      %5568 = vst [vmem:[#allocation5 + $0x13e8] sm:$0xff] %v5408
      %5569 = vst [vmem:[#allocation5 + $0x13f0] sm:$0xff] %v5409
      %5570 = vst [vmem:[#allocation5 + $0x13f8] sm:$0xff] %v5410
    $region157: #{_generator_pallas.1} parent=1 // pred_fallthru
      _
    %v5571 = vld [vmem:[#allocation5 + $0xf00] sm:$0xff]
    %v5572 = vld [vmem:[#allocation5 + $0xf08] sm:$0xff]
    %v5573 = vld [vmem:[#allocation5 + $0xf10] sm:$0xff]
    %v5574 = vld [vmem:[#allocation5 + $0xf18] sm:$0xff]
    %v5575 = vld [vmem:[#allocation5 + $0xf20] sm:$0xff]
    %v5576 = vld [vmem:[#allocation5 + $0xf28] sm:$0xff]
    %v5577 = vld [vmem:[#allocation5 + $0xf30] sm:$0xff]
    %v5578 = vld [vmem:[#allocation5 + $0xf38] sm:$0xff]
    %v5579 = vld [vmem:[#allocation5 + $0xf40] sm:$0xff]
    %v5580 = vld [vmem:[#allocation5 + $0xf48] sm:$0xff]
    %v5581 = vld [vmem:[#allocation5 + $0xf50] sm:$0xff]
    %v5582 = vld [vmem:[#allocation5 + $0xf58] sm:$0xff]
    %v5583 = vld [vmem:[#allocation5 + $0xf60] sm:$0xff]
    %v5584 = vld [vmem:[#allocation5 + $0xf68] sm:$0xff]
    %v5585 = vld [vmem:[#allocation5 + $0xf70] sm:$0xff]
    %v5586 = vld [vmem:[#allocation5 + $0xf78] sm:$0xff]
    %v5587 = vld [vmem:[#allocation5 + $0xf80] sm:$0xff]
    %v5588 = vld [vmem:[#allocation5 + $0xf88] sm:$0xff]
    %v5589 = vld [vmem:[#allocation5 + $0xf90] sm:$0xff]
    %v5590 = vld [vmem:[#allocation5 + $0xf98] sm:$0xff]
    %v5591 = vld [vmem:[#allocation5 + $0xfa0] sm:$0xff]
    %v5592 = vld [vmem:[#allocation5 + $0xfa8] sm:$0xff]
    %v5593 = vld [vmem:[#allocation5 + $0xfb0] sm:$0xff]
    %v5594 = vld [vmem:[#allocation5 + $0xfb8] sm:$0xff]
    %v5595 = vld [vmem:[#allocation5 + $0xfc0] sm:$0xff]
    %v5596 = vld [vmem:[#allocation5 + $0xfc8] sm:$0xff]
    %v5597 = vld [vmem:[#allocation5 + $0xfd0] sm:$0xff]
    %v5598 = vld [vmem:[#allocation5 + $0xfd8] sm:$0xff]
    %v5599 = vld [vmem:[#allocation5 + $0xfe0] sm:$0xff]
    %v5600 = vld [vmem:[#allocation5 + $0xfe8] sm:$0xff]
    %v5601 = vld [vmem:[#allocation5 + $0xff0] sm:$0xff]
    %v5602 = vld [vmem:[#allocation5 + $0xff8] sm:$0xff]
    %v5603 = vld [vmem:[#allocation5 + $0x1000] sm:$0xff]
    %v5604 = vld [vmem:[#allocation5 + $0x1008] sm:$0xff]
    %v5605 = vld [vmem:[#allocation5 + $0x1010] sm:$0xff]
    %v5606 = vld [vmem:[#allocation5 + $0x1018] sm:$0xff]
    %v5607 = vld [vmem:[#allocation5 + $0x1020] sm:$0xff]
    %v5608 = vld [vmem:[#allocation5 + $0x1028] sm:$0xff]
    %v5609 = vld [vmem:[#allocation5 + $0x1030] sm:$0xff]
    %v5610 = vld [vmem:[#allocation5 + $0x1038] sm:$0xff]
    %v5611 = vld [vmem:[#allocation5 + $0x1040] sm:$0xff]
    %v5612 = vld [vmem:[#allocation5 + $0x1048] sm:$0xff]
    %v5613 = vld [vmem:[#allocation5 + $0x1050] sm:$0xff]
    %v5614 = vld [vmem:[#allocation5 + $0x1058] sm:$0xff]
    %v5615 = vld [vmem:[#allocation5 + $0x1060] sm:$0xff]
    %v5616 = vld [vmem:[#allocation5 + $0x1068] sm:$0xff]
    %v5617 = vld [vmem:[#allocation5 + $0x1070] sm:$0xff]
    %v5618 = vld [vmem:[#allocation5 + $0x1078] sm:$0xff]
    %v5619 = vld [vmem:[#allocation5 + $0x1080] sm:$0xff]
    %v5620 = vld [vmem:[#allocation5 + $0x1088] sm:$0xff]
    %v5621 = vld [vmem:[#allocation5 + $0x1090] sm:$0xff]
    %v5622 = vld [vmem:[#allocation5 + $0x1098] sm:$0xff]
    %v5623 = vld [vmem:[#allocation5 + $0x10a0] sm:$0xff]
    %v5624 = vld [vmem:[#allocation5 + $0x10a8] sm:$0xff]
    %v5625 = vld [vmem:[#allocation5 + $0x10b0] sm:$0xff]
    %v5626 = vld [vmem:[#allocation5 + $0x10b8] sm:$0xff]
    %v5627 = vld [vmem:[#allocation5 + $0x10c0] sm:$0xff]
    %v5628 = vld [vmem:[#allocation5 + $0x10c8] sm:$0xff]
    %v5629 = vld [vmem:[#allocation5 + $0x10d0] sm:$0xff]
    %v5630 = vld [vmem:[#allocation5 + $0x10d8] sm:$0xff]
    %v5631 = vld [vmem:[#allocation5 + $0x10e0] sm:$0xff]
    %v5632 = vld [vmem:[#allocation5 + $0x10e8] sm:$0xff]
    %v5633 = vld [vmem:[#allocation5 + $0x10f0] sm:$0xff]
    %v5634 = vld [vmem:[#allocation5 + $0x10f8] sm:$0xff]
    %v5635 = vld [vmem:[#allocation5 + $0x1100] sm:$0xff]
    %v5636 = vld [vmem:[#allocation5 + $0x1108] sm:$0xff]
    %v5637 = vld [vmem:[#allocation5 + $0x1110] sm:$0xff]
    %v5638 = vld [vmem:[#allocation5 + $0x1118] sm:$0xff]
    %v5639 = vld [vmem:[#allocation5 + $0x1120] sm:$0xff]
    %v5640 = vld [vmem:[#allocation5 + $0x1128] sm:$0xff]
    %v5641 = vld [vmem:[#allocation5 + $0x1130] sm:$0xff]
    %v5642 = vld [vmem:[#allocation5 + $0x1138] sm:$0xff]
    %v5643 = vld [vmem:[#allocation5 + $0x1140] sm:$0xff]
    %v5644 = vld [vmem:[#allocation5 + $0x1148] sm:$0xff]
    %v5645 = vld [vmem:[#allocation5 + $0x1150] sm:$0xff]
    %v5646 = vld [vmem:[#allocation5 + $0x1158] sm:$0xff]
    %v5647 = vld [vmem:[#allocation5 + $0x1160] sm:$0xff]
    %v5648 = vld [vmem:[#allocation5 + $0x1168] sm:$0xff]
    %v5649 = vld [vmem:[#allocation5 + $0x1170] sm:$0xff]
    %v5650 = vld [vmem:[#allocation5 + $0x1178] sm:$0xff]
    %v5651 = vld [vmem:[#allocation5 + $0x1180] sm:$0xff]
    %v5652 = vld [vmem:[#allocation5 + $0x1188] sm:$0xff]
    %v5653 = vld [vmem:[#allocation5 + $0x1190] sm:$0xff]
    %v5654 = vld [vmem:[#allocation5 + $0x1198] sm:$0xff]
    %v5655 = vld [vmem:[#allocation5 + $0x11a0] sm:$0xff]
    %v5656 = vld [vmem:[#allocation5 + $0x11a8] sm:$0xff]
    %v5657 = vld [vmem:[#allocation5 + $0x11b0] sm:$0xff]
    %v5658 = vld [vmem:[#allocation5 + $0x11b8] sm:$0xff]
    %v5659 = vld [vmem:[#allocation5 + $0x11c0] sm:$0xff]
    %v5660 = vld [vmem:[#allocation5 + $0x11c8] sm:$0xff]
    %v5661 = vld [vmem:[#allocation5 + $0x11d0] sm:$0xff]
    %v5662 = vld [vmem:[#allocation5 + $0x11d8] sm:$0xff]
    %v5663 = vld [vmem:[#allocation5 + $0x11e0] sm:$0xff]
    %v5664 = vld [vmem:[#allocation5 + $0x11e8] sm:$0xff]
    %v5665 = vld [vmem:[#allocation5 + $0x11f0] sm:$0xff]
    %v5666 = vld [vmem:[#allocation5 + $0x11f8] sm:$0xff]
    %v5667 = vld [vmem:[#allocation5 + $0x1200] sm:$0xff]
    %v5668 = vld [vmem:[#allocation5 + $0x1208] sm:$0xff]
    %v5669 = vld [vmem:[#allocation5 + $0x1210] sm:$0xff]
    %v5670 = vld [vmem:[#allocation5 + $0x1218] sm:$0xff]
    %v5671 = vld [vmem:[#allocation5 + $0x1220] sm:$0xff]
    %v5672 = vld [vmem:[#allocation5 + $0x1228] sm:$0xff]
    %v5673 = vld [vmem:[#allocation5 + $0x1230] sm:$0xff]
    %v5674 = vld [vmem:[#allocation5 + $0x1238] sm:$0xff]
    %v5675 = vld [vmem:[#allocation5 + $0x1240] sm:$0xff]
    %v5676 = vld [vmem:[#allocation5 + $0x1248] sm:$0xff]
    %v5677 = vld [vmem:[#allocation5 + $0x1250] sm:$0xff]
    %v5678 = vld [vmem:[#allocation5 + $0x1258] sm:$0xff]
    %v5679 = vld [vmem:[#allocation5 + $0x1260] sm:$0xff]
    %v5680 = vld [vmem:[#allocation5 + $0x1268] sm:$0xff]
    %v5681 = vld [vmem:[#allocation5 + $0x1270] sm:$0xff]
    %v5682 = vld [vmem:[#allocation5 + $0x1278] sm:$0xff]
    %v5683 = vld [vmem:[#allocation5 + $0x1280] sm:$0xff]
    %v5684 = vld [vmem:[#allocation5 + $0x1288] sm:$0xff]
    %v5685 = vld [vmem:[#allocation5 + $0x1290] sm:$0xff]
    %v5686 = vld [vmem:[#allocation5 + $0x1298] sm:$0xff]
    %v5687 = vld [vmem:[#allocation5 + $0x12a0] sm:$0xff]
    %v5688 = vld [vmem:[#allocation5 + $0x12a8] sm:$0xff]
    %v5689 = vld [vmem:[#allocation5 + $0x12b0] sm:$0xff]
    %v5690 = vld [vmem:[#allocation5 + $0x12b8] sm:$0xff]
    %v5691 = vld [vmem:[#allocation5 + $0x12c0] sm:$0xff]
    %v5692 = vld [vmem:[#allocation5 + $0x12c8] sm:$0xff]
    %v5693 = vld [vmem:[#allocation5 + $0x12d0] sm:$0xff]
    %v5694 = vld [vmem:[#allocation5 + $0x12d8] sm:$0xff]
    %v5695 = vld [vmem:[#allocation5 + $0x12e0] sm:$0xff]
    %v5696 = vld [vmem:[#allocation5 + $0x12e8] sm:$0xff]
    %v5697 = vld [vmem:[#allocation5 + $0x12f0] sm:$0xff]
    %v5698 = vld [vmem:[#allocation5 + $0x12f8] sm:$0xff]
    %v5699 = vld [vmem:[#allocation5 + $0x1300] sm:$0xff]
    %v5700 = vld [vmem:[#allocation5 + $0x1308] sm:$0xff]
    %v5701 = vld [vmem:[#allocation5 + $0x1310] sm:$0xff]
    %v5702 = vld [vmem:[#allocation5 + $0x1318] sm:$0xff]
    %v5703 = vld [vmem:[#allocation5 + $0x1320] sm:$0xff]
    %v5704 = vld [vmem:[#allocation5 + $0x1328] sm:$0xff]
    %v5705 = vld [vmem:[#allocation5 + $0x1330] sm:$0xff]
    %v5706 = vld [vmem:[#allocation5 + $0x1338] sm:$0xff]
    %v5707 = vld [vmem:[#allocation5 + $0x1340] sm:$0xff]
    %v5708 = vld [vmem:[#allocation5 + $0x1348] sm:$0xff]
    %v5709 = vld [vmem:[#allocation5 + $0x1350] sm:$0xff]
    %v5710 = vld [vmem:[#allocation5 + $0x1358] sm:$0xff]
    %v5711 = vld [vmem:[#allocation5 + $0x1360] sm:$0xff]
    %v5712 = vld [vmem:[#allocation5 + $0x1368] sm:$0xff]
    %v5713 = vld [vmem:[#allocation5 + $0x1370] sm:$0xff]
    %v5714 = vld [vmem:[#allocation5 + $0x1378] sm:$0xff]
    %v5715 = vld [vmem:[#allocation5 + $0x1380] sm:$0xff]
    %v5716 = vld [vmem:[#allocation5 + $0x1388] sm:$0xff]
    %v5717 = vld [vmem:[#allocation5 + $0x1390] sm:$0xff]
    %v5718 = vld [vmem:[#allocation5 + $0x1398] sm:$0xff]
    %v5719 = vld [vmem:[#allocation5 + $0x13a0] sm:$0xff]
    %v5720 = vld [vmem:[#allocation5 + $0x13a8] sm:$0xff]
    %v5721 = vld [vmem:[#allocation5 + $0x13b0] sm:$0xff]
    %v5722 = vld [vmem:[#allocation5 + $0x13b8] sm:$0xff]
    %v5723 = vld [vmem:[#allocation5 + $0x13c0] sm:$0xff]
    %v5724 = vld [vmem:[#allocation5 + $0x13c8] sm:$0xff]
    %v5725 = vld [vmem:[#allocation5 + $0x13d0] sm:$0xff]
    %v5726 = vld [vmem:[#allocation5 + $0x13d8] sm:$0xff]
    %v5727 = vld [vmem:[#allocation5 + $0x13e0] sm:$0xff]
    %v5728 = vld [vmem:[#allocation5 + $0x13e8] sm:$0xff]
    %v5729 = vld [vmem:[#allocation5 + $0x13f0] sm:$0xff]
    %v5730 = vld [vmem:[#allocation5 + $0x13f8] sm:$0xff]
    %5731 = vmatprep.subr.bf16.mxu0 %v5572
    %5732 = vmatpush1.bf16.msra.mxu0 %v5571
    %5733 = vmatprep.subr.bf16.mxu0 %v5582
    %5734 = vmatpush1.bf16.msra.mxu0 %v5581
    %5735 = vmatprep.subr.bf16.mxu0 %v5592
    %5736 = vmatpush1.bf16.msra.mxu0 %v5591
    %5737 = vmatprep.subr.bf16.mxu0 %v5602
    %5738 = vmatpush1.bf16.msra.mxu0 %v5601
    %5739 = vmatprep.subr.bf16.mxu0 %v5612
    %5740 = vmatpush1.bf16.msra.mxu0 %v5611
    %5741 = vmatprep.subr.bf16.mxu0 %v5622
    %5742 = vmatpush1.bf16.msra.mxu0 %v5621
    %5743 = vmatprep.subr.bf16.mxu0 %v5632
    %5744 = vmatpush1.bf16.msra.mxu0 %v5631
    %5745 = vmatprep.subr.bf16.mxu0 %v5642
    %5746 = vmatpush1.bf16.msra.mxu0 %v5641
    %5747 = vmatprep.subr.bf16.mxu0 %v5652
    %5748 = vmatpush1.bf16.msra.mxu0 %v5651
    %5749 = vmatprep.subr.bf16.mxu0 %v5662
    %5750 = vmatpush1.bf16.msra.mxu0 %v5661
    %5751 = vmatprep.subr.bf16.mxu0 %v5672
    %5752 = vmatpush1.bf16.msra.mxu0 %v5671
    %5753 = vmatprep.subr.bf16.mxu0 %v5682
    %5754 = vmatpush1.bf16.msra.mxu0 %v5681
    %5755 = vmatprep.subr.bf16.mxu0 %v5692
    %5756 = vmatpush1.bf16.msra.mxu0 %v5691
    %5757 = vmatprep.subr.bf16.mxu0 %v5702
    %5758 = vmatpush1.bf16.msra.mxu0 %v5701
    %5759 = vmatprep.subr.bf16.mxu0 %v5712
    %5760 = vmatpush1.bf16.msra.mxu0 %v5711
    %5761 = vmatprep.subr.bf16.mxu0 %v5722
    %5762 = vmatpush1.bf16.msra.mxu0 %v5721
    %5763 = vmatprep.mubr.bf16.mxu0 %v2833
    %5764 = vmatmul.mubr.bf16.gmra.mrb[0].mxu0 %v2832
    %v5765 = vpop.f32.mrb[0].mxu0
    %v5766 = vadd.f32 0.0, %v5765
    %v5767 = vpop.f32.mrb[0].mxu0
    %v5768 = vadd.f32 0.0, %v5767
    %v5769 = vpop.f32.mrb[0].mxu0
    %v5770 = vpop.f32.mrb[0].mxu0
    %5771 = vdwg.mxu0
    %5772 = vmatprep.subr.bf16.mxu0 %v5574
    %5773 = vmatpush1.bf16.msra.mxu0 %v5573
    %5774 = vmatprep.subr.bf16.mxu0 %v5584
    %5775 = vmatpush1.bf16.msra.mxu0 %v5583
    %5776 = vmatprep.subr.bf16.mxu0 %v5594
    %5777 = vmatpush1.bf16.msra.mxu0 %v5593
    %5778 = vmatprep.subr.bf16.mxu0 %v5604
    %5779 = vmatpush1.bf16.msra.mxu0 %v5603
    %5780 = vmatprep.subr.bf16.mxu0 %v5614
    %5781 = vmatpush1.bf16.msra.mxu0 %v5613
    %5782 = vmatprep.subr.bf16.mxu0 %v5624
    %5783 = vmatpush1.bf16.msra.mxu0 %v5623
    %5784 = vmatprep.subr.bf16.mxu0 %v5634
    %5785 = vmatpush1.bf16.msra.mxu0 %v5633
    %5786 = vmatprep.subr.bf16.mxu0 %v5644
    %5787 = vmatpush1.bf16.msra.mxu0 %v5643
    %5788 = vmatprep.subr.bf16.mxu0 %v5654
    %5789 = vmatpush1.bf16.msra.mxu0 %v5653
    %5790 = vmatprep.subr.bf16.mxu0 %v5664
    %5791 = vmatpush1.bf16.msra.mxu0 %v5663
    %5792 = vmatprep.subr.bf16.mxu0 %v5674
    %5793 = vmatpush1.bf16.msra.mxu0 %v5673
    %5794 = vmatprep.subr.bf16.mxu0 %v5684
    %5795 = vmatpush1.bf16.msra.mxu0 %v5683
    %5796 = vmatprep.subr.bf16.mxu0 %v5694
    %5797 = vmatpush1.bf16.msra.mxu0 %v5693
    %5798 = vmatprep.subr.bf16.mxu0 %v5704
    %5799 = vmatpush1.bf16.msra.mxu0 %v5703
    %5800 = vmatprep.subr.bf16.mxu0 %v5714
    %5801 = vmatpush1.bf16.msra.mxu0 %v5713
    %5802 = vmatprep.subr.bf16.mxu0 %v5724
    %5803 = vmatpush1.bf16.msra.mxu0 %v5723
    %5804 = vmatprep.mubr.bf16.mxu0 %v2833
    %5805 = vmatmul.mubr.bf16.gmra.mrb[0].mxu0 %v2832
    %v5806 = vpop.f32.mrb[0].mxu0
    %v5807 = vadd.f32 0.0, %v5806
    %v5808 = vpop.f32.mrb[0].mxu0
    %v5809 = vadd.f32 0.0, %v5808
    %v5810 = vpop.f32.mrb[0].mxu0
    %v5811 = vpop.f32.mrb[0].mxu0
    %5812 = vdwg.mxu0
    %5813 = vmatprep.subr.bf16.mxu0 %v5576
    %5814 = vmatpush1.bf16.msra.mxu0 %v5575
    %5815 = vmatprep.subr.bf16.mxu0 %v5586
    %5816 = vmatpush1.bf16.msra.mxu0 %v5585
    %5817 = vmatprep.subr.bf16.mxu0 %v5596
    %5818 = vmatpush1.bf16.msra.mxu0 %v5595
    %5819 = vmatprep.subr.bf16.mxu0 %v5606
    %5820 = vmatpush1.bf16.msra.mxu0 %v5605
    %5821 = vmatprep.subr.bf16.mxu0 %v5616
    %5822 = vmatpush1.bf16.msra.mxu0 %v5615
    %5823 = vmatprep.subr.bf16.mxu0 %v5626
    %5824 = vmatpush1.bf16.msra.mxu0 %v5625
    %5825 = vmatprep.subr.bf16.mxu0 %v5636
    %5826 = vmatpush1.bf16.msra.mxu0 %v5635
    %5827 = vmatprep.subr.bf16.mxu0 %v5646
    %5828 = vmatpush1.bf16.msra.mxu0 %v5645
    %5829 = vmatprep.subr.bf16.mxu0 %v5656
    %5830 = vmatpush1.bf16.msra.mxu0 %v5655
    %5831 = vmatprep.subr.bf16.mxu0 %v5666
    %5832 = vmatpush1.bf16.msra.mxu0 %v5665
    %5833 = vmatprep.subr.bf16.mxu0 %v5676
    %5834 = vmatpush1.bf16.msra.mxu0 %v5675
    %5835 = vmatprep.subr.bf16.mxu0 %v5686
    %5836 = vmatpush1.bf16.msra.mxu0 %v5685
    %5837 = vmatprep.subr.bf16.mxu0 %v5696
    %5838 = vmatpush1.bf16.msra.mxu0 %v5695
    %5839 = vmatprep.subr.bf16.mxu0 %v5706
    %5840 = vmatpush1.bf16.msra.mxu0 %v5705
    %5841 = vmatprep.subr.bf16.mxu0 %v5716
    %5842 = vmatpush1.bf16.msra.mxu0 %v5715
    %5843 = vmatprep.subr.bf16.mxu0 %v5726
    %5844 = vmatpush1.bf16.msra.mxu0 %v5725
    %5845 = vmatprep.mubr.bf16.mxu0 %v2833
    %5846 = vmatmul.mubr.bf16.gmra.mrb[0].mxu0 %v2832
    %v5847 = vpop.f32.mrb[0].mxu0
    %v5848 = vadd.f32 0.0, %v5847
    %v5849 = vpop.f32.mrb[0].mxu0
    %v5850 = vadd.f32 0.0, %v5849
    %v5851 = vpop.f32.mrb[0].mxu0
    %v5852 = vpop.f32.mrb[0].mxu0
    %5853 = vdwg.mxu0
    %5854 = vmatprep.subr.bf16.mxu0 %v5578
    %5855 = vmatpush1.bf16.msra.mxu0 %v5577
    %5856 = vmatprep.subr.bf16.mxu0 %v5588
    %5857 = vmatpush1.bf16.msra.mxu0 %v5587
    %5858 = vmatprep.subr.bf16.mxu0 %v5598
    %5859 = vmatpush1.bf16.msra.mxu0 %v5597
    %5860 = vmatprep.subr.bf16.mxu0 %v5608
    %5861 = vmatpush1.bf16.msra.mxu0 %v5607
    %5862 = vmatprep.subr.bf16.mxu0 %v5618
    %5863 = vmatpush1.bf16.msra.mxu0 %v5617
    %5864 = vmatprep.subr.bf16.mxu0 %v5628
    %5865 = vmatpush1.bf16.msra.mxu0 %v5627
    %5866 = vmatprep.subr.bf16.mxu0 %v5638
    %5867 = vmatpush1.bf16.msra.mxu0 %v5637
    %5868 = vmatprep.subr.bf16.mxu0 %v5648
    %5869 = vmatpush1.bf16.msra.mxu0 %v5647
    %5870 = vmatprep.subr.bf16.mxu0 %v5658
    %5871 = vmatpush1.bf16.msra.mxu0 %v5657
    %5872 = vmatprep.subr.bf16.mxu0 %v5668
    %5873 = vmatpush1.bf16.msra.mxu0 %v5667
    %5874 = vmatprep.subr.bf16.mxu0 %v5678
    %5875 = vmatpush1.bf16.msra.mxu0 %v5677
    %5876 = vmatprep.subr.bf16.mxu0 %v5688
    %5877 = vmatpush1.bf16.msra.mxu0 %v5687
    %5878 = vmatprep.subr.bf16.mxu0 %v5698
    %5879 = vmatpush1.bf16.msra.mxu0 %v5697
    %5880 = vmatprep.subr.bf16.mxu0 %v5708
    %5881 = vmatpush1.bf16.msra.mxu0 %v5707
    %5882 = vmatprep.subr.bf16.mxu0 %v5718
    %5883 = vmatpush1.bf16.msra.mxu0 %v5717
    %5884 = vmatprep.subr.bf16.mxu0 %v5728
    %5885 = vmatpush1.bf16.msra.mxu0 %v5727
    %5886 = vmatprep.mubr.bf16.mxu0 %v2833
    %5887 = vmatmul.mubr.bf16.gmra.mrb[0].mxu0 %v2832
    %v5888 = vpop.f32.mrb[0].mxu0
    %v5889 = vadd.f32 0.0, %v5888
    %v5890 = vpop.f32.mrb[0].mxu0
    %v5891 = vadd.f32 0.0, %v5890
    %v5892 = vpop.f32.mrb[0].mxu0
    %v5893 = vpop.f32.mrb[0].mxu0
    %5894 = vdwg.mxu0
    %5895 = vmatprep.subr.bf16.mxu0 %v5580
    %5896 = vmatpush1.bf16.msra.mxu0 %v5579
    %5897 = vmatprep.subr.bf16.mxu0 %v5590
    %5898 = vmatpush1.bf16.msra.mxu0 %v5589
    %5899 = vmatprep.subr.bf16.mxu0 %v5600
    %5900 = vmatpush1.bf16.msra.mxu0 %v5599
    %5901 = vmatprep.subr.bf16.mxu0 %v5610
    %5902 = vmatpush1.bf16.msra.mxu0 %v5609
    %5903 = vmatprep.subr.bf16.mxu0 %v5620
    %5904 = vmatpush1.bf16.msra.mxu0 %v5619
    %5905 = vmatprep.subr.bf16.mxu0 %v5630
    %5906 = vmatpush1.bf16.msra.mxu0 %v5629
    %5907 = vmatprep.subr.bf16.mxu0 %v5640
    %5908 = vmatpush1.bf16.msra.mxu0 %v5639
    %5909 = vmatprep.subr.bf16.mxu0 %v5650
    %5910 = vmatpush1.bf16.msra.mxu0 %v5649
    %5911 = vmatprep.subr.bf16.mxu0 %v5660
    %5912 = vmatpush1.bf16.msra.mxu0 %v5659
    %5913 = vmatprep.subr.bf16.mxu0 %v5670
    %5914 = vmatpush1.bf16.msra.mxu0 %v5669
    %5915 = vmatprep.subr.bf16.mxu0 %v5680
    %5916 = vmatpush1.bf16.msra.mxu0 %v5679
    %5917 = vmatprep.subr.bf16.mxu0 %v5690
    %5918 = vmatpush1.bf16.msra.mxu0 %v5689
    %5919 = vmatprep.subr.bf16.mxu0 %v5700
    %5920 = vmatpush1.bf16.msra.mxu0 %v5699
    %5921 = vmatprep.subr.bf16.mxu0 %v5710
    %5922 = vmatpush1.bf16.msra.mxu0 %v5709
    %5923 = vmatprep.subr.bf16.mxu0 %v5720
    %5924 = vmatpush1.bf16.msra.mxu0 %v5719
    %5925 = vmatprep.subr.bf16.mxu0 %v5730
    %5926 = vmatpush1.bf16.msra.mxu0 %v5729
    %5927 = vmatprep.mubr.bf16.mxu0 %v2833
    %5928 = vmatmul.mubr.bf16.gmra.mrb[0].mxu0 %v2832
    %v5929 = vpop.f32.mrb[0].mxu0
    %v5930 = vadd.f32 0.0, %v5929
    %v5931 = vpop.f32.mrb[0].mxu0
    %v5932 = vadd.f32 0.0, %v5931
    %v5933 = vpop.f32.mrb[0].mxu0
    %v5934 = vpop.f32.mrb[0].mxu0
    %5935 = vdwg.mxu0
    %v5936 = vadd.f32 %v5153, %v5766
    %v5937 = vadd.f32 %v5154, %v5768
    %v5938 = vadd.f32 %v5155, %v5807
    %v5939 = vadd.f32 %v5156, %v5809
    %v5940 = vadd.f32 %v5157, %v5848
    %v5941 = vadd.f32 %v5158, %v5850
    %v5942 = vadd.f32 %v5159, %v5889
    %v5943 = vadd.f32 %v5160, %v5891
    %v5944 = vadd.f32 %v5161, %v5930
    %v5945 = vadd.f32 %v5162, %v5932
    %v5946 = vld [vmem:[#allocation27] sm:$0xff]
    %v5947 = vld [vmem:[#allocation27 + $0x8] sm:$0x3]
    %v5950 = vlaneseq
    %v5951 = vshrl.u32 %v5950, 7
    %v5952 = vsub.s32 0, %v5951
    %v5953 = vrot.slane %v5946, %v5952
    %v5954 = vlaneseq
    %v5955 = vshrl.u32 %v5954, 7
    %v5956 = vsub.s32 1, %v5955
    %v5957 = vrot.slane %v5946, %v5956
    %v5958 = vlaneseq
    %v5959 = vshrl.u32 %v5958, 7
    %v5960 = vsub.s32 2, %v5959
    %v5961 = vrot.slane %v5946, %v5960
    %v5962 = vlaneseq
    %v5963 = vshrl.u32 %v5962, 7
    %v5964 = vsub.s32 3, %v5963
    %v5965 = vrot.slane %v5946, %v5964
    %v5966 = vlaneseq
    %v5967 = vshrl.u32 %v5966, 7
    %v5968 = vsub.s32 4, %v5967
    %v5969 = vrot.slane %v5946, %v5968
    %v5970 = vlaneseq
    %v5971 = vshrl.u32 %v5970, 7
    %v5972 = vsub.s32 5, %v5971
    %v5973 = vrot.slane %v5946, %v5972
    %v5974 = vlaneseq
    %v5975 = vshrl.u32 %v5974, 7
    %v5976 = vsub.s32 6, %v5975
    %v5977 = vrot.slane %v5946, %v5976
    %v5978 = vlaneseq
    %v5979 = vshrl.u32 %v5978, 7
    %v5980 = vsub.s32 7, %v5979
    %v5981 = vrot.slane %v5946, %v5980
    %v5982 = vlaneseq
    %v5983 = vshrl.u32 %v5982, 7
    %v5984 = vsub.s32 0, %v5983
    %v5985 = vrot.slane %v5947, %v5984
    %v5986 = vlaneseq
    %v5987 = vshrl.u32 %v5986, 7
    %v5988 = vsub.s32 1, %v5987
    %v5989 = vrot.slane %v5947, %v5988
    %v6000 = vmul.f32 %v5936, %v5953
    %v6001 = vmul.f32 %v5937, %v5957
    %v6002 = vmul.f32 %v5938, %v5961
    %v6003 = vmul.f32 %v5939, %v5965
    %v6004 = vmul.f32 %v5940, %v5969
    %v6005 = vmul.f32 %v5941, %v5973
    %v6006 = vmul.f32 %v5942, %v5977
    %v6007 = vmul.f32 %v5943, %v5981
    %v6008 = vmul.f32 %v5944, %v5985
    %v6009 = vmul.f32 %v5945, %v5989
    %v6010 = vld [vmem:[#allocation28] sm:$0xff]
    %v6011 = vld [vmem:[#allocation28 + $0x8] sm:$0x3]
    %v6014 = vlaneseq
    %v6015 = vshrl.u32 %v6014, 7
    %v6016 = vsub.s32 0, %v6015
    %v6017 = vrot.slane %v6010, %v6016
    %v6018 = vlaneseq
    %v6019 = vshrl.u32 %v6018, 7
    %v6020 = vsub.s32 1, %v6019
    %v6021 = vrot.slane %v6010, %v6020
    %v6022 = vlaneseq
    %v6023 = vshrl.u32 %v6022, 7
    %v6024 = vsub.s32 2, %v6023
    %v6025 = vrot.slane %v6010, %v6024
    %v6026 = vlaneseq
    %v6027 = vshrl.u32 %v6026, 7
    %v6028 = vsub.s32 3, %v6027
    %v6029 = vrot.slane %v6010, %v6028
    %v6030 = vlaneseq
    %v6031 = vshrl.u32 %v6030, 7
    %v6032 = vsub.s32 4, %v6031
    %v6033 = vrot.slane %v6010, %v6032
    %v6034 = vlaneseq
    %v6035 = vshrl.u32 %v6034, 7
    %v6036 = vsub.s32 5, %v6035
    %v6037 = vrot.slane %v6010, %v6036
    %v6038 = vlaneseq
    %v6039 = vshrl.u32 %v6038, 7
    %v6040 = vsub.s32 6, %v6039
    %v6041 = vrot.slane %v6010, %v6040
    %v6042 = vlaneseq
    %v6043 = vshrl.u32 %v6042, 7
    %v6044 = vsub.s32 7, %v6043
    %v6045 = vrot.slane %v6010, %v6044
    %v6046 = vlaneseq
    %v6047 = vshrl.u32 %v6046, 7
    %v6048 = vsub.s32 0, %v6047
    %v6049 = vrot.slane %v6011, %v6048
    %v6050 = vlaneseq
    %v6051 = vshrl.u32 %v6050, 7
    %v6052 = vsub.s32 1, %v6051
    %v6053 = vrot.slane %v6011, %v6052
    %v6064 = vadd.f32 %v6000, %v6017
    %v6065 = vadd.f32 %v6001, %v6021
    %v6066 = vadd.f32 %v6002, %v6025
    %v6067 = vadd.f32 %v6003, %v6029
    %v6068 = vadd.f32 %v6004, %v6033
    %v6069 = vadd.f32 %v6005, %v6037
    %v6070 = vadd.f32 %v6006, %v6041
    %v6071 = vadd.f32 %v6007, %v6045
    %v6072 = vadd.f32 %v6008, %v6049
    %v6073 = vadd.f32 %v6009, %v6053
    %v6074 = vtanh.pop %v6064
    %v6075 = vtanh.pop %v6065
    %v6076 = vtanh.pop %v6066
    %v6077 = vtanh.pop %v6067
    %v6078 = vtanh.pop %v6068
    %v6079 = vtanh.pop %v6069
    %v6080 = vtanh.pop %v6070
    %v6081 = vtanh.pop %v6071
    %v6082 = vtanh.pop %v6072
    %v6083 = vtanh.pop %v6073
    %6084 = vst [vmem:[#allocation30] sm:$0xff] %v6074
    %6085 = vst [vmem:[#allocation30 + $0x8] sm:$0xff] %v6075
    %6086 = vst [vmem:[#allocation30 + $0x10] sm:$0xff] %v6076
    %6087 = vst [vmem:[#allocation30 + $0x18] sm:$0xff] %v6077
    %6088 = vst [vmem:[#allocation30 + $0x20] sm:$0xff] %v6078
    %6089 = vst [vmem:[#allocation30 + $0x28] sm:$0xff] %v6079
    %6090 = vst [vmem:[#allocation30 + $0x30] sm:$0xff] %v6080
    %6091 = vst [vmem:[#allocation30 + $0x38] sm:$0xff] %v6081
    %6092 = vst [vmem:[#allocation30 + $0x40] sm:$0xff] %v6082
    %6093 = vst [vmem:[#allocation30 + $0x48] sm:$0xff] %v6083
    // Predicated region
    $region158: #{_generator_pallas.1} parent=1 // pred_check
      _
    $region159: #{_generator_pallas.1} parent=1 // pred_check_branch
      %6095 = sbr.rel (0) target = $region161
    $region160: #{_generator_pallas.1} parent=1 // pred_region
      %s6097 = ssub.s32 1280, 1280
      %6098 = vsyncadd [#allocation9], %s6097
      %s6100 = sshll.u32 [#allocation30], 4
      %s6101 = int_to_ptr.vmem [resolvable:$true] %s6100
      %6103 = dma.vmem_to_hbm [thread:$0]  %s6101, 1280, %s16, [#allocation9]
    $region161: #{_generator_pallas.1} parent=1 // pred_fallthru
      _
    // Predicated region
    $region162: #{_generator_pallas.1} parent=1 // pred_check
      _
    $region163: #{_generator_pallas.1} parent=1 // pred_check_branch
      %6105 = sbr.rel (0) target = $region165
    $region164: #{_generator_pallas.1} parent=1 // pred_region
      %6106 = dma.done [#allocation9], 1280
    $region165: #{_generator_pallas.1} parent=1 // pred_fallthru
      _
    %6107 = vsyncpa [#allocation8], 1
    %6108 = vsyncpa [#allocation11], 1
    %6109 = vsyncpa [#allocation14], 1
    %6110 = vsyncpa [#allocation17], 1
    %6111 = vsyncpa [#allocation20], 1
    %6112 = vsyncpa [#allocation23], 1
    %6113 = vsyncpa [#allocation26], 1
    %6114 = vsyncpa [#allocation29], 1
    %6115 = vsyncpa [#allocation9], 1
  %6116 = vsyncmov [#allocation6]
  %s6117 = vpop.sfrf %6116
  %p6118 = scmp.eq.s32.totalorder %s6117, 0
  %p6119 = pneg %p6118
  %6121 = shalt.err (%p6119)
  %s6122 = scalar_lea.sflag [#allocation6], 1
  %6123 = vsyncmov %s6122
  %s6124 = vpop.sfrf %6123
  %p6125 = scmp.eq.s32.totalorder %s6124, 0
  %p6126 = pneg %p6125
  %6128 = shalt.err (%p6126)
  %s6129 = scalar_lea.sflag [#allocation6], 2
  %6130 = vsyncmov %s6129
  %s6131 = vpop.sfrf %6130
  %p6132 = scmp.eq.s32.totalorder %s6131, 0
  %p6133 = pneg %p6132
  %6135 = shalt.err (%p6133)
  %s6136 = scalar_lea.sflag [#allocation6], 3
  %6137 = vsyncmov %s6136
  %s6138 = vpop.sfrf %6137
  %p6139 = scmp.eq.s32.totalorder %s6138, 0
  %p6140 = pneg %p6139
  %6142 = shalt.err (%p6140)
  %s6143 = scalar_lea.sflag [#allocation6], 4
  %6144 = vsyncmov %s6143
  %s6145 = vpop.sfrf %6144
  %p6146 = scmp.eq.s32.totalorder %s6145, 0
  %p6147 = pneg %p6146
  %6149 = shalt.err (%p6147)

</llo_original>
